<compile_context>
chip_gen: v7x
topology: tpu7x:2x2x1
jax: 0.10.0
libtpu: 0.0.40
codegen_flags: <defaults>
</compile_context>

<pallas_src>
import jax
import jax.numpy as jnp
from jax import lax
from jax.experimental import pallas as pl
from jax.experimental.pallas import tpu as pltpu

C_MID = 256    # conv1 output channels (== split point of conv2 output)
C_OUT2 = 512   # conv2 output channels
BN_EPS = 1e-5
MAX_TILE_ROWS = 1024          # cap on tm = tile_h * W  (VMEM-safe on v5e/v6e/v7x)
VMEM_LIMIT = 48 * 1024 * 1024


def _pick_tile_h(h, w, max_rows=MAX_TILE_ROWS):
    """Largest divisor of H with tile_h*W <= max_rows; prefer tm multiple of 8."""
    best, best_aligned = 1, None
    for th in range(1, h + 1):
        if h % th == 0 and th * w <= max_rows:
            best = th
            if (th * w) % 8 == 0:
                best_aligned = th
    return best_aligned if best_aligned is not None else best
    # TODO(synk): ragged (cdiv) last tile for H with no convenient divisor is not
    # implemented; tile_h falls back to a small divisor in that case.


def _im2col_9tap(slab, t, w_img, c):
    """slab: (t+2, w+2, c).  Returns (t*w_img, 9*c) im2col (ky-major, kx, then c),
    matching weight.reshape(9*c, cout) for HWIO weights."""
    # hoist the (sublane-misaligned) kx shift: 3 shifted slabs, then cheap leading-axis
    # ky slices inside the loop.
    kx_slabs = [slab[:, kx:kx + w_img, :] for kx in range(3)]      # each (t+2, w, c)
    taps = []
    for ky in range(3):
        for kx in range(3):
            taps.append(kx_slabs[kx][ky:ky + t].reshape(t * w_img, c))
    return jnp.concatenate(taps, axis=1), taps


def _conv1_stats_kernel(xm_ref, xr1_ref, xr2_ref, w1_ref, b1_ref,
                        y1_ref, s1_ref, s2_ref):
    # xm_ref : (1, T, W+2, Cin)   main row-tile of spatially padded x
    # xr1/xr2: (1, 1, W+2, Cin)   the two halo rows below the tile (padded x)
    t = xm_ref.shape[1]
    wp2 = xm_ref.shape[2]
    w_img = wp2 - 2
    cin = xm_ref.shape[3]
    c_mid = w1_ref.shape[1]
    tm = t * w_img

    slab = jnp.concatenate([xm_ref[0], xr1_ref[0], xr2_ref[0]], axis=0)  # (T+2, W+2, Cin)
    lhs, _ = _im2col_9tap(slab, t, w_img, cin)                           # (TM, 9*Cin) f32

    # single matmul, K = 9*Cin (conv1 is tiny; dominated by the y1 write DMA)
    y1 = jnp.dot(lhs, w1_ref[...], preferred_element_type=jnp.float32) + b1_ref[...]

    # single-pass BN statistics (f32, before the bf16 store)
    s1_ref[...] = jnp.sum(y1, axis=0).reshape(1, 1, 1, c_mid)
    s2_ref[...] = jnp.sum(y1 * y1, axis=0).reshape(1, 1, 1, c_mid)

    # store y1 as bf16, already W-padded with zero border columns (no wrapper pad)
    y1_tile = y1.reshape(t, w_img, c_mid).astype(jnp.bfloat16)
    zcol = jnp.zeros((t, 1, c_mid), jnp.bfloat16)
    y1_ref[...] = jnp.concatenate([zcol, y1_tile, zcol], axis=1).reshape(1, t, wp2, c_mid)


def _conv2_fuse_kernel(yt_ref, ym_ref, yb_ref, w2_ref, b2_ref,
                       scale_ref, shift_ref, out_ref):
    # yt_ref : (1, 1, W+2, C_MID)   halo row above (index_map clamped at row 0)
    # ym_ref : (1, T, W+2, C_MID)   main row-tile of W-padded bf16 y1
    # yb_ref : (1, 1, W+2, C_MID)   halo row below (clamped at row H-1)
    t = ym_ref.shape[1]
    wp2 = ym_ref.shape[2]
    w_img = wp2 - 2
    c_mid = scale_ref.shape[1]
    c_out2 = b2_ref.shape[1]
    tm = t * w_img

    ti = pl.program_id(1)
    n_t = pl.num_programs(1)

    y_slab = jnp.concatenate([yt_ref[0], ym_ref[0], yb_ref[0]], axis=0)  # (T+2, W+2, C) bf16
    # BN apply + ReLU in f32 (out1 is never materialized in HBM)
    out1_slab = jnp.maximum(y_slab.astype(jnp.float32) * scale_ref[0] + shift_ref[0], 0.0)

    # conv2's zero padding lives on out1: bn_relu(0) != 0, so zero the padding ring.
    # Mask depends only on (row, col): build it at (T+2, W+2, 1) and broadcast over C.
    row = lax.broadcasted_iota(jnp.int32, (t + 2, wp2, 1), 0)
    col = lax.broadcasted_iota(jnp.int32, (t + 2, wp2, 1), 1)
    pad_mask = ((col == 0) | (col == wp2 - 1)
                | ((row == 0) & (ti == 0))
                | ((row == t + 1) & (ti == n_t - 1)))
    out1_slab = jnp.where(pad_mask, 0.0, out1_slab)

    slab_b = out1_slab.astype(jnp.bfloat16)                        # MXU operands
    lhs, taps = _im2col_9tap(slab_b, t, w_img, c_mid)              # (TM, 9*256) bf16

    # one matmul, K = 2304, f32 accumulation on the MXU (no per-tap VALU adds)
    y2 = jnp.dot(lhs, w2_ref[...], preferred_element_type=jnp.float32) + b2_ref[...]

    w_part = y2[:, :c_mid]
    b_part = y2[:, c_mid:]
    out1_center = taps[4]                                          # center tap == out1, bf16
    out = jnp.maximum(w_part * out1_center.astype(jnp.float32) + b_part, 0.0)
    out_ref[...] = out.reshape(1, t, w_img, c_mid)


def init_params(key, in_channel):
    k1, k2, k3, k4 = jax.random.split(key, 4)
    # conv weights in HWIO layout (KH, KW, Cin, Cout)
    w1 = jax.random.normal(k1, (3, 3, in_channel, C_MID), jnp.float32) / jnp.sqrt(9.0 * in_channel)
    b1 = jax.random.normal(k2, (1, C_MID), jnp.float32) * 0.05
    gamma = jnp.ones((1, C_MID), jnp.float32)    # BatchNorm2d default affine init
    beta = jnp.zeros((1, C_MID), jnp.float32)
    w2 = jax.random.normal(k3, (3, 3, C_MID, C_OUT2), jnp.float32) / jnp.sqrt(9.0 * C_MID)
    b2 = jax.random.normal(k4, (1, C_OUT2), jnp.float32) * 0.05
    return (w1, b1, gamma, beta, w2, b2)


def sa_forward(x_nchw, params):
    w1, b1, gamma, beta, w2, b2 = params
    x = jnp.transpose(x_nchw, (0, 2, 3, 1)).astype(jnp.float32)   # NCHW -> NHWC
    n, h, w, cin = x.shape
    tile_h = _pick_tile_h(h, w)
    n_t = h // tile_h
    grid = (n, n_t)

    xp = jnp.pad(x, ((0, 0), (1, 1), (1, 1), (0, 0)))             # tiny (Cin channels)
    w1_r = w1.reshape(9 * cin, C_MID)                              # (9*Cin, 256) f32
    w2_r = w2.reshape(9 * C_MID, C_OUT2).astype(jnp.bfloat16)      # (2304, 512) bf16, resident

    cp = pltpu.CompilerParams(dimension_semantics=("parallel", "parallel"),
                              vmem_limit_bytes=VMEM_LIMIT)

    # ---- kernel 1: conv1 + bias (one K=9*Cin matmul), bf16 W-padded y1, BN partial sums ----
    y1, s1, s2 = pl.pallas_call(
        _conv1_stats_kernel,
        out_shape=(jax.ShapeDtypeStruct((n, h, w + 2, C_MID), jnp.bfloat16),
                   jax.ShapeDtypeStruct((n, n_t, 1, C_MID), jnp.float32),
                   jax.ShapeDtypeStruct((n, n_t, 1, C_MID), jnp.float32)),
        grid=grid,
        in_specs=[
            pl.BlockSpec((1, tile_h, w + 2, cin), lambda bi, ti: (bi, ti, 0, 0)),
            pl.BlockSpec((1, 1, w + 2, cin),
                         lambda bi, ti: (bi, ti * tile_h + tile_h, 0, 0)),
            pl.BlockSpec((1, 1, w + 2, cin),
                         lambda bi, ti: (bi, ti * tile_h + tile_h + 1, 0, 0)),
            pl.BlockSpec((9 * cin, C_MID), lambda bi, ti: (0, 0)),   # resident
            pl.BlockSpec((1, C_MID), lambda bi, ti: (0, 0)),         # resident
        ],
        out_specs=(
            pl.BlockSpec((1, tile_h, w + 2, C_MID), lambda bi, ti: (bi, ti, 0, 0)),
            pl.BlockSpec((1, 1, 1, C_MID), lambda bi, ti: (bi, ti, 0, 0)),
            pl.BlockSpec((1, 1, 1, C_MID), lambda bi, ti: (bi, ti, 0, 0)),
        ),
        compiler_params=cp,
    )(xp, xp, xp, w1_r, b1)

    # ---- global BN stats (tiny JAX reduction), folded into scale/shift ----
    cnt = jnp.float32(n * h * w)
    sum1 = jnp.sum(s1, axis=(0, 1, 2))
    sum2 = jnp.sum(s2, axis=(0, 1, 2))
    mean = sum1 / cnt
    var = jnp.maximum(sum2 / cnt - mean * mean, 0.0)   # biased variance (PyTorch fwd)
    inv = lax.rsqrt(var + BN_EPS)
    g = gamma.reshape(-1)
    scale = (g * inv).reshape(1, C_MID)
    shift = (beta.reshape(-1) - mean * g * inv).reshape(1, C_MID)
    # TODO(synk): BatchNorm running_mean/running_var buffer updates (training-time module
    # state) are not reproduced; they do not affect the returned tensor.

    # ---- kernel 2: BN-apply + ReLU + conv2 (one K=2304 matmul) + split/fuse + ReLU ----
    out = pl.pallas_call(
        _conv2_fuse_kernel,
        out_shape=jax.ShapeDtypeStruct((n, h, w, C_MID), jnp.float32),
        grid=grid,
        in_specs=[
            pl.BlockSpec((1, 1, w + 2, C_MID),                     # halo above (clamped)
                         lambda bi, ti: (bi, jnp.maximum(ti * tile_h - 1, 0), 0, 0)),
            pl.BlockSpec((1, tile_h, w + 2, C_MID), lambda bi, ti: (bi, ti, 0, 0)),
            pl.BlockSpec((1, 1, w + 2, C_MID),                     # halo below (clamped)
                         lambda bi, ti: (bi, jnp.minimum((ti + 1) * tile_h, h - 1), 0, 0)),
            pl.BlockSpec((9 * C_MID, C_OUT2), lambda bi, ti: (0, 0)),  # resident bf16
            pl.BlockSpec((1, C_OUT2), lambda bi, ti: (0, 0)),
            pl.BlockSpec((1, C_MID), lambda bi, ti: (0, 0)),
            pl.BlockSpec((1, C_MID), lambda bi, ti: (0, 0)),
        ],
        out_specs=pl.BlockSpec((1, tile_h, w, C_MID), lambda bi, ti: (bi, ti, 0, 0)),
        compiler_params=cp,
    )(y1, y1, y1, w2_r, b2, scale, shift)

    return jnp.transpose(out, (0, 3, 1, 2))   # back to NCHW


def sa_reference(x_nchw, params):
    """Pure-JAX reference of the PyTorch forward (training-mode BN)."""
    w1, b1, gamma, beta, w2, b2 = params
    x = jnp.transpose(x_nchw, (0, 2, 3, 1)).astype(jnp.float32)
    dn = ('NHWC', 'HWIO', 'NHWC')
    y1 = lax.conv_general_dilated(x, w1, (1, 1), 'SAME',
                                  dimension_numbers=dn) + b1.reshape(1, 1, 1, -1)
    mean = jnp.mean(y1, axis=(0, 1, 2))
    var = jnp.mean(jnp.square(y1 - mean), axis=(0, 1, 2))
    out1 = jnp.maximum((y1 - mean) * lax.rsqrt(var + BN_EPS) * gamma.reshape(1, 1, 1, -1)
                       + beta.reshape(1, 1, 1, -1), 0.0)
    y2 = lax.conv_general_dilated(out1, w2, (1, 1), 'SAME',
                                  dimension_numbers=dn) + b2.reshape(1, 1, 1, -1)
    w_part = y2[..., :C_MID]
    b_part = y2[..., C_MID:]
    out = jnp.maximum(w_part * out1 + b_part, 0.0)
    return jnp.transpose(out, (0, 3, 1, 2))


if __name__ == "__main__":
    key = jax.random.PRNGKey(0)
    kx, kp = jax.random.split(key)
    in_channel = 4
    x = jax.random.normal(kx, (2, in_channel, 16, 16), jnp.float32)   # NCHW like PyTorch
    params = init_params(kp, in_channel)

    fwd = jax.jit(sa_forward)
    out = jax.block_until_ready(fwd(x, params))
    ref = jax.block_until_ready(sa_reference(x, params))

    assert out.shape == (2, C_MID, 16, 16), out.shape
    # bf16 y1 + bf16 MXU operands for conv2 => mixed abs/rel tolerance
    err = float(jnp.max(jnp.abs(out - ref) / (1.0 + jnp.abs(ref))))
    assert err < 5e-2, f"normalized max error {err}"
    print("KERNEL_OK")
</pallas_src>

<mosaic_0001>
module attributes {stable_mosaic.version = 11 : i64} {
  func.func @_conv1_stats_kernel(%arg0: i32, %arg1: i32, %arg2: memref<1x16x18x4xf32, #tpu.memory_space<vmem>>, %arg3: memref<1x1x18x4xf32, #tpu.memory_space<vmem>>, %arg4: memref<1x1x18x4xf32, #tpu.memory_space<vmem>>, %arg5: memref<36x256xf32, #tpu.memory_space<vmem>>, %arg6: memref<1x256xf32, #tpu.memory_space<vmem>>, %arg7: memref<1x16x18x256xbf16, #tpu.memory_space<vmem>>, %arg8: memref<1x1x1x256xf32, #tpu.memory_space<vmem>>, %arg9: memref<1x1x1x256xf32, #tpu.memory_space<vmem>>) attributes {dimension_semantics = [#tpu.dimension_semantics<parallel>, #tpu.dimension_semantics<parallel>], iteration_bounds = array<i64: 2, 1>, scalar_prefetch = 0 : i64, scratch_operands = 0 : i64, tpu.core_type = #tpu.core_type<tc>, window_params = [{transform_indices = @transform_0, window_bounds = array<i64: 1, 16, 18, 4>}, {transform_indices = @transform_1, window_bounds = array<i64: 1, 1, 18, 4>}, {transform_indices = @transform_2, window_bounds = array<i64: 1, 1, 18, 4>}, {pipeline_mode = #tpu.pipeline_mode<synchronous>, transform_indices = @transform_3, window_bounds = array<i64: 36, 256>}, {pipeline_mode = #tpu.pipeline_mode<synchronous>, transform_indices = @transform_4, window_bounds = array<i64: 1, 256>}, {transform_indices = @transform_5, window_bounds = array<i64: 1, 16, 18, 256>}, {transform_indices = @transform_6, window_bounds = array<i64: 1, 1, 1, 256>}, {transform_indices = @transform_7, window_bounds = array<i64: 1, 1, 1, 256>}]} {
    %c0 = arith.constant 0 : index
    %c0_0 = arith.constant 0 : index
    %c0_1 = arith.constant 0 : index
    %c0_2 = arith.constant 0 : index
    %0 = vector.load %arg2[%c0, %c0_0, %c0_1, %c0_2] : memref<1x16x18x4xf32, #tpu.memory_space<vmem>>, vector<1x16x18x4xf32>
    %1 = vector.shape_cast %0 : vector<1x16x18x4xf32> to vector<16x18x4xf32>
    %c0_3 = arith.constant 0 : index
    %c0_4 = arith.constant 0 : index
    %c0_5 = arith.constant 0 : index
    %c0_6 = arith.constant 0 : index
    %2 = vector.load %arg3[%c0_3, %c0_4, %c0_5, %c0_6] : memref<1x1x18x4xf32, #tpu.memory_space<vmem>>, vector<1x1x18x4xf32>
    %3 = vector.shape_cast %2 : vector<1x1x18x4xf32> to vector<1x18x4xf32>
    %c0_7 = arith.constant 0 : index
    %c0_8 = arith.constant 0 : index
    %c0_9 = arith.constant 0 : index
    %c0_10 = arith.constant 0 : index
    %4 = vector.load %arg4[%c0_7, %c0_8, %c0_9, %c0_10] : memref<1x1x18x4xf32, #tpu.memory_space<vmem>>, vector<1x1x18x4xf32>
    %5 = vector.shape_cast %4 : vector<1x1x18x4xf32> to vector<1x18x4xf32>
    %6 = tpu.concatenate %1, %3, %5 in 0 : vector<16x18x4xf32>, vector<1x18x4xf32>, vector<1x18x4xf32> -> vector<18x18x4xf32>
    %7 = vector.extract_strided_slice %6 {offsets = [0, 0, 0], sizes = [18, 16, 4], strides = [1, 1, 1]} : vector<18x18x4xf32> to vector<18x16x4xf32>
    %8 = vector.extract_strided_slice %6 {offsets = [0, 1, 0], sizes = [18, 16, 4], strides = [1, 1, 1]} : vector<18x18x4xf32> to vector<18x16x4xf32>
    %9 = vector.extract_strided_slice %6 {offsets = [0, 2, 0], sizes = [18, 16, 4], strides = [1, 1, 1]} : vector<18x18x4xf32> to vector<18x16x4xf32>
    %10 = vector.extract_strided_slice %7 {offsets = [0, 0, 0], sizes = [16, 16, 4], strides = [1, 1, 1]} : vector<18x16x4xf32> to vector<16x16x4xf32>
    %11 = vector.shape_cast %10 : vector<16x16x4xf32> to vector<256x4xf32>
    %12 = vector.extract_strided_slice %8 {offsets = [0, 0, 0], sizes = [16, 16, 4], strides = [1, 1, 1]} : vector<18x16x4xf32> to vector<16x16x4xf32>
    %13 = vector.shape_cast %12 : vector<16x16x4xf32> to vector<256x4xf32>
    %14 = vector.extract_strided_slice %9 {offsets = [0, 0, 0], sizes = [16, 16, 4], strides = [1, 1, 1]} : vector<18x16x4xf32> to vector<16x16x4xf32>
    %15 = vector.shape_cast %14 : vector<16x16x4xf32> to vector<256x4xf32>
    %16 = vector.extract_strided_slice %7 {offsets = [1, 0, 0], sizes = [16, 16, 4], strides = [1, 1, 1]} : vector<18x16x4xf32> to vector<16x16x4xf32>
    %17 = vector.shape_cast %16 : vector<16x16x4xf32> to vector<256x4xf32>
    %18 = vector.extract_strided_slice %8 {offsets = [1, 0, 0], sizes = [16, 16, 4], strides = [1, 1, 1]} : vector<18x16x4xf32> to vector<16x16x4xf32>
    %19 = vector.shape_cast %18 : vector<16x16x4xf32> to vector<256x4xf32>
    %20 = vector.extract_strided_slice %9 {offsets = [1, 0, 0], sizes = [16, 16, 4], strides = [1, 1, 1]} : vector<18x16x4xf32> to vector<16x16x4xf32>
    %21 = vector.shape_cast %20 : vector<16x16x4xf32> to vector<256x4xf32>
    %22 = vector.extract_strided_slice %7 {offsets = [2, 0, 0], sizes = [16, 16, 4], strides = [1, 1, 1]} : vector<18x16x4xf32> to vector<16x16x4xf32>
    %23 = vector.shape_cast %22 : vector<16x16x4xf32> to vector<256x4xf32>
    %24 = vector.extract_strided_slice %8 {offsets = [2, 0, 0], sizes = [16, 16, 4], strides = [1, 1, 1]} : vector<18x16x4xf32> to vector<16x16x4xf32>
    %25 = vector.shape_cast %24 : vector<16x16x4xf32> to vector<256x4xf32>
    %26 = vector.extract_strided_slice %9 {offsets = [2, 0, 0], sizes = [16, 16, 4], strides = [1, 1, 1]} : vector<18x16x4xf32> to vector<16x16x4xf32>
    %27 = vector.shape_cast %26 : vector<16x16x4xf32> to vector<256x4xf32>
    %28 = tpu.concatenate %11, %13, %15, %17, %19, %21, %23, %25, %27 in 1 : vector<256x4xf32>, vector<256x4xf32>, vector<256x4xf32>, vector<256x4xf32>, vector<256x4xf32>, vector<256x4xf32>, vector<256x4xf32>, vector<256x4xf32>, vector<256x4xf32> -> vector<256x36xf32>
    %c0_11 = arith.constant 0 : index
    %c0_12 = arith.constant 0 : index
    %29 = vector.load %arg5[%c0_11, %c0_12] : memref<36x256xf32, #tpu.memory_space<vmem>>, vector<36x256xf32>
    %cst = arith.constant dense<0.000000e+00> : vector<256x256xf32>
    %30 = tpu.matmul %28, %29, %cst {dimension_numbers = #tpu.dot_dimension_numbers<[1], [0], [0], [1], [0, 0, 1, 1], [], []>} : vector<256x36xf32>, vector<36x256xf32>, vector<256x256xf32> -> vector<256x256xf32>
    %c0_13 = arith.constant 0 : index
    %c0_14 = arith.constant 0 : index
    %31 = vector.load %arg6[%c0_13, %c0_14] : memref<1x256xf32, #tpu.memory_space<vmem>>, vector<1x256xf32>
    %32 = vector.broadcast %31 : vector<1x256xf32> to vector<256x256xf32>
    %33 = arith.addf %30, %32 : vector<256x256xf32>
    %cst_15 = arith.constant dense<0.000000e+00> : vector<256xf32>
    %34 = vector.multi_reduction <add>, %33, %cst_15 [0] : vector<256x256xf32> to vector<256xf32>
    %35 = vector.shape_cast %34 : vector<256xf32> to vector<1x1x1x256xf32>
    %c0_16 = arith.constant 0 : index
    %c0_17 = arith.constant 0 : index
    %c0_18 = arith.constant 0 : index
    %c0_19 = arith.constant 0 : index
    %36 = vector.load %arg8[%c0_16, %c0_17, %c0_18, %c0_19] : memref<1x1x1x256xf32, #tpu.memory_space<vmem>>, vector<1x1x1x256xf32>
    tpu.vector_store %arg8[%c0_16, %c0_17, %c0_18, %c0_19], %35 {strides = array<i32>} : memref<1x1x1x256xf32, #tpu.memory_space<vmem>>, vector<1x1x1x256xf32>,
    %37 = arith.mulf %33, %33 : vector<256x256xf32>
    %cst_20 = arith.constant dense<0.000000e+00> : vector<256xf32>
    %38 = vector.multi_reduction <add>, %37, %cst_20 [0] : vector<256x256xf32> to vector<256xf32>
    %39 = vector.shape_cast %38 : vector<256xf32> to vector<1x1x1x256xf32>
    %c0_21 = arith.constant 0 : index
    %c0_22 = arith.constant 0 : index
    %c0_23 = arith.constant 0 : index
    %c0_24 = arith.constant 0 : index
    %40 = vector.load %arg9[%c0_21, %c0_22, %c0_23, %c0_24] : memref<1x1x1x256xf32, #tpu.memory_space<vmem>>, vector<1x1x1x256xf32>
    tpu.vector_store %arg9[%c0_21, %c0_22, %c0_23, %c0_24], %39 {strides = array<i32>} : memref<1x1x1x256xf32, #tpu.memory_space<vmem>>, vector<1x1x1x256xf32>,
    %41 = vector.shape_cast %33 : vector<256x256xf32> to vector<16x16x256xf32>
    %42 = arith.truncf %41 : vector<16x16x256xf32> to vector<16x16x256xbf16>
    %cst_25 = arith.constant 0.000000e+00 : bf16
    %43 = vector.broadcast %cst_25 : bf16 to vector<16x1x256xbf16>
    %44 = tpu.concatenate %43, %42, %43 in 1 : vector<16x1x256xbf16>, vector<16x16x256xbf16>, vector<16x1x256xbf16> -> vector<16x18x256xbf16>
    %45 = vector.shape_cast %44 : vector<16x18x256xbf16> to vector<1x16x18x256xbf16>
    %c0_26 = arith.constant 0 : index
    %c0_27 = arith.constant 0 : index
    %c0_28 = arith.constant 0 : index
    %c0_29 = arith.constant 0 : index
    %46 = vector.load %arg7[%c0_26, %c0_27, %c0_28, %c0_29] : memref<1x16x18x256xbf16, #tpu.memory_space<vmem>>, vector<1x16x18x256xbf16>
    tpu.vector_store %arg7[%c0_26, %c0_27, %c0_28, %c0_29], %45 {strides = array<i32>} : memref<1x16x18x256xbf16, #tpu.memory_space<vmem>>, vector<1x16x18x256xbf16>,
    return
  }
  func.func @transform_0(%arg0: i32, %arg1: i32) -> (i32, i32, i32, i32) {
    %c0_i32 = arith.constant 0 : i32
    %c0_i32_0 = arith.constant 0 : i32
    %c0_i32_1 = arith.constant 0 : i32
    return %arg0, %arg1, %c0_i32, %c0_i32_0 : i32, i32, i32, i32
  }
  func.func @transform_1(%arg0: i32, %arg1: i32) -> (i32, i32, i32, i32) {
    %c16_i32 = arith.constant 16 : i32
    %0 = arith.muli %arg1, %c16_i32 : i32
    %c16_i32_0 = arith.constant 16 : i32
    %1 = arith.addi %0, %c16_i32_0 : i32
    %c0_i32 = arith.constant 0 : i32
    %c0_i32_1 = arith.constant 0 : i32
    %c0_i32_2 = arith.constant 0 : i32
    return %arg0, %1, %c0_i32, %c0_i32_1 : i32, i32, i32, i32
  }
  func.func @transform_2(%arg0: i32, %arg1: i32) -> (i32, i32, i32, i32) {
    %c16_i32 = arith.constant 16 : i32
    %0 = arith.muli %arg1, %c16_i32 : i32
    %c16_i32_0 = arith.constant 16 : i32
    %1 = arith.addi %0, %c16_i32_0 : i32
    %c1_i32 = arith.constant 1 : i32
    %2 = arith.addi %1, %c1_i32 : i32
    %c0_i32 = arith.constant 0 : i32
    %c0_i32_1 = arith.constant 0 : i32
    %c0_i32_2 = arith.constant 0 : i32
    return %arg0, %2, %c0_i32, %c0_i32_1 : i32, i32, i32, i32
  }
  func.func @transform_3(%arg0: i32, %arg1: i32) -> (i32, i32) {
    %c0_i32 = arith.constant 0 : i32
    %c0_i32_0 = arith.constant 0 : i32
    %c0_i32_1 = arith.constant 0 : i32
    return %c0_i32, %c0_i32_0 : i32, i32
  }
  func.func @transform_4(%arg0: i32, %arg1: i32) -> (i32, i32) {
    %c0_i32 = arith.constant 0 : i32
    %c0_i32_0 = arith.constant 0 : i32
    %c0_i32_1 = arith.constant 0 : i32
    return %c0_i32, %c0_i32_0 : i32, i32
  }
  func.func @transform_5(%arg0: i32, %arg1: i32) -> (i32, i32, i32, i32) {
    %c0_i32 = arith.constant 0 : i32
    %c0_i32_0 = arith.constant 0 : i32
    %c0_i32_1 = arith.constant 0 : i32
    return %arg0, %arg1, %c0_i32, %c0_i32_0 : i32, i32, i32, i32
  }
  func.func @transform_6(%arg0: i32, %arg1: i32) -> (i32, i32, i32, i32) {
    %c0_i32 = arith.constant 0 : i32
    %c0_i32_0 = arith.constant 0 : i32
    %c0_i32_1 = arith.constant 0 : i32
    return %arg0, %arg1, %c0_i32, %c0_i32_0 : i32, i32, i32, i32
  }
  func.func @transform_7(%arg0: i32, %arg1: i32) -> (i32, i32, i32, i32) {
    %c0_i32 = arith.constant 0 : i32
    %c0_i32_0 = arith.constant 0 : i32
    %c0_i32_1 = arith.constant 0 : i32
    return %arg0, %arg1, %c0_i32, %c0_i32_0 : i32, i32, i32, i32
  }
}

module attributes {stable_mosaic.version = 11 : i64} {
  func.func @_conv2_fuse_kernel(%arg0: i32, %arg1: i32, %arg2: memref<1x1x18x256xbf16, #tpu.memory_space<vmem>>, %arg3: memref<1x16x18x256xbf16, #tpu.memory_space<vmem>>, %arg4: memref<1x1x18x256xbf16, #tpu.memory_space<vmem>>, %arg5: memref<2304x512xbf16, #tpu.memory_space<vmem>>, %arg6: memref<1x512xf32, #tpu.memory_space<vmem>>, %arg7: memref<1x256xf32, #tpu.memory_space<vmem>>, %arg8: memref<1x256xf32, #tpu.memory_space<vmem>>, %arg9: memref<1x16x16x256xf32, #tpu.memory_space<vmem>>) attributes {dimension_semantics = [#tpu.dimension_semantics<parallel>, #tpu.dimension_semantics<parallel>], iteration_bounds = array<i64: 2, 1>, scalar_prefetch = 0 : i64, scratch_operands = 0 : i64, tpu.core_type = #tpu.core_type<tc>, window_params = [{transform_indices = @transform_0, window_bounds = array<i64: 1, 1, 18, 256>}, {transform_indices = @transform_1, window_bounds = array<i64: 1, 16, 18, 256>}, {transform_indices = @transform_2, window_bounds = array<i64: 1, 1, 18, 256>}, {pipeline_mode = #tpu.pipeline_mode<synchronous>, transform_indices = @transform_3, window_bounds = array<i64: 2304, 512>}, {pipeline_mode = #tpu.pipeline_mode<synchronous>, transform_indices = @transform_4, window_bounds = array<i64: 1, 512>}, {pipeline_mode = #tpu.pipeline_mode<synchronous>, transform_indices = @transform_5, window_bounds = array<i64: 1, 256>}, {pipeline_mode = #tpu.pipeline_mode<synchronous>, transform_indices = @transform_6, window_bounds = array<i64: 1, 256>}, {transform_indices = @transform_7, window_bounds = array<i64: 1, 16, 16, 256>}]} {
    %c0 = arith.constant 0 : index
    %c0_0 = arith.constant 0 : index
    %c0_1 = arith.constant 0 : index
    %c0_2 = arith.constant 0 : index
    %0 = vector.load %arg2[%c0, %c0_0, %c0_1, %c0_2] : memref<1x1x18x256xbf16, #tpu.memory_space<vmem>>, vector<1x1x18x256xbf16>
    %1 = vector.shape_cast %0 : vector<1x1x18x256xbf16> to vector<1x18x256xbf16>
    %c0_3 = arith.constant 0 : index
    %c0_4 = arith.constant 0 : index
    %c0_5 = arith.constant 0 : index
    %c0_6 = arith.constant 0 : index
    %2 = vector.load %arg3[%c0_3, %c0_4, %c0_5, %c0_6] : memref<1x16x18x256xbf16, #tpu.memory_space<vmem>>, vector<1x16x18x256xbf16>
    %3 = vector.shape_cast %2 : vector<1x16x18x256xbf16> to vector<16x18x256xbf16>
    %c0_7 = arith.constant 0 : index
    %c0_8 = arith.constant 0 : index
    %c0_9 = arith.constant 0 : index
    %c0_10 = arith.constant 0 : index
    %4 = vector.load %arg4[%c0_7, %c0_8, %c0_9, %c0_10] : memref<1x1x18x256xbf16, #tpu.memory_space<vmem>>, vector<1x1x18x256xbf16>
    %5 = vector.shape_cast %4 : vector<1x1x18x256xbf16> to vector<1x18x256xbf16>
    %6 = tpu.concatenate %1, %3, %5 in 0 : vector<1x18x256xbf16>, vector<16x18x256xbf16>, vector<1x18x256xbf16> -> vector<18x18x256xbf16>
    %7 = arith.extf %6 : vector<18x18x256xbf16> to vector<18x18x256xf32>
    %c0_11 = arith.constant 0 : index
    %c0_12 = arith.constant 0 : index
    %8 = vector.load %arg7[%c0_11, %c0_12] : memref<1x256xf32, #tpu.memory_space<vmem>>, vector<1x256xf32>
    %9 = vector.shape_cast %8 : vector<1x256xf32> to vector<256xf32>
    %10 = vector.shape_cast %9 : vector<256xf32> to vector<1x1x256xf32>
    %11 = vector.broadcast %10 : vector<1x1x256xf32> to vector<18x18x256xf32>
    %12 = arith.mulf %7, %11 : vector<18x18x256xf32>
    %c0_13 = arith.constant 0 : index
    %c0_14 = arith.constant 0 : index
    %13 = vector.load %arg8[%c0_13, %c0_14] : memref<1x256xf32, #tpu.memory_space<vmem>>, vector<1x256xf32>
    %14 = vector.shape_cast %13 : vector<1x256xf32> to vector<256xf32>
    %15 = vector.shape_cast %14 : vector<256xf32> to vector<1x1x256xf32>
    %16 = vector.broadcast %15 : vector<1x1x256xf32> to vector<18x18x256xf32>
    %17 = arith.addf %12, %16 : vector<18x18x256xf32>
    %cst = arith.constant 0.000000e+00 : f32
    %18 = vector.broadcast %cst : f32 to vector<18x18x256xf32>
    %19 = arith.maximumf %17, %18 : vector<18x18x256xf32>
    %20 = tpu.iota {dimensions = array<i32: 0>} : vector<18x18x1xi32>
    %21 = tpu.iota {dimensions = array<i32: 1>} : vector<18x18x1xi32>
    %c0_i32 = arith.constant 0 : i32
    %22 = vector.broadcast %c0_i32 : i32 to vector<18x18x1xi32>
    %23 = arith.cmpi eq, %21, %22 : vector<18x18x1xi32>
    %c17_i32 = arith.constant 17 : i32
    %24 = vector.broadcast %c17_i32 : i32 to vector<18x18x1xi32>
    %25 = arith.cmpi eq, %21, %24 : vector<18x18x1xi32>
    %26 = arith.ori %23, %25 : vector<18x18x1xi1>
    %c0_i32_15 = arith.constant 0 : i32
    %27 = vector.broadcast %c0_i32_15 : i32 to vector<18x18x1xi32>
    %28 = arith.cmpi eq, %20, %27 : vector<18x18x1xi32>
    %c0_i32_16 = arith.constant 0 : i32
    %29 = arith.cmpi eq, %arg1, %c0_i32_16 : i32
    %30 = vector.broadcast %29 : i1 to vector<18x18x1xi1>
    %31 = arith.andi %28, %30 : vector<18x18x1xi1>
    %32 = arith.ori %26, %31 : vector<18x18x1xi1>
    %c17_i32_17 = arith.constant 17 : i32
    %33 = vector.broadcast %c17_i32_17 : i32 to vector<18x18x1xi32>
    %34 = arith.cmpi eq, %20, %33 : vector<18x18x1xi32>
    %c0_i32_18 = arith.constant 0 : i32
    %35 = arith.cmpi eq, %arg1, %c0_i32_18 : i32
    %36 = vector.broadcast %35 : i1 to vector<18x18x1xi1>
    %37 = arith.andi %34, %36 : vector<18x18x1xi1>
    %38 = arith.ori %32, %37 : vector<18x18x1xi1>
    %cst_19 = arith.constant 0.000000e+00 : f32
    %39 = vector.shape_cast %38 : vector<18x18x1xi1> to vector<18x18x1xi1>
    %40 = vector.broadcast %39 : vector<18x18x1xi1> to vector<18x18x256xi1>
    %41 = vector.broadcast %cst_19 : f32 to vector<18x18x256xf32>
    %42 = arith.select %40, %41, %19 : vector<18x18x256xi1>, vector<18x18x256xf32>
    %43 = arith.truncf %42 : vector<18x18x256xf32> to vector<18x18x256xbf16>
    %44 = vector.extract_strided_slice %43 {offsets = [0, 0, 0], sizes = [18, 16, 256], strides = [1, 1, 1]} : vector<18x18x256xbf16> to vector<18x16x256xbf16>
    %45 = vector.extract_strided_slice %43 {offsets = [0, 1, 0], sizes = [18, 16, 256], strides = [1, 1, 1]} : vector<18x18x256xbf16> to vector<18x16x256xbf16>
    %46 = vector.extract_strided_slice %43 {offsets = [0, 2, 0], sizes = [18, 16, 256], strides = [1, 1, 1]} : vector<18x18x256xbf16> to vector<18x16x256xbf16>
    %47 = vector.extract_strided_slice %44 {offsets = [0, 0, 0], sizes = [16, 16, 256], strides = [1, 1, 1]} : vector<18x16x256xbf16> to vector<16x16x256xbf16>
    %48 = vector.shape_cast %47 : vector<16x16x256xbf16> to vector<256x256xbf16>
    %49 = vector.extract_strided_slice %45 {offsets = [0, 0, 0], sizes = [16, 16, 256], strides = [1, 1, 1]} : vector<18x16x256xbf16> to vector<16x16x256xbf16>
    %50 = vector.shape_cast %49 : vector<16x16x256xbf16> to vector<256x256xbf16>
    %51 = vector.extract_strided_slice %46 {offsets = [0, 0, 0], sizes = [16, 16, 256], strides = [1, 1, 1]} : vector<18x16x256xbf16> to vector<16x16x256xbf16>
    %52 = vector.shape_cast %51 : vector<16x16x256xbf16> to vector<256x256xbf16>
    %53 = vector.extract_strided_slice %44 {offsets = [1, 0, 0], sizes = [16, 16, 256], strides = [1, 1, 1]} : vector<18x16x256xbf16> to vector<16x16x256xbf16>
    %54 = vector.shape_cast %53 : vector<16x16x256xbf16> to vector<256x256xbf16>
    %55 = vector.extract_strided_slice %45 {offsets = [1, 0, 0], sizes = [16, 16, 256], strides = [1, 1, 1]} : vector<18x16x256xbf16> to vector<16x16x256xbf16>
    %56 = vector.shape_cast %55 : vector<16x16x256xbf16> to vector<256x256xbf16>
    %57 = vector.extract_strided_slice %46 {offsets = [1, 0, 0], sizes = [16, 16, 256], strides = [1, 1, 1]} : vector<18x16x256xbf16> to vector<16x16x256xbf16>
    %58 = vector.shape_cast %57 : vector<16x16x256xbf16> to vector<256x256xbf16>
    %59 = vector.extract_strided_slice %44 {offsets = [2, 0, 0], sizes = [16, 16, 256], strides = [1, 1, 1]} : vector<18x16x256xbf16> to vector<16x16x256xbf16>
    %60 = vector.shape_cast %59 : vector<16x16x256xbf16> to vector<256x256xbf16>
    %61 = vector.extract_strided_slice %45 {offsets = [2, 0, 0], sizes = [16, 16, 256], strides = [1, 1, 1]} : vector<18x16x256xbf16> to vector<16x16x256xbf16>
    %62 = vector.shape_cast %61 : vector<16x16x256xbf16> to vector<256x256xbf16>
    %63 = vector.extract_strided_slice %46 {offsets = [2, 0, 0], sizes = [16, 16, 256], strides = [1, 1, 1]} : vector<18x16x256xbf16> to vector<16x16x256xbf16>
    %64 = vector.shape_cast %63 : vector<16x16x256xbf16> to vector<256x256xbf16>
    %65 = tpu.concatenate %48, %50, %52, %54, %56, %58, %60, %62, %64 in 1 : vector<256x256xbf16>, vector<256x256xbf16>, vector<256x256xbf16>, vector<256x256xbf16>, vector<256x256xbf16>, vector<256x256xbf16>, vector<256x256xbf16>, vector<256x256xbf16>, vector<256x256xbf16> -> vector<256x2304xbf16>
    %c0_20 = arith.constant 0 : index
    %c0_21 = arith.constant 0 : index
    %66 = vector.load %arg5[%c0_20, %c0_21] : memref<2304x512xbf16, #tpu.memory_space<vmem>>, vector<2304x512xbf16>
    %cst_22 = arith.constant dense<0.000000e+00> : vector<256x512xf32>
    %67 = tpu.matmul %65, %66, %cst_22 {dimension_numbers = #tpu.dot_dimension_numbers<[1], [0], [0], [1], [0, 0, 1, 1], [], []>} : vector<256x2304xbf16>, vector<2304x512xbf16>, vector<256x512xf32> -> vector<256x512xf32>
    %c0_23 = arith.constant 0 : index
    %c0_24 = arith.constant 0 : index
    %68 = vector.load %arg6[%c0_23, %c0_24] : memref<1x512xf32, #tpu.memory_space<vmem>>, vector<1x512xf32>
    %69 = vector.broadcast %68 : vector<1x512xf32> to vector<256x512xf32>
    %70 = arith.addf %67, %69 : vector<256x512xf32>
    %71 = vector.extract_strided_slice %70 {offsets = [0, 0], sizes = [256, 256], strides = [1, 1]} : vector<256x512xf32> to vector<256x256xf32>
    %72 = vector.extract_strided_slice %70 {offsets = [0, 256], sizes = [256, 256], strides = [1, 1]} : vector<256x512xf32> to vector<256x256xf32>
    %73 = arith.extf %56 : vector<256x256xbf16> to vector<256x256xf32>
    %74 = arith.mulf %71, %73 : vector<256x256xf32>
    %75 = arith.addf %74, %72 : vector<256x256xf32>
    %cst_25 = arith.constant 0.000000e+00 : f32
    %76 = vector.broadcast %cst_25 : f32 to vector<256x256xf32>
    %77 = arith.maximumf %75, %76 : vector<256x256xf32>
    %78 = vector.shape_cast %77 : vector<256x256xf32> to vector<1x16x16x256xf32>
    %c0_26 = arith.constant 0 : index
    %c0_27 = arith.constant 0 : index
    %c0_28 = arith.constant 0 : index
    %c0_29 = arith.constant 0 : index
    %79 = vector.load %arg9[%c0_26, %c0_27, %c0_28, %c0_29] : memref<1x16x16x256xf32, #tpu.memory_space<vmem>>, vector<1x16x16x256xf32>
    tpu.vector_store %arg9[%c0_26, %c0_27, %c0_28, %c0_29], %78 {strides = array<i32>} : memref<1x16x16x256xf32, #tpu.memory_space<vmem>>, vector<1x16x16x256xf32>,
    return
  }
  func.func @transform_0(%arg0: i32, %arg1: i32) -> (i32, i32, i32, i32) {
    %c16_i32 = arith.constant 16 : i32
    %0 = arith.muli %arg1, %c16_i32 : i32
    %c1_i32 = arith.constant 1 : i32
    %1 = arith.subi %0, %c1_i32 : i32
    %c0_i32 = arith.constant 0 : i32
    %2 = arith.maxsi %1, %c0_i32 : i32
    %c0_i32_0 = arith.constant 0 : i32
    %c0_i32_1 = arith.constant 0 : i32
    %c0_i32_2 = arith.constant 0 : i32
    return %arg0, %2, %c0_i32_0, %c0_i32_1 : i32, i32, i32, i32
  }
  func.func @transform_1(%arg0: i32, %arg1: i32) -> (i32, i32, i32, i32) {
    %c0_i32 = arith.constant 0 : i32
    %c0_i32_0 = arith.constant 0 : i32
    %c0_i32_1 = arith.constant 0 : i32
    return %arg0, %arg1, %c0_i32, %c0_i32_0 : i32, i32, i32, i32
  }
  func.func @transform_2(%arg0: i32, %arg1: i32) -> (i32, i32, i32, i32) {
    %c1_i32 = arith.constant 1 : i32
    %0 = arith.addi %arg1, %c1_i32 : i32
    %c16_i32 = arith.constant 16 : i32
    %1 = arith.muli %0, %c16_i32 : i32
    %c15_i32 = arith.constant 15 : i32
    %2 = arith.minsi %1, %c15_i32 : i32
    %c0_i32 = arith.constant 0 : i32
    %c0_i32_0 = arith.constant 0 : i32
    %c0_i32_1 = arith.constant 0 : i32
    return %arg0, %2, %c0_i32, %c0_i32_0 : i32, i32, i32, i32
  }
  func.func @transform_3(%arg0: i32, %arg1: i32) -> (i32, i32) {
    %c0_i32 = arith.constant 0 : i32
    %c0_i32_0 = arith.constant 0 : i32
    %c0_i32_1 = arith.constant 0 : i32
    return %c0_i32, %c0_i32_0 : i32, i32
  }
  func.func @transform_4(%arg0: i32, %arg1: i32) -> (i32, i32) {
    %c0_i32 = arith.constant 0 : i32
    %c0_i32_0 = arith.constant 0 : i32
    %c0_i32_1 = arith.constant 0 : i32
    return %c0_i32, %c0_i32_0 : i32, i32
  }
  func.func @transform_5(%arg0: i32, %arg1: i32) -> (i32, i32) {
    %c0_i32 = arith.constant 0 : i32
    %c0_i32_0 = arith.constant 0 : i32
    %c0_i32_1 = arith.constant 0 : i32
    return %c0_i32, %c0_i32_0 : i32, i32
  }
  func.func @transform_6(%arg0: i32, %arg1: i32) -> (i32, i32) {
    %c0_i32 = arith.constant 0 : i32
    %c0_i32_0 = arith.constant 0 : i32
    %c0_i32_1 = arith.constant 0 : i32
    return %c0_i32, %c0_i32_0 : i32, i32
  }
  func.func @transform_7(%arg0: i32, %arg1: i32) -> (i32, i32, i32, i32) {
    %c0_i32 = arith.constant 0 : i32
    %c0_i32_0 = arith.constant 0 : i32
    %c0_i32_1 = arith.constant 0 : i32
    return %arg0, %arg1, %c0_i32, %c0_i32_0 : i32, i32, i32, i32
  }
}

</mosaic_0001>

<llo_original>
// kernel: sa_forward.2
$region0: #{sa_forward.2}
  #allocation0 [shape = 'u32[]', space=smem, size = 0x4, offset = 0x4, fixed_abs, tag = 'smem constant byte address 0x4 - core index']
  #allocation1 [shape = 'u32[144,128]{1,0:T(1,128)}', space=vmem, size = 0x12000, scoped, tag = 'internal scratch']
  %s0 = inlined_call_operand.vmem [shape: f32[2,18,18,4], index: 0, kind: input, shape index: {}, may-alias: {0,1,2}]
  %s1 = inlined_call_operand.vmem [shape: f32[2,18,18,4], index: 1, kind: input, shape index: {}, may-alias: {0,1,2}]
  %s2 = inlined_call_operand.vmem [shape: f32[2,18,18,4], index: 2, kind: input, shape index: {}, may-alias: {0,1,2}]
  %s3 = inlined_call_operand.vmem [shape: f32[36,256], index: 3, kind: input, shape index: {}]
  %s4 = inlined_call_operand.hbm [shape: f32[1,256], index: 4, kind: input, shape index: {}]
  %s5 = inlined_call_operand.vmem [shape: bf16[2,16,18,256], index: 5, kind: output, shape index: {0}]
  %s6 = inlined_call_operand.vmem [shape: f32[2,1,1,256], index: 6, kind: output, shape index: {1}]
  %s7 = inlined_call_operand.vmem [shape: f32[2,1,1,256], index: 7, kind: output, shape index: {2}]
  %8 = xla_tuple %s5, %s6, %s7
  %s9 = sld [smem:[#allocation0]]
  $region73: #{sa_forward.2} parent=0
    _
  %s11 = ssub.s32 1, %s9
  %s12 = scalar_select 0, %s11, %s9
  $region1: #{sa_forward.2} parent=0
    #allocation2 [shape = 'u8[1024]{0}', space=vmem, size = 0x400, scoped, tag = 'input window, operand 4, single buffered']
    #allocation3 [shape = 's32[2]{0}', space=sflag, size = 0x8, scoped, tag = 'scoped memory for sa_forward.2']
    %13 = vsyncpa [#allocation3], 0
    loop: start=0, step=1, limit=4
    $region2: #{sa_forward.2} parent=1 // loop_pre_header
      _
    $region3: #{sa_forward.2} parent=1 // loop_header
      %s15 = sphi 0, %s19
      %p16 = scmp.ge.s32.totalorder %s15, 4
      %s22 = sphi 0, %s34
      %s23 = sphi 0, %s30
      %s24 = sphi 0, %s22
      %s25 = sphi 0, %s23
      %s26 = sphi 0, %s24
      %s27 = sphi 0, %s25
      %s39 = sphi 0, %s41
      %s42 = sphi 0, %s39
      %s43 = sphi 0, %s42
      %s59 = sphi 0, %s43
      %s71 = sphi 0, %s73
      %s74 = sphi 0, %s71
      %s75 = sphi 0, %s74
      %s91 = sphi 0, %s75
      %s103 = sphi 0, %s105
      %s106 = sphi 0, %s103
      %s107 = sphi 0, %s106
      %s123 = sphi 0, %s107
      %s127 = sphi 0, %s127
      %s129 = sphi 0, %s127
      %s130 = sphi 0, %s129
      %s144 = sphi 0, %s130
      %s148 = sphi 0, %s148
      %s150 = sphi 0, %s148
      %s151 = sphi 0, %s150
      %s165 = sphi 0, %s151
      %s173 = sphi 0, %s175
      %s176 = sphi 0, %s173
      %s177 = sphi 0, %s176
      %s193 = sphi 0, %s177
      %s201 = sphi 0, %s203
      %s204 = sphi 0, %s201
      %s205 = sphi 0, %s204
      %s221 = sphi 0, %s205
      %s229 = sphi 0, %s231
      %s232 = sphi 0, %s229
      %s233 = sphi 0, %s232
      %s249 = sphi 0, %s233
    $region4: #{sa_forward.2} parent=1 // loop_header_branch
      %18 = sbr.rel (%p16) target = $region8
    $region5: #{sa_forward.2} parent=1 // loop_body
      %s20 = ssub.s32 %s15, 1
      %s21 = ssub.s32 %s15, 2
      %s28 = sadd.s32 1, %s23
      %p29 = scmp.ge.s32.totalorder %s28, 1
      %s30 = scalar_select %p29, 0, %s28
      %s31 = sadd.s32 1, %s22
      %s32 = scalar_select %p29, %s31, %s22
      %p33 = scmp.ge.s32.totalorder %s32, 2
      %s34 = scalar_select %p33, 0, %s32
      %s35 = ssub.s32 %s22, %s34
      %s36 = ssub.s32 %s23, %s30
      %s37 = sor.u32 %s35, %s36
      %p38 = scmp.eq.s32.totalorder %s37, 0
      %s40 = sadd.s32 %s39, 1
      %s41 = scalar_select %p38, %s39, %s40
      %p44 = pneg %p38
      %p45 = scmp.eq.s32.totalorder %s15, 1
      %p46 = por %p44, %p45
      %p47 = scmp.ne.s32.totalorder %s39, %s42
      %p48 = scmp.eq.s32.totalorder %s15, 0
      %p49 = por %p47, %p48
      %p50 = scmp.ne.s32.totalorder %s39, %s42
      %p51 = scmp.eq.s32.totalorder %s20, 1
      %p52 = por %p50, %p51
      %p53 = scmp.ne.s32.totalorder %s42, %s43
      %p54 = scmp.eq.s32.totalorder %s20, 0
      %p55 = por %p53, %p54
      %p56 = scmp.ne.s32.totalorder %s42, %s43
      %p57 = scmp.eq.s32.totalorder %s21, 1
      %p58 = por %p56, %p57
      %p60 = scmp.ne.s32.totalorder %s43, %s59
      %p61 = scmp.eq.s32.totalorder %s21, 0
      %p62 = por %p60, %p61
      %s63 = smul.u32 %s23, 16
      %s64 = sadd.s32 %s63, 16
      %s65 = smul.u32 %s30, 16
      %s66 = sadd.s32 %s65, 16
      %s67 = ssub.s32 %s22, %s34
      %s68 = ssub.s32 %s64, %s66
      %s69 = sor.u32 %s67, %s68
      %p70 = scmp.eq.s32.totalorder %s69, 0
      %s72 = sadd.s32 %s71, 1
      %s73 = scalar_select %p70, %s71, %s72
      %p76 = pneg %p70
      %p77 = scmp.eq.s32.totalorder %s15, 1
      %p78 = por %p76, %p77
      %p79 = scmp.ne.s32.totalorder %s71, %s74
      %p80 = scmp.eq.s32.totalorder %s15, 0
      %p81 = por %p79, %p80
      %p82 = scmp.ne.s32.totalorder %s71, %s74
      %p83 = scmp.eq.s32.totalorder %s20, 1
      %p84 = por %p82, %p83
      %p85 = scmp.ne.s32.totalorder %s74, %s75
      %p86 = scmp.eq.s32.totalorder %s20, 0
      %p87 = por %p85, %p86
      %p88 = scmp.ne.s32.totalorder %s74, %s75
      %p89 = scmp.eq.s32.totalorder %s21, 1
      %p90 = por %p88, %p89
      %p92 = scmp.ne.s32.totalorder %s75, %s91
      %p93 = scmp.eq.s32.totalorder %s21, 0
      %p94 = por %p92, %p93
      %s95 = smul.u32 %s23, 16
      %s96 = sadd.s32 %s95, 17
      %s97 = smul.u32 %s30, 16
      %s98 = sadd.s32 %s97, 17
      %s99 = ssub.s32 %s22, %s34
      %s100 = ssub.s32 %s96, %s98
      %s101 = sor.u32 %s99, %s100
      %p102 = scmp.eq.s32.totalorder %s101, 0
      %s104 = sadd.s32 %s103, 1
      %s105 = scalar_select %p102, %s103, %s104
      %p108 = pneg %p102
      %p109 = scmp.eq.s32.totalorder %s15, 1
      %p110 = por %p108, %p109
      %p111 = scmp.ne.s32.totalorder %s103, %s106
      %p112 = scmp.eq.s32.totalorder %s15, 0
      %p113 = por %p111, %p112
      %p114 = scmp.ne.s32.totalorder %s103, %s106
      %p115 = scmp.eq.s32.totalorder %s20, 1
      %p116 = por %p114, %p115
      %p117 = scmp.ne.s32.totalorder %s106, %s107
      %p118 = scmp.eq.s32.totalorder %s20, 0
      %p119 = por %p117, %p118
      %p120 = scmp.ne.s32.totalorder %s106, %s107
      %p121 = scmp.eq.s32.totalorder %s21, 1
      %p122 = por %p120, %p121
      %p124 = scmp.ne.s32.totalorder %s107, %s123
      %p125 = scmp.eq.s32.totalorder %s21, 0
      %p126 = por %p124, %p125
      %s128 = sadd.s32 %s127, 1
      %p131 = scmp.eq.s32.totalorder %s15, 1
      %p132 = scmp.ne.s32.totalorder %s127, %s129
      %p133 = scmp.eq.s32.totalorder %s15, 0
      %p134 = por %p132, %p133
      %p135 = scmp.ne.s32.totalorder %s127, %s129
      %p136 = scmp.eq.s32.totalorder %s20, 1
      %p137 = por %p135, %p136
      %p138 = scmp.ne.s32.totalorder %s129, %s130
      %p139 = scmp.eq.s32.totalorder %s20, 0
      %p140 = por %p138, %p139
      %p141 = scmp.ne.s32.totalorder %s129, %s130
      %p142 = scmp.eq.s32.totalorder %s21, 1
      %p143 = por %p141, %p142
      %p145 = scmp.ne.s32.totalorder %s130, %s144
      %p146 = scmp.eq.s32.totalorder %s21, 0
      %p147 = por %p145, %p146
      %s149 = sadd.s32 %s148, 1
      %p152 = scmp.eq.s32.totalorder %s15, 1
      %p153 = scmp.ne.s32.totalorder %s148, %s150
      %p154 = scmp.eq.s32.totalorder %s15, 0
      %p155 = por %p153, %p154
      %p156 = scmp.ne.s32.totalorder %s148, %s150
      %p157 = scmp.eq.s32.totalorder %s20, 1
      %p158 = por %p156, %p157
      %p159 = scmp.ne.s32.totalorder %s150, %s151
      %p160 = scmp.eq.s32.totalorder %s20, 0
      %p161 = por %p159, %p160
      %p162 = scmp.ne.s32.totalorder %s150, %s151
      %p163 = scmp.eq.s32.totalorder %s21, 1
      %p164 = por %p162, %p163
      %p166 = scmp.ne.s32.totalorder %s151, %s165
      %p167 = scmp.eq.s32.totalorder %s21, 0
      %p168 = por %p166, %p167
      %s169 = ssub.s32 %s22, %s34
      %s170 = ssub.s32 %s23, %s30
      %s171 = sor.u32 %s169, %s170
      %p172 = scmp.eq.s32.totalorder %s171, 0
      %s174 = sadd.s32 %s173, 1
      %s175 = scalar_select %p172, %s173, %s174
      %p178 = pneg %p172
      %p179 = scmp.eq.s32.totalorder %s15, 1
      %p180 = por %p178, %p179
      %p181 = scmp.ne.s32.totalorder %s173, %s176
      %p182 = scmp.eq.s32.totalorder %s15, 0
      %p183 = por %p181, %p182
      %p184 = scmp.ne.s32.totalorder %s173, %s176
      %p185 = scmp.eq.s32.totalorder %s20, 1
      %p186 = por %p184, %p185
      %p187 = scmp.ne.s32.totalorder %s176, %s177
      %p188 = scmp.eq.s32.totalorder %s20, 0
      %p189 = por %p187, %p188
      %p190 = scmp.ne.s32.totalorder %s176, %s177
      %p191 = scmp.eq.s32.totalorder %s21, 1
      %p192 = por %p190, %p191
      %p194 = scmp.ne.s32.totalorder %s177, %s193
      %p195 = scmp.eq.s32.totalorder %s21, 0
      %p196 = por %p194, %p195
      %s197 = ssub.s32 %s22, %s34
      %s198 = ssub.s32 %s23, %s30
      %s199 = sor.u32 %s197, %s198
      %p200 = scmp.eq.s32.totalorder %s199, 0
      %s202 = sadd.s32 %s201, 1
      %s203 = scalar_select %p200, %s201, %s202
      %p206 = pneg %p200
      %p207 = scmp.eq.s32.totalorder %s15, 1
      %p208 = por %p206, %p207
      %p209 = scmp.ne.s32.totalorder %s201, %s204
      %p210 = scmp.eq.s32.totalorder %s15, 0
      %p211 = por %p209, %p210
      %p212 = scmp.ne.s32.totalorder %s201, %s204
      %p213 = scmp.eq.s32.totalorder %s20, 1
      %p214 = por %p212, %p213
      %p215 = scmp.ne.s32.totalorder %s204, %s205
      %p216 = scmp.eq.s32.totalorder %s20, 0
      %p217 = por %p215, %p216
      %p218 = scmp.ne.s32.totalorder %s204, %s205
      %p219 = scmp.eq.s32.totalorder %s21, 1
      %p220 = por %p218, %p219
      %p222 = scmp.ne.s32.totalorder %s205, %s221
      %p223 = scmp.eq.s32.totalorder %s21, 0
      %p224 = por %p222, %p223
      %s225 = ssub.s32 %s22, %s34
      %s226 = ssub.s32 %s23, %s30
      %s227 = sor.u32 %s225, %s226
      %p228 = scmp.eq.s32.totalorder %s227, 0
      %s230 = sadd.s32 %s229, 1
      %s231 = scalar_select %p228, %s229, %s230
      %p234 = pneg %p228
      %p235 = scmp.eq.s32.totalorder %s15, 1
      %p236 = por %p234, %p235
      %p237 = scmp.ne.s32.totalorder %s229, %s232
      %p238 = scmp.eq.s32.totalorder %s15, 0
      %p239 = por %p237, %p238
      %p240 = scmp.ne.s32.totalorder %s229, %s232
      %p241 = scmp.eq.s32.totalorder %s20, 1
      %p242 = por %p240, %p241
      %p243 = scmp.ne.s32.totalorder %s232, %s233
      %p244 = scmp.eq.s32.totalorder %s20, 0
      %p245 = por %p243, %p244
      %p246 = scmp.ne.s32.totalorder %s232, %s233
      %p247 = scmp.eq.s32.totalorder %s21, 1
      %p248 = por %p246, %p247
      %p250 = scmp.ne.s32.totalorder %s233, %s249
      %p251 = scmp.eq.s32.totalorder %s21, 0
      %p252 = por %p250, %p251
      %p253 = scmp.le.s32.totalorder 1, %s15
      %p254 = scmp.lt.s32.totalorder %s15, 3
      %p255 = pnand %p253, %p254
      %p256 = pneg %p255
      // Predicated region
      $region9: #{sa_forward.2} parent=5 // pred_check
        _
      $region10: #{sa_forward.2} parent=5 // pred_check_branch
        %258 = sbr.rel (%p255) target = $region12
      $region11: #{sa_forward.2} parent=5 // pred_region
        %s259 = ssub.s32 %s15, 1
        // Predicated region
        $region13: #{sa_forward.2} parent=11 // pred_check
          %p260 = pneg %p140
        $region14: #{sa_forward.2} parent=11 // pred_check_branch
          %262 = sbr.rel (%p260) target = $region16
        $region15: #{sa_forward.2} parent=11 // pred_region
          _
        $region16: #{sa_forward.2} parent=11 // pred_fallthru
          _
        // Predicated region
        $region17: #{sa_forward.2} parent=11 // pred_check
          %p263 = pneg %p161
        $region18: #{sa_forward.2} parent=11 // pred_check_branch
          %265 = sbr.rel (%p263) target = $region20
        $region19: #{sa_forward.2} parent=11 // pred_region
          %s267 = ssub.s32 32, 32
          %268 = vsyncadd [#allocation3], %s267
          %s270 = sshll.u32 [#allocation2], 4
          %s271 = int_to_ptr.vmem [resolvable:$true] %s270
          %273 = dma.hbm_to_vmem [thread:$0]  %s4, 32, %s271, [#allocation3]
        $region20: #{sa_forward.2} parent=11 // pred_fallthru
          _
      $region12: #{sa_forward.2} parent=5 // pred_fallthru
        _
      %p274 = scmp.lt.s32.totalorder %s15, 2
      // Predicated region
      $region21: #{sa_forward.2} parent=5 // pred_check
        %p275 = pneg %p274
      $region22: #{sa_forward.2} parent=5 // pred_check_branch
        %277 = sbr.rel (%p275) target = $region24
      $region23: #{sa_forward.2} parent=5 // pred_region
        // Predicated region
        $region25: #{sa_forward.2} parent=23 // pred_check
          %p278 = pneg %p49
        $region26: #{sa_forward.2} parent=23 // pred_check_branch
          %280 = sbr.rel (%p278) target = $region28
        $region27: #{sa_forward.2} parent=23 // pred_region
          %s281 = smul.u32 16, %s23
          %s282 = ssub.s32 18, %s281
          %p283 = scmp.lt.s32.totalorder %s282, 16
          %s284 = scalar_select %p283, %s282, 16
          %s285 = smul.u32 128, %s284
          %s286 = smul.u32 %s285, 3
          %p287 = scmp.lt.s32.totalorder %s22, 1
          %s288 = scalar_select %p287, %s22, 1
          %p289 = scmp.lt.s32.totalorder %s281, 17
          %s290 = scalar_select %p289, %s281, 17
          %s291 = smul.addr %s290, 3
          %s292 = smul.addr %s288, 54
          %s293 = sadd.s32 %s291, %s292
          %s294 = smul.addr %s293, 8
          %s295 = scalar_lea.vmem %s0, %s294
          %s296 = smul.u32 16, %s23
          %s297 = ssub.s32 18, %s296
          %p298 = scmp.lt.s32.totalorder %s297, 16
          %s299 = scalar_select %p298, %s297, 16
          %s300 = smul.u32 128, %s299
          %s301 = smul.u32 %s300, 3
        $region28: #{sa_forward.2} parent=23 // pred_fallthru
          _
        // Predicated region
        $region29: #{sa_forward.2} parent=23 // pred_check
          %p302 = pneg %p81
        $region30: #{sa_forward.2} parent=23 // pred_check_branch
          %304 = sbr.rel (%p302) target = $region32
        $region31: #{sa_forward.2} parent=23 // pred_region
          %s305 = smul.u32 %s23, 16
          %s306 = sadd.s32 %s305, 16
          %p307 = scmp.lt.s32.totalorder %s22, 1
          %s308 = scalar_select %p307, %s22, 1
          %p309 = scmp.lt.s32.totalorder %s306, 17
          %s310 = scalar_select %p309, %s306, 17
          %s311 = smul.addr %s310, 3
          %s312 = smul.addr %s308, 54
          %s313 = sadd.s32 %s311, %s312
          %s314 = smul.addr %s313, 8
          %s315 = scalar_lea.vmem %s1, %s314
          %s316 = smul.u32 %s23, 16
          %s317 = sadd.s32 %s316, 16
        $region32: #{sa_forward.2} parent=23 // pred_fallthru
          _
        // Predicated region
        $region33: #{sa_forward.2} parent=23 // pred_check
          %p318 = pneg %p113
        $region34: #{sa_forward.2} parent=23 // pred_check_branch
          %320 = sbr.rel (%p318) target = $region36
        $region35: #{sa_forward.2} parent=23 // pred_region
          %s321 = smul.u32 %s23, 16
          %s322 = sadd.s32 %s321, 17
          %p323 = scmp.lt.s32.totalorder %s22, 1
          %s324 = scalar_select %p323, %s22, 1
          %p325 = scmp.lt.s32.totalorder %s322, 17
          %s326 = scalar_select %p325, %s322, 17
          %s327 = smul.addr %s326, 3
          %s328 = smul.addr %s324, 54
          %s329 = sadd.s32 %s327, %s328
          %s330 = smul.addr %s329, 8
          %s331 = scalar_lea.vmem %s2, %s330
          %s332 = smul.u32 %s23, 16
          %s333 = sadd.s32 %s332, 17
        $region36: #{sa_forward.2} parent=23 // pred_fallthru
          _
      $region24: #{sa_forward.2} parent=5 // pred_fallthru
        _
      %p334 = scmp.le.s32.totalorder 1, %s15
      %p335 = scmp.lt.s32.totalorder %s15, 3
      %p336 = pnand %p334, %p335
      %p337 = pneg %p336
      // Predicated region
      $region37: #{sa_forward.2} parent=5 // pred_check
        _
      $region38: #{sa_forward.2} parent=5 // pred_check_branch
        %339 = sbr.rel (%p336) target = $region40
      $region39: #{sa_forward.2} parent=5 // pred_region
        %s340 = ssub.s32 %s15, 1
        // Predicated region
        $region41: #{sa_forward.2} parent=39 // pred_check
          %p341 = pneg %p161
        $region42: #{sa_forward.2} parent=39 // pred_check_branch
          %343 = sbr.rel (%p341) target = $region44
        $region43: #{sa_forward.2} parent=39 // pred_region
          %344 = dma.done [#allocation3], 32
        $region44: #{sa_forward.2} parent=39 // pred_fallthru
          _
        %s345 = smul.u32 16, %s25
        %s346 = ssub.s32 18, %s345
        %p347 = scmp.lt.s32.totalorder %s346, 16
        %s348 = scalar_select %p347, %s346, 16
        %s349 = smul.u32 128, %s348
        %s350 = smul.u32 %s349, 3
        %p351 = scmp.lt.s32.totalorder %s24, 1
        %s352 = scalar_select %p351, %s24, 1
        %p353 = scmp.lt.s32.totalorder %s345, 17
        %s354 = scalar_select %p353, %s345, 17
        %s355 = smul.addr %s354, 3
        %s356 = smul.addr %s352, 54
        %s357 = sadd.s32 %s355, %s356
        %s358 = smul.addr %s357, 8
        %s359 = scalar_lea.vmem %s0, %s358
        %p360 = pneg %p55
        %p361 = pneg %p52
        %s362 = smul.u32 %s25, 16
        %s363 = sadd.s32 %s362, 16
        %p364 = scmp.lt.s32.totalorder %s24, 1
        %s365 = scalar_select %p364, %s24, 1
        %p366 = scmp.lt.s32.totalorder %s363, 17
        %s367 = scalar_select %p366, %s363, 17
        %s368 = smul.addr %s367, 3
        %s369 = smul.addr %s365, 54
        %s370 = sadd.s32 %s368, %s369
        %s371 = smul.addr %s370, 8
        %s372 = scalar_lea.vmem %s1, %s371
        %p373 = pneg %p87
        %p374 = pneg %p84
        %s375 = smul.u32 %s25, 16
        %s376 = sadd.s32 %s375, 17
        %p377 = scmp.lt.s32.totalorder %s24, 1
        %s378 = scalar_select %p377, %s24, 1
        %p379 = scmp.lt.s32.totalorder %s376, 17
        %s380 = scalar_select %p379, %s376, 17
        %s381 = smul.addr %s380, 3
        %s382 = smul.addr %s378, 54
        %s383 = sadd.s32 %s381, %s382
        %s384 = smul.addr %s383, 8
        %s385 = scalar_lea.vmem %s2, %s384
        %p386 = pneg %p119
        %p387 = pneg %p116
        %p388 = pneg %p140
        %p389 = pneg %p137
        %p390 = pneg %p161
        %p391 = pneg %p158
        %p392 = pneg %p189
        %p393 = pneg %p186
        %s394 = smul.u32 16, %s25
        %p395 = scmp.lt.s32.totalorder %s24, 1
        %s396 = scalar_select %p395, %s24, 1
        %p397 = scmp.lt.s32.totalorder %s394, 15
        %s398 = scalar_select %p397, %s394, 15
        %s399 = smul.addr %s398, 6
        %s400 = smul.addr %s396, 96
        %s401 = sadd.s32 %s399, %s400
        %s402 = smul.addr %s401, 4
        %s403 = scalar_lea.vmem %s5, %s402
        %p404 = pneg %p217
        %p405 = pneg %p214
        %p406 = scmp.lt.s32.totalorder %s24, 1
        %s407 = scalar_select %p406, %s24, 1
        %p408 = scmp.lt.s32.totalorder %s25, 0
        %s409 = scalar_select %p408, %s25, 0
        %s410 = smul.addr %s409, 2
        %s411 = smul.addr %s407, 2
        %s412 = sadd.s32 %s410, %s411
        %s413 = scalar_lea.vmem %s6, %s412
        %p414 = pneg %p245
        %p415 = pneg %p242
        %p416 = scmp.lt.s32.totalorder %s24, 1
        %s417 = scalar_select %p416, %s24, 1
        %p418 = scmp.lt.s32.totalorder %s25, 0
        %s419 = scalar_select %p418, %s25, 0
        %s420 = smul.addr %s419, 2
        %s421 = smul.addr %s417, 2
        %s422 = sadd.s32 %s420, %s421
        %s423 = scalar_lea.vmem %s7, %s422
        %s424 = smul.u32 16, %s25
        %s425 = ssub.s32 18, %s424
        %p426 = scmp.lt.s32.totalorder %s425, 16
        %s427 = scalar_select %p426, %s425, 16
        %s428 = smul.u32 128, %s427
        %s429 = smul.u32 %s428, 3
        %p430 = scmp.lt.s32.totalorder %s24, 1
        %s431 = scalar_select %p430, %s24, 1
        %p432 = scmp.lt.s32.totalorder %s424, 17
        %s433 = scalar_select %p432, %s424, 17
        %s434 = smul.addr %s433, 3
        %s435 = smul.addr %s431, 54
        %s436 = sadd.s32 %s434, %s435
        %s437 = smul.addr %s436, 8
        %s438 = scalar_lea.vmem %s0, %s437
        %s439 = smul.u32 16, %s25
        %s440 = ssub.s32 18, %s439
        %p441 = scmp.lt.s32.totalorder %s440, 16
        %s442 = scalar_select %p441, %s440, 16
        %s443 = smul.u32 128, %s442
        %s444 = smul.u32 %s443, 3
        %s445 = smul.u32 %s25, 16
        %s446 = sadd.s32 %s445, 16
        %p447 = scmp.lt.s32.totalorder %s24, 1
        %s448 = scalar_select %p447, %s24, 1
        %p449 = scmp.lt.s32.totalorder %s446, 17
        %s450 = scalar_select %p449, %s446, 17
        %s451 = smul.addr %s450, 3
        %s452 = smul.addr %s448, 54
        %s453 = sadd.s32 %s451, %s452
        %s454 = smul.addr %s453, 8
        %s455 = scalar_lea.vmem %s1, %s454
        %s456 = smul.u32 %s25, 16
        %s457 = sadd.s32 %s456, 16
        %s458 = smul.u32 %s25, 16
        %s459 = sadd.s32 %s458, 17
        %p460 = scmp.lt.s32.totalorder %s24, 1
        %s461 = scalar_select %p460, %s24, 1
        %p462 = scmp.lt.s32.totalorder %s459, 17
        %s463 = scalar_select %p462, %s459, 17
        %s464 = smul.addr %s463, 3
        %s465 = smul.addr %s461, 54
        %s466 = sadd.s32 %s464, %s465
        %s467 = smul.addr %s466, 8
        %s468 = scalar_lea.vmem %s2, %s467
        %s469 = smul.u32 %s25, 16
        %s470 = sadd.s32 %s469, 17
        %s471 = smul.u32 16, %s25
        %p472 = scmp.lt.s32.totalorder %s24, 1
        %s473 = scalar_select %p472, %s24, 1
        %p474 = scmp.lt.s32.totalorder %s471, 15
        %s475 = scalar_select %p474, %s471, 15
        %s476 = smul.addr %s475, 6
        %s477 = smul.addr %s473, 96
        %s478 = sadd.s32 %s476, %s477
        %s479 = smul.addr %s478, 4
        %s480 = scalar_lea.vmem %s5, %s479
        %s481 = smul.u32 16, %s25
        %p482 = scmp.lt.s32.totalorder %s24, 1
        %s483 = scalar_select %p482, %s24, 1
        %p484 = scmp.lt.s32.totalorder %s25, 0
        %s485 = scalar_select %p484, %s25, 0
        %s486 = smul.addr %s485, 2
        %s487 = smul.addr %s483, 2
        %s488 = sadd.s32 %s486, %s487
        %s489 = scalar_lea.vmem %s6, %s488
        %p490 = scmp.lt.s32.totalorder %s24, 1
        %s491 = scalar_select %p490, %s24, 1
        %p492 = scmp.lt.s32.totalorder %s25, 0
        %s493 = scalar_select %p492, %s25, 0
        %s494 = smul.addr %s493, 2
        %s495 = smul.addr %s491, 2
        %s496 = sadd.s32 %s494, %s495
        %s497 = scalar_lea.vmem %s7, %s496
        %v499 = vld [vmem:[%s438] sm:$0xff]
        %v500 = vld [vmem:[%s438 + $0x8] sm:$0xff]
        %v501 = vld [vmem:[%s438 + $0x10] sm:$0x3]
        %v502 = vld [vmem:[%s438 + $0x18] sm:$0xff]
        %v503 = vld [vmem:[%s438 + $0x20] sm:$0xff]
        %v504 = vld [vmem:[%s438 + $0x28] sm:$0x3]
        %v505 = vld [vmem:[%s438 + $0x30] sm:$0xff]
        %v506 = vld [vmem:[%s438 + $0x38] sm:$0xff]
        %v507 = vld [vmem:[%s438 + $0x40] sm:$0x3]
        %v508 = vld [vmem:[%s438 + $0x48] sm:$0xff]
        %v509 = vld [vmem:[%s438 + $0x50] sm:$0xff]
        %v510 = vld [vmem:[%s438 + $0x58] sm:$0x3]
        %v511 = vld [vmem:[%s438 + $0x60] sm:$0xff]
        %v512 = vld [vmem:[%s438 + $0x68] sm:$0xff]
        %v513 = vld [vmem:[%s438 + $0x70] sm:$0x3]
        %v514 = vld [vmem:[%s438 + $0x78] sm:$0xff]
        %v515 = vld [vmem:[%s438 + $0x80] sm:$0xff]
        %v516 = vld [vmem:[%s438 + $0x88] sm:$0x3]
        %v517 = vld [vmem:[%s438 + $0x90] sm:$0xff]
        %v518 = vld [vmem:[%s438 + $0x98] sm:$0xff]
        %v519 = vld [vmem:[%s438 + $0xa0] sm:$0x3]
        %v520 = vld [vmem:[%s438 + $0xa8] sm:$0xff]
        %v521 = vld [vmem:[%s438 + $0xb0] sm:$0xff]
        %v522 = vld [vmem:[%s438 + $0xb8] sm:$0x3]
        %v523 = vld [vmem:[%s438 + $0xc0] sm:$0xff]
        %v524 = vld [vmem:[%s438 + $0xc8] sm:$0xff]
        %v525 = vld [vmem:[%s438 + $0xd0] sm:$0x3]
        %v526 = vld [vmem:[%s438 + $0xd8] sm:$0xff]
        %v527 = vld [vmem:[%s438 + $0xe0] sm:$0xff]
        %v528 = vld [vmem:[%s438 + $0xe8] sm:$0x3]
        %v529 = vld [vmem:[%s438 + $0xf0] sm:$0xff]
        %v530 = vld [vmem:[%s438 + $0xf8] sm:$0xff]
        %v531 = vld [vmem:[%s438 + $0x100] sm:$0x3]
        %v532 = vld [vmem:[%s438 + $0x108] sm:$0xff]
        %v533 = vld [vmem:[%s438 + $0x110] sm:$0xff]
        %v534 = vld [vmem:[%s438 + $0x118] sm:$0x3]
        %v535 = vld [vmem:[%s438 + $0x120] sm:$0xff]
        %v536 = vld [vmem:[%s438 + $0x128] sm:$0xff]
        %v537 = vld [vmem:[%s438 + $0x130] sm:$0x3]
        %v538 = vld [vmem:[%s438 + $0x138] sm:$0xff]
        %v539 = vld [vmem:[%s438 + $0x140] sm:$0xff]
        %v540 = vld [vmem:[%s438 + $0x148] sm:$0x3]
        %v541 = vld [vmem:[%s438 + $0x150] sm:$0xff]
        %v542 = vld [vmem:[%s438 + $0x158] sm:$0xff]
        %v543 = vld [vmem:[%s438 + $0x160] sm:$0x3]
        %v544 = vld [vmem:[%s438 + $0x168] sm:$0xff]
        %v545 = vld [vmem:[%s438 + $0x170] sm:$0xff]
        %v546 = vld [vmem:[%s438 + $0x178] sm:$0x3]
        %v547 = vld [vmem:[%s455] sm:$0xff]
        %v548 = vld [vmem:[%s455 + $0x8] sm:$0xff]
        %v549 = vld [vmem:[%s455 + $0x10] sm:$0x3]
        %v550 = vld [vmem:[%s468] sm:$0xff]
        %v551 = vld [vmem:[%s468 + $0x8] sm:$0xff]
        %v552 = vld [vmem:[%s468 + $0x10] sm:$0x3]
        %vm601 = vcmask 1046528
        %v602 = vrot.slane %v499, 1
        %v603 = vrot.slane %v500, 1
        %v604 = vsel %vm601, %v602, %v603
        %v605 = vrot.slane %v501, 1
        %v606 = vsel %vm601, %v603, %v605
        %v607 = vrot.slane %v502, 1
        %v608 = vrot.slane %v503, 1
        %v609 = vsel %vm601, %v607, %v608
        %v610 = vrot.slane %v504, 1
        %v611 = vsel %vm601, %v608, %v610
        %v612 = vrot.slane %v505, 1
        %v613 = vrot.slane %v506, 1
        %v614 = vsel %vm601, %v612, %v613
        %v615 = vrot.slane %v507, 1
        %v616 = vsel %vm601, %v613, %v615
        %v617 = vrot.slane %v508, 1
        %v618 = vrot.slane %v509, 1
        %v619 = vsel %vm601, %v617, %v618
        %v620 = vrot.slane %v510, 1
        %v621 = vsel %vm601, %v618, %v620
        %v622 = vrot.slane %v511, 1
        %v623 = vrot.slane %v512, 1
        %v624 = vsel %vm601, %v622, %v623
        %v625 = vrot.slane %v513, 1
        %v626 = vsel %vm601, %v623, %v625
        %v627 = vrot.slane %v514, 1
        %v628 = vrot.slane %v515, 1
        %v629 = vsel %vm601, %v627, %v628
        %v630 = vrot.slane %v516, 1
        %v631 = vsel %vm601, %v628, %v630
        %v632 = vrot.slane %v517, 1
        %v633 = vrot.slane %v518, 1
        %v634 = vsel %vm601, %v632, %v633
        %v635 = vrot.slane %v519, 1
        %v636 = vsel %vm601, %v633, %v635
        %v637 = vrot.slane %v520, 1
        %v638 = vrot.slane %v521, 1
        %v639 = vsel %vm601, %v637, %v638
        %v640 = vrot.slane %v522, 1
        %v641 = vsel %vm601, %v638, %v640
        %v642 = vrot.slane %v523, 1
        %v643 = vrot.slane %v524, 1
        %v644 = vsel %vm601, %v642, %v643
        %v645 = vrot.slane %v525, 1
        %v646 = vsel %vm601, %v643, %v645
        %v647 = vrot.slane %v526, 1
        %v648 = vrot.slane %v527, 1
        %v649 = vsel %vm601, %v647, %v648
        %v650 = vrot.slane %v528, 1
        %v651 = vsel %vm601, %v648, %v650
        %v652 = vrot.slane %v529, 1
        %v653 = vrot.slane %v530, 1
        %v654 = vsel %vm601, %v652, %v653
        %v655 = vrot.slane %v531, 1
        %v656 = vsel %vm601, %v653, %v655
        %v657 = vrot.slane %v532, 1
        %v658 = vrot.slane %v533, 1
        %v659 = vsel %vm601, %v657, %v658
        %v660 = vrot.slane %v534, 1
        %v661 = vsel %vm601, %v658, %v660
        %v662 = vrot.slane %v535, 1
        %v663 = vrot.slane %v536, 1
        %v664 = vsel %vm601, %v662, %v663
        %v665 = vrot.slane %v537, 1
        %v666 = vsel %vm601, %v663, %v665
        %v667 = vrot.slane %v538, 1
        %v668 = vrot.slane %v539, 1
        %v669 = vsel %vm601, %v667, %v668
        %v670 = vrot.slane %v540, 1
        %v671 = vsel %vm601, %v668, %v670
        %v672 = vrot.slane %v541, 1
        %v673 = vrot.slane %v542, 1
        %v674 = vsel %vm601, %v672, %v673
        %v675 = vrot.slane %v543, 1
        %v676 = vsel %vm601, %v673, %v675
        %v677 = vrot.slane %v544, 1
        %v678 = vrot.slane %v545, 1
        %v679 = vsel %vm601, %v677, %v678
        %v680 = vrot.slane %v546, 1
        %v681 = vsel %vm601, %v678, %v680
        %vm682 = vcmask 1045504
        %v683 = vrot.slane %v499, 2
        %v684 = vrot.slane %v500, 2
        %v685 = vsel %vm682, %v683, %v684
        %v686 = vrot.slane %v501, 2
        %v687 = vsel %vm682, %v684, %v686
        %v688 = vrot.slane %v502, 2
        %v689 = vrot.slane %v503, 2
        %v690 = vsel %vm682, %v688, %v689
        %v691 = vrot.slane %v504, 2
        %v692 = vsel %vm682, %v689, %v691
        %v693 = vrot.slane %v505, 2
        %v694 = vrot.slane %v506, 2
        %v695 = vsel %vm682, %v693, %v694
        %v696 = vrot.slane %v507, 2
        %v697 = vsel %vm682, %v694, %v696
        %v698 = vrot.slane %v508, 2
        %v699 = vrot.slane %v509, 2
        %v700 = vsel %vm682, %v698, %v699
        %v701 = vrot.slane %v510, 2
        %v702 = vsel %vm682, %v699, %v701
        %v703 = vrot.slane %v511, 2
        %v704 = vrot.slane %v512, 2
        %v705 = vsel %vm682, %v703, %v704
        %v706 = vrot.slane %v513, 2
        %v707 = vsel %vm682, %v704, %v706
        %v708 = vrot.slane %v514, 2
        %v709 = vrot.slane %v515, 2
        %v710 = vsel %vm682, %v708, %v709
        %v711 = vrot.slane %v516, 2
        %v712 = vsel %vm682, %v709, %v711
        %v713 = vrot.slane %v517, 2
        %v714 = vrot.slane %v518, 2
        %v715 = vsel %vm682, %v713, %v714
        %v716 = vrot.slane %v519, 2
        %v717 = vsel %vm682, %v714, %v716
        %v718 = vrot.slane %v520, 2
        %v719 = vrot.slane %v521, 2
        %v720 = vsel %vm682, %v718, %v719
        %v721 = vrot.slane %v522, 2
        %v722 = vsel %vm682, %v719, %v721
        %v723 = vrot.slane %v523, 2
        %v724 = vrot.slane %v524, 2
        %v725 = vsel %vm682, %v723, %v724
        %v726 = vrot.slane %v525, 2
        %v727 = vsel %vm682, %v724, %v726
        %v728 = vrot.slane %v526, 2
        %v729 = vrot.slane %v527, 2
        %v730 = vsel %vm682, %v728, %v729
        %v731 = vrot.slane %v528, 2
        %v732 = vsel %vm682, %v729, %v731
        %v733 = vrot.slane %v529, 2
        %v734 = vrot.slane %v530, 2
        %v735 = vsel %vm682, %v733, %v734
        %v736 = vrot.slane %v531, 2
        %v737 = vsel %vm682, %v734, %v736
        %v738 = vrot.slane %v532, 2
        %v739 = vrot.slane %v533, 2
        %v740 = vsel %vm682, %v738, %v739
        %v741 = vrot.slane %v534, 2
        %v742 = vsel %vm682, %v739, %v741
        %v743 = vrot.slane %v535, 2
        %v744 = vrot.slane %v536, 2
        %v745 = vsel %vm682, %v743, %v744
        %v746 = vrot.slane %v537, 2
        %v747 = vsel %vm682, %v744, %v746
        %v748 = vrot.slane %v538, 2
        %v749 = vrot.slane %v539, 2
        %v750 = vsel %vm682, %v748, %v749
        %v751 = vrot.slane %v540, 2
        %v752 = vsel %vm682, %v749, %v751
        %v753 = vrot.slane %v541, 2
        %v754 = vrot.slane %v542, 2
        %v755 = vsel %vm682, %v753, %v754
        %v756 = vrot.slane %v543, 2
        %v757 = vsel %vm682, %v754, %v756
        %v758 = vrot.slane %v544, 2
        %v759 = vrot.slane %v545, 2
        %v760 = vsel %vm682, %v758, %v759
        %v761 = vrot.slane %v546, 2
        %v762 = vsel %vm682, %v759, %v761
        %v766 = vrot.slane %v547, 1
        %v767 = vrot.slane %v548, 1
        %v768 = vsel %vm601, %v766, %v767
        %v769 = vrot.slane %v549, 1
        %v770 = vsel %vm601, %v767, %v769
        %v771 = vrot.slane %v547, 2
        %v772 = vrot.slane %v548, 2
        %v773 = vsel %vm682, %v771, %v772
        %v774 = vrot.slane %v549, 2
        %v775 = vsel %vm682, %v772, %v774
        %v779 = vrot.slane %v550, 1
        %v780 = vrot.slane %v551, 1
        %v781 = vsel %vm601, %v779, %v780
        %v782 = vrot.slane %v552, 1
        %v783 = vsel %vm601, %v780, %v782
        %v784 = vrot.slane %v550, 2
        %v785 = vrot.slane %v551, 2
        %v786 = vsel %vm682, %v784, %v785
        %v787 = vrot.slane %v552, 2
        %v788 = vsel %vm682, %v785, %v787
        %789 = vrot.lane.b32.xlu0 %v604, 4
        %v790 = vpop.permute.xlu0 %789
        %791 = vrot.lane.b32.xlu0 %v606, 4
        %v792 = vpop.permute.xlu0 %791
        %793 = vrot.lane.b32.xlu0 %v609, 4
        %v794 = vpop.permute.xlu0 %793
        %795 = vrot.lane.b32.xlu0 %v611, 4
        %v796 = vpop.permute.xlu0 %795
        %797 = vrot.lane.b32.xlu0 %v614, 4
        %v798 = vpop.permute.xlu0 %797
        %799 = vrot.lane.b32.xlu0 %v616, 4
        %v800 = vpop.permute.xlu0 %799
        %801 = vrot.lane.b32.xlu0 %v619, 4
        %v802 = vpop.permute.xlu0 %801
        %803 = vrot.lane.b32.xlu0 %v621, 4
        %v804 = vpop.permute.xlu0 %803
        %805 = vrot.lane.b32.xlu0 %v624, 4
        %v806 = vpop.permute.xlu0 %805
        %807 = vrot.lane.b32.xlu0 %v626, 4
        %v808 = vpop.permute.xlu0 %807
        %809 = vrot.lane.b32.xlu0 %v629, 4
        %v810 = vpop.permute.xlu0 %809
        %811 = vrot.lane.b32.xlu0 %v631, 4
        %v812 = vpop.permute.xlu0 %811
        %813 = vrot.lane.b32.xlu0 %v634, 4
        %v814 = vpop.permute.xlu0 %813
        %815 = vrot.lane.b32.xlu0 %v636, 4
        %v816 = vpop.permute.xlu0 %815
        %817 = vrot.lane.b32.xlu0 %v639, 4
        %v818 = vpop.permute.xlu0 %817
        %819 = vrot.lane.b32.xlu0 %v641, 4
        %v820 = vpop.permute.xlu0 %819
        %821 = vrot.lane.b32.xlu0 %v644, 4
        %v822 = vpop.permute.xlu0 %821
        %823 = vrot.lane.b32.xlu0 %v646, 4
        %v824 = vpop.permute.xlu0 %823
        %825 = vrot.lane.b32.xlu0 %v649, 4
        %v826 = vpop.permute.xlu0 %825
        %827 = vrot.lane.b32.xlu0 %v651, 4
        %v828 = vpop.permute.xlu0 %827
        %829 = vrot.lane.b32.xlu0 %v654, 4
        %v830 = vpop.permute.xlu0 %829
        %831 = vrot.lane.b32.xlu0 %v656, 4
        %v832 = vpop.permute.xlu0 %831
        %833 = vrot.lane.b32.xlu0 %v659, 4
        %v834 = vpop.permute.xlu0 %833
        %835 = vrot.lane.b32.xlu0 %v661, 4
        %v836 = vpop.permute.xlu0 %835
        %837 = vrot.lane.b32.xlu0 %v664, 4
        %v838 = vpop.permute.xlu0 %837
        %839 = vrot.lane.b32.xlu0 %v666, 4
        %v840 = vpop.permute.xlu0 %839
        %841 = vrot.lane.b32.xlu0 %v669, 4
        %v842 = vpop.permute.xlu0 %841
        %843 = vrot.lane.b32.xlu0 %v671, 4
        %v844 = vpop.permute.xlu0 %843
        %845 = vrot.lane.b32.xlu0 %v674, 4
        %v846 = vpop.permute.xlu0 %845
        %847 = vrot.lane.b32.xlu0 %v676, 4
        %v848 = vpop.permute.xlu0 %847
        %849 = vrot.lane.b32.xlu0 %v679, 4
        %v850 = vpop.permute.xlu0 %849
        %851 = vrot.lane.b32.xlu0 %v681, 4
        %v852 = vpop.permute.xlu0 %851
        %885 = vrot.lane.b32.xlu0 %v685, 8
        %v886 = vpop.permute.xlu0 %885
        %887 = vrot.lane.b32.xlu0 %v687, 8
        %v888 = vpop.permute.xlu0 %887
        %889 = vrot.lane.b32.xlu0 %v690, 8
        %v890 = vpop.permute.xlu0 %889
        %891 = vrot.lane.b32.xlu0 %v692, 8
        %v892 = vpop.permute.xlu0 %891
        %893 = vrot.lane.b32.xlu0 %v695, 8
        %v894 = vpop.permute.xlu0 %893
        %895 = vrot.lane.b32.xlu0 %v697, 8
        %v896 = vpop.permute.xlu0 %895
        %897 = vrot.lane.b32.xlu0 %v700, 8
        %v898 = vpop.permute.xlu0 %897
        %899 = vrot.lane.b32.xlu0 %v702, 8
        %v900 = vpop.permute.xlu0 %899
        %901 = vrot.lane.b32.xlu0 %v705, 8
        %v902 = vpop.permute.xlu0 %901
        %903 = vrot.lane.b32.xlu0 %v707, 8
        %v904 = vpop.permute.xlu0 %903
        %905 = vrot.lane.b32.xlu0 %v710, 8
        %v906 = vpop.permute.xlu0 %905
        %907 = vrot.lane.b32.xlu0 %v712, 8
        %v908 = vpop.permute.xlu0 %907
        %909 = vrot.lane.b32.xlu0 %v715, 8
        %v910 = vpop.permute.xlu0 %909
        %911 = vrot.lane.b32.xlu0 %v717, 8
        %v912 = vpop.permute.xlu0 %911
        %913 = vrot.lane.b32.xlu0 %v720, 8
        %v914 = vpop.permute.xlu0 %913
        %915 = vrot.lane.b32.xlu0 %v722, 8
        %v916 = vpop.permute.xlu0 %915
        %917 = vrot.lane.b32.xlu0 %v725, 8
        %v918 = vpop.permute.xlu0 %917
        %919 = vrot.lane.b32.xlu0 %v727, 8
        %v920 = vpop.permute.xlu0 %919
        %921 = vrot.lane.b32.xlu0 %v730, 8
        %v922 = vpop.permute.xlu0 %921
        %923 = vrot.lane.b32.xlu0 %v732, 8
        %v924 = vpop.permute.xlu0 %923
        %925 = vrot.lane.b32.xlu0 %v735, 8
        %v926 = vpop.permute.xlu0 %925
        %927 = vrot.lane.b32.xlu0 %v737, 8
        %v928 = vpop.permute.xlu0 %927
        %929 = vrot.lane.b32.xlu0 %v740, 8
        %v930 = vpop.permute.xlu0 %929
        %931 = vrot.lane.b32.xlu0 %v742, 8
        %v932 = vpop.permute.xlu0 %931
        %933 = vrot.lane.b32.xlu0 %v745, 8
        %v934 = vpop.permute.xlu0 %933
        %935 = vrot.lane.b32.xlu0 %v747, 8
        %v936 = vpop.permute.xlu0 %935
        %937 = vrot.lane.b32.xlu0 %v750, 8
        %v938 = vpop.permute.xlu0 %937
        %939 = vrot.lane.b32.xlu0 %v752, 8
        %v940 = vpop.permute.xlu0 %939
        %941 = vrot.lane.b32.xlu0 %v755, 8
        %v942 = vpop.permute.xlu0 %941
        %943 = vrot.lane.b32.xlu0 %v757, 8
        %v944 = vpop.permute.xlu0 %943
        %945 = vrot.lane.b32.xlu0 %v760, 8
        %v946 = vpop.permute.xlu0 %945
        %947 = vrot.lane.b32.xlu0 %v762, 8
        %v948 = vpop.permute.xlu0 %947
        %981 = vrot.lane.b32.xlu0 %v502, 12
        %v982 = vpop.permute.xlu0 %981
        %983 = vrot.lane.b32.xlu0 %v503, 12
        %v984 = vpop.permute.xlu0 %983
        %985 = vrot.lane.b32.xlu0 %v505, 12
        %v986 = vpop.permute.xlu0 %985
        %987 = vrot.lane.b32.xlu0 %v506, 12
        %v988 = vpop.permute.xlu0 %987
        %989 = vrot.lane.b32.xlu0 %v508, 12
        %v990 = vpop.permute.xlu0 %989
        %991 = vrot.lane.b32.xlu0 %v509, 12
        %v992 = vpop.permute.xlu0 %991
        %993 = vrot.lane.b32.xlu0 %v511, 12
        %v994 = vpop.permute.xlu0 %993
        %995 = vrot.lane.b32.xlu0 %v512, 12
        %v996 = vpop.permute.xlu0 %995
        %997 = vrot.lane.b32.xlu0 %v514, 12
        %v998 = vpop.permute.xlu0 %997
        %999 = vrot.lane.b32.xlu0 %v515, 12
        %v1000 = vpop.permute.xlu0 %999
        %1001 = vrot.lane.b32.xlu0 %v517, 12
        %v1002 = vpop.permute.xlu0 %1001
        %1003 = vrot.lane.b32.xlu0 %v518, 12
        %v1004 = vpop.permute.xlu0 %1003
        %1005 = vrot.lane.b32.xlu0 %v520, 12
        %v1006 = vpop.permute.xlu0 %1005
        %1007 = vrot.lane.b32.xlu0 %v521, 12
        %v1008 = vpop.permute.xlu0 %1007
        %1009 = vrot.lane.b32.xlu0 %v523, 12
        %v1010 = vpop.permute.xlu0 %1009
        %1011 = vrot.lane.b32.xlu0 %v524, 12
        %v1012 = vpop.permute.xlu0 %1011
        %1013 = vrot.lane.b32.xlu0 %v526, 12
        %v1014 = vpop.permute.xlu0 %1013
        %1015 = vrot.lane.b32.xlu0 %v527, 12
        %v1016 = vpop.permute.xlu0 %1015
        %1017 = vrot.lane.b32.xlu0 %v529, 12
        %v1018 = vpop.permute.xlu0 %1017
        %1019 = vrot.lane.b32.xlu0 %v530, 12
        %v1020 = vpop.permute.xlu0 %1019
        %1021 = vrot.lane.b32.xlu0 %v532, 12
        %v1022 = vpop.permute.xlu0 %1021
        %1023 = vrot.lane.b32.xlu0 %v533, 12
        %v1024 = vpop.permute.xlu0 %1023
        %1025 = vrot.lane.b32.xlu0 %v535, 12
        %v1026 = vpop.permute.xlu0 %1025
        %1027 = vrot.lane.b32.xlu0 %v536, 12
        %v1028 = vpop.permute.xlu0 %1027
        %1029 = vrot.lane.b32.xlu0 %v538, 12
        %v1030 = vpop.permute.xlu0 %1029
        %1031 = vrot.lane.b32.xlu0 %v539, 12
        %v1032 = vpop.permute.xlu0 %1031
        %1033 = vrot.lane.b32.xlu0 %v541, 12
        %v1034 = vpop.permute.xlu0 %1033
        %1035 = vrot.lane.b32.xlu0 %v542, 12
        %v1036 = vpop.permute.xlu0 %1035
        %1037 = vrot.lane.b32.xlu0 %v544, 12
        %v1038 = vpop.permute.xlu0 %1037
        %1039 = vrot.lane.b32.xlu0 %v545, 12
        %v1040 = vpop.permute.xlu0 %1039
        %1041 = vrot.lane.b32.xlu0 %v547, 12
        %v1042 = vpop.permute.xlu0 %1041
        %1043 = vrot.lane.b32.xlu0 %v548, 12
        %v1044 = vpop.permute.xlu0 %1043
        %1077 = vrot.lane.b32.xlu0 %v609, 16
        %v1078 = vpop.permute.xlu0 %1077
        %1079 = vrot.lane.b32.xlu0 %v611, 16
        %v1080 = vpop.permute.xlu0 %1079
        %1081 = vrot.lane.b32.xlu0 %v614, 16
        %v1082 = vpop.permute.xlu0 %1081
        %1083 = vrot.lane.b32.xlu0 %v616, 16
        %v1084 = vpop.permute.xlu0 %1083
        %1085 = vrot.lane.b32.xlu0 %v619, 16
        %v1086 = vpop.permute.xlu0 %1085
        %1087 = vrot.lane.b32.xlu0 %v621, 16
        %v1088 = vpop.permute.xlu0 %1087
        %1089 = vrot.lane.b32.xlu0 %v624, 16
        %v1090 = vpop.permute.xlu0 %1089
        %1091 = vrot.lane.b32.xlu0 %v626, 16
        %v1092 = vpop.permute.xlu0 %1091
        %1093 = vrot.lane.b32.xlu0 %v629, 16
        %v1094 = vpop.permute.xlu0 %1093
        %1095 = vrot.lane.b32.xlu0 %v631, 16
        %v1096 = vpop.permute.xlu0 %1095
        %1097 = vrot.lane.b32.xlu0 %v634, 16
        %v1098 = vpop.permute.xlu0 %1097
        %1099 = vrot.lane.b32.xlu0 %v636, 16
        %v1100 = vpop.permute.xlu0 %1099
        %1101 = vrot.lane.b32.xlu0 %v639, 16
        %v1102 = vpop.permute.xlu0 %1101
        %1103 = vrot.lane.b32.xlu0 %v641, 16
        %v1104 = vpop.permute.xlu0 %1103
        %1105 = vrot.lane.b32.xlu0 %v644, 16
        %v1106 = vpop.permute.xlu0 %1105
        %1107 = vrot.lane.b32.xlu0 %v646, 16
        %v1108 = vpop.permute.xlu0 %1107
        %1109 = vrot.lane.b32.xlu0 %v649, 16
        %v1110 = vpop.permute.xlu0 %1109
        %1111 = vrot.lane.b32.xlu0 %v651, 16
        %v1112 = vpop.permute.xlu0 %1111
        %1113 = vrot.lane.b32.xlu0 %v654, 16
        %v1114 = vpop.permute.xlu0 %1113
        %1115 = vrot.lane.b32.xlu0 %v656, 16
        %v1116 = vpop.permute.xlu0 %1115
        %1117 = vrot.lane.b32.xlu0 %v659, 16
        %v1118 = vpop.permute.xlu0 %1117
        %1119 = vrot.lane.b32.xlu0 %v661, 16
        %v1120 = vpop.permute.xlu0 %1119
        %1121 = vrot.lane.b32.xlu0 %v664, 16
        %v1122 = vpop.permute.xlu0 %1121
        %1123 = vrot.lane.b32.xlu0 %v666, 16
        %v1124 = vpop.permute.xlu0 %1123
        %1125 = vrot.lane.b32.xlu0 %v669, 16
        %v1126 = vpop.permute.xlu0 %1125
        %1127 = vrot.lane.b32.xlu0 %v671, 16
        %v1128 = vpop.permute.xlu0 %1127
        %1129 = vrot.lane.b32.xlu0 %v674, 16
        %v1130 = vpop.permute.xlu0 %1129
        %1131 = vrot.lane.b32.xlu0 %v676, 16
        %v1132 = vpop.permute.xlu0 %1131
        %1133 = vrot.lane.b32.xlu0 %v679, 16
        %v1134 = vpop.permute.xlu0 %1133
        %1135 = vrot.lane.b32.xlu0 %v681, 16
        %v1136 = vpop.permute.xlu0 %1135
        %1137 = vrot.lane.b32.xlu0 %v768, 16
        %v1138 = vpop.permute.xlu0 %1137
        %1139 = vrot.lane.b32.xlu0 %v770, 16
        %v1140 = vpop.permute.xlu0 %1139
        %1173 = vrot.lane.b32.xlu0 %v690, 20
        %v1174 = vpop.permute.xlu0 %1173
        %1175 = vrot.lane.b32.xlu0 %v692, 20
        %v1176 = vpop.permute.xlu0 %1175
        %1177 = vrot.lane.b32.xlu0 %v695, 20
        %v1178 = vpop.permute.xlu0 %1177
        %1179 = vrot.lane.b32.xlu0 %v697, 20
        %v1180 = vpop.permute.xlu0 %1179
        %1181 = vrot.lane.b32.xlu0 %v700, 20
        %v1182 = vpop.permute.xlu0 %1181
        %1183 = vrot.lane.b32.xlu0 %v702, 20
        %v1184 = vpop.permute.xlu0 %1183
        %1185 = vrot.lane.b32.xlu0 %v705, 20
        %v1186 = vpop.permute.xlu0 %1185
        %1187 = vrot.lane.b32.xlu0 %v707, 20
        %v1188 = vpop.permute.xlu0 %1187
        %1189 = vrot.lane.b32.xlu0 %v710, 20
        %v1190 = vpop.permute.xlu0 %1189
        %1191 = vrot.lane.b32.xlu0 %v712, 20
        %v1192 = vpop.permute.xlu0 %1191
        %1193 = vrot.lane.b32.xlu0 %v715, 20
        %v1194 = vpop.permute.xlu0 %1193
        %1195 = vrot.lane.b32.xlu0 %v717, 20
        %v1196 = vpop.permute.xlu0 %1195
        %1197 = vrot.lane.b32.xlu0 %v720, 20
        %v1198 = vpop.permute.xlu0 %1197
        %1199 = vrot.lane.b32.xlu0 %v722, 20
        %v1200 = vpop.permute.xlu0 %1199
        %1201 = vrot.lane.b32.xlu0 %v725, 20
        %v1202 = vpop.permute.xlu0 %1201
        %1203 = vrot.lane.b32.xlu0 %v727, 20
        %v1204 = vpop.permute.xlu0 %1203
        %1205 = vrot.lane.b32.xlu0 %v730, 20
        %v1206 = vpop.permute.xlu0 %1205
        %1207 = vrot.lane.b32.xlu0 %v732, 20
        %v1208 = vpop.permute.xlu0 %1207
        %1209 = vrot.lane.b32.xlu0 %v735, 20
        %v1210 = vpop.permute.xlu0 %1209
        %1211 = vrot.lane.b32.xlu0 %v737, 20
        %v1212 = vpop.permute.xlu0 %1211
        %1213 = vrot.lane.b32.xlu0 %v740, 20
        %v1214 = vpop.permute.xlu0 %1213
        %1215 = vrot.lane.b32.xlu0 %v742, 20
        %v1216 = vpop.permute.xlu0 %1215
        %1217 = vrot.lane.b32.xlu0 %v745, 20
        %v1218 = vpop.permute.xlu0 %1217
        %1219 = vrot.lane.b32.xlu0 %v747, 20
        %v1220 = vpop.permute.xlu0 %1219
        %1221 = vrot.lane.b32.xlu0 %v750, 20
        %v1222 = vpop.permute.xlu0 %1221
        %1223 = vrot.lane.b32.xlu0 %v752, 20
        %v1224 = vpop.permute.xlu0 %1223
        %1225 = vrot.lane.b32.xlu0 %v755, 20
        %v1226 = vpop.permute.xlu0 %1225
        %1227 = vrot.lane.b32.xlu0 %v757, 20
        %v1228 = vpop.permute.xlu0 %1227
        %1229 = vrot.lane.b32.xlu0 %v760, 20
        %v1230 = vpop.permute.xlu0 %1229
        %1231 = vrot.lane.b32.xlu0 %v762, 20
        %v1232 = vpop.permute.xlu0 %1231
        %1233 = vrot.lane.b32.xlu0 %v773, 20
        %v1234 = vpop.permute.xlu0 %1233
        %1235 = vrot.lane.b32.xlu0 %v775, 20
        %v1236 = vpop.permute.xlu0 %1235
        %1269 = vrot.lane.b32.xlu0 %v505, 24
        %v1270 = vpop.permute.xlu0 %1269
        %1271 = vrot.lane.b32.xlu0 %v506, 24
        %v1272 = vpop.permute.xlu0 %1271
        %1273 = vrot.lane.b32.xlu0 %v508, 24
        %v1274 = vpop.permute.xlu0 %1273
        %1275 = vrot.lane.b32.xlu0 %v509, 24
        %v1276 = vpop.permute.xlu0 %1275
        %1277 = vrot.lane.b32.xlu0 %v511, 24
        %v1278 = vpop.permute.xlu0 %1277
        %1279 = vrot.lane.b32.xlu0 %v512, 24
        %v1280 = vpop.permute.xlu0 %1279
        %1281 = vrot.lane.b32.xlu0 %v514, 24
        %v1282 = vpop.permute.xlu0 %1281
        %1283 = vrot.lane.b32.xlu0 %v515, 24
        %v1284 = vpop.permute.xlu0 %1283
        %1285 = vrot.lane.b32.xlu0 %v517, 24
        %v1286 = vpop.permute.xlu0 %1285
        %1287 = vrot.lane.b32.xlu0 %v518, 24
        %v1288 = vpop.permute.xlu0 %1287
        %1289 = vrot.lane.b32.xlu0 %v520, 24
        %v1290 = vpop.permute.xlu0 %1289
        %1291 = vrot.lane.b32.xlu0 %v521, 24
        %v1292 = vpop.permute.xlu0 %1291
        %1293 = vrot.lane.b32.xlu0 %v523, 24
        %v1294 = vpop.permute.xlu0 %1293
        %1295 = vrot.lane.b32.xlu0 %v524, 24
        %v1296 = vpop.permute.xlu0 %1295
        %1297 = vrot.lane.b32.xlu0 %v526, 24
        %v1298 = vpop.permute.xlu0 %1297
        %1299 = vrot.lane.b32.xlu0 %v527, 24
        %v1300 = vpop.permute.xlu0 %1299
        %1301 = vrot.lane.b32.xlu0 %v529, 24
        %v1302 = vpop.permute.xlu0 %1301
        %1303 = vrot.lane.b32.xlu0 %v530, 24
        %v1304 = vpop.permute.xlu0 %1303
        %1305 = vrot.lane.b32.xlu0 %v532, 24
        %v1306 = vpop.permute.xlu0 %1305
        %1307 = vrot.lane.b32.xlu0 %v533, 24
        %v1308 = vpop.permute.xlu0 %1307
        %1309 = vrot.lane.b32.xlu0 %v535, 24
        %v1310 = vpop.permute.xlu0 %1309
        %1311 = vrot.lane.b32.xlu0 %v536, 24
        %v1312 = vpop.permute.xlu0 %1311
        %1313 = vrot.lane.b32.xlu0 %v538, 24
        %v1314 = vpop.permute.xlu0 %1313
        %1315 = vrot.lane.b32.xlu0 %v539, 24
        %v1316 = vpop.permute.xlu0 %1315
        %1317 = vrot.lane.b32.xlu0 %v541, 24
        %v1318 = vpop.permute.xlu0 %1317
        %1319 = vrot.lane.b32.xlu0 %v542, 24
        %v1320 = vpop.permute.xlu0 %1319
        %1321 = vrot.lane.b32.xlu0 %v544, 24
        %v1322 = vpop.permute.xlu0 %1321
        %1323 = vrot.lane.b32.xlu0 %v545, 24
        %v1324 = vpop.permute.xlu0 %1323
        %1325 = vrot.lane.b32.xlu0 %v547, 24
        %v1326 = vpop.permute.xlu0 %1325
        %1327 = vrot.lane.b32.xlu0 %v548, 24
        %v1328 = vpop.permute.xlu0 %1327
        %1329 = vrot.lane.b32.xlu0 %v550, 24
        %v1330 = vpop.permute.xlu0 %1329
        %1331 = vrot.lane.b32.xlu0 %v551, 24
        %v1332 = vpop.permute.xlu0 %1331
        %1365 = vrot.lane.b32.xlu0 %v614, 28
        %v1366 = vpop.permute.xlu0 %1365
        %1367 = vrot.lane.b32.xlu0 %v616, 28
        %v1368 = vpop.permute.xlu0 %1367
        %1369 = vrot.lane.b32.xlu0 %v619, 28
        %v1370 = vpop.permute.xlu0 %1369
        %1371 = vrot.lane.b32.xlu0 %v621, 28
        %v1372 = vpop.permute.xlu0 %1371
        %1373 = vrot.lane.b32.xlu0 %v624, 28
        %v1374 = vpop.permute.xlu0 %1373
        %1375 = vrot.lane.b32.xlu0 %v626, 28
        %v1376 = vpop.permute.xlu0 %1375
        %1377 = vrot.lane.b32.xlu0 %v629, 28
        %v1378 = vpop.permute.xlu0 %1377
        %1379 = vrot.lane.b32.xlu0 %v631, 28
        %v1380 = vpop.permute.xlu0 %1379
        %1381 = vrot.lane.b32.xlu0 %v634, 28
        %v1382 = vpop.permute.xlu0 %1381
        %1383 = vrot.lane.b32.xlu0 %v636, 28
        %v1384 = vpop.permute.xlu0 %1383
        %1385 = vrot.lane.b32.xlu0 %v639, 28
        %v1386 = vpop.permute.xlu0 %1385
        %1387 = vrot.lane.b32.xlu0 %v641, 28
        %v1388 = vpop.permute.xlu0 %1387
        %1389 = vrot.lane.b32.xlu0 %v644, 28
        %v1390 = vpop.permute.xlu0 %1389
        %1391 = vrot.lane.b32.xlu0 %v646, 28
        %v1392 = vpop.permute.xlu0 %1391
        %1393 = vrot.lane.b32.xlu0 %v649, 28
        %v1394 = vpop.permute.xlu0 %1393
        %1395 = vrot.lane.b32.xlu0 %v651, 28
        %v1396 = vpop.permute.xlu0 %1395
        %1397 = vrot.lane.b32.xlu0 %v654, 28
        %v1398 = vpop.permute.xlu0 %1397
        %1399 = vrot.lane.b32.xlu0 %v656, 28
        %v1400 = vpop.permute.xlu0 %1399
        %1401 = vrot.lane.b32.xlu0 %v659, 28
        %v1402 = vpop.permute.xlu0 %1401
        %1403 = vrot.lane.b32.xlu0 %v661, 28
        %v1404 = vpop.permute.xlu0 %1403
        %1405 = vrot.lane.b32.xlu0 %v664, 28
        %v1406 = vpop.permute.xlu0 %1405
        %1407 = vrot.lane.b32.xlu0 %v666, 28
        %v1408 = vpop.permute.xlu0 %1407
        %1409 = vrot.lane.b32.xlu0 %v669, 28
        %v1410 = vpop.permute.xlu0 %1409
        %1411 = vrot.lane.b32.xlu0 %v671, 28
        %v1412 = vpop.permute.xlu0 %1411
        %1413 = vrot.lane.b32.xlu0 %v674, 28
        %v1414 = vpop.permute.xlu0 %1413
        %1415 = vrot.lane.b32.xlu0 %v676, 28
        %v1416 = vpop.permute.xlu0 %1415
        %1417 = vrot.lane.b32.xlu0 %v679, 28
        %v1418 = vpop.permute.xlu0 %1417
        %1419 = vrot.lane.b32.xlu0 %v681, 28
        %v1420 = vpop.permute.xlu0 %1419
        %1421 = vrot.lane.b32.xlu0 %v768, 28
        %v1422 = vpop.permute.xlu0 %1421
        %1423 = vrot.lane.b32.xlu0 %v770, 28
        %v1424 = vpop.permute.xlu0 %1423
        %1425 = vrot.lane.b32.xlu0 %v781, 28
        %v1426 = vpop.permute.xlu0 %1425
        %1427 = vrot.lane.b32.xlu0 %v783, 28
        %v1428 = vpop.permute.xlu0 %1427
        %1461 = vrot.lane.b32.xlu0 %v695, 32
        %v1462 = vpop.permute.xlu0 %1461
        %1463 = vrot.lane.b32.xlu0 %v697, 32
        %v1464 = vpop.permute.xlu0 %1463
        %1465 = vrot.lane.b32.xlu0 %v700, 32
        %v1466 = vpop.permute.xlu0 %1465
        %1467 = vrot.lane.b32.xlu0 %v702, 32
        %v1468 = vpop.permute.xlu0 %1467
        %1469 = vrot.lane.b32.xlu0 %v705, 32
        %v1470 = vpop.permute.xlu0 %1469
        %1471 = vrot.lane.b32.xlu0 %v707, 32
        %v1472 = vpop.permute.xlu0 %1471
        %1473 = vrot.lane.b32.xlu0 %v710, 32
        %v1474 = vpop.permute.xlu0 %1473
        %1475 = vrot.lane.b32.xlu0 %v712, 32
        %v1476 = vpop.permute.xlu0 %1475
        %1477 = vrot.lane.b32.xlu0 %v715, 32
        %v1478 = vpop.permute.xlu0 %1477
        %1479 = vrot.lane.b32.xlu0 %v717, 32
        %v1480 = vpop.permute.xlu0 %1479
        %1481 = vrot.lane.b32.xlu0 %v720, 32
        %v1482 = vpop.permute.xlu0 %1481
        %1483 = vrot.lane.b32.xlu0 %v722, 32
        %v1484 = vpop.permute.xlu0 %1483
        %1485 = vrot.lane.b32.xlu0 %v725, 32
        %v1486 = vpop.permute.xlu0 %1485
        %1487 = vrot.lane.b32.xlu0 %v727, 32
        %v1488 = vpop.permute.xlu0 %1487
        %1489 = vrot.lane.b32.xlu0 %v730, 32
        %v1490 = vpop.permute.xlu0 %1489
        %1491 = vrot.lane.b32.xlu0 %v732, 32
        %v1492 = vpop.permute.xlu0 %1491
        %1493 = vrot.lane.b32.xlu0 %v735, 32
        %v1494 = vpop.permute.xlu0 %1493
        %1495 = vrot.lane.b32.xlu0 %v737, 32
        %v1496 = vpop.permute.xlu0 %1495
        %1497 = vrot.lane.b32.xlu0 %v740, 32
        %v1498 = vpop.permute.xlu0 %1497
        %1499 = vrot.lane.b32.xlu0 %v742, 32
        %v1500 = vpop.permute.xlu0 %1499
        %1501 = vrot.lane.b32.xlu0 %v745, 32
        %v1502 = vpop.permute.xlu0 %1501
        %1503 = vrot.lane.b32.xlu0 %v747, 32
        %v1504 = vpop.permute.xlu0 %1503
        %1505 = vrot.lane.b32.xlu0 %v750, 32
        %v1506 = vpop.permute.xlu0 %1505
        %1507 = vrot.lane.b32.xlu0 %v752, 32
        %v1508 = vpop.permute.xlu0 %1507
        %1509 = vrot.lane.b32.xlu0 %v755, 32
        %v1510 = vpop.permute.xlu0 %1509
        %1511 = vrot.lane.b32.xlu0 %v757, 32
        %v1512 = vpop.permute.xlu0 %1511
        %1513 = vrot.lane.b32.xlu0 %v760, 32
        %v1514 = vpop.permute.xlu0 %1513
        %1515 = vrot.lane.b32.xlu0 %v762, 32
        %v1516 = vpop.permute.xlu0 %1515
        %1517 = vrot.lane.b32.xlu0 %v773, 32
        %v1518 = vpop.permute.xlu0 %1517
        %1519 = vrot.lane.b32.xlu0 %v775, 32
        %v1520 = vpop.permute.xlu0 %1519
        %1521 = vrot.lane.b32.xlu0 %v786, 32
        %v1522 = vpop.permute.xlu0 %1521
        %1523 = vrot.lane.b32.xlu0 %v788, 32
        %v1524 = vpop.permute.xlu0 %1523
        %vm1557 = vcmask 31744
        %v1558 = vsel %vm1557, %v499, %v790
        %v1559 = vsel %vm1557, %v500, %v792
        %v1560 = vsel %vm1557, %v502, %v794
        %v1561 = vsel %vm1557, %v503, %v796
        %v1562 = vsel %vm1557, %v505, %v798
        %v1563 = vsel %vm1557, %v506, %v800
        %v1564 = vsel %vm1557, %v508, %v802
        %v1565 = vsel %vm1557, %v509, %v804
        %v1566 = vsel %vm1557, %v511, %v806
        %v1567 = vsel %vm1557, %v512, %v808
        %v1568 = vsel %vm1557, %v514, %v810
        %v1569 = vsel %vm1557, %v515, %v812
        %v1570 = vsel %vm1557, %v517, %v814
        %v1571 = vsel %vm1557, %v518, %v816
        %v1572 = vsel %vm1557, %v520, %v818
        %v1573 = vsel %vm1557, %v521, %v820
        %v1574 = vsel %vm1557, %v523, %v822
        %v1575 = vsel %vm1557, %v524, %v824
        %v1576 = vsel %vm1557, %v526, %v826
        %v1577 = vsel %vm1557, %v527, %v828
        %v1578 = vsel %vm1557, %v529, %v830
        %v1579 = vsel %vm1557, %v530, %v832
        %v1580 = vsel %vm1557, %v532, %v834
        %v1581 = vsel %vm1557, %v533, %v836
        %v1582 = vsel %vm1557, %v535, %v838
        %v1583 = vsel %vm1557, %v536, %v840
        %v1584 = vsel %vm1557, %v538, %v842
        %v1585 = vsel %vm1557, %v539, %v844
        %v1586 = vsel %vm1557, %v541, %v846
        %v1587 = vsel %vm1557, %v542, %v848
        %v1588 = vsel %vm1557, %v544, %v850
        %v1589 = vsel %vm1557, %v545, %v852
        %vm1590 = vcmask 64512
        %v1591 = vsel %vm1590, %v1558, %v886
        %v1592 = vsel %vm1590, %v1559, %v888
        %v1593 = vsel %vm1590, %v1560, %v890
        %v1594 = vsel %vm1590, %v1561, %v892
        %v1595 = vsel %vm1590, %v1562, %v894
        %v1596 = vsel %vm1590, %v1563, %v896
        %v1597 = vsel %vm1590, %v1564, %v898
        %v1598 = vsel %vm1590, %v1565, %v900
        %v1599 = vsel %vm1590, %v1566, %v902
        %v1600 = vsel %vm1590, %v1567, %v904
        %v1601 = vsel %vm1590, %v1568, %v906
        %v1602 = vsel %vm1590, %v1569, %v908
        %v1603 = vsel %vm1590, %v1570, %v910
        %v1604 = vsel %vm1590, %v1571, %v912
        %v1605 = vsel %vm1590, %v1572, %v914
        %v1606 = vsel %vm1590, %v1573, %v916
        %v1607 = vsel %vm1590, %v1574, %v918
        %v1608 = vsel %vm1590, %v1575, %v920
        %v1609 = vsel %vm1590, %v1576, %v922
        %v1610 = vsel %vm1590, %v1577, %v924
        %v1611 = vsel %vm1590, %v1578, %v926
        %v1612 = vsel %vm1590, %v1579, %v928
        %v1613 = vsel %vm1590, %v1580, %v930
        %v1614 = vsel %vm1590, %v1581, %v932
        %v1615 = vsel %vm1590, %v1582, %v934
        %v1616 = vsel %vm1590, %v1583, %v936
        %v1617 = vsel %vm1590, %v1584, %v938
        %v1618 = vsel %vm1590, %v1585, %v940
        %v1619 = vsel %vm1590, %v1586, %v942
        %v1620 = vsel %vm1590, %v1587, %v944
        %v1621 = vsel %vm1590, %v1588, %v946
        %v1622 = vsel %vm1590, %v1589, %v948
        %vm1623 = vcmask 97280
        %v1624 = vsel %vm1623, %v1591, %v982
        %v1625 = vsel %vm1623, %v1592, %v984
        %v1626 = vsel %vm1623, %v1593, %v986
        %v1627 = vsel %vm1623, %v1594, %v988
        %v1628 = vsel %vm1623, %v1595, %v990
        %v1629 = vsel %vm1623, %v1596, %v992
        %v1630 = vsel %vm1623, %v1597, %v994
        %v1631 = vsel %vm1623, %v1598, %v996
        %v1632 = vsel %vm1623, %v1599, %v998
        %v1633 = vsel %vm1623, %v1600, %v1000
        %v1634 = vsel %vm1623, %v1601, %v1002
        %v1635 = vsel %vm1623, %v1602, %v1004
        %v1636 = vsel %vm1623, %v1603, %v1006
        %v1637 = vsel %vm1623, %v1604, %v1008
        %v1638 = vsel %vm1623, %v1605, %v1010
        %v1639 = vsel %vm1623, %v1606, %v1012
        %v1640 = vsel %vm1623, %v1607, %v1014
        %v1641 = vsel %vm1623, %v1608, %v1016
        %v1642 = vsel %vm1623, %v1609, %v1018
        %v1643 = vsel %vm1623, %v1610, %v1020
        %v1644 = vsel %vm1623, %v1611, %v1022
        %v1645 = vsel %vm1623, %v1612, %v1024
        %v1646 = vsel %vm1623, %v1613, %v1026
        %v1647 = vsel %vm1623, %v1614, %v1028
        %v1648 = vsel %vm1623, %v1615, %v1030
        %v1649 = vsel %vm1623, %v1616, %v1032
        %v1650 = vsel %vm1623, %v1617, %v1034
        %v1651 = vsel %vm1623, %v1618, %v1036
        %v1652 = vsel %vm1623, %v1619, %v1038
        %v1653 = vsel %vm1623, %v1620, %v1040
        %v1654 = vsel %vm1623, %v1621, %v1042
        %v1655 = vsel %vm1623, %v1622, %v1044
        %vm1656 = vcmask 130048
        %v1657 = vsel %vm1656, %v1624, %v1078
        %v1658 = vsel %vm1656, %v1625, %v1080
        %v1659 = vsel %vm1656, %v1626, %v1082
        %v1660 = vsel %vm1656, %v1627, %v1084
        %v1661 = vsel %vm1656, %v1628, %v1086
        %v1662 = vsel %vm1656, %v1629, %v1088
        %v1663 = vsel %vm1656, %v1630, %v1090
        %v1664 = vsel %vm1656, %v1631, %v1092
        %v1665 = vsel %vm1656, %v1632, %v1094
        %v1666 = vsel %vm1656, %v1633, %v1096
        %v1667 = vsel %vm1656, %v1634, %v1098
        %v1668 = vsel %vm1656, %v1635, %v1100
        %v1669 = vsel %vm1656, %v1636, %v1102
        %v1670 = vsel %vm1656, %v1637, %v1104
        %v1671 = vsel %vm1656, %v1638, %v1106
        %v1672 = vsel %vm1656, %v1639, %v1108
        %v1673 = vsel %vm1656, %v1640, %v1110
        %v1674 = vsel %vm1656, %v1641, %v1112
        %v1675 = vsel %vm1656, %v1642, %v1114
        %v1676 = vsel %vm1656, %v1643, %v1116
        %v1677 = vsel %vm1656, %v1644, %v1118
        %v1678 = vsel %vm1656, %v1645, %v1120
        %v1679 = vsel %vm1656, %v1646, %v1122
        %v1680 = vsel %vm1656, %v1647, %v1124
        %v1681 = vsel %vm1656, %v1648, %v1126
        %v1682 = vsel %vm1656, %v1649, %v1128
        %v1683 = vsel %vm1656, %v1650, %v1130
        %v1684 = vsel %vm1656, %v1651, %v1132
        %v1685 = vsel %vm1656, %v1652, %v1134
        %v1686 = vsel %vm1656, %v1653, %v1136
        %v1687 = vsel %vm1656, %v1654, %v1138
        %v1688 = vsel %vm1656, %v1655, %v1140
        %vm1689 = vcmask 162816
        %v1690 = vsel %vm1689, %v1657, %v1174
        %v1691 = vsel %vm1689, %v1658, %v1176
        %v1692 = vsel %vm1689, %v1659, %v1178
        %v1693 = vsel %vm1689, %v1660, %v1180
        %v1694 = vsel %vm1689, %v1661, %v1182
        %v1695 = vsel %vm1689, %v1662, %v1184
        %v1696 = vsel %vm1689, %v1663, %v1186
        %v1697 = vsel %vm1689, %v1664, %v1188
        %v1698 = vsel %vm1689, %v1665, %v1190
        %v1699 = vsel %vm1689, %v1666, %v1192
        %v1700 = vsel %vm1689, %v1667, %v1194
        %v1701 = vsel %vm1689, %v1668, %v1196
        %v1702 = vsel %vm1689, %v1669, %v1198
        %v1703 = vsel %vm1689, %v1670, %v1200
        %v1704 = vsel %vm1689, %v1671, %v1202
        %v1705 = vsel %vm1689, %v1672, %v1204
        %v1706 = vsel %vm1689, %v1673, %v1206
        %v1707 = vsel %vm1689, %v1674, %v1208
        %v1708 = vsel %vm1689, %v1675, %v1210
        %v1709 = vsel %vm1689, %v1676, %v1212
        %v1710 = vsel %vm1689, %v1677, %v1214
        %v1711 = vsel %vm1689, %v1678, %v1216
        %v1712 = vsel %vm1689, %v1679, %v1218
        %v1713 = vsel %vm1689, %v1680, %v1220
        %v1714 = vsel %vm1689, %v1681, %v1222
        %v1715 = vsel %vm1689, %v1682, %v1224
        %v1716 = vsel %vm1689, %v1683, %v1226
        %v1717 = vsel %vm1689, %v1684, %v1228
        %v1718 = vsel %vm1689, %v1685, %v1230
        %v1719 = vsel %vm1689, %v1686, %v1232
        %v1720 = vsel %vm1689, %v1687, %v1234
        %v1721 = vsel %vm1689, %v1688, %v1236
        %vm1722 = vcmask 195584
        %v1723 = vsel %vm1722, %v1690, %v1270
        %v1724 = vsel %vm1722, %v1691, %v1272
        %v1725 = vsel %vm1722, %v1692, %v1274
        %v1726 = vsel %vm1722, %v1693, %v1276
        %v1727 = vsel %vm1722, %v1694, %v1278
        %v1728 = vsel %vm1722, %v1695, %v1280
        %v1729 = vsel %vm1722, %v1696, %v1282
        %v1730 = vsel %vm1722, %v1697, %v1284
        %v1731 = vsel %vm1722, %v1698, %v1286
        %v1732 = vsel %vm1722, %v1699, %v1288
        %v1733 = vsel %vm1722, %v1700, %v1290
        %v1734 = vsel %vm1722, %v1701, %v1292
        %v1735 = vsel %vm1722, %v1702, %v1294
        %v1736 = vsel %vm1722, %v1703, %v1296
        %v1737 = vsel %vm1722, %v1704, %v1298
        %v1738 = vsel %vm1722, %v1705, %v1300
        %v1739 = vsel %vm1722, %v1706, %v1302
        %v1740 = vsel %vm1722, %v1707, %v1304
        %v1741 = vsel %vm1722, %v1708, %v1306
        %v1742 = vsel %vm1722, %v1709, %v1308
        %v1743 = vsel %vm1722, %v1710, %v1310
        %v1744 = vsel %vm1722, %v1711, %v1312
        %v1745 = vsel %vm1722, %v1712, %v1314
        %v1746 = vsel %vm1722, %v1713, %v1316
        %v1747 = vsel %vm1722, %v1714, %v1318
        %v1748 = vsel %vm1722, %v1715, %v1320
        %v1749 = vsel %vm1722, %v1716, %v1322
        %v1750 = vsel %vm1722, %v1717, %v1324
        %v1751 = vsel %vm1722, %v1718, %v1326
        %v1752 = vsel %vm1722, %v1719, %v1328
        %v1753 = vsel %vm1722, %v1720, %v1330
        %v1754 = vsel %vm1722, %v1721, %v1332
        %vm1755 = vcmask 228352
        %v1756 = vsel %vm1755, %v1723, %v1366
        %v1757 = vsel %vm1755, %v1724, %v1368
        %v1758 = vsel %vm1755, %v1725, %v1370
        %v1759 = vsel %vm1755, %v1726, %v1372
        %v1760 = vsel %vm1755, %v1727, %v1374
        %v1761 = vsel %vm1755, %v1728, %v1376
        %v1762 = vsel %vm1755, %v1729, %v1378
        %v1763 = vsel %vm1755, %v1730, %v1380
        %v1764 = vsel %vm1755, %v1731, %v1382
        %v1765 = vsel %vm1755, %v1732, %v1384
        %v1766 = vsel %vm1755, %v1733, %v1386
        %v1767 = vsel %vm1755, %v1734, %v1388
        %v1768 = vsel %vm1755, %v1735, %v1390
        %v1769 = vsel %vm1755, %v1736, %v1392
        %v1770 = vsel %vm1755, %v1737, %v1394
        %v1771 = vsel %vm1755, %v1738, %v1396
        %v1772 = vsel %vm1755, %v1739, %v1398
        %v1773 = vsel %vm1755, %v1740, %v1400
        %v1774 = vsel %vm1755, %v1741, %v1402
        %v1775 = vsel %vm1755, %v1742, %v1404
        %v1776 = vsel %vm1755, %v1743, %v1406
        %v1777 = vsel %vm1755, %v1744, %v1408
        %v1778 = vsel %vm1755, %v1745, %v1410
        %v1779 = vsel %vm1755, %v1746, %v1412
        %v1780 = vsel %vm1755, %v1747, %v1414
        %v1781 = vsel %vm1755, %v1748, %v1416
        %v1782 = vsel %vm1755, %v1749, %v1418
        %v1783 = vsel %vm1755, %v1750, %v1420
        %v1784 = vsel %vm1755, %v1751, %v1422
        %v1785 = vsel %vm1755, %v1752, %v1424
        %v1786 = vsel %vm1755, %v1753, %v1426
        %v1787 = vsel %vm1755, %v1754, %v1428
        %vm1788 = vcmask 261120
        %v1789 = vsel %vm1788, %v1756, %v1462
        %v1790 = vsel %vm1788, %v1757, %v1464
        %v1791 = vsel %vm1788, %v1758, %v1466
        %v1792 = vsel %vm1788, %v1759, %v1468
        %v1793 = vsel %vm1788, %v1760, %v1470
        %v1794 = vsel %vm1788, %v1761, %v1472
        %v1795 = vsel %vm1788, %v1762, %v1474
        %v1796 = vsel %vm1788, %v1763, %v1476
        %v1797 = vsel %vm1788, %v1764, %v1478
        %v1798 = vsel %vm1788, %v1765, %v1480
        %v1799 = vsel %vm1788, %v1766, %v1482
        %v1800 = vsel %vm1788, %v1767, %v1484
        %v1801 = vsel %vm1788, %v1768, %v1486
        %v1802 = vsel %vm1788, %v1769, %v1488
        %v1803 = vsel %vm1788, %v1770, %v1490
        %v1804 = vsel %vm1788, %v1771, %v1492
        %v1805 = vsel %vm1788, %v1772, %v1494
        %v1806 = vsel %vm1788, %v1773, %v1496
        %v1807 = vsel %vm1788, %v1774, %v1498
        %v1808 = vsel %vm1788, %v1775, %v1500
        %v1809 = vsel %vm1788, %v1776, %v1502
        %v1810 = vsel %vm1788, %v1777, %v1504
        %v1811 = vsel %vm1788, %v1778, %v1506
        %v1812 = vsel %vm1788, %v1779, %v1508
        %v1813 = vsel %vm1788, %v1780, %v1510
        %v1814 = vsel %vm1788, %v1781, %v1512
        %v1815 = vsel %vm1788, %v1782, %v1514
        %v1816 = vsel %vm1788, %v1783, %v1516
        %v1817 = vsel %vm1788, %v1784, %v1518
        %v1818 = vsel %vm1788, %v1785, %v1520
        %v1819 = vsel %vm1788, %v1786, %v1522
        %v1820 = vsel %vm1788, %v1787, %v1524
        %v1821 = vld [vmem:[%s3] sm:$0xff]
        %v1822 = vld [vmem:[%s3 + $0x8] sm:$0xff]
        %v1823 = vld [vmem:[%s3 + $0x10] sm:$0xff]
        %v1824 = vld [vmem:[%s3 + $0x18] sm:$0xff]
        %v1825 = vld [vmem:[%s3 + $0x20] sm:$0xff]
        %v1826 = vld [vmem:[%s3 + $0x28] sm:$0xff]
        %v1827 = vld [vmem:[%s3 + $0x30] sm:$0xff]
        %v1828 = vld [vmem:[%s3 + $0x38] sm:$0xff]
        %v1829 = vld [vmem:[%s3 + $0x40] sm:$0xf]
        %v1830 = vld [vmem:[%s3 + $0x48] sm:$0xf]
        %v1831 = vld [vmem:[#allocation2] sm:$0x3]
        %v1833 = vlaneseq
        %v1834 = vshrl.u32 %v1833, 7
        %v1835 = vsub.s32 0, %v1834
        %v1836 = vrot.slane %v1831, %v1835
        %v1837 = vlaneseq
        %v1838 = vshrl.u32 %v1837, 7
        %v1839 = vsub.s32 1, %v1838
        %v1840 = vrot.slane %v1831, %v1839
        %vm1843 = vcmask 293888
        %v1845 = vsel %vm1843, %v1789, 0
        %v1848 = vsel %vm1843, %v1790, 0
        %v1851 = vsel %vm1843, %v1791, 0
        %v1854 = vsel %vm1843, %v1792, 0
        %v1857 = vsel %vm1843, %v1793, 0
        %v1860 = vsel %vm1843, %v1794, 0
        %v1863 = vsel %vm1843, %v1795, 0
        %v1866 = vsel %vm1843, %v1796, 0
        %v1869 = vsel %vm1843, %v1797, 0
        %v1872 = vsel %vm1843, %v1798, 0
        %v1875 = vsel %vm1843, %v1799, 0
        %v1878 = vsel %vm1843, %v1800, 0
        %v1881 = vsel %vm1843, %v1801, 0
        %v1884 = vsel %vm1843, %v1802, 0
        %v1887 = vsel %vm1843, %v1803, 0
        %v1890 = vsel %vm1843, %v1804, 0
        %v1893 = vsel %vm1843, %v1805, 0
        %v1896 = vsel %vm1843, %v1806, 0
        %v1899 = vsel %vm1843, %v1807, 0
        %v1902 = vsel %vm1843, %v1808, 0
        %v1905 = vsel %vm1843, %v1809, 0
        %v1908 = vsel %vm1843, %v1810, 0
        %v1911 = vsel %vm1843, %v1811, 0
        %v1914 = vsel %vm1843, %v1812, 0
        %v1917 = vsel %vm1843, %v1813, 0
        %v1920 = vsel %vm1843, %v1814, 0
        %v1923 = vsel %vm1843, %v1815, 0
        %v1926 = vsel %vm1843, %v1816, 0
        %v1929 = vsel %vm1843, %v1817, 0
        %v1932 = vsel %vm1843, %v1818, 0
        %v1935 = vsel %vm1843, %v1819, 0
        %v1938 = vsel %vm1843, %v1820, 0
        %vm1940 = vcmask 1043456
        %v1942 = vsel %vm1940, %v1829, 0
        %v1945 = vsel %vm1940, %v1830, 0
        %1947 = vmatprep.subr.mxu0 %v1822
        %1948 = vmatpush1.msra.mxu0 %v1821
        %1949 = vmatprep.subr.mxu0 %v1824
        %1950 = vmatpush1.msra.mxu0 %v1823
        %1951 = vmatprep.subr.mxu0 %v1826
        %1952 = vmatpush1.msra.mxu0 %v1825
        %1953 = vmatprep.subr.mxu0 %v1828
        %1954 = vmatpush1.msra.mxu0 %v1827
        %1955 = vmatprep.subr.mxu0 %v1945
        %1956 = vmatpush1.msra.mxu0 %v1942
        %1957 = vmatprep.subr.mxu0 0.0
        %1958 = vmatpush1.msra.mxu0 0.0
        %1959 = vmatprep.subr.mxu0 0.0
        %1960 = vmatpush1.msra.mxu0 0.0
        %1961 = vmatprep.subr.mxu0 0.0
        %1962 = vmatpush1.msra.mxu0 0.0
        %1963 = vmatprep.subr.mxu0 0.0
        %1964 = vmatpush1.msra.mxu0 0.0
        %1965 = vmatprep.subr.mxu0 0.0
        %1966 = vmatpush1.msra.mxu0 0.0
        %1967 = vmatprep.subr.mxu0 0.0
        %1968 = vmatpush1.msra.mxu0 0.0
        %1969 = vmatprep.subr.mxu0 0.0
        %1970 = vmatpush1.msra.mxu0 0.0
        %1971 = vmatprep.subr.mxu0 0.0
        %1972 = vmatpush1.msra.mxu0 0.0
        %1973 = vmatprep.subr.mxu0 0.0
        %1974 = vmatpush1.msra.mxu0 0.0
        %1975 = vmatprep.subr.mxu0 0.0
        %1976 = vmatpush1.msra.mxu0 0.0
        %1977 = vmatprep.subr.mxu0 0.0
        %1978 = vmatpush1.msra.mxu0 0.0
        %1979 = vmatprep.subr.mxu0 0.0
        %1980 = vmatpush1.msra.mxu0 0.0
        %1981 = vmatprep.subr.mxu0 0.0
        %1982 = vmatpush1.msra.mxu0 0.0
        %1983 = vmatprep.subr.mxu0 0.0
        %1984 = vmatpush1.msra.mxu0 0.0
        %1985 = vmatprep.subr.mxu0 0.0
        %1986 = vmatpush1.msra.mxu0 0.0
        %1987 = vmatprep.subr.mxu0 0.0
        %1988 = vmatpush1.msra.mxu0 0.0
        %1989 = vmatprep.subr.mxu0 0.0
        %1990 = vmatpush1.msra.mxu0 0.0
        %1991 = vmatprep.subr.mxu0 0.0
        %1992 = vmatpush1.msra.mxu0 0.0
        %1993 = vmatprep.subr.mxu0 0.0
        %1994 = vmatpush1.msra.mxu0 0.0
        %1995 = vmatprep.subr.mxu0 0.0
        %1996 = vmatpush1.msra.mxu0 0.0
        %1997 = vmatprep.subr.mxu0 0.0
        %1998 = vmatpush1.msra.mxu0 0.0
        %1999 = vmatprep.subr.mxu0 0.0
        %2000 = vmatpush1.msra.mxu0 0.0
        %2001 = vmatprep.subr.mxu0 0.0
        %2002 = vmatpush1.msra.mxu0 0.0
        %2003 = vmatprep.subr.mxu0 0.0
        %2004 = vmatpush1.msra.mxu0 0.0
        %2005 = vmatprep.subr.mxu0 0.0
        %2006 = vmatpush1.msra.mxu0 0.0
        %2007 = vmatprep.subr.mxu0 0.0
        %2008 = vmatpush1.msra.mxu0 0.0
        %2009 = vmatprep.subr.mxu0 0.0
        %2010 = vmatpush1.msra.mxu0 0.0
        %2011 = vmatprep.mubr.f32.mxu0 0.0
        %2012 = vmatmul.mubr.f32.gmra.mrb[0].mxu0 %v1845
        %v2013 = vpop.f32.mrb[0].mxu0
        %v2014 = vadd.f32 %v1836, %v2013
        %v2015 = vpop.f32.mrb[0].mxu0
        %v2016 = vadd.f32 %v1840, %v2015
        %2017 = vmatprep.mubr.f32.mxu0 0.0
        %2018 = vmatmul.mubr.f32.gmra.mrb[0].mxu0 %v1848
        %v2019 = vpop.f32.mrb[0].mxu0
        %v2020 = vadd.f32 %v1836, %v2019
        %v2021 = vpop.f32.mrb[0].mxu0
        %v2022 = vadd.f32 %v1840, %v2021
        %2023 = vmatprep.mubr.f32.mxu0 0.0
        %2024 = vmatmul.mubr.f32.gmra.mrb[0].mxu0 %v1851
        %v2025 = vpop.f32.mrb[0].mxu0
        %v2026 = vadd.f32 %v1836, %v2025
        %v2027 = vpop.f32.mrb[0].mxu0
        %v2028 = vadd.f32 %v1840, %v2027
        %2029 = vmatprep.mubr.f32.mxu0 0.0
        %2030 = vmatmul.mubr.f32.gmra.mrb[0].mxu0 %v1854
        %v2031 = vpop.f32.mrb[0].mxu0
        %v2032 = vadd.f32 %v1836, %v2031
        %v2033 = vpop.f32.mrb[0].mxu0
        %v2034 = vadd.f32 %v1840, %v2033
        %2035 = vmatprep.mubr.f32.mxu0 0.0
        %2036 = vmatmul.mubr.f32.gmra.mrb[0].mxu0 %v1857
        %v2037 = vpop.f32.mrb[0].mxu0
        %v2038 = vadd.f32 %v1836, %v2037
        %v2039 = vpop.f32.mrb[0].mxu0
        %v2040 = vadd.f32 %v1840, %v2039
        %2041 = vmatprep.mubr.f32.mxu0 0.0
        %2042 = vmatmul.mubr.f32.gmra.mrb[0].mxu0 %v1860
        %v2043 = vpop.f32.mrb[0].mxu0
        %v2044 = vadd.f32 %v1836, %v2043
        %v2045 = vpop.f32.mrb[0].mxu0
        %v2046 = vadd.f32 %v1840, %v2045
        %2047 = vmatprep.mubr.f32.mxu0 0.0
        %2048 = vmatmul.mubr.f32.gmra.mrb[0].mxu0 %v1863
        %v2049 = vpop.f32.mrb[0].mxu0
        %v2050 = vadd.f32 %v1836, %v2049
        %v2051 = vpop.f32.mrb[0].mxu0
        %v2052 = vadd.f32 %v1840, %v2051
        %2053 = vmatprep.mubr.f32.mxu0 0.0
        %2054 = vmatmul.mubr.f32.gmra.mrb[0].mxu0 %v1866
        %v2055 = vpop.f32.mrb[0].mxu0
        %v2056 = vadd.f32 %v1836, %v2055
        %v2057 = vpop.f32.mrb[0].mxu0
        %v2058 = vadd.f32 %v1840, %v2057
        %2059 = vmatprep.mubr.f32.mxu0 0.0
        %2060 = vmatmul.mubr.f32.gmra.mrb[0].mxu0 %v1869
        %v2061 = vpop.f32.mrb[0].mxu0
        %v2062 = vadd.f32 %v1836, %v2061
        %v2063 = vpop.f32.mrb[0].mxu0
        %v2064 = vadd.f32 %v1840, %v2063
        %2065 = vmatprep.mubr.f32.mxu0 0.0
        %2066 = vmatmul.mubr.f32.gmra.mrb[0].mxu0 %v1872
        %v2067 = vpop.f32.mrb[0].mxu0
        %v2068 = vadd.f32 %v1836, %v2067
        %v2069 = vpop.f32.mrb[0].mxu0
        %v2070 = vadd.f32 %v1840, %v2069
        %2071 = vmatprep.mubr.f32.mxu0 0.0
        %2072 = vmatmul.mubr.f32.gmra.mrb[0].mxu0 %v1875
        %v2073 = vpop.f32.mrb[0].mxu0
        %v2074 = vadd.f32 %v1836, %v2073
        %v2075 = vpop.f32.mrb[0].mxu0
        %v2076 = vadd.f32 %v1840, %v2075
        %2077 = vmatprep.mubr.f32.mxu0 0.0
        %2078 = vmatmul.mubr.f32.gmra.mrb[0].mxu0 %v1878
        %v2079 = vpop.f32.mrb[0].mxu0
        %v2080 = vadd.f32 %v1836, %v2079
        %v2081 = vpop.f32.mrb[0].mxu0
        %v2082 = vadd.f32 %v1840, %v2081
        %2083 = vmatprep.mubr.f32.mxu0 0.0
        %2084 = vmatmul.mubr.f32.gmra.mrb[0].mxu0 %v1881
        %v2085 = vpop.f32.mrb[0].mxu0
        %v2086 = vadd.f32 %v1836, %v2085
        %v2087 = vpop.f32.mrb[0].mxu0
        %v2088 = vadd.f32 %v1840, %v2087
        %2089 = vmatprep.mubr.f32.mxu0 0.0
        %2090 = vmatmul.mubr.f32.gmra.mrb[0].mxu0 %v1884
        %v2091 = vpop.f32.mrb[0].mxu0
        %v2092 = vadd.f32 %v1836, %v2091
        %v2093 = vpop.f32.mrb[0].mxu0
        %v2094 = vadd.f32 %v1840, %v2093
        %2095 = vmatprep.mubr.f32.mxu0 0.0
        %2096 = vmatmul.mubr.f32.gmra.mrb[0].mxu0 %v1887
        %v2097 = vpop.f32.mrb[0].mxu0
        %v2098 = vadd.f32 %v1836, %v2097
        %v2099 = vpop.f32.mrb[0].mxu0
        %v2100 = vadd.f32 %v1840, %v2099
        %2101 = vmatprep.mubr.f32.mxu0 0.0
        %2102 = vmatmul.mubr.f32.gmra.mrb[0].mxu0 %v1890
        %v2103 = vpop.f32.mrb[0].mxu0
        %v2104 = vadd.f32 %v1836, %v2103
        %v2105 = vpop.f32.mrb[0].mxu0
        %v2106 = vadd.f32 %v1840, %v2105
        %2107 = vmatprep.mubr.f32.mxu0 0.0
        %2108 = vmatmul.mubr.f32.gmra.mrb[0].mxu0 %v1893
        %v2109 = vpop.f32.mrb[0].mxu0
        %v2110 = vadd.f32 %v1836, %v2109
        %v2111 = vpop.f32.mrb[0].mxu0
        %v2112 = vadd.f32 %v1840, %v2111
        %2113 = vmatprep.mubr.f32.mxu0 0.0
        %2114 = vmatmul.mubr.f32.gmra.mrb[0].mxu0 %v1896
        %v2115 = vpop.f32.mrb[0].mxu0
        %v2116 = vadd.f32 %v1836, %v2115
        %v2117 = vpop.f32.mrb[0].mxu0
        %v2118 = vadd.f32 %v1840, %v2117
        %2119 = vmatprep.mubr.f32.mxu0 0.0
        %2120 = vmatmul.mubr.f32.gmra.mrb[0].mxu0 %v1899
        %v2121 = vpop.f32.mrb[0].mxu0
        %v2122 = vadd.f32 %v1836, %v2121
        %v2123 = vpop.f32.mrb[0].mxu0
        %v2124 = vadd.f32 %v1840, %v2123
        %2125 = vmatprep.mubr.f32.mxu0 0.0
        %2126 = vmatmul.mubr.f32.gmra.mrb[0].mxu0 %v1902
        %v2127 = vpop.f32.mrb[0].mxu0
        %v2128 = vadd.f32 %v1836, %v2127
        %v2129 = vpop.f32.mrb[0].mxu0
        %v2130 = vadd.f32 %v1840, %v2129
        %2131 = vmatprep.mubr.f32.mxu0 0.0
        %2132 = vmatmul.mubr.f32.gmra.mrb[0].mxu0 %v1905
        %v2133 = vpop.f32.mrb[0].mxu0
        %v2134 = vadd.f32 %v1836, %v2133
        %v2135 = vpop.f32.mrb[0].mxu0
        %v2136 = vadd.f32 %v1840, %v2135
        %2137 = vmatprep.mubr.f32.mxu0 0.0
        %2138 = vmatmul.mubr.f32.gmra.mrb[0].mxu0 %v1908
        %v2139 = vpop.f32.mrb[0].mxu0
        %v2140 = vadd.f32 %v1836, %v2139
        %v2141 = vpop.f32.mrb[0].mxu0
        %v2142 = vadd.f32 %v1840, %v2141
        %2143 = vmatprep.mubr.f32.mxu0 0.0
        %2144 = vmatmul.mubr.f32.gmra.mrb[0].mxu0 %v1911
        %v2145 = vpop.f32.mrb[0].mxu0
        %v2146 = vadd.f32 %v1836, %v2145
        %v2147 = vpop.f32.mrb[0].mxu0
        %v2148 = vadd.f32 %v1840, %v2147
        %2149 = vmatprep.mubr.f32.mxu0 0.0
        %2150 = vmatmul.mubr.f32.gmra.mrb[0].mxu0 %v1914
        %v2151 = vpop.f32.mrb[0].mxu0
        %v2152 = vadd.f32 %v1836, %v2151
        %v2153 = vpop.f32.mrb[0].mxu0
        %v2154 = vadd.f32 %v1840, %v2153
        %2155 = vmatprep.mubr.f32.mxu0 0.0
        %2156 = vmatmul.mubr.f32.gmra.mrb[0].mxu0 %v1917
        %v2157 = vpop.f32.mrb[0].mxu0
        %v2158 = vadd.f32 %v1836, %v2157
        %v2159 = vpop.f32.mrb[0].mxu0
        %v2160 = vadd.f32 %v1840, %v2159
        %2161 = vmatprep.mubr.f32.mxu0 0.0
        %2162 = vmatmul.mubr.f32.gmra.mrb[0].mxu0 %v1920
        %v2163 = vpop.f32.mrb[0].mxu0
        %v2164 = vadd.f32 %v1836, %v2163
        %v2165 = vpop.f32.mrb[0].mxu0
        %v2166 = vadd.f32 %v1840, %v2165
        %2167 = vmatprep.mubr.f32.mxu0 0.0
        %2168 = vmatmul.mubr.f32.gmra.mrb[0].mxu0 %v1923
        %v2169 = vpop.f32.mrb[0].mxu0
        %v2170 = vadd.f32 %v1836, %v2169
        %v2171 = vpop.f32.mrb[0].mxu0
        %v2172 = vadd.f32 %v1840, %v2171
        %2173 = vmatprep.mubr.f32.mxu0 0.0
        %2174 = vmatmul.mubr.f32.gmra.mrb[0].mxu0 %v1926
        %v2175 = vpop.f32.mrb[0].mxu0
        %v2176 = vadd.f32 %v1836, %v2175
        %v2177 = vpop.f32.mrb[0].mxu0
        %v2178 = vadd.f32 %v1840, %v2177
        %2179 = vmatprep.mubr.f32.mxu0 0.0
        %2180 = vmatmul.mubr.f32.gmra.mrb[0].mxu0 %v1929
        %v2181 = vpop.f32.mrb[0].mxu0
        %v2182 = vadd.f32 %v1836, %v2181
        %v2183 = vpop.f32.mrb[0].mxu0
        %v2184 = vadd.f32 %v1840, %v2183
        %2185 = vmatprep.mubr.f32.mxu0 0.0
        %2186 = vmatmul.mubr.f32.gmra.mrb[0].mxu0 %v1932
        %v2187 = vpop.f32.mrb[0].mxu0
        %v2188 = vadd.f32 %v1836, %v2187
        %v2189 = vpop.f32.mrb[0].mxu0
        %v2190 = vadd.f32 %v1840, %v2189
        %2191 = vmatprep.mubr.f32.mxu0 0.0
        %2192 = vmatmul.mubr.f32.gmra.mrb[0].mxu0 %v1935
        %v2193 = vpop.f32.mrb[0].mxu0
        %v2194 = vadd.f32 %v1836, %v2193
        %v2195 = vpop.f32.mrb[0].mxu0
        %v2196 = vadd.f32 %v1840, %v2195
        %2197 = vmatprep.mubr.f32.mxu0 0.0
        %2198 = vmatmul.mubr.f32.gmra.mrb[0].mxu0 %v1938
        %v2199 = vpop.f32.mrb[0].mxu0
        %v2200 = vadd.f32 %v1836, %v2199
        %v2201 = vpop.f32.mrb[0].mxu0
        %v2202 = vadd.f32 %v1840, %v2201
        %2203 = vdwg.mxu0
        %v2204 = vadd.f32 %v2014, %v2020
        %v2205 = vadd.f32 %v2204, %v2026
        %v2206 = vadd.f32 %v2205, %v2032
        %v2207 = vadd.f32 %v2206, %v2038
        %v2208 = vadd.f32 %v2207, %v2044
        %v2209 = vadd.f32 %v2208, %v2050
        %v2210 = vadd.f32 %v2209, %v2056
        %v2211 = vadd.f32 %v2210, %v2062
        %v2212 = vadd.f32 %v2211, %v2068
        %v2213 = vadd.f32 %v2212, %v2074
        %v2214 = vadd.f32 %v2213, %v2080
        %v2215 = vadd.f32 %v2214, %v2086
        %v2216 = vadd.f32 %v2215, %v2092
        %v2217 = vadd.f32 %v2216, %v2098
        %v2218 = vadd.f32 %v2217, %v2104
        %v2219 = vadd.f32 %v2218, %v2110
        %v2220 = vadd.f32 %v2219, %v2116
        %v2221 = vadd.f32 %v2220, %v2122
        %v2222 = vadd.f32 %v2221, %v2128
        %v2223 = vadd.f32 %v2222, %v2134
        %v2224 = vadd.f32 %v2223, %v2140
        %v2225 = vadd.f32 %v2224, %v2146
        %v2226 = vadd.f32 %v2225, %v2152
        %v2227 = vadd.f32 %v2226, %v2158
        %v2228 = vadd.f32 %v2227, %v2164
        %v2229 = vadd.f32 %v2228, %v2170
        %v2230 = vadd.f32 %v2229, %v2176
        %v2231 = vadd.f32 %v2230, %v2182
        %v2232 = vadd.f32 %v2231, %v2188
        %v2233 = vadd.f32 %v2232, %v2194
        %v2234 = vadd.f32 %v2233, %v2200
        %v2235 = vrot.slane %v2234, 4
        %v2236 = vadd.f32 %v2234, %v2235
        %v2237 = vrot.slane %v2236, 2
        %v2238 = vadd.f32 %v2236, %v2237
        %v2239 = vrot.slane %v2238, 1
        %v2240 = vadd.f32 %v2238, %v2239
        %v2241 = vadd.f32 %v2016, %v2022
        %v2242 = vadd.f32 %v2241, %v2028
        %v2243 = vadd.f32 %v2242, %v2034
        %v2244 = vadd.f32 %v2243, %v2040
        %v2245 = vadd.f32 %v2244, %v2046
        %v2246 = vadd.f32 %v2245, %v2052
        %v2247 = vadd.f32 %v2246, %v2058
        %v2248 = vadd.f32 %v2247, %v2064
        %v2249 = vadd.f32 %v2248, %v2070
        %v2250 = vadd.f32 %v2249, %v2076
        %v2251 = vadd.f32 %v2250, %v2082
        %v2252 = vadd.f32 %v2251, %v2088
        %v2253 = vadd.f32 %v2252, %v2094
        %v2254 = vadd.f32 %v2253, %v2100
        %v2255 = vadd.f32 %v2254, %v2106
        %v2256 = vadd.f32 %v2255, %v2112
        %v2257 = vadd.f32 %v2256, %v2118
        %v2258 = vadd.f32 %v2257, %v2124
        %v2259 = vadd.f32 %v2258, %v2130
        %v2260 = vadd.f32 %v2259, %v2136
        %v2261 = vadd.f32 %v2260, %v2142
        %v2262 = vadd.f32 %v2261, %v2148
        %v2263 = vadd.f32 %v2262, %v2154
        %v2264 = vadd.f32 %v2263, %v2160
        %v2265 = vadd.f32 %v2264, %v2166
        %v2266 = vadd.f32 %v2265, %v2172
        %v2267 = vadd.f32 %v2266, %v2178
        %v2268 = vadd.f32 %v2267, %v2184
        %v2269 = vadd.f32 %v2268, %v2190
        %v2270 = vadd.f32 %v2269, %v2196
        %v2271 = vadd.f32 %v2270, %v2202
        %v2272 = vrot.slane %v2271, 4
        %v2273 = vadd.f32 %v2271, %v2272
        %v2274 = vrot.slane %v2273, 2
        %v2275 = vadd.f32 %v2273, %v2274
        %v2276 = vrot.slane %v2275, 1
        %v2277 = vadd.f32 %v2275, %v2276
        %v2280 = vcombine.low %v2240, %v2277
        %v2282 = vunpack.c.l.s4 1966171168
        %v2283 = vunpack.c.0.s8 %v2282
        %v2284 = vlaneseq
        %v2285 = vshrl.u32 %v2284, 7
        %v2286 = vsub.s32 %v2283, %v2285
        %v2287 = vrot.slane %v2280, %v2286
        %v2289 = vunpack.c.l.s4 1966171168
        %v2290 = vunpack.c.0.s8 %v2289
        %v2291 = vlaneseq
        %v2292 = vshrl.u32 %v2291, 7
        %v2293 = vsub.s32 %v2290, %v2292
        %v2294 = vrot.slane %v2287, %v2293
        %v2296 = vlaneseq
        %vm2297 = vcmp.ge.s32.totalorder %v2296, 0
        %vm2298 = vcmp.lt.s32.totalorder %v2296, 256
        %vm2299 = vmand %vm2297, %vm2298
        %2300 = vst.msk [vmem:[%s489] sm:$0x3] %vm2299, %v2294
        %v2301 = vmul.f32 %v2014, %v2014
        %v2302 = vmul.f32 %v2016, %v2016
        %v2303 = vmul.f32 %v2020, %v2020
        %v2304 = vmul.f32 %v2022, %v2022
        %v2305 = vmul.f32 %v2026, %v2026
        %v2306 = vmul.f32 %v2028, %v2028
        %v2307 = vmul.f32 %v2032, %v2032
        %v2308 = vmul.f32 %v2034, %v2034
        %v2309 = vmul.f32 %v2038, %v2038
        %v2310 = vmul.f32 %v2040, %v2040
        %v2311 = vmul.f32 %v2044, %v2044
        %v2312 = vmul.f32 %v2046, %v2046
        %v2313 = vmul.f32 %v2050, %v2050
        %v2314 = vmul.f32 %v2052, %v2052
        %v2315 = vmul.f32 %v2056, %v2056
        %v2316 = vmul.f32 %v2058, %v2058
        %v2317 = vmul.f32 %v2062, %v2062
        %v2318 = vmul.f32 %v2064, %v2064
        %v2319 = vmul.f32 %v2068, %v2068
        %v2320 = vmul.f32 %v2070, %v2070
        %v2321 = vmul.f32 %v2074, %v2074
        %v2322 = vmul.f32 %v2076, %v2076
        %v2323 = vmul.f32 %v2080, %v2080
        %v2324 = vmul.f32 %v2082, %v2082
        %v2325 = vmul.f32 %v2086, %v2086
        %v2326 = vmul.f32 %v2088, %v2088
        %v2327 = vmul.f32 %v2092, %v2092
        %v2328 = vmul.f32 %v2094, %v2094
        %v2329 = vmul.f32 %v2098, %v2098
        %v2330 = vmul.f32 %v2100, %v2100
        %v2331 = vmul.f32 %v2104, %v2104
        %v2332 = vmul.f32 %v2106, %v2106
        %v2333 = vmul.f32 %v2110, %v2110
        %v2334 = vmul.f32 %v2112, %v2112
        %v2335 = vmul.f32 %v2116, %v2116
        %v2336 = vmul.f32 %v2118, %v2118
        %v2337 = vmul.f32 %v2122, %v2122
        %v2338 = vmul.f32 %v2124, %v2124
        %v2339 = vmul.f32 %v2128, %v2128
        %v2340 = vmul.f32 %v2130, %v2130
        %v2341 = vmul.f32 %v2134, %v2134
        %v2342 = vmul.f32 %v2136, %v2136
        %v2343 = vmul.f32 %v2140, %v2140
        %v2344 = vmul.f32 %v2142, %v2142
        %v2345 = vmul.f32 %v2146, %v2146
        %v2346 = vmul.f32 %v2148, %v2148
        %v2347 = vmul.f32 %v2152, %v2152
        %v2348 = vmul.f32 %v2154, %v2154
        %v2349 = vmul.f32 %v2158, %v2158
        %v2350 = vmul.f32 %v2160, %v2160
        %v2351 = vmul.f32 %v2164, %v2164
        %v2352 = vmul.f32 %v2166, %v2166
        %v2353 = vmul.f32 %v2170, %v2170
        %v2354 = vmul.f32 %v2172, %v2172
        %v2355 = vmul.f32 %v2176, %v2176
        %v2356 = vmul.f32 %v2178, %v2178
        %v2357 = vmul.f32 %v2182, %v2182
        %v2358 = vmul.f32 %v2184, %v2184
        %v2359 = vmul.f32 %v2188, %v2188
        %v2360 = vmul.f32 %v2190, %v2190
        %v2361 = vmul.f32 %v2194, %v2194
        %v2362 = vmul.f32 %v2196, %v2196
        %v2363 = vmul.f32 %v2200, %v2200
        %v2364 = vmul.f32 %v2202, %v2202
        %v2365 = vadd.f32 %v2301, %v2303
        %v2366 = vadd.f32 %v2365, %v2305
        %v2367 = vadd.f32 %v2366, %v2307
        %v2368 = vadd.f32 %v2367, %v2309
        %v2369 = vadd.f32 %v2368, %v2311
        %v2370 = vadd.f32 %v2369, %v2313
        %v2371 = vadd.f32 %v2370, %v2315
        %v2372 = vadd.f32 %v2371, %v2317
        %v2373 = vadd.f32 %v2372, %v2319
        %v2374 = vadd.f32 %v2373, %v2321
        %v2375 = vadd.f32 %v2374, %v2323
        %v2376 = vadd.f32 %v2375, %v2325
        %v2377 = vadd.f32 %v2376, %v2327
        %v2378 = vadd.f32 %v2377, %v2329
        %v2379 = vadd.f32 %v2378, %v2331
        %v2380 = vadd.f32 %v2379, %v2333
        %v2381 = vadd.f32 %v2380, %v2335
        %v2382 = vadd.f32 %v2381, %v2337
        %v2383 = vadd.f32 %v2382, %v2339
        %v2384 = vadd.f32 %v2383, %v2341
        %v2385 = vadd.f32 %v2384, %v2343
        %v2386 = vadd.f32 %v2385, %v2345
        %v2387 = vadd.f32 %v2386, %v2347
        %v2388 = vadd.f32 %v2387, %v2349
        %v2389 = vadd.f32 %v2388, %v2351
        %v2390 = vadd.f32 %v2389, %v2353
        %v2391 = vadd.f32 %v2390, %v2355
        %v2392 = vadd.f32 %v2391, %v2357
        %v2393 = vadd.f32 %v2392, %v2359
        %v2394 = vadd.f32 %v2393, %v2361
        %v2395 = vadd.f32 %v2394, %v2363
        %v2396 = vrot.slane %v2395, 4
        %v2397 = vadd.f32 %v2395, %v2396
        %v2398 = vrot.slane %v2397, 2
        %v2399 = vadd.f32 %v2397, %v2398
        %v2400 = vrot.slane %v2399, 1
        %v2401 = vadd.f32 %v2399, %v2400
        %v2402 = vadd.f32 %v2302, %v2304
        %v2403 = vadd.f32 %v2402, %v2306
        %v2404 = vadd.f32 %v2403, %v2308
        %v2405 = vadd.f32 %v2404, %v2310
        %v2406 = vadd.f32 %v2405, %v2312
        %v2407 = vadd.f32 %v2406, %v2314
        %v2408 = vadd.f32 %v2407, %v2316
        %v2409 = vadd.f32 %v2408, %v2318
        %v2410 = vadd.f32 %v2409, %v2320
        %v2411 = vadd.f32 %v2410, %v2322
        %v2412 = vadd.f32 %v2411, %v2324
        %v2413 = vadd.f32 %v2412, %v2326
        %v2414 = vadd.f32 %v2413, %v2328
        %v2415 = vadd.f32 %v2414, %v2330
        %v2416 = vadd.f32 %v2415, %v2332
        %v2417 = vadd.f32 %v2416, %v2334
        %v2418 = vadd.f32 %v2417, %v2336
        %v2419 = vadd.f32 %v2418, %v2338
        %v2420 = vadd.f32 %v2419, %v2340
        %v2421 = vadd.f32 %v2420, %v2342
        %v2422 = vadd.f32 %v2421, %v2344
        %v2423 = vadd.f32 %v2422, %v2346
        %v2424 = vadd.f32 %v2423, %v2348
        %v2425 = vadd.f32 %v2424, %v2350
        %v2426 = vadd.f32 %v2425, %v2352
        %v2427 = vadd.f32 %v2426, %v2354
        %v2428 = vadd.f32 %v2427, %v2356
        %v2429 = vadd.f32 %v2428, %v2358
        %v2430 = vadd.f32 %v2429, %v2360
        %v2431 = vadd.f32 %v2430, %v2362
        %v2432 = vadd.f32 %v2431, %v2364
        %v2433 = vrot.slane %v2432, 4
        %v2434 = vadd.f32 %v2432, %v2433
        %v2435 = vrot.slane %v2434, 2
        %v2436 = vadd.f32 %v2434, %v2435
        %v2437 = vrot.slane %v2436, 1
        %v2438 = vadd.f32 %v2436, %v2437
        %v2441 = vcombine.low %v2401, %v2438
        %v2443 = vunpack.c.l.s4 1966171168
        %v2444 = vunpack.c.0.s8 %v2443
        %v2445 = vlaneseq
        %v2446 = vshrl.u32 %v2445, 7
        %v2447 = vsub.s32 %v2444, %v2446
        %v2448 = vrot.slane %v2441, %v2447
        %v2450 = vunpack.c.l.s4 1966171168
        %v2451 = vunpack.c.0.s8 %v2450
        %v2452 = vlaneseq
        %v2453 = vshrl.u32 %v2452, 7
        %v2454 = vsub.s32 %v2451, %v2453
        %v2455 = vrot.slane %v2448, %v2454
        %2457 = vst.msk [vmem:[%s497] sm:$0x3] %vm2299, %v2455
        %v2458 = vpack.c.bf16 %v2020, %v2014
        %v2459 = vpack.c.bf16 %v2022, %v2016
        %v2460 = vpack.c.bf16 %v2032, %v2026
        %v2461 = vpack.c.bf16 %v2034, %v2028
        %v2462 = vpack.c.bf16 %v2044, %v2038
        %v2463 = vpack.c.bf16 %v2046, %v2040
        %v2464 = vpack.c.bf16 %v2056, %v2050
        %v2465 = vpack.c.bf16 %v2058, %v2052
        %v2466 = vpack.c.bf16 %v2068, %v2062
        %v2467 = vpack.c.bf16 %v2070, %v2064
        %v2468 = vpack.c.bf16 %v2080, %v2074
        %v2469 = vpack.c.bf16 %v2082, %v2076
        %v2470 = vpack.c.bf16 %v2092, %v2086
        %v2471 = vpack.c.bf16 %v2094, %v2088
        %v2472 = vpack.c.bf16 %v2104, %v2098
        %v2473 = vpack.c.bf16 %v2106, %v2100
        %v2474 = vpack.c.bf16 %v2116, %v2110
        %v2475 = vpack.c.bf16 %v2118, %v2112
        %v2476 = vpack.c.bf16 %v2128, %v2122
        %v2477 = vpack.c.bf16 %v2130, %v2124
        %v2478 = vpack.c.bf16 %v2140, %v2134
        %v2479 = vpack.c.bf16 %v2142, %v2136
        %v2480 = vpack.c.bf16 %v2152, %v2146
        %v2481 = vpack.c.bf16 %v2154, %v2148
        %v2482 = vpack.c.bf16 %v2164, %v2158
        %v2483 = vpack.c.bf16 %v2166, %v2160
        %v2484 = vpack.c.bf16 %v2176, %v2170
        %v2485 = vpack.c.bf16 %v2178, %v2172
        %v2486 = vpack.c.bf16 %v2188, %v2182
        %v2487 = vpack.c.bf16 %v2190, %v2184
        %v2488 = vpack.c.bf16 %v2200, %v2194
        %v2489 = vpack.c.bf16 %v2202, %v2196
        %v2491 = vshrl.u32 %v2458, 16
        %v2493 = vrot.slane %v2491, 7
        %v2494 = vshll.u32 %v2458, 16
        %v2496 = vor.u32 %v2493, %v2494
        %v2498 = vshrl.u32 %v2459, 16
        %v2500 = vrot.slane %v2498, 7
        %v2501 = vshll.u32 %v2459, 16
        %v2503 = vor.u32 %v2500, %v2501
        %v2505 = vshrl.u32 %v2460, 16
        %v2507 = vrot.slane %v2505, 7
        %v2508 = vshll.u32 %v2460, 16
        %v2510 = vor.u32 %v2507, %v2508
        %v2512 = vshrl.u32 %v2461, 16
        %v2514 = vrot.slane %v2512, 7
        %v2515 = vshll.u32 %v2461, 16
        %v2517 = vor.u32 %v2514, %v2515
        %v2519 = vshrl.u32 %v2462, 16
        %v2521 = vrot.slane %v2519, 7
        %v2522 = vshll.u32 %v2462, 16
        %v2524 = vor.u32 %v2521, %v2522
        %v2526 = vshrl.u32 %v2463, 16
        %v2528 = vrot.slane %v2526, 7
        %v2529 = vshll.u32 %v2463, 16
        %v2531 = vor.u32 %v2528, %v2529
        %v2533 = vshrl.u32 %v2464, 16
        %v2535 = vrot.slane %v2533, 7
        %v2536 = vshll.u32 %v2464, 16
        %v2538 = vor.u32 %v2535, %v2536
        %v2540 = vshrl.u32 %v2465, 16
        %v2542 = vrot.slane %v2540, 7
        %v2543 = vshll.u32 %v2465, 16
        %v2545 = vor.u32 %v2542, %v2543
        %v2547 = vshrl.u32 %v2466, 16
        %v2549 = vrot.slane %v2547, 7
        %v2550 = vshll.u32 %v2466, 16
        %v2552 = vor.u32 %v2549, %v2550
        %v2554 = vshrl.u32 %v2467, 16
        %v2556 = vrot.slane %v2554, 7
        %v2557 = vshll.u32 %v2467, 16
        %v2559 = vor.u32 %v2556, %v2557
        %v2561 = vshrl.u32 %v2468, 16
        %v2563 = vrot.slane %v2561, 7
        %v2564 = vshll.u32 %v2468, 16
        %v2566 = vor.u32 %v2563, %v2564
        %v2568 = vshrl.u32 %v2469, 16
        %v2570 = vrot.slane %v2568, 7
        %v2571 = vshll.u32 %v2469, 16
        %v2573 = vor.u32 %v2570, %v2571
        %v2575 = vshrl.u32 %v2470, 16
        %v2577 = vrot.slane %v2575, 7
        %v2578 = vshll.u32 %v2470, 16
        %v2580 = vor.u32 %v2577, %v2578
        %v2582 = vshrl.u32 %v2471, 16
        %v2584 = vrot.slane %v2582, 7
        %v2585 = vshll.u32 %v2471, 16
        %v2587 = vor.u32 %v2584, %v2585
        %v2589 = vshrl.u32 %v2472, 16
        %v2591 = vrot.slane %v2589, 7
        %v2592 = vshll.u32 %v2472, 16
        %v2594 = vor.u32 %v2591, %v2592
        %v2596 = vshrl.u32 %v2473, 16
        %v2598 = vrot.slane %v2596, 7
        %v2599 = vshll.u32 %v2473, 16
        %v2601 = vor.u32 %v2598, %v2599
        %v2603 = vshrl.u32 %v2474, 16
        %v2605 = vrot.slane %v2603, 7
        %v2606 = vshll.u32 %v2474, 16
        %v2608 = vor.u32 %v2605, %v2606
        %v2610 = vshrl.u32 %v2475, 16
        %v2612 = vrot.slane %v2610, 7
        %v2613 = vshll.u32 %v2475, 16
        %v2615 = vor.u32 %v2612, %v2613
        %v2617 = vshrl.u32 %v2476, 16
        %v2619 = vrot.slane %v2617, 7
        %v2620 = vshll.u32 %v2476, 16
        %v2622 = vor.u32 %v2619, %v2620
        %v2624 = vshrl.u32 %v2477, 16
        %v2626 = vrot.slane %v2624, 7
        %v2627 = vshll.u32 %v2477, 16
        %v2629 = vor.u32 %v2626, %v2627
        %v2631 = vshrl.u32 %v2478, 16
        %v2633 = vrot.slane %v2631, 7
        %v2634 = vshll.u32 %v2478, 16
        %v2636 = vor.u32 %v2633, %v2634
        %v2638 = vshrl.u32 %v2479, 16
        %v2640 = vrot.slane %v2638, 7
        %v2641 = vshll.u32 %v2479, 16
        %v2643 = vor.u32 %v2640, %v2641
        %v2645 = vshrl.u32 %v2480, 16
        %v2647 = vrot.slane %v2645, 7
        %v2648 = vshll.u32 %v2480, 16
        %v2650 = vor.u32 %v2647, %v2648
        %v2652 = vshrl.u32 %v2481, 16
        %v2654 = vrot.slane %v2652, 7
        %v2655 = vshll.u32 %v2481, 16
        %v2657 = vor.u32 %v2654, %v2655
        %v2659 = vshrl.u32 %v2482, 16
        %v2661 = vrot.slane %v2659, 7
        %v2662 = vshll.u32 %v2482, 16
        %v2664 = vor.u32 %v2661, %v2662
        %v2666 = vshrl.u32 %v2483, 16
        %v2668 = vrot.slane %v2666, 7
        %v2669 = vshll.u32 %v2483, 16
        %v2671 = vor.u32 %v2668, %v2669
        %v2673 = vshrl.u32 %v2484, 16
        %v2675 = vrot.slane %v2673, 7
        %v2676 = vshll.u32 %v2484, 16
        %v2678 = vor.u32 %v2675, %v2676
        %v2680 = vshrl.u32 %v2485, 16
        %v2682 = vrot.slane %v2680, 7
        %v2683 = vshll.u32 %v2485, 16
        %v2685 = vor.u32 %v2682, %v2683
        %v2687 = vshrl.u32 %v2486, 16
        %v2689 = vrot.slane %v2687, 7
        %v2690 = vshll.u32 %v2486, 16
        %v2692 = vor.u32 %v2689, %v2690
        %v2694 = vshrl.u32 %v2487, 16
        %v2696 = vrot.slane %v2694, 7
        %v2697 = vshll.u32 %v2487, 16
        %v2699 = vor.u32 %v2696, %v2697
        %v2701 = vshrl.u32 %v2488, 16
        %v2703 = vrot.slane %v2701, 7
        %v2704 = vshll.u32 %v2488, 16
        %v2706 = vor.u32 %v2703, %v2704
        %v2708 = vshrl.u32 %v2489, 16
        %v2710 = vrot.slane %v2708, 7
        %v2711 = vshll.u32 %v2489, 16
        %v2713 = vor.u32 %v2710, %v2711
        %vm2778 = vcmask 1040384
        %vm2779 = vsmask.f32 256
        %vm2780 = vmand %vm2778, %vm2779
        %v2781 = vsel %vm2780, 0, %v2496
        %v2782 = vsel %vm2780, 0, %v2503
        %v2783 = vsel %vm2780, 0, %v2510
        %v2784 = vsel %vm2780, 0, %v2517
        %v2785 = vsel %vm2780, 0, %v2524
        %v2786 = vsel %vm2780, 0, %v2531
        %v2787 = vsel %vm2780, 0, %v2538
        %v2788 = vsel %vm2780, 0, %v2545
        %v2789 = vsel %vm2780, 0, %v2552
        %v2790 = vsel %vm2780, 0, %v2559
        %v2791 = vsel %vm2780, 0, %v2566
        %v2792 = vsel %vm2780, 0, %v2573
        %v2793 = vsel %vm2780, 0, %v2580
        %v2794 = vsel %vm2780, 0, %v2587
        %v2795 = vsel %vm2780, 0, %v2594
        %v2796 = vsel %vm2780, 0, %v2601
        %v2797 = vsel %vm2780, 0, %v2608
        %v2798 = vsel %vm2780, 0, %v2615
        %v2799 = vsel %vm2780, 0, %v2622
        %v2800 = vsel %vm2780, 0, %v2629
        %v2801 = vsel %vm2780, 0, %v2636
        %v2802 = vsel %vm2780, 0, %v2643
        %v2803 = vsel %vm2780, 0, %v2650
        %v2804 = vsel %vm2780, 0, %v2657
        %v2805 = vsel %vm2780, 0, %v2664
        %v2806 = vsel %vm2780, 0, %v2671
        %v2807 = vsel %vm2780, 0, %v2678
        %v2808 = vsel %vm2780, 0, %v2685
        %v2809 = vsel %vm2780, 0, %v2692
        %v2810 = vsel %vm2780, 0, %v2699
        %v2811 = vsel %vm2780, 0, %v2706
        %v2812 = vsel %vm2780, 0, %v2713
        %v2813 = vsel %vm2780, %v2493, 0
        %v2814 = vsel %vm2780, %v2500, 0
        %v2815 = vsel %vm2780, %v2507, 0
        %v2816 = vsel %vm2780, %v2514, 0
        %v2817 = vsel %vm2780, %v2521, 0
        %v2818 = vsel %vm2780, %v2528, 0
        %v2819 = vsel %vm2780, %v2535, 0
        %v2820 = vsel %vm2780, %v2542, 0
        %v2821 = vsel %vm2780, %v2549, 0
        %v2822 = vsel %vm2780, %v2556, 0
        %v2823 = vsel %vm2780, %v2563, 0
        %v2824 = vsel %vm2780, %v2570, 0
        %v2825 = vsel %vm2780, %v2577, 0
        %v2826 = vsel %vm2780, %v2584, 0
        %v2827 = vsel %vm2780, %v2591, 0
        %v2828 = vsel %vm2780, %v2598, 0
        %v2829 = vsel %vm2780, %v2605, 0
        %v2830 = vsel %vm2780, %v2612, 0
        %v2831 = vsel %vm2780, %v2619, 0
        %v2832 = vsel %vm2780, %v2626, 0
        %v2833 = vsel %vm2780, %v2633, 0
        %v2834 = vsel %vm2780, %v2640, 0
        %v2835 = vsel %vm2780, %v2647, 0
        %v2836 = vsel %vm2780, %v2654, 0
        %v2837 = vsel %vm2780, %v2661, 0
        %v2838 = vsel %vm2780, %v2668, 0
        %v2839 = vsel %vm2780, %v2675, 0
        %v2840 = vsel %vm2780, %v2682, 0
        %v2841 = vsel %vm2780, %v2689, 0
        %v2842 = vsel %vm2780, %v2696, 0
        %v2843 = vsel %vm2780, %v2703, 0
        %v2844 = vsel %vm2780, %v2710, 0
        %v2909 = vunpack.c.l.b16 %v2781
        %v2910 = vunpack.c.l.b16 %v2782
        %v2911 = vunpack.c.h.b16 %v2781
        %v2912 = vunpack.c.h.b16 %v2782
        %v2913 = vunpack.c.l.b16 %v2813
        %v2914 = vunpack.c.l.b16 %v2814
        %v2915 = vunpack.c.l.b16 %v2783
        %v2916 = vunpack.c.l.b16 %v2784
        %v2917 = vunpack.c.h.b16 %v2783
        %v2918 = vunpack.c.h.b16 %v2784
        %v2919 = vunpack.c.l.b16 %v2815
        %v2920 = vunpack.c.l.b16 %v2816
        %v2921 = vunpack.c.l.b16 %v2785
        %v2922 = vunpack.c.l.b16 %v2786
        %v2923 = vunpack.c.h.b16 %v2785
        %v2924 = vunpack.c.h.b16 %v2786
        %v2925 = vunpack.c.l.b16 %v2817
        %v2926 = vunpack.c.l.b16 %v2818
        %v2927 = vunpack.c.l.b16 %v2787
        %v2928 = vunpack.c.l.b16 %v2788
        %v2929 = vunpack.c.h.b16 %v2787
        %v2930 = vunpack.c.h.b16 %v2788
        %v2931 = vunpack.c.l.b16 %v2819
        %v2932 = vunpack.c.l.b16 %v2820
        %v2933 = vunpack.c.l.b16 %v2789
        %v2934 = vunpack.c.l.b16 %v2790
        %v2935 = vunpack.c.h.b16 %v2789
        %v2936 = vunpack.c.h.b16 %v2790
        %v2937 = vunpack.c.l.b16 %v2821
        %v2938 = vunpack.c.l.b16 %v2822
        %v2939 = vunpack.c.l.b16 %v2791
        %v2940 = vunpack.c.l.b16 %v2792
        %v2941 = vunpack.c.h.b16 %v2791
        %v2942 = vunpack.c.h.b16 %v2792
        %v2943 = vunpack.c.l.b16 %v2823
        %v2944 = vunpack.c.l.b16 %v2824
        %v2945 = vunpack.c.l.b16 %v2793
        %v2946 = vunpack.c.l.b16 %v2794
        %v2947 = vunpack.c.h.b16 %v2793
        %v2948 = vunpack.c.h.b16 %v2794
        %v2949 = vunpack.c.l.b16 %v2825
        %v2950 = vunpack.c.l.b16 %v2826
        %v2951 = vunpack.c.l.b16 %v2795
        %v2952 = vunpack.c.l.b16 %v2796
        %v2953 = vunpack.c.h.b16 %v2795
        %v2954 = vunpack.c.h.b16 %v2796
        %v2955 = vunpack.c.l.b16 %v2827
        %v2956 = vunpack.c.l.b16 %v2828
        %v2957 = vunpack.c.l.b16 %v2797
        %v2958 = vunpack.c.l.b16 %v2798
        %v2959 = vunpack.c.h.b16 %v2797
        %v2960 = vunpack.c.h.b16 %v2798
        %v2961 = vunpack.c.l.b16 %v2829
        %v2962 = vunpack.c.l.b16 %v2830
        %v2963 = vunpack.c.l.b16 %v2799
        %v2964 = vunpack.c.l.b16 %v2800
        %v2965 = vunpack.c.h.b16 %v2799
        %v2966 = vunpack.c.h.b16 %v2800
        %v2967 = vunpack.c.l.b16 %v2831
        %v2968 = vunpack.c.l.b16 %v2832
        %v2969 = vunpack.c.l.b16 %v2801
        %v2970 = vunpack.c.l.b16 %v2802
        %v2971 = vunpack.c.h.b16 %v2801
        %v2972 = vunpack.c.h.b16 %v2802
        %v2973 = vunpack.c.l.b16 %v2833
        %v2974 = vunpack.c.l.b16 %v2834
        %v2975 = vunpack.c.l.b16 %v2803
        %v2976 = vunpack.c.l.b16 %v2804
        %v2977 = vunpack.c.h.b16 %v2803
        %v2978 = vunpack.c.h.b16 %v2804
        %v2979 = vunpack.c.l.b16 %v2835
        %v2980 = vunpack.c.l.b16 %v2836
        %v2981 = vunpack.c.l.b16 %v2805
        %v2982 = vunpack.c.l.b16 %v2806
        %v2983 = vunpack.c.h.b16 %v2805
        %v2984 = vunpack.c.h.b16 %v2806
        %v2985 = vunpack.c.l.b16 %v2837
        %v2986 = vunpack.c.l.b16 %v2838
        %v2987 = vunpack.c.l.b16 %v2807
        %v2988 = vunpack.c.l.b16 %v2808
        %v2989 = vunpack.c.h.b16 %v2807
        %v2990 = vunpack.c.h.b16 %v2808
        %v2991 = vunpack.c.l.b16 %v2839
        %v2992 = vunpack.c.l.b16 %v2840
        %v2993 = vunpack.c.l.b16 %v2809
        %v2994 = vunpack.c.l.b16 %v2810
        %v2995 = vunpack.c.h.b16 %v2809
        %v2996 = vunpack.c.h.b16 %v2810
        %v2997 = vunpack.c.l.b16 %v2841
        %v2998 = vunpack.c.l.b16 %v2842
        %v2999 = vunpack.c.l.b16 %v2811
        %v3000 = vunpack.c.l.b16 %v2812
        %v3001 = vunpack.c.h.b16 %v2811
        %v3002 = vunpack.c.h.b16 %v2812
        %v3003 = vunpack.c.l.b16 %v2843
        %v3004 = vunpack.c.l.b16 %v2844
        %v3005 = vpack.c.b16 %v2910, %v2909
        %v3006 = vpack.c.b16 %v2912, %v2911
        %v3007 = vpack.c.b16 %v2914, %v2913
        %v3008 = vpack.c.b16 %v2916, %v2915
        %v3009 = vpack.c.b16 %v2918, %v2917
        %v3010 = vpack.c.b16 %v2920, %v2919
        %v3011 = vpack.c.b16 %v2922, %v2921
        %v3012 = vpack.c.b16 %v2924, %v2923
        %v3013 = vpack.c.b16 %v2926, %v2925
        %v3014 = vpack.c.b16 %v2928, %v2927
        %v3015 = vpack.c.b16 %v2930, %v2929
        %v3016 = vpack.c.b16 %v2932, %v2931
        %v3017 = vpack.c.b16 %v2934, %v2933
        %v3018 = vpack.c.b16 %v2936, %v2935
        %v3019 = vpack.c.b16 %v2938, %v2937
        %v3020 = vpack.c.b16 %v2940, %v2939
        %v3021 = vpack.c.b16 %v2942, %v2941
        %v3022 = vpack.c.b16 %v2944, %v2943
        %v3023 = vpack.c.b16 %v2946, %v2945
        %v3024 = vpack.c.b16 %v2948, %v2947
        %v3025 = vpack.c.b16 %v2950, %v2949
        %v3026 = vpack.c.b16 %v2952, %v2951
        %v3027 = vpack.c.b16 %v2954, %v2953
        %v3028 = vpack.c.b16 %v2956, %v2955
        %v3029 = vpack.c.b16 %v2958, %v2957
        %v3030 = vpack.c.b16 %v2960, %v2959
        %v3031 = vpack.c.b16 %v2962, %v2961
        %v3032 = vpack.c.b16 %v2964, %v2963
        %v3033 = vpack.c.b16 %v2966, %v2965
        %v3034 = vpack.c.b16 %v2968, %v2967
        %v3035 = vpack.c.b16 %v2970, %v2969
        %v3036 = vpack.c.b16 %v2972, %v2971
        %v3037 = vpack.c.b16 %v2974, %v2973
        %v3038 = vpack.c.b16 %v2976, %v2975
        %v3039 = vpack.c.b16 %v2978, %v2977
        %v3040 = vpack.c.b16 %v2980, %v2979
        %v3041 = vpack.c.b16 %v2982, %v2981
        %v3042 = vpack.c.b16 %v2984, %v2983
        %v3043 = vpack.c.b16 %v2986, %v2985
        %v3044 = vpack.c.b16 %v2988, %v2987
        %v3045 = vpack.c.b16 %v2990, %v2989
        %v3046 = vpack.c.b16 %v2992, %v2991
        %v3047 = vpack.c.b16 %v2994, %v2993
        %v3048 = vpack.c.b16 %v2996, %v2995
        %v3049 = vpack.c.b16 %v2998, %v2997
        %v3050 = vpack.c.b16 %v3000, %v2999
        %v3051 = vpack.c.b16 %v3002, %v3001
        %v3052 = vpack.c.b16 %v3004, %v3003
        %3101 = vst [vmem:[%s480] sm:$0xff] %v3005
        %3102 = vst [vmem:[%s480 + $0x8] sm:$0xff] %v3006
        %3103 = vst [vmem:[%s480 + $0x10] sm:$0x11] %v3007
        %3104 = vst [vmem:[%s480 + $0x18] sm:$0xff] %v3008
        %3105 = vst [vmem:[%s480 + $0x20] sm:$0xff] %v3009
        %3106 = vst [vmem:[%s480 + $0x28] sm:$0x11] %v3010
        %3107 = vst [vmem:[%s480 + $0x30] sm:$0xff] %v3011
        %3108 = vst [vmem:[%s480 + $0x38] sm:$0xff] %v3012
        %3109 = vst [vmem:[%s480 + $0x40] sm:$0x11] %v3013
        %3110 = vst [vmem:[%s480 + $0x48] sm:$0xff] %v3014
        %3111 = vst [vmem:[%s480 + $0x50] sm:$0xff] %v3015
        %3112 = vst [vmem:[%s480 + $0x58] sm:$0x11] %v3016
        %3113 = vst [vmem:[%s480 + $0x60] sm:$0xff] %v3017
        %3114 = vst [vmem:[%s480 + $0x68] sm:$0xff] %v3018
        %3115 = vst [vmem:[%s480 + $0x70] sm:$0x11] %v3019
        %3116 = vst [vmem:[%s480 + $0x78] sm:$0xff] %v3020
        %3117 = vst [vmem:[%s480 + $0x80] sm:$0xff] %v3021
        %3118 = vst [vmem:[%s480 + $0x88] sm:$0x11] %v3022
        %3119 = vst [vmem:[%s480 + $0x90] sm:$0xff] %v3023
        %3120 = vst [vmem:[%s480 + $0x98] sm:$0xff] %v3024
        %3121 = vst [vmem:[%s480 + $0xa0] sm:$0x11] %v3025
        %3122 = vst [vmem:[%s480 + $0xa8] sm:$0xff] %v3026
        %3123 = vst [vmem:[%s480 + $0xb0] sm:$0xff] %v3027
        %3124 = vst [vmem:[%s480 + $0xb8] sm:$0x11] %v3028
        %3125 = vst [vmem:[%s480 + $0xc0] sm:$0xff] %v3029
        %3126 = vst [vmem:[%s480 + $0xc8] sm:$0xff] %v3030
        %3127 = vst [vmem:[%s480 + $0xd0] sm:$0x11] %v3031
        %3128 = vst [vmem:[%s480 + $0xd8] sm:$0xff] %v3032
        %3129 = vst [vmem:[%s480 + $0xe0] sm:$0xff] %v3033
        %3130 = vst [vmem:[%s480 + $0xe8] sm:$0x11] %v3034
        %3131 = vst [vmem:[%s480 + $0xf0] sm:$0xff] %v3035
        %3132 = vst [vmem:[%s480 + $0xf8] sm:$0xff] %v3036
        %3133 = vst [vmem:[%s480 + $0x100] sm:$0x11] %v3037
        %3134 = vst [vmem:[%s480 + $0x108] sm:$0xff] %v3038
        %3135 = vst [vmem:[%s480 + $0x110] sm:$0xff] %v3039
        %3136 = vst [vmem:[%s480 + $0x118] sm:$0x11] %v3040
        %3137 = vst [vmem:[%s480 + $0x120] sm:$0xff] %v3041
        %3138 = vst [vmem:[%s480 + $0x128] sm:$0xff] %v3042
        %3139 = vst [vmem:[%s480 + $0x130] sm:$0x11] %v3043
        %3140 = vst [vmem:[%s480 + $0x138] sm:$0xff] %v3044
        %3141 = vst [vmem:[%s480 + $0x140] sm:$0xff] %v3045
        %3142 = vst [vmem:[%s480 + $0x148] sm:$0x11] %v3046
        %3143 = vst [vmem:[%s480 + $0x150] sm:$0xff] %v3047
        %3144 = vst [vmem:[%s480 + $0x158] sm:$0xff] %v3048
        %3145 = vst [vmem:[%s480 + $0x160] sm:$0x11] %v3049
        %3146 = vst [vmem:[%s480 + $0x168] sm:$0xff] %v3050
        %3147 = vst [vmem:[%s480 + $0x170] sm:$0xff] %v3051
        %3148 = vst [vmem:[%s480 + $0x178] sm:$0x11] %v3052
        %s3149 = smul.u32 16, %s25
        %p3150 = scmp.lt.s32.totalorder %s24, 1
        %s3151 = scalar_select %p3150, %s24, 1
        %p3152 = scmp.lt.s32.totalorder %s3149, 15
        %s3153 = scalar_select %p3152, %s3149, 15
        %s3154 = smul.addr %s3153, 6
        %s3155 = smul.addr %s3151, 96
        %s3156 = sadd.s32 %s3154, %s3155
        %s3157 = smul.addr %s3156, 4
        %s3158 = scalar_lea.vmem %s5, %s3157
        %p3159 = scmp.lt.s32.totalorder %s24, 1
        %s3160 = scalar_select %p3159, %s24, 1
        %p3161 = scmp.lt.s32.totalorder %s25, 0
        %s3162 = scalar_select %p3161, %s25, 0
        %s3163 = smul.addr %s3162, 2
        %s3164 = smul.addr %s3160, 2
        %s3165 = sadd.s32 %s3163, %s3164
        %s3166 = scalar_lea.vmem %s6, %s3165
        %p3167 = scmp.lt.s32.totalorder %s24, 1
        %s3168 = scalar_select %p3167, %s24, 1
        %p3169 = scmp.lt.s32.totalorder %s25, 0
        %s3170 = scalar_select %p3169, %s25, 0
        %s3171 = smul.addr %s3170, 2
        %s3172 = smul.addr %s3168, 2
        %s3173 = sadd.s32 %s3171, %s3172
        %s3174 = scalar_lea.vmem %s7, %s3173
        // Predicated region
        $region45: #{sa_forward.2} parent=39 // pred_check
          %p3175 = pneg %p186
        $region46: #{sa_forward.2} parent=39 // pred_check_branch
          %3177 = sbr.rel (%p3175) target = $region48
        $region47: #{sa_forward.2} parent=39 // pred_region
          %s3178 = smul.u32 16, %s25
        $region48: #{sa_forward.2} parent=39 // pred_fallthru
          _
        // Predicated region
        $region49: #{sa_forward.2} parent=39 // pred_check
          %p3179 = pneg %p214
        $region50: #{sa_forward.2} parent=39 // pred_check_branch
          %3181 = sbr.rel (%p3179) target = $region52
        $region51: #{sa_forward.2} parent=39 // pred_region
          _
        $region52: #{sa_forward.2} parent=39 // pred_fallthru
          _
        // Predicated region
        $region53: #{sa_forward.2} parent=39 // pred_check
          %p3182 = pneg %p242
        $region54: #{sa_forward.2} parent=39 // pred_check_branch
          %3184 = sbr.rel (%p3182) target = $region56
        $region55: #{sa_forward.2} parent=39 // pred_region
          _
        $region56: #{sa_forward.2} parent=39 // pred_fallthru
          _
      $region40: #{sa_forward.2} parent=5 // pred_fallthru
        _
      %p3185 = scmp.le.s32.totalorder 2, %s15
      // Predicated region
      $region57: #{sa_forward.2} parent=5 // pred_check
        %p3186 = pneg %p3185
      $region58: #{sa_forward.2} parent=5 // pred_check_branch
        %3188 = sbr.rel (%p3186) target = $region60
      $region59: #{sa_forward.2} parent=5 // pred_region
        %s3189 = ssub.s32 %s15, 2
        // Predicated region
        $region61: #{sa_forward.2} parent=59 // pred_check
          %p3190 = pneg %p192
        $region62: #{sa_forward.2} parent=59 // pred_check_branch
          %3192 = sbr.rel (%p3190) target = $region64
        $region63: #{sa_forward.2} parent=59 // pred_region
          %s3193 = smul.u32 16, %s27
          %p3194 = scmp.lt.s32.totalorder %s26, 1
          %s3195 = scalar_select %p3194, %s26, 1
          %p3196 = scmp.lt.s32.totalorder %s3193, 15
          %s3197 = scalar_select %p3196, %s3193, 15
          %s3198 = smul.addr %s3197, 6
          %s3199 = smul.addr %s3195, 96
          %s3200 = sadd.s32 %s3198, %s3199
          %s3201 = smul.addr %s3200, 4
          %s3202 = scalar_lea.vmem %s5, %s3201
        $region64: #{sa_forward.2} parent=59 // pred_fallthru
          _
        // Predicated region
        $region65: #{sa_forward.2} parent=59 // pred_check
          %p3203 = pneg %p220
        $region66: #{sa_forward.2} parent=59 // pred_check_branch
          %3205 = sbr.rel (%p3203) target = $region68
        $region67: #{sa_forward.2} parent=59 // pred_region
          %p3206 = scmp.lt.s32.totalorder %s26, 1
          %s3207 = scalar_select %p3206, %s26, 1
          %p3208 = scmp.lt.s32.totalorder %s27, 0
          %s3209 = scalar_select %p3208, %s27, 0
          %s3210 = smul.addr %s3209, 2
          %s3211 = smul.addr %s3207, 2
          %s3212 = sadd.s32 %s3210, %s3211
          %s3213 = scalar_lea.vmem %s6, %s3212
        $region68: #{sa_forward.2} parent=59 // pred_fallthru
          _
        // Predicated region
        $region69: #{sa_forward.2} parent=59 // pred_check
          %p3214 = pneg %p248
        $region70: #{sa_forward.2} parent=59 // pred_check_branch
          %3216 = sbr.rel (%p3214) target = $region72
        $region71: #{sa_forward.2} parent=59 // pred_region
          %p3217 = scmp.lt.s32.totalorder %s26, 1
          %s3218 = scalar_select %p3217, %s26, 1
          %p3219 = scmp.lt.s32.totalorder %s27, 0
          %s3220 = scalar_select %p3219, %s27, 0
          %s3221 = smul.addr %s3220, 2
          %s3222 = smul.addr %s3218, 2
          %s3223 = sadd.s32 %s3221, %s3222
          %s3224 = scalar_lea.vmem %s7, %s3223
        $region72: #{sa_forward.2} parent=59 // pred_fallthru
          _
      $region60: #{sa_forward.2} parent=5 // pred_fallthru
        _
    $region6: #{sa_forward.2} parent=1 // loop_footer
      %s19 = sadd.s32 1, %s15
    $region7: #{sa_forward.2} parent=1 // loop_footer_branch
      %14 = sbr.rel target = $region3
    $region8: #{sa_forward.2} parent=1 // loop_exit
      _
    %3225 = vsyncpa [#allocation3], 1
    %s3226 = scalar_lea.sflag [#allocation3], 1
    %3227 = vsyncpa %s3226, 1

// kernel: sa_forward.3
$region0: #{sa_forward.3}
  #allocation0 [shape = 'u32[]', space=smem, size = 0x4, offset = 0x4, fixed_abs, tag = 'smem constant byte address 0x4 - core index']
  #allocation1 [shape = 'u32[144,128]{1,0:T(1,128)}', space=vmem, size = 0x12000, scoped, tag = 'internal scratch']
  %s0 = inlined_call_operand.vmem [shape: bf16[2,16,18,256], index: 0, kind: input, shape index: {}, may-alias: {0,1,2}]
  %s1 = inlined_call_operand.vmem [shape: bf16[2,16,18,256], index: 1, kind: input, shape index: {}, may-alias: {0,1,2}]
  %s2 = inlined_call_operand.vmem [shape: bf16[2,16,18,256], index: 2, kind: input, shape index: {}, may-alias: {0,1,2}]
  %s3 = inlined_call_operand.vmem [shape: bf16[2304,512], index: 3, kind: input, shape index: {}]
  %s4 = inlined_call_operand.vmem [shape: f32[1,512], index: 4, kind: input, shape index: {}]
  %s5 = inlined_call_operand.vmem [shape: f32[1,256], index: 5, kind: input, shape index: {}]
  %s6 = inlined_call_operand.vmem [shape: f32[1,256], index: 6, kind: input, shape index: {}]
  %s7 = inlined_call_operand.hbm [shape: f32[2,16,16,256], index: 7, kind: output, shape index: {}]
  %s8 = sld [smem:[#allocation0]]
  $region61: #{sa_forward.3} parent=0
    _
  %s10 = ssub.s32 1, %s8
  %s11 = scalar_select 0, %s10, %s8
  $region1: #{sa_forward.3} parent=0
    #allocation2 [shape = 'u8[524288]{0}', space=vmem, size = 0x80000, scoped, tag = 'output window, operand 0']
    #allocation3 [shape = 's32[2]{0}', space=sflag, size = 0x8, scoped, tag = 'scoped memory for sa_forward.3']
    %12 = vsyncpa [#allocation3], 0
    %s13 = scalar_lea.sflag [#allocation3], 1
    %14 = vsyncpa %s13, 0
    loop: start=0, step=1, limit=4
    $region2: #{sa_forward.3} parent=1 // loop_pre_header
      _
    $region3: #{sa_forward.3} parent=1 // loop_header
      %s16 = sphi 0, %s20
      %p17 = scmp.ge.s32.totalorder %s16, 4
      %s23 = sphi 0, %s35
      %s24 = sphi 0, %s31
      %s25 = sphi 0, %s23
      %s26 = sphi 0, %s24
      %s27 = sphi 0, %s25
      %s28 = sphi 0, %s26
      %s48 = sphi 0, %s50
      %s51 = sphi 0, %s48
      %s52 = sphi 0, %s51
      %s68 = sphi 0, %s52
      %s76 = sphi 0, %s78
      %s79 = sphi 0, %s76
      %s80 = sphi 0, %s79
      %s96 = sphi 0, %s80
      %s112 = sphi 0, %s114
      %s115 = sphi 0, %s112
      %s116 = sphi 0, %s115
      %s132 = sphi 0, %s116
      %s136 = sphi 0, %s136
      %s138 = sphi 0, %s136
      %s139 = sphi 0, %s138
      %s153 = sphi 0, %s139
      %s157 = sphi 0, %s157
      %s159 = sphi 0, %s157
      %s160 = sphi 0, %s159
      %s174 = sphi 0, %s160
      %s178 = sphi 0, %s178
      %s180 = sphi 0, %s178
      %s181 = sphi 0, %s180
      %s195 = sphi 0, %s181
      %s199 = sphi 0, %s199
      %s201 = sphi 0, %s199
      %s202 = sphi 0, %s201
      %s216 = sphi 0, %s202
      %s224 = sphi 0, %s226
      %s227 = sphi 0, %s224
      %s228 = sphi 0, %s227
      %s244 = sphi 0, %s228
    $region4: #{sa_forward.3} parent=1 // loop_header_branch
      %19 = sbr.rel (%p17) target = $region8
    $region5: #{sa_forward.3} parent=1 // loop_body
      %s21 = ssub.s32 %s16, 1
      %s22 = ssub.s32 %s16, 2
      %s29 = sadd.s32 1, %s24
      %p30 = scmp.ge.s32.totalorder %s29, 1
      %s31 = scalar_select %p30, 0, %s29
      %s32 = sadd.s32 1, %s23
      %s33 = scalar_select %p30, %s32, %s23
      %p34 = scmp.ge.s32.totalorder %s33, 2
      %s35 = scalar_select %p34, 0, %s33
      %s36 = smul.u32 %s24, 16
      %s37 = ssub.s32 %s36, 1
      %p38 = scmp.gt.s32.totalorder %s37, 0
      %s39 = scalar_select %p38, %s37, 0
      %s40 = smul.u32 %s31, 16
      %s41 = ssub.s32 %s40, 1
      %p42 = scmp.gt.s32.totalorder %s41, 0
      %s43 = scalar_select %p42, %s41, 0
      %s44 = ssub.s32 %s23, %s35
      %s45 = ssub.s32 %s39, %s43
      %s46 = sor.u32 %s44, %s45
      %p47 = scmp.eq.s32.totalorder %s46, 0
      %s49 = sadd.s32 %s48, 1
      %s50 = scalar_select %p47, %s48, %s49
      %p53 = pneg %p47
      %p54 = scmp.eq.s32.totalorder %s16, 1
      %p55 = por %p53, %p54
      %p56 = scmp.ne.s32.totalorder %s48, %s51
      %p57 = scmp.eq.s32.totalorder %s16, 0
      %p58 = por %p56, %p57
      %p59 = scmp.ne.s32.totalorder %s48, %s51
      %p60 = scmp.eq.s32.totalorder %s21, 1
      %p61 = por %p59, %p60
      %p62 = scmp.ne.s32.totalorder %s51, %s52
      %p63 = scmp.eq.s32.totalorder %s21, 0
      %p64 = por %p62, %p63
      %p65 = scmp.ne.s32.totalorder %s51, %s52
      %p66 = scmp.eq.s32.totalorder %s22, 1
      %p67 = por %p65, %p66
      %p69 = scmp.ne.s32.totalorder %s52, %s68
      %p70 = scmp.eq.s32.totalorder %s22, 0
      %p71 = por %p69, %p70
      %s72 = ssub.s32 %s23, %s35
      %s73 = ssub.s32 %s24, %s31
      %s74 = sor.u32 %s72, %s73
      %p75 = scmp.eq.s32.totalorder %s74, 0
      %s77 = sadd.s32 %s76, 1
      %s78 = scalar_select %p75, %s76, %s77
      %p81 = pneg %p75
      %p82 = scmp.eq.s32.totalorder %s16, 1
      %p83 = por %p81, %p82
      %p84 = scmp.ne.s32.totalorder %s76, %s79
      %p85 = scmp.eq.s32.totalorder %s16, 0
      %p86 = por %p84, %p85
      %p87 = scmp.ne.s32.totalorder %s76, %s79
      %p88 = scmp.eq.s32.totalorder %s21, 1
      %p89 = por %p87, %p88
      %p90 = scmp.ne.s32.totalorder %s79, %s80
      %p91 = scmp.eq.s32.totalorder %s21, 0
      %p92 = por %p90, %p91
      %p93 = scmp.ne.s32.totalorder %s79, %s80
      %p94 = scmp.eq.s32.totalorder %s22, 1
      %p95 = por %p93, %p94
      %p97 = scmp.ne.s32.totalorder %s80, %s96
      %p98 = scmp.eq.s32.totalorder %s22, 0
      %p99 = por %p97, %p98
      %s100 = sadd.s32 %s24, 1
      %s101 = smul.u32 %s100, 16
      %p102 = scmp.lt.s32.totalorder %s101, 15
      %s103 = scalar_select %p102, %s101, 15
      %s104 = sadd.s32 %s31, 1
      %s105 = smul.u32 %s104, 16
      %p106 = scmp.lt.s32.totalorder %s105, 15
      %s107 = scalar_select %p106, %s105, 15
      %s108 = ssub.s32 %s23, %s35
      %s109 = ssub.s32 %s103, %s107
      %s110 = sor.u32 %s108, %s109
      %p111 = scmp.eq.s32.totalorder %s110, 0
      %s113 = sadd.s32 %s112, 1
      %s114 = scalar_select %p111, %s112, %s113
      %p117 = pneg %p111
      %p118 = scmp.eq.s32.totalorder %s16, 1
      %p119 = por %p117, %p118
      %p120 = scmp.ne.s32.totalorder %s112, %s115
      %p121 = scmp.eq.s32.totalorder %s16, 0
      %p122 = por %p120, %p121
      %p123 = scmp.ne.s32.totalorder %s112, %s115
      %p124 = scmp.eq.s32.totalorder %s21, 1
      %p125 = por %p123, %p124
      %p126 = scmp.ne.s32.totalorder %s115, %s116
      %p127 = scmp.eq.s32.totalorder %s21, 0
      %p128 = por %p126, %p127
      %p129 = scmp.ne.s32.totalorder %s115, %s116
      %p130 = scmp.eq.s32.totalorder %s22, 1
      %p131 = por %p129, %p130
      %p133 = scmp.ne.s32.totalorder %s116, %s132
      %p134 = scmp.eq.s32.totalorder %s22, 0
      %p135 = por %p133, %p134
      %s137 = sadd.s32 %s136, 1
      %p140 = scmp.eq.s32.totalorder %s16, 1
      %p141 = scmp.ne.s32.totalorder %s136, %s138
      %p142 = scmp.eq.s32.totalorder %s16, 0
      %p143 = por %p141, %p142
      %p144 = scmp.ne.s32.totalorder %s136, %s138
      %p145 = scmp.eq.s32.totalorder %s21, 1
      %p146 = por %p144, %p145
      %p147 = scmp.ne.s32.totalorder %s138, %s139
      %p148 = scmp.eq.s32.totalorder %s21, 0
      %p149 = por %p147, %p148
      %p150 = scmp.ne.s32.totalorder %s138, %s139
      %p151 = scmp.eq.s32.totalorder %s22, 1
      %p152 = por %p150, %p151
      %p154 = scmp.ne.s32.totalorder %s139, %s153
      %p155 = scmp.eq.s32.totalorder %s22, 0
      %p156 = por %p154, %p155
      %s158 = sadd.s32 %s157, 1
      %p161 = scmp.eq.s32.totalorder %s16, 1
      %p162 = scmp.ne.s32.totalorder %s157, %s159
      %p163 = scmp.eq.s32.totalorder %s16, 0
      %p164 = por %p162, %p163
      %p165 = scmp.ne.s32.totalorder %s157, %s159
      %p166 = scmp.eq.s32.totalorder %s21, 1
      %p167 = por %p165, %p166
      %p168 = scmp.ne.s32.totalorder %s159, %s160
      %p169 = scmp.eq.s32.totalorder %s21, 0
      %p170 = por %p168, %p169
      %p171 = scmp.ne.s32.totalorder %s159, %s160
      %p172 = scmp.eq.s32.totalorder %s22, 1
      %p173 = por %p171, %p172
      %p175 = scmp.ne.s32.totalorder %s160, %s174
      %p176 = scmp.eq.s32.totalorder %s22, 0
      %p177 = por %p175, %p176
      %s179 = sadd.s32 %s178, 1
      %p182 = scmp.eq.s32.totalorder %s16, 1
      %p183 = scmp.ne.s32.totalorder %s178, %s180
      %p184 = scmp.eq.s32.totalorder %s16, 0
      %p185 = por %p183, %p184
      %p186 = scmp.ne.s32.totalorder %s178, %s180
      %p187 = scmp.eq.s32.totalorder %s21, 1
      %p188 = por %p186, %p187
      %p189 = scmp.ne.s32.totalorder %s180, %s181
      %p190 = scmp.eq.s32.totalorder %s21, 0
      %p191 = por %p189, %p190
      %p192 = scmp.ne.s32.totalorder %s180, %s181
      %p193 = scmp.eq.s32.totalorder %s22, 1
      %p194 = por %p192, %p193
      %p196 = scmp.ne.s32.totalorder %s181, %s195
      %p197 = scmp.eq.s32.totalorder %s22, 0
      %p198 = por %p196, %p197
      %s200 = sadd.s32 %s199, 1
      %p203 = scmp.eq.s32.totalorder %s16, 1
      %p204 = scmp.ne.s32.totalorder %s199, %s201
      %p205 = scmp.eq.s32.totalorder %s16, 0
      %p206 = por %p204, %p205
      %p207 = scmp.ne.s32.totalorder %s199, %s201
      %p208 = scmp.eq.s32.totalorder %s21, 1
      %p209 = por %p207, %p208
      %p210 = scmp.ne.s32.totalorder %s201, %s202
      %p211 = scmp.eq.s32.totalorder %s21, 0
      %p212 = por %p210, %p211
      %p213 = scmp.ne.s32.totalorder %s201, %s202
      %p214 = scmp.eq.s32.totalorder %s22, 1
      %p215 = por %p213, %p214
      %p217 = scmp.ne.s32.totalorder %s202, %s216
      %p218 = scmp.eq.s32.totalorder %s22, 0
      %p219 = por %p217, %p218
      %s220 = ssub.s32 %s23, %s35
      %s221 = ssub.s32 %s24, %s31
      %s222 = sor.u32 %s220, %s221
      %p223 = scmp.eq.s32.totalorder %s222, 0
      %s225 = sadd.s32 %s224, 1
      %s226 = scalar_select %p223, %s224, %s225
      %p229 = pneg %p223
      %p230 = scmp.eq.s32.totalorder %s16, 1
      %p231 = por %p229, %p230
      %p232 = scmp.ne.s32.totalorder %s224, %s227
      %p233 = scmp.eq.s32.totalorder %s16, 0
      %p234 = por %p232, %p233
      %p235 = scmp.ne.s32.totalorder %s224, %s227
      %p236 = scmp.eq.s32.totalorder %s21, 1
      %p237 = por %p235, %p236
      %p238 = scmp.ne.s32.totalorder %s227, %s228
      %p239 = scmp.eq.s32.totalorder %s21, 0
      %p240 = por %p238, %p239
      %p241 = scmp.ne.s32.totalorder %s227, %s228
      %p242 = scmp.eq.s32.totalorder %s22, 1
      %p243 = por %p241, %p242
      %p245 = scmp.ne.s32.totalorder %s228, %s244
      %p246 = scmp.eq.s32.totalorder %s22, 0
      %p247 = por %p245, %p246
      %p248 = scmp.le.s32.totalorder 1, %s16
      %p249 = scmp.lt.s32.totalorder %s16, 3
      %p250 = pnand %p248, %p249
      %p251 = pneg %p250
      // Predicated region
      $region9: #{sa_forward.3} parent=5 // pred_check
        _
      $region10: #{sa_forward.3} parent=5 // pred_check_branch
        %253 = sbr.rel (%p250) target = $region12
      $region11: #{sa_forward.3} parent=5 // pred_region
        %s254 = ssub.s32 %s16, 1
        // Predicated region
        $region13: #{sa_forward.3} parent=11 // pred_check
          %p255 = pneg %p149
        $region14: #{sa_forward.3} parent=11 // pred_check_branch
          %257 = sbr.rel (%p255) target = $region16
        $region15: #{sa_forward.3} parent=11 // pred_region
          _
        $region16: #{sa_forward.3} parent=11 // pred_fallthru
          _
        // Predicated region
        $region17: #{sa_forward.3} parent=11 // pred_check
          %p258 = pneg %p170
        $region18: #{sa_forward.3} parent=11 // pred_check_branch
          %260 = sbr.rel (%p258) target = $region20
        $region19: #{sa_forward.3} parent=11 // pred_region
          _
        $region20: #{sa_forward.3} parent=11 // pred_fallthru
          _
        // Predicated region
        $region21: #{sa_forward.3} parent=11 // pred_check
          %p261 = pneg %p191
        $region22: #{sa_forward.3} parent=11 // pred_check_branch
          %263 = sbr.rel (%p261) target = $region24
        $region23: #{sa_forward.3} parent=11 // pred_region
          _
        $region24: #{sa_forward.3} parent=11 // pred_fallthru
          _
        // Predicated region
        $region25: #{sa_forward.3} parent=11 // pred_check
          %p264 = pneg %p212
        $region26: #{sa_forward.3} parent=11 // pred_check_branch
          %266 = sbr.rel (%p264) target = $region28
        $region27: #{sa_forward.3} parent=11 // pred_region
          _
        $region28: #{sa_forward.3} parent=11 // pred_fallthru
          _
      $region12: #{sa_forward.3} parent=5 // pred_fallthru
        _
      %p267 = scmp.lt.s32.totalorder %s16, 2
      // Predicated region
      $region29: #{sa_forward.3} parent=5 // pred_check
        %p268 = pneg %p267
      $region30: #{sa_forward.3} parent=5 // pred_check_branch
        %270 = sbr.rel (%p268) target = $region32
      $region31: #{sa_forward.3} parent=5 // pred_region
        // Predicated region
        $region33: #{sa_forward.3} parent=31 // pred_check
          %p271 = pneg %p58
        $region34: #{sa_forward.3} parent=31 // pred_check_branch
          %273 = sbr.rel (%p271) target = $region36
        $region35: #{sa_forward.3} parent=31 // pred_region
          %s274 = smul.u32 %s24, 16
          %s275 = ssub.s32 %s274, 1
          %p276 = scmp.gt.s32.totalorder %s275, 0
          %s277 = scalar_select %p276, %s275, 0
          %p278 = scmp.lt.s32.totalorder %s23, 1
          %s279 = scalar_select %p278, %s23, 1
          %p280 = scmp.lt.s32.totalorder %s277, 15
          %s281 = scalar_select %p280, %s277, 15
          %s282 = smul.addr %s281, 6
          %s283 = smul.addr %s279, 96
          %s284 = sadd.s32 %s282, %s283
          %s285 = smul.addr %s284, 4
          %s286 = scalar_lea.vmem %s0, %s285
          %s287 = smul.u32 %s24, 16
          %s288 = ssub.s32 %s287, 1
          %p289 = scmp.gt.s32.totalorder %s288, 0
          %s290 = scalar_select %p289, %s288, 0
        $region36: #{sa_forward.3} parent=31 // pred_fallthru
          _
        // Predicated region
        $region37: #{sa_forward.3} parent=31 // pred_check
          %p291 = pneg %p86
        $region38: #{sa_forward.3} parent=31 // pred_check_branch
          %293 = sbr.rel (%p291) target = $region40
        $region39: #{sa_forward.3} parent=31 // pred_region
          %s294 = smul.u32 16, %s24
          %p295 = scmp.lt.s32.totalorder %s23, 1
          %s296 = scalar_select %p295, %s23, 1
          %p297 = scmp.lt.s32.totalorder %s294, 15
          %s298 = scalar_select %p297, %s294, 15
          %s299 = smul.addr %s298, 6
          %s300 = smul.addr %s296, 96
          %s301 = sadd.s32 %s299, %s300
          %s302 = smul.addr %s301, 4
          %s303 = scalar_lea.vmem %s1, %s302
          %s304 = smul.u32 16, %s24
        $region40: #{sa_forward.3} parent=31 // pred_fallthru
          _
        // Predicated region
        $region41: #{sa_forward.3} parent=31 // pred_check
          %p305 = pneg %p122
        $region42: #{sa_forward.3} parent=31 // pred_check_branch
          %307 = sbr.rel (%p305) target = $region44
        $region43: #{sa_forward.3} parent=31 // pred_region
          %s308 = sadd.s32 %s24, 1
          %s309 = smul.u32 %s308, 16
          %p310 = scmp.lt.s32.totalorder %s309, 15
          %s311 = scalar_select %p310, %s309, 15
          %p312 = scmp.lt.s32.totalorder %s23, 1
          %s313 = scalar_select %p312, %s23, 1
          %p314 = scmp.lt.s32.totalorder %s311, 15
          %s315 = scalar_select %p314, %s311, 15
          %s316 = smul.addr %s315, 6
          %s317 = smul.addr %s313, 96
          %s318 = sadd.s32 %s316, %s317
          %s319 = smul.addr %s318, 4
          %s320 = scalar_lea.vmem %s2, %s319
          %s321 = sadd.s32 %s24, 1
          %s322 = smul.u32 %s321, 16
          %p323 = scmp.lt.s32.totalorder %s322, 15
          %s324 = scalar_select %p323, %s322, 15
        $region44: #{sa_forward.3} parent=31 // pred_fallthru
          _
      $region32: #{sa_forward.3} parent=5 // pred_fallthru
        _
      %p325 = scmp.le.s32.totalorder 1, %s16
      %p326 = scmp.lt.s32.totalorder %s16, 3
      %p327 = pnand %p325, %p326
      %p328 = pneg %p327
      // Predicated region
      $region45: #{sa_forward.3} parent=5 // pred_check
        _
      $region46: #{sa_forward.3} parent=5 // pred_check_branch
        %330 = sbr.rel (%p327) target = $region48
      $region47: #{sa_forward.3} parent=5 // pred_region
        %s331 = ssub.s32 %s16, 1
        %s332 = smul.u32 %s26, 16
        %s333 = ssub.s32 %s332, 1
        %p334 = scmp.gt.s32.totalorder %s333, 0
        %s335 = scalar_select %p334, %s333, 0
        %p336 = scmp.lt.s32.totalorder %s25, 1
        %s337 = scalar_select %p336, %s25, 1
        %p338 = scmp.lt.s32.totalorder %s335, 15
        %s339 = scalar_select %p338, %s335, 15
        %s340 = smul.addr %s339, 6
        %s341 = smul.addr %s337, 96
        %s342 = sadd.s32 %s340, %s341
        %s343 = smul.addr %s342, 4
        %s344 = scalar_lea.vmem %s0, %s343
        %p345 = pneg %p64
        %p346 = pneg %p61
        %s347 = smul.u32 16, %s26
        %p348 = scmp.lt.s32.totalorder %s25, 1
        %s349 = scalar_select %p348, %s25, 1
        %p350 = scmp.lt.s32.totalorder %s347, 15
        %s351 = scalar_select %p350, %s347, 15
        %s352 = smul.addr %s351, 6
        %s353 = smul.addr %s349, 96
        %s354 = sadd.s32 %s352, %s353
        %s355 = smul.addr %s354, 4
        %s356 = scalar_lea.vmem %s1, %s355
        %p357 = pneg %p92
        %p358 = pneg %p89
        %s359 = sadd.s32 %s26, 1
        %s360 = smul.u32 %s359, 16
        %p361 = scmp.lt.s32.totalorder %s360, 15
        %s362 = scalar_select %p361, %s360, 15
        %p363 = scmp.lt.s32.totalorder %s25, 1
        %s364 = scalar_select %p363, %s25, 1
        %p365 = scmp.lt.s32.totalorder %s362, 15
        %s366 = scalar_select %p365, %s362, 15
        %s367 = smul.addr %s366, 6
        %s368 = smul.addr %s364, 96
        %s369 = sadd.s32 %s367, %s368
        %s370 = smul.addr %s369, 4
        %s371 = scalar_lea.vmem %s2, %s370
        %p372 = pneg %p128
        %p373 = pneg %p125
        %p374 = pneg %p149
        %p375 = pneg %p146
        %p376 = pneg %p170
        %p377 = pneg %p167
        %p378 = pneg %p191
        %p379 = pneg %p188
        %p380 = pneg %p212
        %p381 = pneg %p209
        %p382 = pneg %p240
        %p383 = pneg %p237
        %s384 = sand.u32 %s227, 1
        %s385 = scalar_lea.sflag [#allocation3], %s384
        %s386 = sand.u32 %s227, 1
        %s387 = smul.addr %s386, 512
        %s388 = scalar_lea.vmem [#allocation2], %s387
        %s389 = smul.u32 %s26, 16
        %s390 = ssub.s32 %s389, 1
        %p391 = scmp.gt.s32.totalorder %s390, 0
        %s392 = scalar_select %p391, %s390, 0
        %p393 = scmp.lt.s32.totalorder %s25, 1
        %s394 = scalar_select %p393, %s25, 1
        %p395 = scmp.lt.s32.totalorder %s392, 15
        %s396 = scalar_select %p395, %s392, 15
        %s397 = smul.addr %s396, 6
        %s398 = smul.addr %s394, 96
        %s399 = sadd.s32 %s397, %s398
        %s400 = smul.addr %s399, 4
        %s401 = scalar_lea.vmem %s0, %s400
        %s402 = smul.u32 %s26, 16
        %s403 = ssub.s32 %s402, 1
        %p404 = scmp.gt.s32.totalorder %s403, 0
        %s405 = scalar_select %p404, %s403, 0
        %s406 = smul.u32 16, %s26
        %p407 = scmp.lt.s32.totalorder %s25, 1
        %s408 = scalar_select %p407, %s25, 1
        %p409 = scmp.lt.s32.totalorder %s406, 15
        %s410 = scalar_select %p409, %s406, 15
        %s411 = smul.addr %s410, 6
        %s412 = smul.addr %s408, 96
        %s413 = sadd.s32 %s411, %s412
        %s414 = smul.addr %s413, 4
        %s415 = scalar_lea.vmem %s1, %s414
        %s416 = smul.u32 16, %s26
        %s417 = sadd.s32 %s26, 1
        %s418 = smul.u32 %s417, 16
        %p419 = scmp.lt.s32.totalorder %s418, 15
        %s420 = scalar_select %p419, %s418, 15
        %p421 = scmp.lt.s32.totalorder %s25, 1
        %s422 = scalar_select %p421, %s25, 1
        %p423 = scmp.lt.s32.totalorder %s420, 15
        %s424 = scalar_select %p423, %s420, 15
        %s425 = smul.addr %s424, 6
        %s426 = smul.addr %s422, 96
        %s427 = sadd.s32 %s425, %s426
        %s428 = smul.addr %s427, 4
        %s429 = scalar_lea.vmem %s2, %s428
        %s430 = sadd.s32 %s26, 1
        %s431 = smul.u32 %s430, 16
        %p432 = scmp.lt.s32.totalorder %s431, 15
        %s433 = scalar_select %p432, %s431, 15
        %s434 = smul.u32 16, %s26
        %v435 = vld [vmem:[%s401] sm:$0xff]
        %v436 = vld [vmem:[%s401 + $0x8] sm:$0xff]
        %v437 = vld [vmem:[%s401 + $0x10] sm:$0x11]
        %v438 = vld [vmem:[%s415] sm:$0xff]
        %v439 = vld [vmem:[%s415 + $0x8] sm:$0xff]
        %v440 = vld [vmem:[%s415 + $0x10] sm:$0x11]
        %v441 = vld [vmem:[%s415 + $0x18] sm:$0xff]
        %v442 = vld [vmem:[%s415 + $0x20] sm:$0xff]
        %v443 = vld [vmem:[%s415 + $0x28] sm:$0x11]
        %v444 = vld [vmem:[%s415 + $0x30] sm:$0xff]
        %v445 = vld [vmem:[%s415 + $0x38] sm:$0xff]
        %v446 = vld [vmem:[%s415 + $0x40] sm:$0x11]
        %v447 = vld [vmem:[%s415 + $0x48] sm:$0xff]
        %v448 = vld [vmem:[%s415 + $0x50] sm:$0xff]
        %v449 = vld [vmem:[%s415 + $0x58] sm:$0x11]
        %v450 = vld [vmem:[%s415 + $0x60] sm:$0xff]
        %v451 = vld [vmem:[%s415 + $0x68] sm:$0xff]
        %v452 = vld [vmem:[%s415 + $0x70] sm:$0x11]
        %v453 = vld [vmem:[%s415 + $0x78] sm:$0xff]
        %v454 = vld [vmem:[%s415 + $0x80] sm:$0xff]
        %v455 = vld [vmem:[%s415 + $0x88] sm:$0x11]
        %v456 = vld [vmem:[%s415 + $0x90] sm:$0xff]
        %v457 = vld [vmem:[%s415 + $0x98] sm:$0xff]
        %v458 = vld [vmem:[%s415 + $0xa0] sm:$0x11]
        %v459 = vld [vmem:[%s415 + $0xa8] sm:$0xff]
        %v460 = vld [vmem:[%s415 + $0xb0] sm:$0xff]
        %v461 = vld [vmem:[%s415 + $0xb8] sm:$0x11]
        %v462 = vld [vmem:[%s415 + $0xc0] sm:$0xff]
        %v463 = vld [vmem:[%s415 + $0xc8] sm:$0xff]
        %v464 = vld [vmem:[%s415 + $0xd0] sm:$0x11]
        %v465 = vld [vmem:[%s415 + $0xd8] sm:$0xff]
        %v466 = vld [vmem:[%s415 + $0xe0] sm:$0xff]
        %v467 = vld [vmem:[%s415 + $0xe8] sm:$0x11]
        %v468 = vld [vmem:[%s415 + $0xf0] sm:$0xff]
        %v469 = vld [vmem:[%s415 + $0xf8] sm:$0xff]
        %v470 = vld [vmem:[%s415 + $0x100] sm:$0x11]
        %v471 = vld [vmem:[%s415 + $0x108] sm:$0xff]
        %v472 = vld [vmem:[%s415 + $0x110] sm:$0xff]
        %v473 = vld [vmem:[%s415 + $0x118] sm:$0x11]
        %v474 = vld [vmem:[%s415 + $0x120] sm:$0xff]
        %v475 = vld [vmem:[%s415 + $0x128] sm:$0xff]
        %v476 = vld [vmem:[%s415 + $0x130] sm:$0x11]
        %v477 = vld [vmem:[%s415 + $0x138] sm:$0xff]
        %v478 = vld [vmem:[%s415 + $0x140] sm:$0xff]
        %v479 = vld [vmem:[%s415 + $0x148] sm:$0x11]
        %v480 = vld [vmem:[%s415 + $0x150] sm:$0xff]
        %v481 = vld [vmem:[%s415 + $0x158] sm:$0xff]
        %v482 = vld [vmem:[%s415 + $0x160] sm:$0x11]
        %v483 = vld [vmem:[%s415 + $0x168] sm:$0xff]
        %v484 = vld [vmem:[%s415 + $0x170] sm:$0xff]
        %v485 = vld [vmem:[%s415 + $0x178] sm:$0x11]
        %v486 = vld [vmem:[%s429] sm:$0xff]
        %v487 = vld [vmem:[%s429 + $0x8] sm:$0xff]
        %v488 = vld [vmem:[%s429 + $0x10] sm:$0x11]
        %v489 = vunpack.c.l.bf16 %v435
        %v490 = vunpack.c.h.bf16 %v435
        %v491 = vunpack.c.l.bf16 %v436
        %v492 = vunpack.c.h.bf16 %v436
        %v493 = vunpack.c.l.bf16 %v437
        %v494 = vunpack.c.h.bf16 %v437
        %v495 = vunpack.c.l.bf16 %v438
        %v496 = vunpack.c.h.bf16 %v438
        %v497 = vunpack.c.l.bf16 %v439
        %v498 = vunpack.c.h.bf16 %v439
        %v499 = vunpack.c.l.bf16 %v440
        %v500 = vunpack.c.h.bf16 %v440
        %v501 = vunpack.c.l.bf16 %v441
        %v502 = vunpack.c.h.bf16 %v441
        %v503 = vunpack.c.l.bf16 %v442
        %v504 = vunpack.c.h.bf16 %v442
        %v505 = vunpack.c.l.bf16 %v443
        %v506 = vunpack.c.h.bf16 %v443
        %v507 = vunpack.c.l.bf16 %v444
        %v508 = vunpack.c.h.bf16 %v444
        %v509 = vunpack.c.l.bf16 %v445
        %v510 = vunpack.c.h.bf16 %v445
        %v511 = vunpack.c.l.bf16 %v446
        %v512 = vunpack.c.h.bf16 %v446
        %v513 = vunpack.c.l.bf16 %v447
        %v514 = vunpack.c.h.bf16 %v447
        %v515 = vunpack.c.l.bf16 %v448
        %v516 = vunpack.c.h.bf16 %v448
        %v517 = vunpack.c.l.bf16 %v449
        %v518 = vunpack.c.h.bf16 %v449
        %v519 = vunpack.c.l.bf16 %v450
        %v520 = vunpack.c.h.bf16 %v450
        %v521 = vunpack.c.l.bf16 %v451
        %v522 = vunpack.c.h.bf16 %v451
        %v523 = vunpack.c.l.bf16 %v452
        %v524 = vunpack.c.h.bf16 %v452
        %v525 = vunpack.c.l.bf16 %v453
        %v526 = vunpack.c.h.bf16 %v453
        %v527 = vunpack.c.l.bf16 %v454
        %v528 = vunpack.c.h.bf16 %v454
        %v529 = vunpack.c.l.bf16 %v455
        %v530 = vunpack.c.h.bf16 %v455
        %v531 = vunpack.c.l.bf16 %v456
        %v532 = vunpack.c.h.bf16 %v456
        %v533 = vunpack.c.l.bf16 %v457
        %v534 = vunpack.c.h.bf16 %v457
        %v535 = vunpack.c.l.bf16 %v458
        %v536 = vunpack.c.h.bf16 %v458
        %v537 = vunpack.c.l.bf16 %v459
        %v538 = vunpack.c.h.bf16 %v459
        %v539 = vunpack.c.l.bf16 %v460
        %v540 = vunpack.c.h.bf16 %v460
        %v541 = vunpack.c.l.bf16 %v461
        %v542 = vunpack.c.h.bf16 %v461
        %v543 = vunpack.c.l.bf16 %v462
        %v544 = vunpack.c.h.bf16 %v462
        %v545 = vunpack.c.l.bf16 %v463
        %v546 = vunpack.c.h.bf16 %v463
        %v547 = vunpack.c.l.bf16 %v464
        %v548 = vunpack.c.h.bf16 %v464
        %v549 = vunpack.c.l.bf16 %v465
        %v550 = vunpack.c.h.bf16 %v465
        %v551 = vunpack.c.l.bf16 %v466
        %v552 = vunpack.c.h.bf16 %v466
        %v553 = vunpack.c.l.bf16 %v467
        %v554 = vunpack.c.h.bf16 %v467
        %v555 = vunpack.c.l.bf16 %v468
        %v556 = vunpack.c.h.bf16 %v468
        %v557 = vunpack.c.l.bf16 %v469
        %v558 = vunpack.c.h.bf16 %v469
        %v559 = vunpack.c.l.bf16 %v470
        %v560 = vunpack.c.h.bf16 %v470
        %v561 = vunpack.c.l.bf16 %v471
        %v562 = vunpack.c.h.bf16 %v471
        %v563 = vunpack.c.l.bf16 %v472
        %v564 = vunpack.c.h.bf16 %v472
        %v565 = vunpack.c.l.bf16 %v473
        %v566 = vunpack.c.h.bf16 %v473
        %v567 = vunpack.c.l.bf16 %v474
        %v568 = vunpack.c.h.bf16 %v474
        %v569 = vunpack.c.l.bf16 %v475
        %v570 = vunpack.c.h.bf16 %v475
        %v571 = vunpack.c.l.bf16 %v476
        %v572 = vunpack.c.h.bf16 %v476
        %v573 = vunpack.c.l.bf16 %v477
        %v574 = vunpack.c.h.bf16 %v477
        %v575 = vunpack.c.l.bf16 %v478
        %v576 = vunpack.c.h.bf16 %v478
        %v577 = vunpack.c.l.bf16 %v479
        %v578 = vunpack.c.h.bf16 %v479
        %v579 = vunpack.c.l.bf16 %v480
        %v580 = vunpack.c.h.bf16 %v480
        %v581 = vunpack.c.l.bf16 %v481
        %v582 = vunpack.c.h.bf16 %v481
        %v583 = vunpack.c.l.bf16 %v482
        %v584 = vunpack.c.h.bf16 %v482
        %v585 = vunpack.c.l.bf16 %v483
        %v586 = vunpack.c.h.bf16 %v483
        %v587 = vunpack.c.l.bf16 %v484
        %v588 = vunpack.c.h.bf16 %v484
        %v589 = vunpack.c.l.bf16 %v485
        %v590 = vunpack.c.h.bf16 %v485
        %v591 = vunpack.c.l.bf16 %v486
        %v592 = vunpack.c.h.bf16 %v486
        %v593 = vunpack.c.l.bf16 %v487
        %v594 = vunpack.c.h.bf16 %v487
        %v595 = vunpack.c.l.bf16 %v488
        %v596 = vunpack.c.h.bf16 %v488
        %v597 = vld [vmem:[%s5] sm:$0x3]
        %v599 = vlaneseq
        %v600 = vshrl.u32 %v599, 7
        %v601 = vsub.s32 0, %v600
        %v602 = vrot.slane %v597, %v601
        %v603 = vlaneseq
        %v604 = vshrl.u32 %v603, 7
        %v605 = vsub.s32 1, %v604
        %v606 = vrot.slane %v597, %v605
        %v609 = vmul.f32 %v489, %v602
        %v610 = vmul.f32 %v490, %v606
        %v611 = vmul.f32 %v491, %v602
        %v612 = vmul.f32 %v492, %v606
        %v613 = vmul.f32 %v493, %v602
        %v614 = vmul.f32 %v494, %v606
        %v615 = vmul.f32 %v495, %v602
        %v616 = vmul.f32 %v496, %v606
        %v617 = vmul.f32 %v497, %v602
        %v618 = vmul.f32 %v498, %v606
        %v619 = vmul.f32 %v499, %v602
        %v620 = vmul.f32 %v500, %v606
        %v621 = vmul.f32 %v501, %v602
        %v622 = vmul.f32 %v502, %v606
        %v623 = vmul.f32 %v503, %v602
        %v624 = vmul.f32 %v504, %v606
        %v625 = vmul.f32 %v505, %v602
        %v626 = vmul.f32 %v506, %v606
        %v627 = vmul.f32 %v507, %v602
        %v628 = vmul.f32 %v508, %v606
        %v629 = vmul.f32 %v509, %v602
        %v630 = vmul.f32 %v510, %v606
        %v631 = vmul.f32 %v511, %v602
        %v632 = vmul.f32 %v512, %v606
        %v633 = vmul.f32 %v513, %v602
        %v634 = vmul.f32 %v514, %v606
        %v635 = vmul.f32 %v515, %v602
        %v636 = vmul.f32 %v516, %v606
        %v637 = vmul.f32 %v517, %v602
        %v638 = vmul.f32 %v518, %v606
        %v639 = vmul.f32 %v519, %v602
        %v640 = vmul.f32 %v520, %v606
        %v641 = vmul.f32 %v521, %v602
        %v642 = vmul.f32 %v522, %v606
        %v643 = vmul.f32 %v523, %v602
        %v644 = vmul.f32 %v524, %v606
        %v645 = vmul.f32 %v525, %v602
        %v646 = vmul.f32 %v526, %v606
        %v647 = vmul.f32 %v527, %v602
        %v648 = vmul.f32 %v528, %v606
        %v649 = vmul.f32 %v529, %v602
        %v650 = vmul.f32 %v530, %v606
        %v651 = vmul.f32 %v531, %v602
        %v652 = vmul.f32 %v532, %v606
        %v653 = vmul.f32 %v533, %v602
        %v654 = vmul.f32 %v534, %v606
        %v655 = vmul.f32 %v535, %v602
        %v656 = vmul.f32 %v536, %v606
        %v657 = vmul.f32 %v537, %v602
        %v658 = vmul.f32 %v538, %v606
        %v659 = vmul.f32 %v539, %v602
        %v660 = vmul.f32 %v540, %v606
        %v661 = vmul.f32 %v541, %v602
        %v662 = vmul.f32 %v542, %v606
        %v663 = vmul.f32 %v543, %v602
        %v664 = vmul.f32 %v544, %v606
        %v665 = vmul.f32 %v545, %v602
        %v666 = vmul.f32 %v546, %v606
        %v667 = vmul.f32 %v547, %v602
        %v668 = vmul.f32 %v548, %v606
        %v669 = vmul.f32 %v549, %v602
        %v670 = vmul.f32 %v550, %v606
        %v671 = vmul.f32 %v551, %v602
        %v672 = vmul.f32 %v552, %v606
        %v673 = vmul.f32 %v553, %v602
        %v674 = vmul.f32 %v554, %v606
        %v675 = vmul.f32 %v555, %v602
        %v676 = vmul.f32 %v556, %v606
        %v677 = vmul.f32 %v557, %v602
        %v678 = vmul.f32 %v558, %v606
        %v679 = vmul.f32 %v559, %v602
        %v680 = vmul.f32 %v560, %v606
        %v681 = vmul.f32 %v561, %v602
        %v682 = vmul.f32 %v562, %v606
        %v683 = vmul.f32 %v563, %v602
        %v684 = vmul.f32 %v564, %v606
        %v685 = vmul.f32 %v565, %v602
        %v686 = vmul.f32 %v566, %v606
        %v687 = vmul.f32 %v567, %v602
        %v688 = vmul.f32 %v568, %v606
        %v689 = vmul.f32 %v569, %v602
        %v690 = vmul.f32 %v570, %v606
        %v691 = vmul.f32 %v571, %v602
        %v692 = vmul.f32 %v572, %v606
        %v693 = vmul.f32 %v573, %v602
        %v694 = vmul.f32 %v574, %v606
        %v695 = vmul.f32 %v575, %v602
        %v696 = vmul.f32 %v576, %v606
        %v697 = vmul.f32 %v577, %v602
        %v698 = vmul.f32 %v578, %v606
        %v699 = vmul.f32 %v579, %v602
        %v700 = vmul.f32 %v580, %v606
        %v701 = vmul.f32 %v581, %v602
        %v702 = vmul.f32 %v582, %v606
        %v703 = vmul.f32 %v583, %v602
        %v704 = vmul.f32 %v584, %v606
        %v705 = vmul.f32 %v585, %v602
        %v706 = vmul.f32 %v586, %v606
        %v707 = vmul.f32 %v587, %v602
        %v708 = vmul.f32 %v588, %v606
        %v709 = vmul.f32 %v589, %v602
        %v710 = vmul.f32 %v590, %v606
        %v711 = vmul.f32 %v591, %v602
        %v712 = vmul.f32 %v592, %v606
        %v713 = vmul.f32 %v593, %v602
        %v714 = vmul.f32 %v594, %v606
        %v715 = vmul.f32 %v595, %v602
        %v716 = vmul.f32 %v596, %v606
        %v717 = vld [vmem:[%s6] sm:$0x3]
        %v719 = vlaneseq
        %v720 = vshrl.u32 %v719, 7
        %v721 = vsub.s32 0, %v720
        %v722 = vrot.slane %v717, %v721
        %v723 = vlaneseq
        %v724 = vshrl.u32 %v723, 7
        %v725 = vsub.s32 1, %v724
        %v726 = vrot.slane %v717, %v725
        %v729 = vadd.f32 %v609, %v722
        %v730 = vadd.f32 %v610, %v726
        %v731 = vadd.f32 %v611, %v722
        %v732 = vadd.f32 %v612, %v726
        %v733 = vadd.f32 %v613, %v722
        %v734 = vadd.f32 %v614, %v726
        %v735 = vadd.f32 %v615, %v722
        %v736 = vadd.f32 %v616, %v726
        %v737 = vadd.f32 %v617, %v722
        %v738 = vadd.f32 %v618, %v726
        %v739 = vadd.f32 %v619, %v722
        %v740 = vadd.f32 %v620, %v726
        %v741 = vadd.f32 %v621, %v722
        %v742 = vadd.f32 %v622, %v726
        %v743 = vadd.f32 %v623, %v722
        %v744 = vadd.f32 %v624, %v726
        %v745 = vadd.f32 %v625, %v722
        %v746 = vadd.f32 %v626, %v726
        %v747 = vadd.f32 %v627, %v722
        %v748 = vadd.f32 %v628, %v726
        %v749 = vadd.f32 %v629, %v722
        %v750 = vadd.f32 %v630, %v726
        %v751 = vadd.f32 %v631, %v722
        %v752 = vadd.f32 %v632, %v726
        %v753 = vadd.f32 %v633, %v722
        %v754 = vadd.f32 %v634, %v726
        %v755 = vadd.f32 %v635, %v722
        %v756 = vadd.f32 %v636, %v726
        %v757 = vadd.f32 %v637, %v722
        %v758 = vadd.f32 %v638, %v726
        %v759 = vadd.f32 %v639, %v722
        %v760 = vadd.f32 %v640, %v726
        %v761 = vadd.f32 %v641, %v722
        %v762 = vadd.f32 %v642, %v726
        %v763 = vadd.f32 %v643, %v722
        %v764 = vadd.f32 %v644, %v726
        %v765 = vadd.f32 %v645, %v722
        %v766 = vadd.f32 %v646, %v726
        %v767 = vadd.f32 %v647, %v722
        %v768 = vadd.f32 %v648, %v726
        %v769 = vadd.f32 %v649, %v722
        %v770 = vadd.f32 %v650, %v726
        %v771 = vadd.f32 %v651, %v722
        %v772 = vadd.f32 %v652, %v726
        %v773 = vadd.f32 %v653, %v722
        %v774 = vadd.f32 %v654, %v726
        %v775 = vadd.f32 %v655, %v722
        %v776 = vadd.f32 %v656, %v726
        %v777 = vadd.f32 %v657, %v722
        %v778 = vadd.f32 %v658, %v726
        %v779 = vadd.f32 %v659, %v722
        %v780 = vadd.f32 %v660, %v726
        %v781 = vadd.f32 %v661, %v722
        %v782 = vadd.f32 %v662, %v726
        %v783 = vadd.f32 %v663, %v722
        %v784 = vadd.f32 %v664, %v726
        %v785 = vadd.f32 %v665, %v722
        %v786 = vadd.f32 %v666, %v726
        %v787 = vadd.f32 %v667, %v722
        %v788 = vadd.f32 %v668, %v726
        %v789 = vadd.f32 %v669, %v722
        %v790 = vadd.f32 %v670, %v726
        %v791 = vadd.f32 %v671, %v722
        %v792 = vadd.f32 %v672, %v726
        %v793 = vadd.f32 %v673, %v722
        %v794 = vadd.f32 %v674, %v726
        %v795 = vadd.f32 %v675, %v722
        %v796 = vadd.f32 %v676, %v726
        %v797 = vadd.f32 %v677, %v722
        %v798 = vadd.f32 %v678, %v726
        %v799 = vadd.f32 %v679, %v722
        %v800 = vadd.f32 %v680, %v726
        %v801 = vadd.f32 %v681, %v722
        %v802 = vadd.f32 %v682, %v726
        %v803 = vadd.f32 %v683, %v722
        %v804 = vadd.f32 %v684, %v726
        %v805 = vadd.f32 %v685, %v722
        %v806 = vadd.f32 %v686, %v726
        %v807 = vadd.f32 %v687, %v722
        %v808 = vadd.f32 %v688, %v726
        %v809 = vadd.f32 %v689, %v722
        %v810 = vadd.f32 %v690, %v726
        %v811 = vadd.f32 %v691, %v722
        %v812 = vadd.f32 %v692, %v726
        %v813 = vadd.f32 %v693, %v722
        %v814 = vadd.f32 %v694, %v726
        %v815 = vadd.f32 %v695, %v722
        %v816 = vadd.f32 %v696, %v726
        %v817 = vadd.f32 %v697, %v722
        %v818 = vadd.f32 %v698, %v726
        %v819 = vadd.f32 %v699, %v722
        %v820 = vadd.f32 %v700, %v726
        %v821 = vadd.f32 %v701, %v722
        %v822 = vadd.f32 %v702, %v726
        %v823 = vadd.f32 %v703, %v722
        %v824 = vadd.f32 %v704, %v726
        %v825 = vadd.f32 %v705, %v722
        %v826 = vadd.f32 %v706, %v726
        %v827 = vadd.f32 %v707, %v722
        %v828 = vadd.f32 %v708, %v726
        %v829 = vadd.f32 %v709, %v722
        %v830 = vadd.f32 %v710, %v726
        %v831 = vadd.f32 %v711, %v722
        %v832 = vadd.f32 %v712, %v726
        %v833 = vadd.f32 %v713, %v722
        %v834 = vadd.f32 %v714, %v726
        %v835 = vadd.f32 %v715, %v722
        %v836 = vadd.f32 %v716, %v726
        %v837 = vmax.f32 %v729, 0.0
        %v838 = vmax.f32 %v730, 0.0
        %v839 = vmax.f32 %v731, 0.0
        %v840 = vmax.f32 %v732, 0.0
        %v841 = vmax.f32 %v733, 0.0
        %v842 = vmax.f32 %v734, 0.0
        %v843 = vmax.f32 %v735, 0.0
        %v844 = vmax.f32 %v736, 0.0
        %v845 = vmax.f32 %v737, 0.0
        %v846 = vmax.f32 %v738, 0.0
        %v847 = vmax.f32 %v739, 0.0
        %v848 = vmax.f32 %v740, 0.0
        %v849 = vmax.f32 %v741, 0.0
        %v850 = vmax.f32 %v742, 0.0
        %v851 = vmax.f32 %v743, 0.0
        %v852 = vmax.f32 %v744, 0.0
        %v853 = vmax.f32 %v745, 0.0
        %v854 = vmax.f32 %v746, 0.0
        %v855 = vmax.f32 %v747, 0.0
        %v856 = vmax.f32 %v748, 0.0
        %v857 = vmax.f32 %v749, 0.0
        %v858 = vmax.f32 %v750, 0.0
        %v859 = vmax.f32 %v751, 0.0
        %v860 = vmax.f32 %v752, 0.0
        %v861 = vmax.f32 %v753, 0.0
        %v862 = vmax.f32 %v754, 0.0
        %v863 = vmax.f32 %v755, 0.0
        %v864 = vmax.f32 %v756, 0.0
        %v865 = vmax.f32 %v757, 0.0
        %v866 = vmax.f32 %v758, 0.0
        %v867 = vmax.f32 %v759, 0.0
        %v868 = vmax.f32 %v760, 0.0
        %v869 = vmax.f32 %v761, 0.0
        %v870 = vmax.f32 %v762, 0.0
        %v871 = vmax.f32 %v763, 0.0
        %v872 = vmax.f32 %v764, 0.0
        %v873 = vmax.f32 %v765, 0.0
        %v874 = vmax.f32 %v766, 0.0
        %v875 = vmax.f32 %v767, 0.0
        %v876 = vmax.f32 %v768, 0.0
        %v877 = vmax.f32 %v769, 0.0
        %v878 = vmax.f32 %v770, 0.0
        %v879 = vmax.f32 %v771, 0.0
        %v880 = vmax.f32 %v772, 0.0
        %v881 = vmax.f32 %v773, 0.0
        %v882 = vmax.f32 %v774, 0.0
        %v883 = vmax.f32 %v775, 0.0
        %v884 = vmax.f32 %v776, 0.0
        %v885 = vmax.f32 %v777, 0.0
        %v886 = vmax.f32 %v778, 0.0
        %v887 = vmax.f32 %v779, 0.0
        %v888 = vmax.f32 %v780, 0.0
        %v889 = vmax.f32 %v781, 0.0
        %v890 = vmax.f32 %v782, 0.0
        %v891 = vmax.f32 %v783, 0.0
        %v892 = vmax.f32 %v784, 0.0
        %v893 = vmax.f32 %v785, 0.0
        %v894 = vmax.f32 %v786, 0.0
        %v895 = vmax.f32 %v787, 0.0
        %v896 = vmax.f32 %v788, 0.0
        %v897 = vmax.f32 %v789, 0.0
        %v898 = vmax.f32 %v790, 0.0
        %v899 = vmax.f32 %v791, 0.0
        %v900 = vmax.f32 %v792, 0.0
        %v901 = vmax.f32 %v793, 0.0
        %v902 = vmax.f32 %v794, 0.0
        %v903 = vmax.f32 %v795, 0.0
        %v904 = vmax.f32 %v796, 0.0
        %v905 = vmax.f32 %v797, 0.0
        %v906 = vmax.f32 %v798, 0.0
        %v907 = vmax.f32 %v799, 0.0
        %v908 = vmax.f32 %v800, 0.0
        %v909 = vmax.f32 %v801, 0.0
        %v910 = vmax.f32 %v802, 0.0
        %v911 = vmax.f32 %v803, 0.0
        %v912 = vmax.f32 %v804, 0.0
        %v913 = vmax.f32 %v805, 0.0
        %v914 = vmax.f32 %v806, 0.0
        %v915 = vmax.f32 %v807, 0.0
        %v916 = vmax.f32 %v808, 0.0
        %v917 = vmax.f32 %v809, 0.0
        %v918 = vmax.f32 %v810, 0.0
        %v919 = vmax.f32 %v811, 0.0
        %v920 = vmax.f32 %v812, 0.0
        %v921 = vmax.f32 %v813, 0.0
        %v922 = vmax.f32 %v814, 0.0
        %v923 = vmax.f32 %v815, 0.0
        %v924 = vmax.f32 %v816, 0.0
        %v925 = vmax.f32 %v817, 0.0
        %v926 = vmax.f32 %v818, 0.0
        %v927 = vmax.f32 %v819, 0.0
        %v928 = vmax.f32 %v820, 0.0
        %v929 = vmax.f32 %v821, 0.0
        %v930 = vmax.f32 %v822, 0.0
        %v931 = vmax.f32 %v823, 0.0
        %v932 = vmax.f32 %v824, 0.0
        %v933 = vmax.f32 %v825, 0.0
        %v934 = vmax.f32 %v826, 0.0
        %v935 = vmax.f32 %v827, 0.0
        %v936 = vmax.f32 %v828, 0.0
        %v937 = vmax.f32 %v829, 0.0
        %v938 = vmax.f32 %v830, 0.0
        %v939 = vmax.f32 %v831, 0.0
        %v940 = vmax.f32 %v832, 0.0
        %v941 = vmax.f32 %v833, 0.0
        %v942 = vmax.f32 %v834, 0.0
        %v943 = vmax.f32 %v835, 0.0
        %v944 = vmax.f32 %v836, 0.0
        %v945 = vlaneseq
        %v946 = vshrl.u32 %v945, 7
        %v947 = vadd.s32 %v946, 8
        %v948 = vadd.s32 %v946, 16
        %vm949 = vcmp.eq.s32.totalorder %v946, 0
        %vm950 = vcmp.eq.s32.totalorder %v947, 0
        %vm951 = vcmp.eq.s32.totalorder %v948, 0
        %vm952 = vcmp.eq.s32.totalorder %v946, 17
        %vm953 = vcmp.eq.s32.totalorder %v947, 17
        %vm954 = vcmp.eq.s32.totalorder %v948, 17
        %vm955 = vmor %vm949, %vm952
        %vm956 = vmor %vm950, %vm953
        %vm957 = vmor %vm951, %vm954
        %p958 = scmp.eq.s32.totalorder %s26, 0
        %s959 = scalar_select %p958, 1, 0
        %v960 = vstv %s959
        %vm961 = vcmp.eq.s32.totalorder %v960, 1
        %vm962 = vmor %vm955, %vm961
        %vm963 = vmor %vm956, %vm961
        %vm964 = vmor %vm957, %vm961
        %vm965 = vmor %vm955, 0
        %vm966 = vmor %vm956, 0
        %vm967 = vmor %vm957, 0
        %vm968 = vmor %vm962, 0
        %vm969 = vmor %vm963, 0
        %vm970 = vmor %vm964, 0
        %vm971 = vmor %vm965, 0
        %vm972 = vmor %vm966, 0
        %vm973 = vmor %vm967, 0
        %vm974 = vmor %vm965, %vm961
        %vm975 = vmor %vm966, %vm961
        %vm976 = vmor %vm967, %vm961
        %v977 = vsel %vm968, 1, 0
        %v978 = vsel %vm969, 1, 0
        %v979 = vsel %vm970, 1, 0
        %v980 = vsel %vm971, 1, 0
        %v981 = vsel %vm972, 1, 0
        %v982 = vsel %vm973, 1, 0
        %v983 = vsel %vm974, 1, 0
        %v984 = vsel %vm975, 1, 0
        %v985 = vsel %vm976, 1, 0
        %vm986 = vcmp.eq.s32.totalorder %v977, 1
        %vm987 = vcmp.eq.s32.totalorder %v978, 1
        %vm988 = vcmp.eq.s32.totalorder %v979, 1
        %vm989 = vcmp.eq.s32.totalorder %v980, 1
        %vm990 = vcmp.eq.s32.totalorder %v981, 1
        %vm991 = vcmp.eq.s32.totalorder %v982, 1
        %vm992 = vcmp.eq.s32.totalorder %v983, 1
        %vm993 = vcmp.eq.s32.totalorder %v984, 1
        %vm994 = vcmp.eq.s32.totalorder %v985, 1
        %v995 = vsel %vm986, 0.0, %v837
        %v996 = vsel %vm986, 0.0, %v838
        %v997 = vsel %vm987, 0.0, %v839
        %v998 = vsel %vm987, 0.0, %v840
        %v999 = vsel %vm988, 0.0, %v841
        %v1000 = vsel %vm988, 0.0, %v842
        %v1001 = vsel %vm989, 0.0, %v843
        %v1002 = vsel %vm989, 0.0, %v844
        %v1003 = vsel %vm990, 0.0, %v845
        %v1004 = vsel %vm990, 0.0, %v846
        %v1005 = vsel %vm991, 0.0, %v847
        %v1006 = vsel %vm991, 0.0, %v848
        %v1007 = vsel %vm989, 0.0, %v849
        %v1008 = vsel %vm989, 0.0, %v850
        %v1009 = vsel %vm990, 0.0, %v851
        %v1010 = vsel %vm990, 0.0, %v852
        %v1011 = vsel %vm991, 0.0, %v853
        %v1012 = vsel %vm991, 0.0, %v854
        %v1013 = vsel %vm989, 0.0, %v855
        %v1014 = vsel %vm989, 0.0, %v856
        %v1015 = vsel %vm990, 0.0, %v857
        %v1016 = vsel %vm990, 0.0, %v858
        %v1017 = vsel %vm991, 0.0, %v859
        %v1018 = vsel %vm991, 0.0, %v860
        %v1019 = vsel %vm989, 0.0, %v861
        %v1020 = vsel %vm989, 0.0, %v862
        %v1021 = vsel %vm990, 0.0, %v863
        %v1022 = vsel %vm990, 0.0, %v864
        %v1023 = vsel %vm991, 0.0, %v865
        %v1024 = vsel %vm991, 0.0, %v866
        %v1025 = vsel %vm989, 0.0, %v867
        %v1026 = vsel %vm989, 0.0, %v868
        %v1027 = vsel %vm990, 0.0, %v869
        %v1028 = vsel %vm990, 0.0, %v870
        %v1029 = vsel %vm991, 0.0, %v871
        %v1030 = vsel %vm991, 0.0, %v872
        %v1031 = vsel %vm989, 0.0, %v873
        %v1032 = vsel %vm989, 0.0, %v874
        %v1033 = vsel %vm990, 0.0, %v875
        %v1034 = vsel %vm990, 0.0, %v876
        %v1035 = vsel %vm991, 0.0, %v877
        %v1036 = vsel %vm991, 0.0, %v878
        %v1037 = vsel %vm989, 0.0, %v879
        %v1038 = vsel %vm989, 0.0, %v880
        %v1039 = vsel %vm990, 0.0, %v881
        %v1040 = vsel %vm990, 0.0, %v882
        %v1041 = vsel %vm991, 0.0, %v883
        %v1042 = vsel %vm991, 0.0, %v884
        %v1043 = vsel %vm989, 0.0, %v885
        %v1044 = vsel %vm989, 0.0, %v886
        %v1045 = vsel %vm990, 0.0, %v887
        %v1046 = vsel %vm990, 0.0, %v888
        %v1047 = vsel %vm991, 0.0, %v889
        %v1048 = vsel %vm991, 0.0, %v890
        %v1049 = vsel %vm989, 0.0, %v891
        %v1050 = vsel %vm989, 0.0, %v892
        %v1051 = vsel %vm990, 0.0, %v893
        %v1052 = vsel %vm990, 0.0, %v894
        %v1053 = vsel %vm991, 0.0, %v895
        %v1054 = vsel %vm991, 0.0, %v896
        %v1055 = vsel %vm989, 0.0, %v897
        %v1056 = vsel %vm989, 0.0, %v898
        %v1057 = vsel %vm990, 0.0, %v899
        %v1058 = vsel %vm990, 0.0, %v900
        %v1059 = vsel %vm991, 0.0, %v901
        %v1060 = vsel %vm991, 0.0, %v902
        %v1061 = vsel %vm989, 0.0, %v903
        %v1062 = vsel %vm989, 0.0, %v904
        %v1063 = vsel %vm990, 0.0, %v905
        %v1064 = vsel %vm990, 0.0, %v906
        %v1065 = vsel %vm991, 0.0, %v907
        %v1066 = vsel %vm991, 0.0, %v908
        %v1067 = vsel %vm989, 0.0, %v909
        %v1068 = vsel %vm989, 0.0, %v910
        %v1069 = vsel %vm990, 0.0, %v911
        %v1070 = vsel %vm990, 0.0, %v912
        %v1071 = vsel %vm991, 0.0, %v913
        %v1072 = vsel %vm991, 0.0, %v914
        %v1073 = vsel %vm989, 0.0, %v915
        %v1074 = vsel %vm989, 0.0, %v916
        %v1075 = vsel %vm990, 0.0, %v917
        %v1076 = vsel %vm990, 0.0, %v918
        %v1077 = vsel %vm991, 0.0, %v919
        %v1078 = vsel %vm991, 0.0, %v920
        %v1079 = vsel %vm989, 0.0, %v921
        %v1080 = vsel %vm989, 0.0, %v922
        %v1081 = vsel %vm990, 0.0, %v923
        %v1082 = vsel %vm990, 0.0, %v924
        %v1083 = vsel %vm991, 0.0, %v925
        %v1084 = vsel %vm991, 0.0, %v926
        %v1085 = vsel %vm989, 0.0, %v927
        %v1086 = vsel %vm989, 0.0, %v928
        %v1087 = vsel %vm990, 0.0, %v929
        %v1088 = vsel %vm990, 0.0, %v930
        %v1089 = vsel %vm991, 0.0, %v931
        %v1090 = vsel %vm991, 0.0, %v932
        %v1091 = vsel %vm989, 0.0, %v933
        %v1092 = vsel %vm989, 0.0, %v934
        %v1093 = vsel %vm990, 0.0, %v935
        %v1094 = vsel %vm990, 0.0, %v936
        %v1095 = vsel %vm991, 0.0, %v937
        %v1096 = vsel %vm991, 0.0, %v938
        %v1097 = vsel %vm992, 0.0, %v939
        %v1098 = vsel %vm992, 0.0, %v940
        %v1099 = vsel %vm993, 0.0, %v941
        %v1100 = vsel %vm993, 0.0, %v942
        %v1101 = vsel %vm994, 0.0, %v943
        %v1102 = vsel %vm994, 0.0, %v944
        %v1103 = vpack.c.bf16 %v997, %v995
        %v1104 = vpack.c.bf16 %v998, %v996
        %v1105 = vpack.c.bf16 %v999, %v999
        %v1106 = vpack.c.bf16 %v1000, %v1000
        %v1107 = vpack.c.bf16 %v1003, %v1001
        %v1108 = vpack.c.bf16 %v1004, %v1002
        %v1109 = vpack.c.bf16 %v1005, %v1005
        %v1110 = vpack.c.bf16 %v1006, %v1006
        %v1111 = vpack.c.bf16 %v1009, %v1007
        %v1112 = vpack.c.bf16 %v1010, %v1008
        %v1113 = vpack.c.bf16 %v1011, %v1011
        %v1114 = vpack.c.bf16 %v1012, %v1012
        %v1115 = vpack.c.bf16 %v1015, %v1013
        %v1116 = vpack.c.bf16 %v1016, %v1014
        %v1117 = vpack.c.bf16 %v1017, %v1017
        %v1118 = vpack.c.bf16 %v1018, %v1018
        %v1119 = vpack.c.bf16 %v1021, %v1019
        %v1120 = vpack.c.bf16 %v1022, %v1020
        %v1121 = vpack.c.bf16 %v1023, %v1023
        %v1122 = vpack.c.bf16 %v1024, %v1024
        %v1123 = vpack.c.bf16 %v1027, %v1025
        %v1124 = vpack.c.bf16 %v1028, %v1026
        %v1125 = vpack.c.bf16 %v1029, %v1029
        %v1126 = vpack.c.bf16 %v1030, %v1030
        %v1127 = vpack.c.bf16 %v1033, %v1031
        %v1128 = vpack.c.bf16 %v1034, %v1032
        %v1129 = vpack.c.bf16 %v1035, %v1035
        %v1130 = vpack.c.bf16 %v1036, %v1036
        %v1131 = vpack.c.bf16 %v1039, %v1037
        %v1132 = vpack.c.bf16 %v1040, %v1038
        %v1133 = vpack.c.bf16 %v1041, %v1041
        %v1134 = vpack.c.bf16 %v1042, %v1042
        %v1135 = vpack.c.bf16 %v1045, %v1043
        %v1136 = vpack.c.bf16 %v1046, %v1044
        %v1137 = vpack.c.bf16 %v1047, %v1047
        %v1138 = vpack.c.bf16 %v1048, %v1048
        %v1139 = vpack.c.bf16 %v1051, %v1049
        %v1140 = vpack.c.bf16 %v1052, %v1050
        %v1141 = vpack.c.bf16 %v1053, %v1053
        %v1142 = vpack.c.bf16 %v1054, %v1054
        %v1143 = vpack.c.bf16 %v1057, %v1055
        %v1144 = vpack.c.bf16 %v1058, %v1056
        %v1145 = vpack.c.bf16 %v1059, %v1059
        %v1146 = vpack.c.bf16 %v1060, %v1060
        %v1147 = vpack.c.bf16 %v1063, %v1061
        %v1148 = vpack.c.bf16 %v1064, %v1062
        %v1149 = vpack.c.bf16 %v1065, %v1065
        %v1150 = vpack.c.bf16 %v1066, %v1066
        %v1151 = vpack.c.bf16 %v1069, %v1067
        %v1152 = vpack.c.bf16 %v1070, %v1068
        %v1153 = vpack.c.bf16 %v1071, %v1071
        %v1154 = vpack.c.bf16 %v1072, %v1072
        %v1155 = vpack.c.bf16 %v1075, %v1073
        %v1156 = vpack.c.bf16 %v1076, %v1074
        %v1157 = vpack.c.bf16 %v1077, %v1077
        %v1158 = vpack.c.bf16 %v1078, %v1078
        %v1159 = vpack.c.bf16 %v1081, %v1079
        %v1160 = vpack.c.bf16 %v1082, %v1080
        %v1161 = vpack.c.bf16 %v1083, %v1083
        %v1162 = vpack.c.bf16 %v1084, %v1084
        %v1163 = vpack.c.bf16 %v1087, %v1085
        %v1164 = vpack.c.bf16 %v1088, %v1086
        %v1165 = vpack.c.bf16 %v1089, %v1089
        %v1166 = vpack.c.bf16 %v1090, %v1090
        %v1167 = vpack.c.bf16 %v1093, %v1091
        %v1168 = vpack.c.bf16 %v1094, %v1092
        %v1169 = vpack.c.bf16 %v1095, %v1095
        %v1170 = vpack.c.bf16 %v1096, %v1096
        %v1171 = vpack.c.bf16 %v1099, %v1097
        %v1172 = vpack.c.bf16 %v1100, %v1098
        %v1173 = vpack.c.bf16 %v1101, %v1101
        %v1174 = vpack.c.bf16 %v1102, %v1102
        %vm1175 = vsmask.f32 7424
        %v1177 = vshrl.u32 %v1103, 16
        %v1179 = vshll.u32 %v1103, 16
        %v1181 = vrot.slane %v1179, 1
        %v1182 = vor.u32 %v1177, %v1181
        %v1184 = vshll.u32 %v1105, 16
        %v1186 = vrot.slane %v1184, 1
        %v1187 = vsel %vm1175, %v1182, %v1186
        %v1189 = vshrl.u32 %v1104, 16
        %v1191 = vshll.u32 %v1104, 16
        %v1193 = vrot.slane %v1191, 1
        %v1194 = vor.u32 %v1189, %v1193
        %v1196 = vshll.u32 %v1106, 16
        %v1198 = vrot.slane %v1196, 1
        %v1199 = vsel %vm1175, %v1194, %v1198
        %v1201 = vshrl.u32 %v1107, 16
        %v1203 = vshll.u32 %v1107, 16
        %v1205 = vrot.slane %v1203, 1
        %v1206 = vor.u32 %v1201, %v1205
        %v1208 = vshll.u32 %v1109, 16
        %v1210 = vrot.slane %v1208, 1
        %v1211 = vsel %vm1175, %v1206, %v1210
        %v1213 = vshrl.u32 %v1108, 16
        %v1215 = vshll.u32 %v1108, 16
        %v1217 = vrot.slane %v1215, 1
        %v1218 = vor.u32 %v1213, %v1217
        %v1220 = vshll.u32 %v1110, 16
        %v1222 = vrot.slane %v1220, 1
        %v1223 = vsel %vm1175, %v1218, %v1222
        %v1225 = vshrl.u32 %v1111, 16
        %v1227 = vshll.u32 %v1111, 16
        %v1229 = vrot.slane %v1227, 1
        %v1230 = vor.u32 %v1225, %v1229
        %v1232 = vshll.u32 %v1113, 16
        %v1234 = vrot.slane %v1232, 1
        %v1235 = vsel %vm1175, %v1230, %v1234
        %v1237 = vshrl.u32 %v1112, 16
        %v1239 = vshll.u32 %v1112, 16
        %v1241 = vrot.slane %v1239, 1
        %v1242 = vor.u32 %v1237, %v1241
        %v1244 = vshll.u32 %v1114, 16
        %v1246 = vrot.slane %v1244, 1
        %v1247 = vsel %vm1175, %v1242, %v1246
        %v1249 = vshrl.u32 %v1115, 16
        %v1251 = vshll.u32 %v1115, 16
        %v1253 = vrot.slane %v1251, 1
        %v1254 = vor.u32 %v1249, %v1253
        %v1256 = vshll.u32 %v1117, 16
        %v1258 = vrot.slane %v1256, 1
        %v1259 = vsel %vm1175, %v1254, %v1258
        %v1261 = vshrl.u32 %v1116, 16
        %v1263 = vshll.u32 %v1116, 16
        %v1265 = vrot.slane %v1263, 1
        %v1266 = vor.u32 %v1261, %v1265
        %v1268 = vshll.u32 %v1118, 16
        %v1270 = vrot.slane %v1268, 1
        %v1271 = vsel %vm1175, %v1266, %v1270
        %v1273 = vshrl.u32 %v1119, 16
        %v1275 = vshll.u32 %v1119, 16
        %v1277 = vrot.slane %v1275, 1
        %v1278 = vor.u32 %v1273, %v1277
        %v1280 = vshll.u32 %v1121, 16
        %v1282 = vrot.slane %v1280, 1
        %v1283 = vsel %vm1175, %v1278, %v1282
        %v1285 = vshrl.u32 %v1120, 16
        %v1287 = vshll.u32 %v1120, 16
        %v1289 = vrot.slane %v1287, 1
        %v1290 = vor.u32 %v1285, %v1289
        %v1292 = vshll.u32 %v1122, 16
        %v1294 = vrot.slane %v1292, 1
        %v1295 = vsel %vm1175, %v1290, %v1294
        %v1297 = vshrl.u32 %v1123, 16
        %v1299 = vshll.u32 %v1123, 16
        %v1301 = vrot.slane %v1299, 1
        %v1302 = vor.u32 %v1297, %v1301
        %v1304 = vshll.u32 %v1125, 16
        %v1306 = vrot.slane %v1304, 1
        %v1307 = vsel %vm1175, %v1302, %v1306
        %v1309 = vshrl.u32 %v1124, 16
        %v1311 = vshll.u32 %v1124, 16
        %v1313 = vrot.slane %v1311, 1
        %v1314 = vor.u32 %v1309, %v1313
        %v1316 = vshll.u32 %v1126, 16
        %v1318 = vrot.slane %v1316, 1
        %v1319 = vsel %vm1175, %v1314, %v1318
        %v1321 = vshrl.u32 %v1127, 16
        %v1323 = vshll.u32 %v1127, 16
        %v1325 = vrot.slane %v1323, 1
        %v1326 = vor.u32 %v1321, %v1325
        %v1328 = vshll.u32 %v1129, 16
        %v1330 = vrot.slane %v1328, 1
        %v1331 = vsel %vm1175, %v1326, %v1330
        %v1333 = vshrl.u32 %v1128, 16
        %v1335 = vshll.u32 %v1128, 16
        %v1337 = vrot.slane %v1335, 1
        %v1338 = vor.u32 %v1333, %v1337
        %v1340 = vshll.u32 %v1130, 16
        %v1342 = vrot.slane %v1340, 1
        %v1343 = vsel %vm1175, %v1338, %v1342
        %v1345 = vshrl.u32 %v1131, 16
        %v1347 = vshll.u32 %v1131, 16
        %v1349 = vrot.slane %v1347, 1
        %v1350 = vor.u32 %v1345, %v1349
        %v1352 = vshll.u32 %v1133, 16
        %v1354 = vrot.slane %v1352, 1
        %v1355 = vsel %vm1175, %v1350, %v1354
        %v1357 = vshrl.u32 %v1132, 16
        %v1359 = vshll.u32 %v1132, 16
        %v1361 = vrot.slane %v1359, 1
        %v1362 = vor.u32 %v1357, %v1361
        %v1364 = vshll.u32 %v1134, 16
        %v1366 = vrot.slane %v1364, 1
        %v1367 = vsel %vm1175, %v1362, %v1366
        %v1369 = vshrl.u32 %v1135, 16
        %v1371 = vshll.u32 %v1135, 16
        %v1373 = vrot.slane %v1371, 1
        %v1374 = vor.u32 %v1369, %v1373
        %v1376 = vshll.u32 %v1137, 16
        %v1378 = vrot.slane %v1376, 1
        %v1379 = vsel %vm1175, %v1374, %v1378
        %v1381 = vshrl.u32 %v1136, 16
        %v1383 = vshll.u32 %v1136, 16
        %v1385 = vrot.slane %v1383, 1
        %v1386 = vor.u32 %v1381, %v1385
        %v1388 = vshll.u32 %v1138, 16
        %v1390 = vrot.slane %v1388, 1
        %v1391 = vsel %vm1175, %v1386, %v1390
        %v1393 = vshrl.u32 %v1139, 16
        %v1395 = vshll.u32 %v1139, 16
        %v1397 = vrot.slane %v1395, 1
        %v1398 = vor.u32 %v1393, %v1397
        %v1400 = vshll.u32 %v1141, 16
        %v1402 = vrot.slane %v1400, 1
        %v1403 = vsel %vm1175, %v1398, %v1402
        %v1405 = vshrl.u32 %v1140, 16
        %v1407 = vshll.u32 %v1140, 16
        %v1409 = vrot.slane %v1407, 1
        %v1410 = vor.u32 %v1405, %v1409
        %v1412 = vshll.u32 %v1142, 16
        %v1414 = vrot.slane %v1412, 1
        %v1415 = vsel %vm1175, %v1410, %v1414
        %v1417 = vshrl.u32 %v1143, 16
        %v1419 = vshll.u32 %v1143, 16
        %v1421 = vrot.slane %v1419, 1
        %v1422 = vor.u32 %v1417, %v1421
        %v1424 = vshll.u32 %v1145, 16
        %v1426 = vrot.slane %v1424, 1
        %v1427 = vsel %vm1175, %v1422, %v1426
        %v1429 = vshrl.u32 %v1144, 16
        %v1431 = vshll.u32 %v1144, 16
        %v1433 = vrot.slane %v1431, 1
        %v1434 = vor.u32 %v1429, %v1433
        %v1436 = vshll.u32 %v1146, 16
        %v1438 = vrot.slane %v1436, 1
        %v1439 = vsel %vm1175, %v1434, %v1438
        %v1441 = vshrl.u32 %v1147, 16
        %v1443 = vshll.u32 %v1147, 16
        %v1445 = vrot.slane %v1443, 1
        %v1446 = vor.u32 %v1441, %v1445
        %v1448 = vshll.u32 %v1149, 16
        %v1450 = vrot.slane %v1448, 1
        %v1451 = vsel %vm1175, %v1446, %v1450
        %v1453 = vshrl.u32 %v1148, 16
        %v1455 = vshll.u32 %v1148, 16
        %v1457 = vrot.slane %v1455, 1
        %v1458 = vor.u32 %v1453, %v1457
        %v1460 = vshll.u32 %v1150, 16
        %v1462 = vrot.slane %v1460, 1
        %v1463 = vsel %vm1175, %v1458, %v1462
        %v1465 = vshrl.u32 %v1151, 16
        %v1467 = vshll.u32 %v1151, 16
        %v1469 = vrot.slane %v1467, 1
        %v1470 = vor.u32 %v1465, %v1469
        %v1472 = vshll.u32 %v1153, 16
        %v1474 = vrot.slane %v1472, 1
        %v1475 = vsel %vm1175, %v1470, %v1474
        %v1477 = vshrl.u32 %v1152, 16
        %v1479 = vshll.u32 %v1152, 16
        %v1481 = vrot.slane %v1479, 1
        %v1482 = vor.u32 %v1477, %v1481
        %v1484 = vshll.u32 %v1154, 16
        %v1486 = vrot.slane %v1484, 1
        %v1487 = vsel %vm1175, %v1482, %v1486
        %v1489 = vshrl.u32 %v1155, 16
        %v1491 = vshll.u32 %v1155, 16
        %v1493 = vrot.slane %v1491, 1
        %v1494 = vor.u32 %v1489, %v1493
        %v1496 = vshll.u32 %v1157, 16
        %v1498 = vrot.slane %v1496, 1
        %v1499 = vsel %vm1175, %v1494, %v1498
        %v1501 = vshrl.u32 %v1156, 16
        %v1503 = vshll.u32 %v1156, 16
        %v1505 = vrot.slane %v1503, 1
        %v1506 = vor.u32 %v1501, %v1505
        %v1508 = vshll.u32 %v1158, 16
        %v1510 = vrot.slane %v1508, 1
        %v1511 = vsel %vm1175, %v1506, %v1510
        %v1513 = vshrl.u32 %v1159, 16
        %v1515 = vshll.u32 %v1159, 16
        %v1517 = vrot.slane %v1515, 1
        %v1518 = vor.u32 %v1513, %v1517
        %v1520 = vshll.u32 %v1161, 16
        %v1522 = vrot.slane %v1520, 1
        %v1523 = vsel %vm1175, %v1518, %v1522
        %v1525 = vshrl.u32 %v1160, 16
        %v1527 = vshll.u32 %v1160, 16
        %v1529 = vrot.slane %v1527, 1
        %v1530 = vor.u32 %v1525, %v1529
        %v1532 = vshll.u32 %v1162, 16
        %v1534 = vrot.slane %v1532, 1
        %v1535 = vsel %vm1175, %v1530, %v1534
        %v1537 = vshrl.u32 %v1163, 16
        %v1539 = vshll.u32 %v1163, 16
        %v1541 = vrot.slane %v1539, 1
        %v1542 = vor.u32 %v1537, %v1541
        %v1544 = vshll.u32 %v1165, 16
        %v1546 = vrot.slane %v1544, 1
        %v1547 = vsel %vm1175, %v1542, %v1546
        %v1549 = vshrl.u32 %v1164, 16
        %v1551 = vshll.u32 %v1164, 16
        %v1553 = vrot.slane %v1551, 1
        %v1554 = vor.u32 %v1549, %v1553
        %v1556 = vshll.u32 %v1166, 16
        %v1558 = vrot.slane %v1556, 1
        %v1559 = vsel %vm1175, %v1554, %v1558
        %vm1656 = vcmask 1046528
        %v1657 = vrot.slane %v1103, 1
        %v1658 = vrot.slane %v1105, 1
        %v1659 = vsel %vm1656, %v1657, %v1658
        %v1660 = vrot.slane %v1104, 1
        %v1661 = vrot.slane %v1106, 1
        %v1662 = vsel %vm1656, %v1660, %v1661
        %v1663 = vrot.slane %v1107, 1
        %v1664 = vrot.slane %v1109, 1
        %v1665 = vsel %vm1656, %v1663, %v1664
        %v1666 = vrot.slane %v1108, 1
        %v1667 = vrot.slane %v1110, 1
        %v1668 = vsel %vm1656, %v1666, %v1667
        %v1669 = vrot.slane %v1111, 1
        %v1670 = vrot.slane %v1113, 1
        %v1671 = vsel %vm1656, %v1669, %v1670
        %v1672 = vrot.slane %v1112, 1
        %v1673 = vrot.slane %v1114, 1
        %v1674 = vsel %vm1656, %v1672, %v1673
        %v1675 = vrot.slane %v1115, 1
        %v1676 = vrot.slane %v1117, 1
        %v1677 = vsel %vm1656, %v1675, %v1676
        %v1678 = vrot.slane %v1116, 1
        %v1679 = vrot.slane %v1118, 1
        %v1680 = vsel %vm1656, %v1678, %v1679
        %v1681 = vrot.slane %v1119, 1
        %v1682 = vrot.slane %v1121, 1
        %v1683 = vsel %vm1656, %v1681, %v1682
        %v1684 = vrot.slane %v1120, 1
        %v1685 = vrot.slane %v1122, 1
        %v1686 = vsel %vm1656, %v1684, %v1685
        %v1687 = vrot.slane %v1123, 1
        %v1688 = vrot.slane %v1125, 1
        %v1689 = vsel %vm1656, %v1687, %v1688
        %v1690 = vrot.slane %v1124, 1
        %v1691 = vrot.slane %v1126, 1
        %v1692 = vsel %vm1656, %v1690, %v1691
        %v1693 = vrot.slane %v1127, 1
        %v1694 = vrot.slane %v1129, 1
        %v1695 = vsel %vm1656, %v1693, %v1694
        %v1696 = vrot.slane %v1128, 1
        %v1697 = vrot.slane %v1130, 1
        %v1698 = vsel %vm1656, %v1696, %v1697
        %v1699 = vrot.slane %v1131, 1
        %v1700 = vrot.slane %v1133, 1
        %v1701 = vsel %vm1656, %v1699, %v1700
        %v1702 = vrot.slane %v1132, 1
        %v1703 = vrot.slane %v1134, 1
        %v1704 = vsel %vm1656, %v1702, %v1703
        %v1705 = vrot.slane %v1135, 1
        %v1706 = vrot.slane %v1137, 1
        %v1707 = vsel %vm1656, %v1705, %v1706
        %v1708 = vrot.slane %v1136, 1
        %v1709 = vrot.slane %v1138, 1
        %v1710 = vsel %vm1656, %v1708, %v1709
        %v1711 = vrot.slane %v1139, 1
        %v1712 = vrot.slane %v1141, 1
        %v1713 = vsel %vm1656, %v1711, %v1712
        %v1714 = vrot.slane %v1140, 1
        %v1715 = vrot.slane %v1142, 1
        %v1716 = vsel %vm1656, %v1714, %v1715
        %v1717 = vrot.slane %v1143, 1
        %v1718 = vrot.slane %v1145, 1
        %v1719 = vsel %vm1656, %v1717, %v1718
        %v1720 = vrot.slane %v1144, 1
        %v1721 = vrot.slane %v1146, 1
        %v1722 = vsel %vm1656, %v1720, %v1721
        %v1723 = vrot.slane %v1147, 1
        %v1724 = vrot.slane %v1149, 1
        %v1725 = vsel %vm1656, %v1723, %v1724
        %v1726 = vrot.slane %v1148, 1
        %v1727 = vrot.slane %v1150, 1
        %v1728 = vsel %vm1656, %v1726, %v1727
        %v1729 = vrot.slane %v1151, 1
        %v1730 = vrot.slane %v1153, 1
        %v1731 = vsel %vm1656, %v1729, %v1730
        %v1732 = vrot.slane %v1152, 1
        %v1733 = vrot.slane %v1154, 1
        %v1734 = vsel %vm1656, %v1732, %v1733
        %v1735 = vrot.slane %v1155, 1
        %v1736 = vrot.slane %v1157, 1
        %v1737 = vsel %vm1656, %v1735, %v1736
        %v1738 = vrot.slane %v1156, 1
        %v1739 = vrot.slane %v1158, 1
        %v1740 = vsel %vm1656, %v1738, %v1739
        %v1741 = vrot.slane %v1159, 1
        %v1742 = vrot.slane %v1161, 1
        %v1743 = vsel %vm1656, %v1741, %v1742
        %v1744 = vrot.slane %v1160, 1
        %v1745 = vrot.slane %v1162, 1
        %v1746 = vsel %vm1656, %v1744, %v1745
        %v1747 = vrot.slane %v1163, 1
        %v1748 = vrot.slane %v1165, 1
        %v1749 = vsel %vm1656, %v1747, %v1748
        %v1750 = vrot.slane %v1164, 1
        %v1751 = vrot.slane %v1166, 1
        %v1752 = vsel %vm1656, %v1750, %v1751
        %v1786 = vshrl.u32 %v1167, 16
        %v1788 = vshll.u32 %v1167, 16
        %v1790 = vrot.slane %v1788, 1
        %v1791 = vor.u32 %v1786, %v1790
        %v1793 = vshll.u32 %v1169, 16
        %v1795 = vrot.slane %v1793, 1
        %v1796 = vsel %vm1175, %v1791, %v1795
        %v1798 = vshrl.u32 %v1168, 16
        %v1800 = vshll.u32 %v1168, 16
        %v1802 = vrot.slane %v1800, 1
        %v1803 = vor.u32 %v1798, %v1802
        %v1805 = vshll.u32 %v1170, 16
        %v1807 = vrot.slane %v1805, 1
        %v1808 = vsel %vm1175, %v1803, %v1807
        %v1815 = vrot.slane %v1167, 1
        %v1816 = vrot.slane %v1169, 1
        %v1817 = vsel %vm1656, %v1815, %v1816
        %v1818 = vrot.slane %v1168, 1
        %v1819 = vrot.slane %v1170, 1
        %v1820 = vsel %vm1656, %v1818, %v1819
        %v1824 = vshrl.u32 %v1171, 16
        %v1826 = vshll.u32 %v1171, 16
        %v1828 = vrot.slane %v1826, 1
        %v1829 = vor.u32 %v1824, %v1828
        %v1831 = vshll.u32 %v1173, 16
        %v1833 = vrot.slane %v1831, 1
        %v1834 = vsel %vm1175, %v1829, %v1833
        %v1836 = vshrl.u32 %v1172, 16
        %v1838 = vshll.u32 %v1172, 16
        %v1840 = vrot.slane %v1838, 1
        %v1841 = vor.u32 %v1836, %v1840
        %v1843 = vshll.u32 %v1174, 16
        %v1845 = vrot.slane %v1843, 1
        %v1846 = vsel %vm1175, %v1841, %v1845
        %v1853 = vrot.slane %v1171, 1
        %v1854 = vrot.slane %v1173, 1
        %v1855 = vsel %vm1656, %v1853, %v1854
        %v1856 = vrot.slane %v1172, 1
        %v1857 = vrot.slane %v1174, 1
        %v1858 = vsel %vm1656, %v1856, %v1857
        %v1861 = vld [vmem:[%s3] sm:$0xff]
        %v1862 = vld [vmem:[%s3 + $0x8] sm:$0xff]
        %v1863 = vld [vmem:[%s3 + $0x10] sm:$0xff]
        %v1864 = vld [vmem:[%s3 + $0x18] sm:$0xff]
        %v1865 = vld [vmem:[%s3 + $0x20] sm:$0xff]
        %v1866 = vld [vmem:[%s3 + $0x28] sm:$0xff]
        %v1867 = vld [vmem:[%s3 + $0x30] sm:$0xff]
        %v1868 = vld [vmem:[%s3 + $0x38] sm:$0xff]
        %v1869 = vld [vmem:[%s3 + $0x40] sm:$0xff]
        %v1870 = vld [vmem:[%s3 + $0x48] sm:$0xff]
        %v1871 = vld [vmem:[%s3 + $0x50] sm:$0xff]
        %v1872 = vld [vmem:[%s3 + $0x58] sm:$0xff]
        %v1873 = vld [vmem:[%s3 + $0x60] sm:$0xff]
        %v1874 = vld [vmem:[%s3 + $0x68] sm:$0xff]
        %v1875 = vld [vmem:[%s3 + $0x70] sm:$0xff]
        %v1876 = vld [vmem:[%s3 + $0x78] sm:$0xff]
        %v1877 = vld [vmem:[%s3 + $0x80] sm:$0xff]
        %v1878 = vld [vmem:[%s3 + $0x88] sm:$0xff]
        %v1879 = vld [vmem:[%s3 + $0x90] sm:$0xff]
        %v1880 = vld [vmem:[%s3 + $0x98] sm:$0xff]
        %v1881 = vld [vmem:[%s3 + $0xa0] sm:$0xff]
        %v1882 = vld [vmem:[%s3 + $0xa8] sm:$0xff]
        %v1883 = vld [vmem:[%s3 + $0xb0] sm:$0xff]
        %v1884 = vld [vmem:[%s3 + $0xb8] sm:$0xff]
        %v1885 = vld [vmem:[%s3 + $0xc0] sm:$0xff]
        %v1886 = vld [vmem:[%s3 + $0xc8] sm:$0xff]
        %v1887 = vld [vmem:[%s3 + $0xd0] sm:$0xff]
        %v1888 = vld [vmem:[%s3 + $0xd8] sm:$0xff]
        %v1889 = vld [vmem:[%s3 + $0xe0] sm:$0xff]
        %v1890 = vld [vmem:[%s3 + $0xe8] sm:$0xff]
        %v1891 = vld [vmem:[%s3 + $0xf0] sm:$0xff]
        %v1892 = vld [vmem:[%s3 + $0xf8] sm:$0xff]
        %v1893 = vld [vmem:[%s3 + $0x100] sm:$0xff]
        %v1894 = vld [vmem:[%s3 + $0x108] sm:$0xff]
        %v1895 = vld [vmem:[%s3 + $0x110] sm:$0xff]
        %v1896 = vld [vmem:[%s3 + $0x118] sm:$0xff]
        %v1897 = vld [vmem:[%s3 + $0x120] sm:$0xff]
        %v1898 = vld [vmem:[%s3 + $0x128] sm:$0xff]
        %v1899 = vld [vmem:[%s3 + $0x130] sm:$0xff]
        %v1900 = vld [vmem:[%s3 + $0x138] sm:$0xff]
        %v1901 = vld [vmem:[%s3 + $0x140] sm:$0xff]
        %v1902 = vld [vmem:[%s3 + $0x148] sm:$0xff]
        %v1903 = vld [vmem:[%s3 + $0x150] sm:$0xff]
        %v1904 = vld [vmem:[%s3 + $0x158] sm:$0xff]
        %v1905 = vld [vmem:[%s3 + $0x160] sm:$0xff]
        %v1906 = vld [vmem:[%s3 + $0x168] sm:$0xff]
        %v1907 = vld [vmem:[%s3 + $0x170] sm:$0xff]
        %v1908 = vld [vmem:[%s3 + $0x178] sm:$0xff]
        %v1909 = vld [vmem:[%s3 + $0x180] sm:$0xff]
        %v1910 = vld [vmem:[%s3 + $0x188] sm:$0xff]
        %v1911 = vld [vmem:[%s3 + $0x190] sm:$0xff]
        %v1912 = vld [vmem:[%s3 + $0x198] sm:$0xff]
        %v1913 = vld [vmem:[%s3 + $0x1a0] sm:$0xff]
        %v1914 = vld [vmem:[%s3 + $0x1a8] sm:$0xff]
        %v1915 = vld [vmem:[%s3 + $0x1b0] sm:$0xff]
        %v1916 = vld [vmem:[%s3 + $0x1b8] sm:$0xff]
        %v1917 = vld [vmem:[%s3 + $0x1c0] sm:$0xff]
        %v1918 = vld [vmem:[%s3 + $0x1c8] sm:$0xff]
        %v1919 = vld [vmem:[%s3 + $0x1d0] sm:$0xff]
        %v1920 = vld [vmem:[%s3 + $0x1d8] sm:$0xff]
        %v1921 = vld [vmem:[%s3 + $0x1e0] sm:$0xff]
        %v1922 = vld [vmem:[%s3 + $0x1e8] sm:$0xff]
        %v1923 = vld [vmem:[%s3 + $0x1f0] sm:$0xff]
        %v1924 = vld [vmem:[%s3 + $0x1f8] sm:$0xff]
        %v1925 = vld [vmem:[%s3 + $0x200] sm:$0xff]
        %v1926 = vld [vmem:[%s3 + $0x208] sm:$0xff]
        %v1927 = vld [vmem:[%s3 + $0x210] sm:$0xff]
        %v1928 = vld [vmem:[%s3 + $0x218] sm:$0xff]
        %v1929 = vld [vmem:[%s3 + $0x220] sm:$0xff]
        %v1930 = vld [vmem:[%s3 + $0x228] sm:$0xff]
        %v1931 = vld [vmem:[%s3 + $0x230] sm:$0xff]
        %v1932 = vld [vmem:[%s3 + $0x238] sm:$0xff]
        %v1933 = vld [vmem:[%s3 + $0x240] sm:$0xff]
        %v1934 = vld [vmem:[%s3 + $0x248] sm:$0xff]
        %v1935 = vld [vmem:[%s3 + $0x250] sm:$0xff]
        %v1936 = vld [vmem:[%s3 + $0x258] sm:$0xff]
        %v1937 = vld [vmem:[%s3 + $0x260] sm:$0xff]
        %v1938 = vld [vmem:[%s3 + $0x268] sm:$0xff]
        %v1939 = vld [vmem:[%s3 + $0x270] sm:$0xff]
        %v1940 = vld [vmem:[%s3 + $0x278] sm:$0xff]
        %v1941 = vld [vmem:[%s3 + $0x280] sm:$0xff]
        %v1942 = vld [vmem:[%s3 + $0x288] sm:$0xff]
        %v1943 = vld [vmem:[%s3 + $0x290] sm:$0xff]
        %v1944 = vld [vmem:[%s3 + $0x298] sm:$0xff]
        %v1945 = vld [vmem:[%s3 + $0x2a0] sm:$0xff]
        %v1946 = vld [vmem:[%s3 + $0x2a8] sm:$0xff]
        %v1947 = vld [vmem:[%s3 + $0x2b0] sm:$0xff]
        %v1948 = vld [vmem:[%s3 + $0x2b8] sm:$0xff]
        %v1949 = vld [vmem:[%s3 + $0x2c0] sm:$0xff]
        %v1950 = vld [vmem:[%s3 + $0x2c8] sm:$0xff]
        %v1951 = vld [vmem:[%s3 + $0x2d0] sm:$0xff]
        %v1952 = vld [vmem:[%s3 + $0x2d8] sm:$0xff]
        %v1953 = vld [vmem:[%s3 + $0x2e0] sm:$0xff]
        %v1954 = vld [vmem:[%s3 + $0x2e8] sm:$0xff]
        %v1955 = vld [vmem:[%s3 + $0x2f0] sm:$0xff]
        %v1956 = vld [vmem:[%s3 + $0x2f8] sm:$0xff]
        %v1957 = vld [vmem:[%s3 + $0x300] sm:$0xff]
        %v1958 = vld [vmem:[%s3 + $0x308] sm:$0xff]
        %v1959 = vld [vmem:[%s3 + $0x310] sm:$0xff]
        %v1960 = vld [vmem:[%s3 + $0x318] sm:$0xff]
        %v1961 = vld [vmem:[%s3 + $0x320] sm:$0xff]
        %v1962 = vld [vmem:[%s3 + $0x328] sm:$0xff]
        %v1963 = vld [vmem:[%s3 + $0x330] sm:$0xff]
        %v1964 = vld [vmem:[%s3 + $0x338] sm:$0xff]
        %v1965 = vld [vmem:[%s3 + $0x340] sm:$0xff]
        %v1966 = vld [vmem:[%s3 + $0x348] sm:$0xff]
        %v1967 = vld [vmem:[%s3 + $0x350] sm:$0xff]
        %v1968 = vld [vmem:[%s3 + $0x358] sm:$0xff]
        %v1969 = vld [vmem:[%s3 + $0x360] sm:$0xff]
        %v1970 = vld [vmem:[%s3 + $0x368] sm:$0xff]
        %v1971 = vld [vmem:[%s3 + $0x370] sm:$0xff]
        %v1972 = vld [vmem:[%s3 + $0x378] sm:$0xff]
        %v1973 = vld [vmem:[%s3 + $0x380] sm:$0xff]
        %v1974 = vld [vmem:[%s3 + $0x388] sm:$0xff]
        %v1975 = vld [vmem:[%s3 + $0x390] sm:$0xff]
        %v1976 = vld [vmem:[%s3 + $0x398] sm:$0xff]
        %v1977 = vld [vmem:[%s3 + $0x3a0] sm:$0xff]
        %v1978 = vld [vmem:[%s3 + $0x3a8] sm:$0xff]
        %v1979 = vld [vmem:[%s3 + $0x3b0] sm:$0xff]
        %v1980 = vld [vmem:[%s3 + $0x3b8] sm:$0xff]
        %v1981 = vld [vmem:[%s3 + $0x3c0] sm:$0xff]
        %v1982 = vld [vmem:[%s3 + $0x3c8] sm:$0xff]
        %v1983 = vld [vmem:[%s3 + $0x3d0] sm:$0xff]
        %v1984 = vld [vmem:[%s3 + $0x3d8] sm:$0xff]
        %v1985 = vld [vmem:[%s3 + $0x3e0] sm:$0xff]
        %v1986 = vld [vmem:[%s3 + $0x3e8] sm:$0xff]
        %v1987 = vld [vmem:[%s3 + $0x3f0] sm:$0xff]
        %v1988 = vld [vmem:[%s3 + $0x3f8] sm:$0xff]
        %v1989 = vld [vmem:[%s3 + $0x400] sm:$0xff]
        %v1990 = vld [vmem:[%s3 + $0x408] sm:$0xff]
        %v1991 = vld [vmem:[%s3 + $0x410] sm:$0xff]
        %v1992 = vld [vmem:[%s3 + $0x418] sm:$0xff]
        %v1993 = vld [vmem:[%s3 + $0x420] sm:$0xff]
        %v1994 = vld [vmem:[%s3 + $0x428] sm:$0xff]
        %v1995 = vld [vmem:[%s3 + $0x430] sm:$0xff]
        %v1996 = vld [vmem:[%s3 + $0x438] sm:$0xff]
        %v1997 = vld [vmem:[%s3 + $0x440] sm:$0xff]
        %v1998 = vld [vmem:[%s3 + $0x448] sm:$0xff]
        %v1999 = vld [vmem:[%s3 + $0x450] sm:$0xff]
        %v2000 = vld [vmem:[%s3 + $0x458] sm:$0xff]
        %v2001 = vld [vmem:[%s3 + $0x460] sm:$0xff]
        %v2002 = vld [vmem:[%s3 + $0x468] sm:$0xff]
        %v2003 = vld [vmem:[%s3 + $0x470] sm:$0xff]
        %v2004 = vld [vmem:[%s3 + $0x478] sm:$0xff]
        %v2005 = vld [vmem:[%s3 + $0x480] sm:$0xff]
        %v2006 = vld [vmem:[%s3 + $0x488] sm:$0xff]
        %v2007 = vld [vmem:[%s3 + $0x490] sm:$0xff]
        %v2008 = vld [vmem:[%s3 + $0x498] sm:$0xff]
        %v2009 = vld [vmem:[%s3 + $0x4a0] sm:$0xff]
        %v2010 = vld [vmem:[%s3 + $0x4a8] sm:$0xff]
        %v2011 = vld [vmem:[%s3 + $0x4b0] sm:$0xff]
        %v2012 = vld [vmem:[%s3 + $0x4b8] sm:$0xff]
        %v2013 = vld [vmem:[%s3 + $0x4c0] sm:$0xff]
        %v2014 = vld [vmem:[%s3 + $0x4c8] sm:$0xff]
        %v2015 = vld [vmem:[%s3 + $0x4d0] sm:$0xff]
        %v2016 = vld [vmem:[%s3 + $0x4d8] sm:$0xff]
        %v2017 = vld [vmem:[%s3 + $0x4e0] sm:$0xff]
        %v2018 = vld [vmem:[%s3 + $0x4e8] sm:$0xff]
        %v2019 = vld [vmem:[%s3 + $0x4f0] sm:$0xff]
        %v2020 = vld [vmem:[%s3 + $0x4f8] sm:$0xff]
        %v2021 = vld [vmem:[%s3 + $0x500] sm:$0xff]
        %v2022 = vld [vmem:[%s3 + $0x508] sm:$0xff]
        %v2023 = vld [vmem:[%s3 + $0x510] sm:$0xff]
        %v2024 = vld [vmem:[%s3 + $0x518] sm:$0xff]
        %v2025 = vld [vmem:[%s3 + $0x520] sm:$0xff]
        %v2026 = vld [vmem:[%s3 + $0x528] sm:$0xff]
        %v2027 = vld [vmem:[%s3 + $0x530] sm:$0xff]
        %v2028 = vld [vmem:[%s3 + $0x538] sm:$0xff]
        %v2029 = vld [vmem:[%s3 + $0x540] sm:$0xff]
        %v2030 = vld [vmem:[%s3 + $0x548] sm:$0xff]
        %v2031 = vld [vmem:[%s3 + $0x550] sm:$0xff]
        %v2032 = vld [vmem:[%s3 + $0x558] sm:$0xff]
        %v2033 = vld [vmem:[%s3 + $0x560] sm:$0xff]
        %v2034 = vld [vmem:[%s3 + $0x568] sm:$0xff]
        %v2035 = vld [vmem:[%s3 + $0x570] sm:$0xff]
        %v2036 = vld [vmem:[%s3 + $0x578] sm:$0xff]
        %v2037 = vld [vmem:[%s3 + $0x580] sm:$0xff]
        %v2038 = vld [vmem:[%s3 + $0x588] sm:$0xff]
        %v2039 = vld [vmem:[%s3 + $0x590] sm:$0xff]
        %v2040 = vld [vmem:[%s3 + $0x598] sm:$0xff]
        %v2041 = vld [vmem:[%s3 + $0x5a0] sm:$0xff]
        %v2042 = vld [vmem:[%s3 + $0x5a8] sm:$0xff]
        %v2043 = vld [vmem:[%s3 + $0x5b0] sm:$0xff]
        %v2044 = vld [vmem:[%s3 + $0x5b8] sm:$0xff]
        %v2045 = vld [vmem:[%s3 + $0x5c0] sm:$0xff]
        %v2046 = vld [vmem:[%s3 + $0x5c8] sm:$0xff]
        %v2047 = vld [vmem:[%s3 + $0x5d0] sm:$0xff]
        %v2048 = vld [vmem:[%s3 + $0x5d8] sm:$0xff]
        %v2049 = vld [vmem:[%s3 + $0x5e0] sm:$0xff]
        %v2050 = vld [vmem:[%s3 + $0x5e8] sm:$0xff]
        %v2051 = vld [vmem:[%s3 + $0x5f0] sm:$0xff]
        %v2052 = vld [vmem:[%s3 + $0x5f8] sm:$0xff]
        %v2053 = vld [vmem:[%s3 + $0x600] sm:$0xff]
        %v2054 = vld [vmem:[%s3 + $0x608] sm:$0xff]
        %v2055 = vld [vmem:[%s3 + $0x610] sm:$0xff]
        %v2056 = vld [vmem:[%s3 + $0x618] sm:$0xff]
        %v2057 = vld [vmem:[%s3 + $0x620] sm:$0xff]
        %v2058 = vld [vmem:[%s3 + $0x628] sm:$0xff]
        %v2059 = vld [vmem:[%s3 + $0x630] sm:$0xff]
        %v2060 = vld [vmem:[%s3 + $0x638] sm:$0xff]
        %v2061 = vld [vmem:[%s3 + $0x640] sm:$0xff]
        %v2062 = vld [vmem:[%s3 + $0x648] sm:$0xff]
        %v2063 = vld [vmem:[%s3 + $0x650] sm:$0xff]
        %v2064 = vld [vmem:[%s3 + $0x658] sm:$0xff]
        %v2065 = vld [vmem:[%s3 + $0x660] sm:$0xff]
        %v2066 = vld [vmem:[%s3 + $0x668] sm:$0xff]
        %v2067 = vld [vmem:[%s3 + $0x670] sm:$0xff]
        %v2068 = vld [vmem:[%s3 + $0x678] sm:$0xff]
        %v2069 = vld [vmem:[%s3 + $0x680] sm:$0xff]
        %v2070 = vld [vmem:[%s3 + $0x688] sm:$0xff]
        %v2071 = vld [vmem:[%s3 + $0x690] sm:$0xff]
        %v2072 = vld [vmem:[%s3 + $0x698] sm:$0xff]
        %v2073 = vld [vmem:[%s3 + $0x6a0] sm:$0xff]
        %v2074 = vld [vmem:[%s3 + $0x6a8] sm:$0xff]
        %v2075 = vld [vmem:[%s3 + $0x6b0] sm:$0xff]
        %v2076 = vld [vmem:[%s3 + $0x6b8] sm:$0xff]
        %v2077 = vld [vmem:[%s3 + $0x6c0] sm:$0xff]
        %v2078 = vld [vmem:[%s3 + $0x6c8] sm:$0xff]
        %v2079 = vld [vmem:[%s3 + $0x6d0] sm:$0xff]
        %v2080 = vld [vmem:[%s3 + $0x6d8] sm:$0xff]
        %v2081 = vld [vmem:[%s3 + $0x6e0] sm:$0xff]
        %v2082 = vld [vmem:[%s3 + $0x6e8] sm:$0xff]
        %v2083 = vld [vmem:[%s3 + $0x6f0] sm:$0xff]
        %v2084 = vld [vmem:[%s3 + $0x6f8] sm:$0xff]
        %v2085 = vld [vmem:[%s3 + $0x700] sm:$0xff]
        %v2086 = vld [vmem:[%s3 + $0x708] sm:$0xff]
        %v2087 = vld [vmem:[%s3 + $0x710] sm:$0xff]
        %v2088 = vld [vmem:[%s3 + $0x718] sm:$0xff]
        %v2089 = vld [vmem:[%s3 + $0x720] sm:$0xff]
        %v2090 = vld [vmem:[%s3 + $0x728] sm:$0xff]
        %v2091 = vld [vmem:[%s3 + $0x730] sm:$0xff]
        %v2092 = vld [vmem:[%s3 + $0x738] sm:$0xff]
        %v2093 = vld [vmem:[%s3 + $0x740] sm:$0xff]
        %v2094 = vld [vmem:[%s3 + $0x748] sm:$0xff]
        %v2095 = vld [vmem:[%s3 + $0x750] sm:$0xff]
        %v2096 = vld [vmem:[%s3 + $0x758] sm:$0xff]
        %v2097 = vld [vmem:[%s3 + $0x760] sm:$0xff]
        %v2098 = vld [vmem:[%s3 + $0x768] sm:$0xff]
        %v2099 = vld [vmem:[%s3 + $0x770] sm:$0xff]
        %v2100 = vld [vmem:[%s3 + $0x778] sm:$0xff]
        %v2101 = vld [vmem:[%s3 + $0x780] sm:$0xff]
        %v2102 = vld [vmem:[%s3 + $0x788] sm:$0xff]
        %v2103 = vld [vmem:[%s3 + $0x790] sm:$0xff]
        %v2104 = vld [vmem:[%s3 + $0x798] sm:$0xff]
        %v2105 = vld [vmem:[%s3 + $0x7a0] sm:$0xff]
        %v2106 = vld [vmem:[%s3 + $0x7a8] sm:$0xff]
        %v2107 = vld [vmem:[%s3 + $0x7b0] sm:$0xff]
        %v2108 = vld [vmem:[%s3 + $0x7b8] sm:$0xff]
        %v2109 = vld [vmem:[%s3 + $0x7c0] sm:$0xff]
        %v2110 = vld [vmem:[%s3 + $0x7c8] sm:$0xff]
        %v2111 = vld [vmem:[%s3 + $0x7d0] sm:$0xff]
        %v2112 = vld [vmem:[%s3 + $0x7d8] sm:$0xff]
        %v2113 = vld [vmem:[%s3 + $0x7e0] sm:$0xff]
        %v2114 = vld [vmem:[%s3 + $0x7e8] sm:$0xff]
        %v2115 = vld [vmem:[%s3 + $0x7f0] sm:$0xff]
        %v2116 = vld [vmem:[%s3 + $0x7f8] sm:$0xff]
        %v2117 = vld [vmem:[%s3 + $0x800] sm:$0xff]
        %v2118 = vld [vmem:[%s3 + $0x808] sm:$0xff]
        %v2119 = vld [vmem:[%s3 + $0x810] sm:$0xff]
        %v2120 = vld [vmem:[%s3 + $0x818] sm:$0xff]
        %v2121 = vld [vmem:[%s3 + $0x820] sm:$0xff]
        %v2122 = vld [vmem:[%s3 + $0x828] sm:$0xff]
        %v2123 = vld [vmem:[%s3 + $0x830] sm:$0xff]
        %v2124 = vld [vmem:[%s3 + $0x838] sm:$0xff]
        %v2125 = vld [vmem:[%s3 + $0x840] sm:$0xff]
        %v2126 = vld [vmem:[%s3 + $0x848] sm:$0xff]
        %v2127 = vld [vmem:[%s3 + $0x850] sm:$0xff]
        %v2128 = vld [vmem:[%s3 + $0x858] sm:$0xff]
        %v2129 = vld [vmem:[%s3 + $0x860] sm:$0xff]
        %v2130 = vld [vmem:[%s3 + $0x868] sm:$0xff]
        %v2131 = vld [vmem:[%s3 + $0x870] sm:$0xff]
        %v2132 = vld [vmem:[%s3 + $0x878] sm:$0xff]
        %v2133 = vld [vmem:[%s3 + $0x880] sm:$0xff]
        %v2134 = vld [vmem:[%s3 + $0x888] sm:$0xff]
        %v2135 = vld [vmem:[%s3 + $0x890] sm:$0xff]
        %v2136 = vld [vmem:[%s3 + $0x898] sm:$0xff]
        %v2137 = vld [vmem:[%s3 + $0x8a0] sm:$0xff]
        %v2138 = vld [vmem:[%s3 + $0x8a8] sm:$0xff]
        %v2139 = vld [vmem:[%s3 + $0x8b0] sm:$0xff]
        %v2140 = vld [vmem:[%s3 + $0x8b8] sm:$0xff]
        %v2141 = vld [vmem:[%s3 + $0x8c0] sm:$0xff]
        %v2142 = vld [vmem:[%s3 + $0x8c8] sm:$0xff]
        %v2143 = vld [vmem:[%s3 + $0x8d0] sm:$0xff]
        %v2144 = vld [vmem:[%s3 + $0x8d8] sm:$0xff]
        %v2145 = vld [vmem:[%s3 + $0x8e0] sm:$0xff]
        %v2146 = vld [vmem:[%s3 + $0x8e8] sm:$0xff]
        %v2147 = vld [vmem:[%s3 + $0x8f0] sm:$0xff]
        %v2148 = vld [vmem:[%s3 + $0x8f8] sm:$0xff]
        %v2149 = vld [vmem:[%s3 + $0x900] sm:$0xff]
        %v2150 = vld [vmem:[%s3 + $0x908] sm:$0xff]
        %v2151 = vld [vmem:[%s3 + $0x910] sm:$0xff]
        %v2152 = vld [vmem:[%s3 + $0x918] sm:$0xff]
        %v2153 = vld [vmem:[%s3 + $0x920] sm:$0xff]
        %v2154 = vld [vmem:[%s3 + $0x928] sm:$0xff]
        %v2155 = vld [vmem:[%s3 + $0x930] sm:$0xff]
        %v2156 = vld [vmem:[%s3 + $0x938] sm:$0xff]
        %v2157 = vld [vmem:[%s3 + $0x940] sm:$0xff]
        %v2158 = vld [vmem:[%s3 + $0x948] sm:$0xff]
        %v2159 = vld [vmem:[%s3 + $0x950] sm:$0xff]
        %v2160 = vld [vmem:[%s3 + $0x958] sm:$0xff]
        %v2161 = vld [vmem:[%s3 + $0x960] sm:$0xff]
        %v2162 = vld [vmem:[%s3 + $0x968] sm:$0xff]
        %v2163 = vld [vmem:[%s3 + $0x970] sm:$0xff]
        %v2164 = vld [vmem:[%s3 + $0x978] sm:$0xff]
        %v2165 = vld [vmem:[%s3 + $0x980] sm:$0xff]
        %v2166 = vld [vmem:[%s3 + $0x988] sm:$0xff]
        %v2167 = vld [vmem:[%s3 + $0x990] sm:$0xff]
        %v2168 = vld [vmem:[%s3 + $0x998] sm:$0xff]
        %v2169 = vld [vmem:[%s3 + $0x9a0] sm:$0xff]
        %v2170 = vld [vmem:[%s3 + $0x9a8] sm:$0xff]
        %v2171 = vld [vmem:[%s3 + $0x9b0] sm:$0xff]
        %v2172 = vld [vmem:[%s3 + $0x9b8] sm:$0xff]
        %v2173 = vld [vmem:[%s3 + $0x9c0] sm:$0xff]
        %v2174 = vld [vmem:[%s3 + $0x9c8] sm:$0xff]
        %v2175 = vld [vmem:[%s3 + $0x9d0] sm:$0xff]
        %v2176 = vld [vmem:[%s3 + $0x9d8] sm:$0xff]
        %v2177 = vld [vmem:[%s3 + $0x9e0] sm:$0xff]
        %v2178 = vld [vmem:[%s3 + $0x9e8] sm:$0xff]
        %v2179 = vld [vmem:[%s3 + $0x9f0] sm:$0xff]
        %v2180 = vld [vmem:[%s3 + $0x9f8] sm:$0xff]
        %v2181 = vld [vmem:[%s3 + $0xa00] sm:$0xff]
        %v2182 = vld [vmem:[%s3 + $0xa08] sm:$0xff]
        %v2183 = vld [vmem:[%s3 + $0xa10] sm:$0xff]
        %v2184 = vld [vmem:[%s3 + $0xa18] sm:$0xff]
        %v2185 = vld [vmem:[%s3 + $0xa20] sm:$0xff]
        %v2186 = vld [vmem:[%s3 + $0xa28] sm:$0xff]
        %v2187 = vld [vmem:[%s3 + $0xa30] sm:$0xff]
        %v2188 = vld [vmem:[%s3 + $0xa38] sm:$0xff]
        %v2189 = vld [vmem:[%s3 + $0xa40] sm:$0xff]
        %v2190 = vld [vmem:[%s3 + $0xa48] sm:$0xff]
        %v2191 = vld [vmem:[%s3 + $0xa50] sm:$0xff]
        %v2192 = vld [vmem:[%s3 + $0xa58] sm:$0xff]
        %v2193 = vld [vmem:[%s3 + $0xa60] sm:$0xff]
        %v2194 = vld [vmem:[%s3 + $0xa68] sm:$0xff]
        %v2195 = vld [vmem:[%s3 + $0xa70] sm:$0xff]
        %v2196 = vld [vmem:[%s3 + $0xa78] sm:$0xff]
        %v2197 = vld [vmem:[%s3 + $0xa80] sm:$0xff]
        %v2198 = vld [vmem:[%s3 + $0xa88] sm:$0xff]
        %v2199 = vld [vmem:[%s3 + $0xa90] sm:$0xff]
        %v2200 = vld [vmem:[%s3 + $0xa98] sm:$0xff]
        %v2201 = vld [vmem:[%s3 + $0xaa0] sm:$0xff]
        %v2202 = vld [vmem:[%s3 + $0xaa8] sm:$0xff]
        %v2203 = vld [vmem:[%s3 + $0xab0] sm:$0xff]
        %v2204 = vld [vmem:[%s3 + $0xab8] sm:$0xff]
        %v2205 = vld [vmem:[%s3 + $0xac0] sm:$0xff]
        %v2206 = vld [vmem:[%s3 + $0xac8] sm:$0xff]
        %v2207 = vld [vmem:[%s3 + $0xad0] sm:$0xff]
        %v2208 = vld [vmem:[%s3 + $0xad8] sm:$0xff]
        %v2209 = vld [vmem:[%s3 + $0xae0] sm:$0xff]
        %v2210 = vld [vmem:[%s3 + $0xae8] sm:$0xff]
        %v2211 = vld [vmem:[%s3 + $0xaf0] sm:$0xff]
        %v2212 = vld [vmem:[%s3 + $0xaf8] sm:$0xff]
        %v2213 = vld [vmem:[%s3 + $0xb00] sm:$0xff]
        %v2214 = vld [vmem:[%s3 + $0xb08] sm:$0xff]
        %v2215 = vld [vmem:[%s3 + $0xb10] sm:$0xff]
        %v2216 = vld [vmem:[%s3 + $0xb18] sm:$0xff]
        %v2217 = vld [vmem:[%s3 + $0xb20] sm:$0xff]
        %v2218 = vld [vmem:[%s3 + $0xb28] sm:$0xff]
        %v2219 = vld [vmem:[%s3 + $0xb30] sm:$0xff]
        %v2220 = vld [vmem:[%s3 + $0xb38] sm:$0xff]
        %v2221 = vld [vmem:[%s3 + $0xb40] sm:$0xff]
        %v2222 = vld [vmem:[%s3 + $0xb48] sm:$0xff]
        %v2223 = vld [vmem:[%s3 + $0xb50] sm:$0xff]
        %v2224 = vld [vmem:[%s3 + $0xb58] sm:$0xff]
        %v2225 = vld [vmem:[%s3 + $0xb60] sm:$0xff]
        %v2226 = vld [vmem:[%s3 + $0xb68] sm:$0xff]
        %v2227 = vld [vmem:[%s3 + $0xb70] sm:$0xff]
        %v2228 = vld [vmem:[%s3 + $0xb78] sm:$0xff]
        %v2229 = vld [vmem:[%s3 + $0xb80] sm:$0xff]
        %v2230 = vld [vmem:[%s3 + $0xb88] sm:$0xff]
        %v2231 = vld [vmem:[%s3 + $0xb90] sm:$0xff]
        %v2232 = vld [vmem:[%s3 + $0xb98] sm:$0xff]
        %v2233 = vld [vmem:[%s3 + $0xba0] sm:$0xff]
        %v2234 = vld [vmem:[%s3 + $0xba8] sm:$0xff]
        %v2235 = vld [vmem:[%s3 + $0xbb0] sm:$0xff]
        %v2236 = vld [vmem:[%s3 + $0xbb8] sm:$0xff]
        %v2237 = vld [vmem:[%s3 + $0xbc0] sm:$0xff]
        %v2238 = vld [vmem:[%s3 + $0xbc8] sm:$0xff]
        %v2239 = vld [vmem:[%s3 + $0xbd0] sm:$0xff]
        %v2240 = vld [vmem:[%s3 + $0xbd8] sm:$0xff]
        %v2241 = vld [vmem:[%s3 + $0xbe0] sm:$0xff]
        %v2242 = vld [vmem:[%s3 + $0xbe8] sm:$0xff]
        %v2243 = vld [vmem:[%s3 + $0xbf0] sm:$0xff]
        %v2244 = vld [vmem:[%s3 + $0xbf8] sm:$0xff]
        %v2245 = vld [vmem:[%s3 + $0xc00] sm:$0xff]
        %v2246 = vld [vmem:[%s3 + $0xc08] sm:$0xff]
        %v2247 = vld [vmem:[%s3 + $0xc10] sm:$0xff]
        %v2248 = vld [vmem:[%s3 + $0xc18] sm:$0xff]
        %v2249 = vld [vmem:[%s3 + $0xc20] sm:$0xff]
        %v2250 = vld [vmem:[%s3 + $0xc28] sm:$0xff]
        %v2251 = vld [vmem:[%s3 + $0xc30] sm:$0xff]
        %v2252 = vld [vmem:[%s3 + $0xc38] sm:$0xff]
        %v2253 = vld [vmem:[%s3 + $0xc40] sm:$0xff]
        %v2254 = vld [vmem:[%s3 + $0xc48] sm:$0xff]
        %v2255 = vld [vmem:[%s3 + $0xc50] sm:$0xff]
        %v2256 = vld [vmem:[%s3 + $0xc58] sm:$0xff]
        %v2257 = vld [vmem:[%s3 + $0xc60] sm:$0xff]
        %v2258 = vld [vmem:[%s3 + $0xc68] sm:$0xff]
        %v2259 = vld [vmem:[%s3 + $0xc70] sm:$0xff]
        %v2260 = vld [vmem:[%s3 + $0xc78] sm:$0xff]
        %v2261 = vld [vmem:[%s3 + $0xc80] sm:$0xff]
        %v2262 = vld [vmem:[%s3 + $0xc88] sm:$0xff]
        %v2263 = vld [vmem:[%s3 + $0xc90] sm:$0xff]
        %v2264 = vld [vmem:[%s3 + $0xc98] sm:$0xff]
        %v2265 = vld [vmem:[%s3 + $0xca0] sm:$0xff]
        %v2266 = vld [vmem:[%s3 + $0xca8] sm:$0xff]
        %v2267 = vld [vmem:[%s3 + $0xcb0] sm:$0xff]
        %v2268 = vld [vmem:[%s3 + $0xcb8] sm:$0xff]
        %v2269 = vld [vmem:[%s3 + $0xcc0] sm:$0xff]
        %v2270 = vld [vmem:[%s3 + $0xcc8] sm:$0xff]
        %v2271 = vld [vmem:[%s3 + $0xcd0] sm:$0xff]
        %v2272 = vld [vmem:[%s3 + $0xcd8] sm:$0xff]
        %v2273 = vld [vmem:[%s3 + $0xce0] sm:$0xff]
        %v2274 = vld [vmem:[%s3 + $0xce8] sm:$0xff]
        %v2275 = vld [vmem:[%s3 + $0xcf0] sm:$0xff]
        %v2276 = vld [vmem:[%s3 + $0xcf8] sm:$0xff]
        %v2277 = vld [vmem:[%s3 + $0xd00] sm:$0xff]
        %v2278 = vld [vmem:[%s3 + $0xd08] sm:$0xff]
        %v2279 = vld [vmem:[%s3 + $0xd10] sm:$0xff]
        %v2280 = vld [vmem:[%s3 + $0xd18] sm:$0xff]
        %v2281 = vld [vmem:[%s3 + $0xd20] sm:$0xff]
        %v2282 = vld [vmem:[%s3 + $0xd28] sm:$0xff]
        %v2283 = vld [vmem:[%s3 + $0xd30] sm:$0xff]
        %v2284 = vld [vmem:[%s3 + $0xd38] sm:$0xff]
        %v2285 = vld [vmem:[%s3 + $0xd40] sm:$0xff]
        %v2286 = vld [vmem:[%s3 + $0xd48] sm:$0xff]
        %v2287 = vld [vmem:[%s3 + $0xd50] sm:$0xff]
        %v2288 = vld [vmem:[%s3 + $0xd58] sm:$0xff]
        %v2289 = vld [vmem:[%s3 + $0xd60] sm:$0xff]
        %v2290 = vld [vmem:[%s3 + $0xd68] sm:$0xff]
        %v2291 = vld [vmem:[%s3 + $0xd70] sm:$0xff]
        %v2292 = vld [vmem:[%s3 + $0xd78] sm:$0xff]
        %v2293 = vld [vmem:[%s3 + $0xd80] sm:$0xff]
        %v2294 = vld [vmem:[%s3 + $0xd88] sm:$0xff]
        %v2295 = vld [vmem:[%s3 + $0xd90] sm:$0xff]
        %v2296 = vld [vmem:[%s3 + $0xd98] sm:$0xff]
        %v2297 = vld [vmem:[%s3 + $0xda0] sm:$0xff]
        %v2298 = vld [vmem:[%s3 + $0xda8] sm:$0xff]
        %v2299 = vld [vmem:[%s3 + $0xdb0] sm:$0xff]
        %v2300 = vld [vmem:[%s3 + $0xdb8] sm:$0xff]
        %v2301 = vld [vmem:[%s3 + $0xdc0] sm:$0xff]
        %v2302 = vld [vmem:[%s3 + $0xdc8] sm:$0xff]
        %v2303 = vld [vmem:[%s3 + $0xdd0] sm:$0xff]
        %v2304 = vld [vmem:[%s3 + $0xdd8] sm:$0xff]
        %v2305 = vld [vmem:[%s3 + $0xde0] sm:$0xff]
        %v2306 = vld [vmem:[%s3 + $0xde8] sm:$0xff]
        %v2307 = vld [vmem:[%s3 + $0xdf0] sm:$0xff]
        %v2308 = vld [vmem:[%s3 + $0xdf8] sm:$0xff]
        %v2309 = vld [vmem:[%s3 + $0xe00] sm:$0xff]
        %v2310 = vld [vmem:[%s3 + $0xe08] sm:$0xff]
        %v2311 = vld [vmem:[%s3 + $0xe10] sm:$0xff]
        %v2312 = vld [vmem:[%s3 + $0xe18] sm:$0xff]
        %v2313 = vld [vmem:[%s3 + $0xe20] sm:$0xff]
        %v2314 = vld [vmem:[%s3 + $0xe28] sm:$0xff]
        %v2315 = vld [vmem:[%s3 + $0xe30] sm:$0xff]
        %v2316 = vld [vmem:[%s3 + $0xe38] sm:$0xff]
        %v2317 = vld [vmem:[%s3 + $0xe40] sm:$0xff]
        %v2318 = vld [vmem:[%s3 + $0xe48] sm:$0xff]
        %v2319 = vld [vmem:[%s3 + $0xe50] sm:$0xff]
        %v2320 = vld [vmem:[%s3 + $0xe58] sm:$0xff]
        %v2321 = vld [vmem:[%s3 + $0xe60] sm:$0xff]
        %v2322 = vld [vmem:[%s3 + $0xe68] sm:$0xff]
        %v2323 = vld [vmem:[%s3 + $0xe70] sm:$0xff]
        %v2324 = vld [vmem:[%s3 + $0xe78] sm:$0xff]
        %v2325 = vld [vmem:[%s3 + $0xe80] sm:$0xff]
        %v2326 = vld [vmem:[%s3 + $0xe88] sm:$0xff]
        %v2327 = vld [vmem:[%s3 + $0xe90] sm:$0xff]
        %v2328 = vld [vmem:[%s3 + $0xe98] sm:$0xff]
        %v2329 = vld [vmem:[%s3 + $0xea0] sm:$0xff]
        %v2330 = vld [vmem:[%s3 + $0xea8] sm:$0xff]
        %v2331 = vld [vmem:[%s3 + $0xeb0] sm:$0xff]
        %v2332 = vld [vmem:[%s3 + $0xeb8] sm:$0xff]
        %v2333 = vld [vmem:[%s3 + $0xec0] sm:$0xff]
        %v2334 = vld [vmem:[%s3 + $0xec8] sm:$0xff]
        %v2335 = vld [vmem:[%s3 + $0xed0] sm:$0xff]
        %v2336 = vld [vmem:[%s3 + $0xed8] sm:$0xff]
        %v2337 = vld [vmem:[%s3 + $0xee0] sm:$0xff]
        %v2338 = vld [vmem:[%s3 + $0xee8] sm:$0xff]
        %v2339 = vld [vmem:[%s3 + $0xef0] sm:$0xff]
        %v2340 = vld [vmem:[%s3 + $0xef8] sm:$0xff]
        %v2341 = vld [vmem:[%s3 + $0xf00] sm:$0xff]
        %v2342 = vld [vmem:[%s3 + $0xf08] sm:$0xff]
        %v2343 = vld [vmem:[%s3 + $0xf10] sm:$0xff]
        %v2344 = vld [vmem:[%s3 + $0xf18] sm:$0xff]
        %v2345 = vld [vmem:[%s3 + $0xf20] sm:$0xff]
        %v2346 = vld [vmem:[%s3 + $0xf28] sm:$0xff]
        %v2347 = vld [vmem:[%s3 + $0xf30] sm:$0xff]
        %v2348 = vld [vmem:[%s3 + $0xf38] sm:$0xff]
        %v2349 = vld [vmem:[%s3 + $0xf40] sm:$0xff]
        %v2350 = vld [vmem:[%s3 + $0xf48] sm:$0xff]
        %v2351 = vld [vmem:[%s3 + $0xf50] sm:$0xff]
        %v2352 = vld [vmem:[%s3 + $0xf58] sm:$0xff]
        %v2353 = vld [vmem:[%s3 + $0xf60] sm:$0xff]
        %v2354 = vld [vmem:[%s3 + $0xf68] sm:$0xff]
        %v2355 = vld [vmem:[%s3 + $0xf70] sm:$0xff]
        %v2356 = vld [vmem:[%s3 + $0xf78] sm:$0xff]
        %v2357 = vld [vmem:[%s3 + $0xf80] sm:$0xff]
        %v2358 = vld [vmem:[%s3 + $0xf88] sm:$0xff]
        %v2359 = vld [vmem:[%s3 + $0xf90] sm:$0xff]
        %v2360 = vld [vmem:[%s3 + $0xf98] sm:$0xff]
        %v2361 = vld [vmem:[%s3 + $0xfa0] sm:$0xff]
        %v2362 = vld [vmem:[%s3 + $0xfa8] sm:$0xff]
        %v2363 = vld [vmem:[%s3 + $0xfb0] sm:$0xff]
        %v2364 = vld [vmem:[%s3 + $0xfb8] sm:$0xff]
        %v2365 = vld [vmem:[%s3 + $0xfc0] sm:$0xff]
        %v2366 = vld [vmem:[%s3 + $0xfc8] sm:$0xff]
        %v2367 = vld [vmem:[%s3 + $0xfd0] sm:$0xff]
        %v2368 = vld [vmem:[%s3 + $0xfd8] sm:$0xff]
        %v2369 = vld [vmem:[%s3 + $0xfe0] sm:$0xff]
        %v2370 = vld [vmem:[%s3 + $0xfe8] sm:$0xff]
        %v2371 = vld [vmem:[%s3 + $0xff0] sm:$0xff]
        %v2372 = vld [vmem:[%s3 + $0xff8] sm:$0xff]
        %v2373 = vld [vmem:[%s3 + $0x1000] sm:$0xff]
        %v2374 = vld [vmem:[%s3 + $0x1008] sm:$0xff]
        %v2375 = vld [vmem:[%s3 + $0x1010] sm:$0xff]
        %v2376 = vld [vmem:[%s3 + $0x1018] sm:$0xff]
        %v2377 = vld [vmem:[%s3 + $0x1020] sm:$0xff]
        %v2378 = vld [vmem:[%s3 + $0x1028] sm:$0xff]
        %v2379 = vld [vmem:[%s3 + $0x1030] sm:$0xff]
        %v2380 = vld [vmem:[%s3 + $0x1038] sm:$0xff]
        %v2381 = vld [vmem:[%s3 + $0x1040] sm:$0xff]
        %v2382 = vld [vmem:[%s3 + $0x1048] sm:$0xff]
        %v2383 = vld [vmem:[%s3 + $0x1050] sm:$0xff]
        %v2384 = vld [vmem:[%s3 + $0x1058] sm:$0xff]
        %v2385 = vld [vmem:[%s3 + $0x1060] sm:$0xff]
        %v2386 = vld [vmem:[%s3 + $0x1068] sm:$0xff]
        %v2387 = vld [vmem:[%s3 + $0x1070] sm:$0xff]
        %v2388 = vld [vmem:[%s3 + $0x1078] sm:$0xff]
        %v2389 = vld [vmem:[%s3 + $0x1080] sm:$0xff]
        %v2390 = vld [vmem:[%s3 + $0x1088] sm:$0xff]
        %v2391 = vld [vmem:[%s3 + $0x1090] sm:$0xff]
        %v2392 = vld [vmem:[%s3 + $0x1098] sm:$0xff]
        %v2393 = vld [vmem:[%s3 + $0x10a0] sm:$0xff]
        %v2394 = vld [vmem:[%s3 + $0x10a8] sm:$0xff]
        %v2395 = vld [vmem:[%s3 + $0x10b0] sm:$0xff]
        %v2396 = vld [vmem:[%s3 + $0x10b8] sm:$0xff]
        %v2397 = vld [vmem:[%s3 + $0x10c0] sm:$0xff]
        %v2398 = vld [vmem:[%s3 + $0x10c8] sm:$0xff]
        %v2399 = vld [vmem:[%s3 + $0x10d0] sm:$0xff]
        %v2400 = vld [vmem:[%s3 + $0x10d8] sm:$0xff]
        %v2401 = vld [vmem:[%s3 + $0x10e0] sm:$0xff]
        %v2402 = vld [vmem:[%s3 + $0x10e8] sm:$0xff]
        %v2403 = vld [vmem:[%s3 + $0x10f0] sm:$0xff]
        %v2404 = vld [vmem:[%s3 + $0x10f8] sm:$0xff]
        %v2405 = vld [vmem:[%s3 + $0x1100] sm:$0xff]
        %v2406 = vld [vmem:[%s3 + $0x1108] sm:$0xff]
        %v2407 = vld [vmem:[%s3 + $0x1110] sm:$0xff]
        %v2408 = vld [vmem:[%s3 + $0x1118] sm:$0xff]
        %v2409 = vld [vmem:[%s3 + $0x1120] sm:$0xff]
        %v2410 = vld [vmem:[%s3 + $0x1128] sm:$0xff]
        %v2411 = vld [vmem:[%s3 + $0x1130] sm:$0xff]
        %v2412 = vld [vmem:[%s3 + $0x1138] sm:$0xff]
        %v2413 = vld [vmem:[%s3 + $0x1140] sm:$0xff]
        %v2414 = vld [vmem:[%s3 + $0x1148] sm:$0xff]
        %v2415 = vld [vmem:[%s3 + $0x1150] sm:$0xff]
        %v2416 = vld [vmem:[%s3 + $0x1158] sm:$0xff]
        %v2417 = vld [vmem:[%s3 + $0x1160] sm:$0xff]
        %v2418 = vld [vmem:[%s3 + $0x1168] sm:$0xff]
        %v2419 = vld [vmem:[%s3 + $0x1170] sm:$0xff]
        %v2420 = vld [vmem:[%s3 + $0x1178] sm:$0xff]
        %v2421 = vld [vmem:[%s3 + $0x1180] sm:$0xff]
        %v2422 = vld [vmem:[%s3 + $0x1188] sm:$0xff]
        %v2423 = vld [vmem:[%s3 + $0x1190] sm:$0xff]
        %v2424 = vld [vmem:[%s3 + $0x1198] sm:$0xff]
        %v2425 = vld [vmem:[%s3 + $0x11a0] sm:$0xff]
        %v2426 = vld [vmem:[%s3 + $0x11a8] sm:$0xff]
        %v2427 = vld [vmem:[%s3 + $0x11b0] sm:$0xff]
        %v2428 = vld [vmem:[%s3 + $0x11b8] sm:$0xff]
        %v2429 = vld [vmem:[%s3 + $0x11c0] sm:$0xff]
        %v2430 = vld [vmem:[%s3 + $0x11c8] sm:$0xff]
        %v2431 = vld [vmem:[%s3 + $0x11d0] sm:$0xff]
        %v2432 = vld [vmem:[%s3 + $0x11d8] sm:$0xff]
        %v2433 = vld [vmem:[%s3 + $0x11e0] sm:$0xff]
        %v2434 = vld [vmem:[%s3 + $0x11e8] sm:$0xff]
        %v2435 = vld [vmem:[%s3 + $0x11f0] sm:$0xff]
        %v2436 = vld [vmem:[%s3 + $0x11f8] sm:$0xff]
        %v2437 = vld [vmem:[%s4] sm:$0xf]
        %v2439 = vlaneseq
        %v2440 = vshrl.u32 %v2439, 7
        %v2441 = vsub.s32 0, %v2440
        %v2442 = vrot.slane %v2437, %v2441
        %v2443 = vlaneseq
        %v2444 = vshrl.u32 %v2443, 7
        %v2445 = vsub.s32 1, %v2444
        %v2446 = vrot.slane %v2437, %v2445
        %v2447 = vlaneseq
        %v2448 = vshrl.u32 %v2447, 7
        %v2449 = vsub.s32 2, %v2448
        %v2450 = vrot.slane %v2437, %v2449
        %v2451 = vlaneseq
        %v2452 = vshrl.u32 %v2451, 7
        %v2453 = vsub.s32 3, %v2452
        %v2454 = vrot.slane %v2437, %v2453
        %v3035 = vunpack.c.l.b16 %v1861
        %v3036 = vunpack.c.h.b16 %v1861
        %v3037 = vunpack.c.l.b16 %v1862
        %v3038 = vunpack.c.h.b16 %v1862
        %v3039 = vunpack.c.l.b16 %v1863
        %v3040 = vunpack.c.h.b16 %v1863
        %v3041 = vunpack.c.l.b16 %v1864
        %v3042 = vunpack.c.h.b16 %v1864
        %v3043 = vunpack.c.l.b16 %v1865
        %v3044 = vunpack.c.h.b16 %v1865
        %v3045 = vunpack.c.l.b16 %v1866
        %v3046 = vunpack.c.h.b16 %v1866
        %v3047 = vunpack.c.l.b16 %v1867
        %v3048 = vunpack.c.h.b16 %v1867
        %v3049 = vunpack.c.l.b16 %v1868
        %v3050 = vunpack.c.h.b16 %v1868
        %v3051 = vunpack.c.l.b16 %v1869
        %v3052 = vunpack.c.h.b16 %v1869
        %v3053 = vunpack.c.l.b16 %v1870
        %v3054 = vunpack.c.h.b16 %v1870
        %v3055 = vunpack.c.l.b16 %v1871
        %v3056 = vunpack.c.h.b16 %v1871
        %v3057 = vunpack.c.l.b16 %v1872
        %v3058 = vunpack.c.h.b16 %v1872
        %v3059 = vunpack.c.l.b16 %v1873
        %v3060 = vunpack.c.h.b16 %v1873
        %v3061 = vunpack.c.l.b16 %v1874
        %v3062 = vunpack.c.h.b16 %v1874
        %v3063 = vunpack.c.l.b16 %v1875
        %v3064 = vunpack.c.h.b16 %v1875
        %v3065 = vunpack.c.l.b16 %v1876
        %v3066 = vunpack.c.h.b16 %v1876
        %v3067 = vunpack.c.l.b16 %v1877
        %v3068 = vunpack.c.h.b16 %v1877
        %v3069 = vunpack.c.l.b16 %v1878
        %v3070 = vunpack.c.h.b16 %v1878
        %v3071 = vunpack.c.l.b16 %v1879
        %v3072 = vunpack.c.h.b16 %v1879
        %v3073 = vunpack.c.l.b16 %v1880
        %v3074 = vunpack.c.h.b16 %v1880
        %v3075 = vunpack.c.l.b16 %v1881
        %v3076 = vunpack.c.h.b16 %v1881
        %v3077 = vunpack.c.l.b16 %v1882
        %v3078 = vunpack.c.h.b16 %v1882
        %v3079 = vunpack.c.l.b16 %v1883
        %v3080 = vunpack.c.h.b16 %v1883
        %v3081 = vunpack.c.l.b16 %v1884
        %v3082 = vunpack.c.h.b16 %v1884
        %v3083 = vunpack.c.l.b16 %v1885
        %v3084 = vunpack.c.h.b16 %v1885
        %v3085 = vunpack.c.l.b16 %v1886
        %v3086 = vunpack.c.h.b16 %v1886
        %v3087 = vunpack.c.l.b16 %v1887
        %v3088 = vunpack.c.h.b16 %v1887
        %v3089 = vunpack.c.l.b16 %v1888
        %v3090 = vunpack.c.h.b16 %v1888
        %v3091 = vunpack.c.l.b16 %v1889
        %v3092 = vunpack.c.h.b16 %v1889
        %v3093 = vunpack.c.l.b16 %v1890
        %v3094 = vunpack.c.h.b16 %v1890
        %v3095 = vunpack.c.l.b16 %v1891
        %v3096 = vunpack.c.h.b16 %v1891
        %v3097 = vunpack.c.l.b16 %v1892
        %v3098 = vunpack.c.h.b16 %v1892
        %v3099 = vunpack.c.l.b16 %v1893
        %v3100 = vunpack.c.h.b16 %v1893
        %v3101 = vunpack.c.l.b16 %v1894
        %v3102 = vunpack.c.h.b16 %v1894
        %v3103 = vunpack.c.l.b16 %v1895
        %v3104 = vunpack.c.h.b16 %v1895
        %v3105 = vunpack.c.l.b16 %v1896
        %v3106 = vunpack.c.h.b16 %v1896
        %v3107 = vunpack.c.l.b16 %v1897
        %v3108 = vunpack.c.h.b16 %v1897
        %v3109 = vunpack.c.l.b16 %v1898
        %v3110 = vunpack.c.h.b16 %v1898
        %v3111 = vunpack.c.l.b16 %v1899
        %v3112 = vunpack.c.h.b16 %v1899
        %v3113 = vunpack.c.l.b16 %v1900
        %v3114 = vunpack.c.h.b16 %v1900
        %v3115 = vunpack.c.l.b16 %v1901
        %v3116 = vunpack.c.h.b16 %v1901
        %v3117 = vunpack.c.l.b16 %v1902
        %v3118 = vunpack.c.h.b16 %v1902
        %v3119 = vunpack.c.l.b16 %v1903
        %v3120 = vunpack.c.h.b16 %v1903
        %v3121 = vunpack.c.l.b16 %v1904
        %v3122 = vunpack.c.h.b16 %v1904
        %v3123 = vunpack.c.l.b16 %v1905
        %v3124 = vunpack.c.h.b16 %v1905
        %v3125 = vunpack.c.l.b16 %v1906
        %v3126 = vunpack.c.h.b16 %v1906
        %v3127 = vunpack.c.l.b16 %v1907
        %v3128 = vunpack.c.h.b16 %v1907
        %v3129 = vunpack.c.l.b16 %v1908
        %v3130 = vunpack.c.h.b16 %v1908
        %v3131 = vunpack.c.l.b16 %v1909
        %v3132 = vunpack.c.h.b16 %v1909
        %v3133 = vunpack.c.l.b16 %v1910
        %v3134 = vunpack.c.h.b16 %v1910
        %v3135 = vunpack.c.l.b16 %v1911
        %v3136 = vunpack.c.h.b16 %v1911
        %v3137 = vunpack.c.l.b16 %v1912
        %v3138 = vunpack.c.h.b16 %v1912
        %v3139 = vunpack.c.l.b16 %v1913
        %v3140 = vunpack.c.h.b16 %v1913
        %v3141 = vunpack.c.l.b16 %v1914
        %v3142 = vunpack.c.h.b16 %v1914
        %v3143 = vunpack.c.l.b16 %v1915
        %v3144 = vunpack.c.h.b16 %v1915
        %v3145 = vunpack.c.l.b16 %v1916
        %v3146 = vunpack.c.h.b16 %v1916
        %v3147 = vunpack.c.l.b16 %v1917
        %v3148 = vunpack.c.h.b16 %v1917
        %v3149 = vunpack.c.l.b16 %v1918
        %v3150 = vunpack.c.h.b16 %v1918
        %v3151 = vunpack.c.l.b16 %v1919
        %v3152 = vunpack.c.h.b16 %v1919
        %v3153 = vunpack.c.l.b16 %v1920
        %v3154 = vunpack.c.h.b16 %v1920
        %v3155 = vunpack.c.l.b16 %v1921
        %v3156 = vunpack.c.h.b16 %v1921
        %v3157 = vunpack.c.l.b16 %v1922
        %v3158 = vunpack.c.h.b16 %v1922
        %v3159 = vunpack.c.l.b16 %v1923
        %v3160 = vunpack.c.h.b16 %v1923
        %v3161 = vunpack.c.l.b16 %v1924
        %v3162 = vunpack.c.h.b16 %v1924
        %v3163 = vunpack.c.l.b16 %v1925
        %v3164 = vunpack.c.h.b16 %v1925
        %v3165 = vunpack.c.l.b16 %v1926
        %v3166 = vunpack.c.h.b16 %v1926
        %v3167 = vunpack.c.l.b16 %v1927
        %v3168 = vunpack.c.h.b16 %v1927
        %v3169 = vunpack.c.l.b16 %v1928
        %v3170 = vunpack.c.h.b16 %v1928
        %v3171 = vunpack.c.l.b16 %v1929
        %v3172 = vunpack.c.h.b16 %v1929
        %v3173 = vunpack.c.l.b16 %v1930
        %v3174 = vunpack.c.h.b16 %v1930
        %v3175 = vunpack.c.l.b16 %v1931
        %v3176 = vunpack.c.h.b16 %v1931
        %v3177 = vunpack.c.l.b16 %v1932
        %v3178 = vunpack.c.h.b16 %v1932
        %v3179 = vunpack.c.l.b16 %v1933
        %v3180 = vunpack.c.h.b16 %v1933
        %v3181 = vunpack.c.l.b16 %v1934
        %v3182 = vunpack.c.h.b16 %v1934
        %v3183 = vunpack.c.l.b16 %v1935
        %v3184 = vunpack.c.h.b16 %v1935
        %v3185 = vunpack.c.l.b16 %v1936
        %v3186 = vunpack.c.h.b16 %v1936
        %v3187 = vunpack.c.l.b16 %v1937
        %v3188 = vunpack.c.h.b16 %v1937
        %v3189 = vunpack.c.l.b16 %v1938
        %v3190 = vunpack.c.h.b16 %v1938
        %v3191 = vunpack.c.l.b16 %v1939
        %v3192 = vunpack.c.h.b16 %v1939
        %v3193 = vunpack.c.l.b16 %v1940
        %v3194 = vunpack.c.h.b16 %v1940
        %v3195 = vunpack.c.l.b16 %v1941
        %v3196 = vunpack.c.h.b16 %v1941
        %v3197 = vunpack.c.l.b16 %v1942
        %v3198 = vunpack.c.h.b16 %v1942
        %v3199 = vunpack.c.l.b16 %v1943
        %v3200 = vunpack.c.h.b16 %v1943
        %v3201 = vunpack.c.l.b16 %v1944
        %v3202 = vunpack.c.h.b16 %v1944
        %v3203 = vunpack.c.l.b16 %v1945
        %v3204 = vunpack.c.h.b16 %v1945
        %v3205 = vunpack.c.l.b16 %v1946
        %v3206 = vunpack.c.h.b16 %v1946
        %v3207 = vunpack.c.l.b16 %v1947
        %v3208 = vunpack.c.h.b16 %v1947
        %v3209 = vunpack.c.l.b16 %v1948
        %v3210 = vunpack.c.h.b16 %v1948
        %v3211 = vunpack.c.l.b16 %v1949
        %v3212 = vunpack.c.h.b16 %v1949
        %v3213 = vunpack.c.l.b16 %v1950
        %v3214 = vunpack.c.h.b16 %v1950
        %v3215 = vunpack.c.l.b16 %v1951
        %v3216 = vunpack.c.h.b16 %v1951
        %v3217 = vunpack.c.l.b16 %v1952
        %v3218 = vunpack.c.h.b16 %v1952
        %v3219 = vunpack.c.l.b16 %v1953
        %v3220 = vunpack.c.h.b16 %v1953
        %v3221 = vunpack.c.l.b16 %v1954
        %v3222 = vunpack.c.h.b16 %v1954
        %v3223 = vunpack.c.l.b16 %v1955
        %v3224 = vunpack.c.h.b16 %v1955
        %v3225 = vunpack.c.l.b16 %v1956
        %v3226 = vunpack.c.h.b16 %v1956
        %v3227 = vunpack.c.l.b16 %v1957
        %v3228 = vunpack.c.h.b16 %v1957
        %v3229 = vunpack.c.l.b16 %v1958
        %v3230 = vunpack.c.h.b16 %v1958
        %v3231 = vunpack.c.l.b16 %v1959
        %v3232 = vunpack.c.h.b16 %v1959
        %v3233 = vunpack.c.l.b16 %v1960
        %v3234 = vunpack.c.h.b16 %v1960
        %v3235 = vunpack.c.l.b16 %v1961
        %v3236 = vunpack.c.h.b16 %v1961
        %v3237 = vunpack.c.l.b16 %v1962
        %v3238 = vunpack.c.h.b16 %v1962
        %v3239 = vunpack.c.l.b16 %v1963
        %v3240 = vunpack.c.h.b16 %v1963
        %v3241 = vunpack.c.l.b16 %v1964
        %v3242 = vunpack.c.h.b16 %v1964
        %v3243 = vunpack.c.l.b16 %v1965
        %v3244 = vunpack.c.h.b16 %v1965
        %v3245 = vunpack.c.l.b16 %v1966
        %v3246 = vunpack.c.h.b16 %v1966
        %v3247 = vunpack.c.l.b16 %v1967
        %v3248 = vunpack.c.h.b16 %v1967
        %v3249 = vunpack.c.l.b16 %v1968
        %v3250 = vunpack.c.h.b16 %v1968
        %v3251 = vunpack.c.l.b16 %v1969
        %v3252 = vunpack.c.h.b16 %v1969
        %v3253 = vunpack.c.l.b16 %v1970
        %v3254 = vunpack.c.h.b16 %v1970
        %v3255 = vunpack.c.l.b16 %v1971
        %v3256 = vunpack.c.h.b16 %v1971
        %v3257 = vunpack.c.l.b16 %v1972
        %v3258 = vunpack.c.h.b16 %v1972
        %v3259 = vunpack.c.l.b16 %v1973
        %v3260 = vunpack.c.h.b16 %v1973
        %v3261 = vunpack.c.l.b16 %v1974
        %v3262 = vunpack.c.h.b16 %v1974
        %v3263 = vunpack.c.l.b16 %v1975
        %v3264 = vunpack.c.h.b16 %v1975
        %v3265 = vunpack.c.l.b16 %v1976
        %v3266 = vunpack.c.h.b16 %v1976
        %v3267 = vunpack.c.l.b16 %v1977
        %v3268 = vunpack.c.h.b16 %v1977
        %v3269 = vunpack.c.l.b16 %v1978
        %v3270 = vunpack.c.h.b16 %v1978
        %v3271 = vunpack.c.l.b16 %v1979
        %v3272 = vunpack.c.h.b16 %v1979
        %v3273 = vunpack.c.l.b16 %v1980
        %v3274 = vunpack.c.h.b16 %v1980
        %v3275 = vunpack.c.l.b16 %v1981
        %v3276 = vunpack.c.h.b16 %v1981
        %v3277 = vunpack.c.l.b16 %v1982
        %v3278 = vunpack.c.h.b16 %v1982
        %v3279 = vunpack.c.l.b16 %v1983
        %v3280 = vunpack.c.h.b16 %v1983
        %v3281 = vunpack.c.l.b16 %v1984
        %v3282 = vunpack.c.h.b16 %v1984
        %v3283 = vunpack.c.l.b16 %v1985
        %v3284 = vunpack.c.h.b16 %v1985
        %v3285 = vunpack.c.l.b16 %v1986
        %v3286 = vunpack.c.h.b16 %v1986
        %v3287 = vunpack.c.l.b16 %v1987
        %v3288 = vunpack.c.h.b16 %v1987
        %v3289 = vunpack.c.l.b16 %v1988
        %v3290 = vunpack.c.h.b16 %v1988
        %v3291 = vunpack.c.l.b16 %v1989
        %v3292 = vunpack.c.h.b16 %v1989
        %v3293 = vunpack.c.l.b16 %v1990
        %v3294 = vunpack.c.h.b16 %v1990
        %v3295 = vunpack.c.l.b16 %v1991
        %v3296 = vunpack.c.h.b16 %v1991
        %v3297 = vunpack.c.l.b16 %v1992
        %v3298 = vunpack.c.h.b16 %v1992
        %v3299 = vunpack.c.l.b16 %v1993
        %v3300 = vunpack.c.h.b16 %v1993
        %v3301 = vunpack.c.l.b16 %v1994
        %v3302 = vunpack.c.h.b16 %v1994
        %v3303 = vunpack.c.l.b16 %v1995
        %v3304 = vunpack.c.h.b16 %v1995
        %v3305 = vunpack.c.l.b16 %v1996
        %v3306 = vunpack.c.h.b16 %v1996
        %v3307 = vunpack.c.l.b16 %v1997
        %v3308 = vunpack.c.h.b16 %v1997
        %v3309 = vunpack.c.l.b16 %v1998
        %v3310 = vunpack.c.h.b16 %v1998
        %v3311 = vunpack.c.l.b16 %v1999
        %v3312 = vunpack.c.h.b16 %v1999
        %v3313 = vunpack.c.l.b16 %v2000
        %v3314 = vunpack.c.h.b16 %v2000
        %v3315 = vunpack.c.l.b16 %v2001
        %v3316 = vunpack.c.h.b16 %v2001
        %v3317 = vunpack.c.l.b16 %v2002
        %v3318 = vunpack.c.h.b16 %v2002
        %v3319 = vunpack.c.l.b16 %v2003
        %v3320 = vunpack.c.h.b16 %v2003
        %v3321 = vunpack.c.l.b16 %v2004
        %v3322 = vunpack.c.h.b16 %v2004
        %v3323 = vunpack.c.l.b16 %v2005
        %v3324 = vunpack.c.h.b16 %v2005
        %v3325 = vunpack.c.l.b16 %v2006
        %v3326 = vunpack.c.h.b16 %v2006
        %v3327 = vunpack.c.l.b16 %v2007
        %v3328 = vunpack.c.h.b16 %v2007
        %v3329 = vunpack.c.l.b16 %v2008
        %v3330 = vunpack.c.h.b16 %v2008
        %v3331 = vunpack.c.l.b16 %v2009
        %v3332 = vunpack.c.h.b16 %v2009
        %v3333 = vunpack.c.l.b16 %v2010
        %v3334 = vunpack.c.h.b16 %v2010
        %v3335 = vunpack.c.l.b16 %v2011
        %v3336 = vunpack.c.h.b16 %v2011
        %v3337 = vunpack.c.l.b16 %v2012
        %v3338 = vunpack.c.h.b16 %v2012
        %v3339 = vunpack.c.l.b16 %v2013
        %v3340 = vunpack.c.h.b16 %v2013
        %v3341 = vunpack.c.l.b16 %v2014
        %v3342 = vunpack.c.h.b16 %v2014
        %v3343 = vunpack.c.l.b16 %v2015
        %v3344 = vunpack.c.h.b16 %v2015
        %v3345 = vunpack.c.l.b16 %v2016
        %v3346 = vunpack.c.h.b16 %v2016
        %v3347 = vunpack.c.l.b16 %v2017
        %v3348 = vunpack.c.h.b16 %v2017
        %v3349 = vunpack.c.l.b16 %v2018
        %v3350 = vunpack.c.h.b16 %v2018
        %v3351 = vunpack.c.l.b16 %v2019
        %v3352 = vunpack.c.h.b16 %v2019
        %v3353 = vunpack.c.l.b16 %v2020
        %v3354 = vunpack.c.h.b16 %v2020
        %v3355 = vunpack.c.l.b16 %v2021
        %v3356 = vunpack.c.h.b16 %v2021
        %v3357 = vunpack.c.l.b16 %v2022
        %v3358 = vunpack.c.h.b16 %v2022
        %v3359 = vunpack.c.l.b16 %v2023
        %v3360 = vunpack.c.h.b16 %v2023
        %v3361 = vunpack.c.l.b16 %v2024
        %v3362 = vunpack.c.h.b16 %v2024
        %v3363 = vunpack.c.l.b16 %v2025
        %v3364 = vunpack.c.h.b16 %v2025
        %v3365 = vunpack.c.l.b16 %v2026
        %v3366 = vunpack.c.h.b16 %v2026
        %v3367 = vunpack.c.l.b16 %v2027
        %v3368 = vunpack.c.h.b16 %v2027
        %v3369 = vunpack.c.l.b16 %v2028
        %v3370 = vunpack.c.h.b16 %v2028
        %v3371 = vunpack.c.l.b16 %v2029
        %v3372 = vunpack.c.h.b16 %v2029
        %v3373 = vunpack.c.l.b16 %v2030
        %v3374 = vunpack.c.h.b16 %v2030
        %v3375 = vunpack.c.l.b16 %v2031
        %v3376 = vunpack.c.h.b16 %v2031
        %v3377 = vunpack.c.l.b16 %v2032
        %v3378 = vunpack.c.h.b16 %v2032
        %v3379 = vunpack.c.l.b16 %v2033
        %v3380 = vunpack.c.h.b16 %v2033
        %v3381 = vunpack.c.l.b16 %v2034
        %v3382 = vunpack.c.h.b16 %v2034
        %v3383 = vunpack.c.l.b16 %v2035
        %v3384 = vunpack.c.h.b16 %v2035
        %v3385 = vunpack.c.l.b16 %v2036
        %v3386 = vunpack.c.h.b16 %v2036
        %v3387 = vunpack.c.l.b16 %v2037
        %v3388 = vunpack.c.h.b16 %v2037
        %v3389 = vunpack.c.l.b16 %v2038
        %v3390 = vunpack.c.h.b16 %v2038
        %v3391 = vunpack.c.l.b16 %v2039
        %v3392 = vunpack.c.h.b16 %v2039
        %v3393 = vunpack.c.l.b16 %v2040
        %v3394 = vunpack.c.h.b16 %v2040
        %v3395 = vunpack.c.l.b16 %v2041
        %v3396 = vunpack.c.h.b16 %v2041
        %v3397 = vunpack.c.l.b16 %v2042
        %v3398 = vunpack.c.h.b16 %v2042
        %v3399 = vunpack.c.l.b16 %v2043
        %v3400 = vunpack.c.h.b16 %v2043
        %v3401 = vunpack.c.l.b16 %v2044
        %v3402 = vunpack.c.h.b16 %v2044
        %v3403 = vunpack.c.l.b16 %v2045
        %v3404 = vunpack.c.h.b16 %v2045
        %v3405 = vunpack.c.l.b16 %v2046
        %v3406 = vunpack.c.h.b16 %v2046
        %v3407 = vunpack.c.l.b16 %v2047
        %v3408 = vunpack.c.h.b16 %v2047
        %v3409 = vunpack.c.l.b16 %v2048
        %v3410 = vunpack.c.h.b16 %v2048
        %v3411 = vunpack.c.l.b16 %v2049
        %v3412 = vunpack.c.h.b16 %v2049
        %v3413 = vunpack.c.l.b16 %v2050
        %v3414 = vunpack.c.h.b16 %v2050
        %v3415 = vunpack.c.l.b16 %v2051
        %v3416 = vunpack.c.h.b16 %v2051
        %v3417 = vunpack.c.l.b16 %v2052
        %v3418 = vunpack.c.h.b16 %v2052
        %v3419 = vunpack.c.l.b16 %v2053
        %v3420 = vunpack.c.h.b16 %v2053
        %v3421 = vunpack.c.l.b16 %v2054
        %v3422 = vunpack.c.h.b16 %v2054
        %v3423 = vunpack.c.l.b16 %v2055
        %v3424 = vunpack.c.h.b16 %v2055
        %v3425 = vunpack.c.l.b16 %v2056
        %v3426 = vunpack.c.h.b16 %v2056
        %v3427 = vunpack.c.l.b16 %v2057
        %v3428 = vunpack.c.h.b16 %v2057
        %v3429 = vunpack.c.l.b16 %v2058
        %v3430 = vunpack.c.h.b16 %v2058
        %v3431 = vunpack.c.l.b16 %v2059
        %v3432 = vunpack.c.h.b16 %v2059
        %v3433 = vunpack.c.l.b16 %v2060
        %v3434 = vunpack.c.h.b16 %v2060
        %v3435 = vunpack.c.l.b16 %v2061
        %v3436 = vunpack.c.h.b16 %v2061
        %v3437 = vunpack.c.l.b16 %v2062
        %v3438 = vunpack.c.h.b16 %v2062
        %v3439 = vunpack.c.l.b16 %v2063
        %v3440 = vunpack.c.h.b16 %v2063
        %v3441 = vunpack.c.l.b16 %v2064
        %v3442 = vunpack.c.h.b16 %v2064
        %v3443 = vunpack.c.l.b16 %v2065
        %v3444 = vunpack.c.h.b16 %v2065
        %v3445 = vunpack.c.l.b16 %v2066
        %v3446 = vunpack.c.h.b16 %v2066
        %v3447 = vunpack.c.l.b16 %v2067
        %v3448 = vunpack.c.h.b16 %v2067
        %v3449 = vunpack.c.l.b16 %v2068
        %v3450 = vunpack.c.h.b16 %v2068
        %v3451 = vunpack.c.l.b16 %v2069
        %v3452 = vunpack.c.h.b16 %v2069
        %v3453 = vunpack.c.l.b16 %v2070
        %v3454 = vunpack.c.h.b16 %v2070
        %v3455 = vunpack.c.l.b16 %v2071
        %v3456 = vunpack.c.h.b16 %v2071
        %v3457 = vunpack.c.l.b16 %v2072
        %v3458 = vunpack.c.h.b16 %v2072
        %v3459 = vunpack.c.l.b16 %v2073
        %v3460 = vunpack.c.h.b16 %v2073
        %v3461 = vunpack.c.l.b16 %v2074
        %v3462 = vunpack.c.h.b16 %v2074
        %v3463 = vunpack.c.l.b16 %v2075
        %v3464 = vunpack.c.h.b16 %v2075
        %v3465 = vunpack.c.l.b16 %v2076
        %v3466 = vunpack.c.h.b16 %v2076
        %v3467 = vunpack.c.l.b16 %v2077
        %v3468 = vunpack.c.h.b16 %v2077
        %v3469 = vunpack.c.l.b16 %v2078
        %v3470 = vunpack.c.h.b16 %v2078
        %v3471 = vunpack.c.l.b16 %v2079
        %v3472 = vunpack.c.h.b16 %v2079
        %v3473 = vunpack.c.l.b16 %v2080
        %v3474 = vunpack.c.h.b16 %v2080
        %v3475 = vunpack.c.l.b16 %v2081
        %v3476 = vunpack.c.h.b16 %v2081
        %v3477 = vunpack.c.l.b16 %v2082
        %v3478 = vunpack.c.h.b16 %v2082
        %v3479 = vunpack.c.l.b16 %v2083
        %v3480 = vunpack.c.h.b16 %v2083
        %v3481 = vunpack.c.l.b16 %v2084
        %v3482 = vunpack.c.h.b16 %v2084
        %v3483 = vunpack.c.l.b16 %v2085
        %v3484 = vunpack.c.h.b16 %v2085
        %v3485 = vunpack.c.l.b16 %v2086
        %v3486 = vunpack.c.h.b16 %v2086
        %v3487 = vunpack.c.l.b16 %v2087
        %v3488 = vunpack.c.h.b16 %v2087
        %v3489 = vunpack.c.l.b16 %v2088
        %v3490 = vunpack.c.h.b16 %v2088
        %v3491 = vunpack.c.l.b16 %v2089
        %v3492 = vunpack.c.h.b16 %v2089
        %v3493 = vunpack.c.l.b16 %v2090
        %v3494 = vunpack.c.h.b16 %v2090
        %v3495 = vunpack.c.l.b16 %v2091
        %v3496 = vunpack.c.h.b16 %v2091
        %v3497 = vunpack.c.l.b16 %v2092
        %v3498 = vunpack.c.h.b16 %v2092
        %v3499 = vunpack.c.l.b16 %v2093
        %v3500 = vunpack.c.h.b16 %v2093
        %v3501 = vunpack.c.l.b16 %v2094
        %v3502 = vunpack.c.h.b16 %v2094
        %v3503 = vunpack.c.l.b16 %v2095
        %v3504 = vunpack.c.h.b16 %v2095
        %v3505 = vunpack.c.l.b16 %v2096
        %v3506 = vunpack.c.h.b16 %v2096
        %v3507 = vunpack.c.l.b16 %v2097
        %v3508 = vunpack.c.h.b16 %v2097
        %v3509 = vunpack.c.l.b16 %v2098
        %v3510 = vunpack.c.h.b16 %v2098
        %v3511 = vunpack.c.l.b16 %v2099
        %v3512 = vunpack.c.h.b16 %v2099
        %v3513 = vunpack.c.l.b16 %v2100
        %v3514 = vunpack.c.h.b16 %v2100
        %v3515 = vunpack.c.l.b16 %v2101
        %v3516 = vunpack.c.h.b16 %v2101
        %v3517 = vunpack.c.l.b16 %v2102
        %v3518 = vunpack.c.h.b16 %v2102
        %v3519 = vunpack.c.l.b16 %v2103
        %v3520 = vunpack.c.h.b16 %v2103
        %v3521 = vunpack.c.l.b16 %v2104
        %v3522 = vunpack.c.h.b16 %v2104
        %v3523 = vunpack.c.l.b16 %v2105
        %v3524 = vunpack.c.h.b16 %v2105
        %v3525 = vunpack.c.l.b16 %v2106
        %v3526 = vunpack.c.h.b16 %v2106
        %v3527 = vunpack.c.l.b16 %v2107
        %v3528 = vunpack.c.h.b16 %v2107
        %v3529 = vunpack.c.l.b16 %v2108
        %v3530 = vunpack.c.h.b16 %v2108
        %v3531 = vunpack.c.l.b16 %v2109
        %v3532 = vunpack.c.h.b16 %v2109
        %v3533 = vunpack.c.l.b16 %v2110
        %v3534 = vunpack.c.h.b16 %v2110
        %v3535 = vunpack.c.l.b16 %v2111
        %v3536 = vunpack.c.h.b16 %v2111
        %v3537 = vunpack.c.l.b16 %v2112
        %v3538 = vunpack.c.h.b16 %v2112
        %v3539 = vunpack.c.l.b16 %v2113
        %v3540 = vunpack.c.h.b16 %v2113
        %v3541 = vunpack.c.l.b16 %v2114
        %v3542 = vunpack.c.h.b16 %v2114
        %v3543 = vunpack.c.l.b16 %v2115
        %v3544 = vunpack.c.h.b16 %v2115
        %v3545 = vunpack.c.l.b16 %v2116
        %v3546 = vunpack.c.h.b16 %v2116
        %v3547 = vunpack.c.l.b16 %v2117
        %v3548 = vunpack.c.h.b16 %v2117
        %v3549 = vunpack.c.l.b16 %v2118
        %v3550 = vunpack.c.h.b16 %v2118
        %v3551 = vunpack.c.l.b16 %v2119
        %v3552 = vunpack.c.h.b16 %v2119
        %v3553 = vunpack.c.l.b16 %v2120
        %v3554 = vunpack.c.h.b16 %v2120
        %v3555 = vunpack.c.l.b16 %v2121
        %v3556 = vunpack.c.h.b16 %v2121
        %v3557 = vunpack.c.l.b16 %v2122
        %v3558 = vunpack.c.h.b16 %v2122
        %v3559 = vunpack.c.l.b16 %v2123
        %v3560 = vunpack.c.h.b16 %v2123
        %v3561 = vunpack.c.l.b16 %v2124
        %v3562 = vunpack.c.h.b16 %v2124
        %v3563 = vunpack.c.l.b16 %v2125
        %v3564 = vunpack.c.h.b16 %v2125
        %v3565 = vunpack.c.l.b16 %v2126
        %v3566 = vunpack.c.h.b16 %v2126
        %v3567 = vunpack.c.l.b16 %v2127
        %v3568 = vunpack.c.h.b16 %v2127
        %v3569 = vunpack.c.l.b16 %v2128
        %v3570 = vunpack.c.h.b16 %v2128
        %v3571 = vunpack.c.l.b16 %v2129
        %v3572 = vunpack.c.h.b16 %v2129
        %v3573 = vunpack.c.l.b16 %v2130
        %v3574 = vunpack.c.h.b16 %v2130
        %v3575 = vunpack.c.l.b16 %v2131
        %v3576 = vunpack.c.h.b16 %v2131
        %v3577 = vunpack.c.l.b16 %v2132
        %v3578 = vunpack.c.h.b16 %v2132
        %v3579 = vunpack.c.l.b16 %v2133
        %v3580 = vunpack.c.h.b16 %v2133
        %v3581 = vunpack.c.l.b16 %v2134
        %v3582 = vunpack.c.h.b16 %v2134
        %v3583 = vunpack.c.l.b16 %v2135
        %v3584 = vunpack.c.h.b16 %v2135
        %v3585 = vunpack.c.l.b16 %v2136
        %v3586 = vunpack.c.h.b16 %v2136
        %v3587 = vunpack.c.l.b16 %v2137
        %v3588 = vunpack.c.h.b16 %v2137
        %v3589 = vunpack.c.l.b16 %v2138
        %v3590 = vunpack.c.h.b16 %v2138
        %v3591 = vunpack.c.l.b16 %v2139
        %v3592 = vunpack.c.h.b16 %v2139
        %v3593 = vunpack.c.l.b16 %v2140
        %v3594 = vunpack.c.h.b16 %v2140
        %v3595 = vunpack.c.l.b16 %v2141
        %v3596 = vunpack.c.h.b16 %v2141
        %v3597 = vunpack.c.l.b16 %v2142
        %v3598 = vunpack.c.h.b16 %v2142
        %v3599 = vunpack.c.l.b16 %v2143
        %v3600 = vunpack.c.h.b16 %v2143
        %v3601 = vunpack.c.l.b16 %v2144
        %v3602 = vunpack.c.h.b16 %v2144
        %v3603 = vunpack.c.l.b16 %v2145
        %v3604 = vunpack.c.h.b16 %v2145
        %v3605 = vunpack.c.l.b16 %v2146
        %v3606 = vunpack.c.h.b16 %v2146
        %v3607 = vunpack.c.l.b16 %v2147
        %v3608 = vunpack.c.h.b16 %v2147
        %v3609 = vunpack.c.l.b16 %v2148
        %v3610 = vunpack.c.h.b16 %v2148
        %v3611 = vunpack.c.l.b16 %v2149
        %v3612 = vunpack.c.h.b16 %v2149
        %v3613 = vunpack.c.l.b16 %v2150
        %v3614 = vunpack.c.h.b16 %v2150
        %v3615 = vunpack.c.l.b16 %v2151
        %v3616 = vunpack.c.h.b16 %v2151
        %v3617 = vunpack.c.l.b16 %v2152
        %v3618 = vunpack.c.h.b16 %v2152
        %v3619 = vunpack.c.l.b16 %v2153
        %v3620 = vunpack.c.h.b16 %v2153
        %v3621 = vunpack.c.l.b16 %v2154
        %v3622 = vunpack.c.h.b16 %v2154
        %v3623 = vunpack.c.l.b16 %v2155
        %v3624 = vunpack.c.h.b16 %v2155
        %v3625 = vunpack.c.l.b16 %v2156
        %v3626 = vunpack.c.h.b16 %v2156
        %v3627 = vunpack.c.l.b16 %v2157
        %v3628 = vunpack.c.h.b16 %v2157
        %v3629 = vunpack.c.l.b16 %v2158
        %v3630 = vunpack.c.h.b16 %v2158
        %v3631 = vunpack.c.l.b16 %v2159
        %v3632 = vunpack.c.h.b16 %v2159
        %v3633 = vunpack.c.l.b16 %v2160
        %v3634 = vunpack.c.h.b16 %v2160
        %v3635 = vunpack.c.l.b16 %v2161
        %v3636 = vunpack.c.h.b16 %v2161
        %v3637 = vunpack.c.l.b16 %v2162
        %v3638 = vunpack.c.h.b16 %v2162
        %v3639 = vunpack.c.l.b16 %v2163
        %v3640 = vunpack.c.h.b16 %v2163
        %v3641 = vunpack.c.l.b16 %v2164
        %v3642 = vunpack.c.h.b16 %v2164
        %v3643 = vunpack.c.l.b16 %v2165
        %v3644 = vunpack.c.h.b16 %v2165
        %v3645 = vunpack.c.l.b16 %v2166
        %v3646 = vunpack.c.h.b16 %v2166
        %v3647 = vunpack.c.l.b16 %v2167
        %v3648 = vunpack.c.h.b16 %v2167
        %v3649 = vunpack.c.l.b16 %v2168
        %v3650 = vunpack.c.h.b16 %v2168
        %v3651 = vunpack.c.l.b16 %v2169
        %v3652 = vunpack.c.h.b16 %v2169
        %v3653 = vunpack.c.l.b16 %v2170
        %v3654 = vunpack.c.h.b16 %v2170
        %v3655 = vunpack.c.l.b16 %v2171
        %v3656 = vunpack.c.h.b16 %v2171
        %v3657 = vunpack.c.l.b16 %v2172
        %v3658 = vunpack.c.h.b16 %v2172
        %v3659 = vunpack.c.l.b16 %v2173
        %v3660 = vunpack.c.h.b16 %v2173
        %v3661 = vunpack.c.l.b16 %v2174
        %v3662 = vunpack.c.h.b16 %v2174
        %v3663 = vunpack.c.l.b16 %v2175
        %v3664 = vunpack.c.h.b16 %v2175
        %v3665 = vunpack.c.l.b16 %v2176
        %v3666 = vunpack.c.h.b16 %v2176
        %v3667 = vunpack.c.l.b16 %v2177
        %v3668 = vunpack.c.h.b16 %v2177
        %v3669 = vunpack.c.l.b16 %v2178
        %v3670 = vunpack.c.h.b16 %v2178
        %v3671 = vunpack.c.l.b16 %v2179
        %v3672 = vunpack.c.h.b16 %v2179
        %v3673 = vunpack.c.l.b16 %v2180
        %v3674 = vunpack.c.h.b16 %v2180
        %v3675 = vunpack.c.l.b16 %v2181
        %v3676 = vunpack.c.h.b16 %v2181
        %v3677 = vunpack.c.l.b16 %v2182
        %v3678 = vunpack.c.h.b16 %v2182
        %v3679 = vunpack.c.l.b16 %v2183
        %v3680 = vunpack.c.h.b16 %v2183
        %v3681 = vunpack.c.l.b16 %v2184
        %v3682 = vunpack.c.h.b16 %v2184
        %v3683 = vunpack.c.l.b16 %v2185
        %v3684 = vunpack.c.h.b16 %v2185
        %v3685 = vunpack.c.l.b16 %v2186
        %v3686 = vunpack.c.h.b16 %v2186
        %v3687 = vunpack.c.l.b16 %v2187
        %v3688 = vunpack.c.h.b16 %v2187
        %v3689 = vunpack.c.l.b16 %v2188
        %v3690 = vunpack.c.h.b16 %v2188
        %v3691 = vunpack.c.l.b16 %v2189
        %v3692 = vunpack.c.h.b16 %v2189
        %v3693 = vunpack.c.l.b16 %v2190
        %v3694 = vunpack.c.h.b16 %v2190
        %v3695 = vunpack.c.l.b16 %v2191
        %v3696 = vunpack.c.h.b16 %v2191
        %v3697 = vunpack.c.l.b16 %v2192
        %v3698 = vunpack.c.h.b16 %v2192
        %v3699 = vunpack.c.l.b16 %v2193
        %v3700 = vunpack.c.h.b16 %v2193
        %v3701 = vunpack.c.l.b16 %v2194
        %v3702 = vunpack.c.h.b16 %v2194
        %v3703 = vunpack.c.l.b16 %v2195
        %v3704 = vunpack.c.h.b16 %v2195
        %v3705 = vunpack.c.l.b16 %v2196
        %v3706 = vunpack.c.h.b16 %v2196
        %v3707 = vunpack.c.l.b16 %v2197
        %v3708 = vunpack.c.h.b16 %v2197
        %v3709 = vunpack.c.l.b16 %v2198
        %v3710 = vunpack.c.h.b16 %v2198
        %v3711 = vunpack.c.l.b16 %v2199
        %v3712 = vunpack.c.h.b16 %v2199
        %v3713 = vunpack.c.l.b16 %v2200
        %v3714 = vunpack.c.h.b16 %v2200
        %v3715 = vunpack.c.l.b16 %v2201
        %v3716 = vunpack.c.h.b16 %v2201
        %v3717 = vunpack.c.l.b16 %v2202
        %v3718 = vunpack.c.h.b16 %v2202
        %v3719 = vunpack.c.l.b16 %v2203
        %v3720 = vunpack.c.h.b16 %v2203
        %v3721 = vunpack.c.l.b16 %v2204
        %v3722 = vunpack.c.h.b16 %v2204
        %v3723 = vunpack.c.l.b16 %v2205
        %v3724 = vunpack.c.h.b16 %v2205
        %v3725 = vunpack.c.l.b16 %v2206
        %v3726 = vunpack.c.h.b16 %v2206
        %v3727 = vunpack.c.l.b16 %v2207
        %v3728 = vunpack.c.h.b16 %v2207
        %v3729 = vunpack.c.l.b16 %v2208
        %v3730 = vunpack.c.h.b16 %v2208
        %v3731 = vunpack.c.l.b16 %v2209
        %v3732 = vunpack.c.h.b16 %v2209
        %v3733 = vunpack.c.l.b16 %v2210
        %v3734 = vunpack.c.h.b16 %v2210
        %v3735 = vunpack.c.l.b16 %v2211
        %v3736 = vunpack.c.h.b16 %v2211
        %v3737 = vunpack.c.l.b16 %v2212
        %v3738 = vunpack.c.h.b16 %v2212
        %v3739 = vunpack.c.l.b16 %v2213
        %v3740 = vunpack.c.h.b16 %v2213
        %v3741 = vunpack.c.l.b16 %v2214
        %v3742 = vunpack.c.h.b16 %v2214
        %v3743 = vunpack.c.l.b16 %v2215
        %v3744 = vunpack.c.h.b16 %v2215
        %v3745 = vunpack.c.l.b16 %v2216
        %v3746 = vunpack.c.h.b16 %v2216
        %v3747 = vunpack.c.l.b16 %v2217
        %v3748 = vunpack.c.h.b16 %v2217
        %v3749 = vunpack.c.l.b16 %v2218
        %v3750 = vunpack.c.h.b16 %v2218
        %v3751 = vunpack.c.l.b16 %v2219
        %v3752 = vunpack.c.h.b16 %v2219
        %v3753 = vunpack.c.l.b16 %v2220
        %v3754 = vunpack.c.h.b16 %v2220
        %v3755 = vunpack.c.l.b16 %v2221
        %v3756 = vunpack.c.h.b16 %v2221
        %v3757 = vunpack.c.l.b16 %v2222
        %v3758 = vunpack.c.h.b16 %v2222
        %v3759 = vunpack.c.l.b16 %v2223
        %v3760 = vunpack.c.h.b16 %v2223
        %v3761 = vunpack.c.l.b16 %v2224
        %v3762 = vunpack.c.h.b16 %v2224
        %v3763 = vunpack.c.l.b16 %v2225
        %v3764 = vunpack.c.h.b16 %v2225
        %v3765 = vunpack.c.l.b16 %v2226
        %v3766 = vunpack.c.h.b16 %v2226
        %v3767 = vunpack.c.l.b16 %v2227
        %v3768 = vunpack.c.h.b16 %v2227
        %v3769 = vunpack.c.l.b16 %v2228
        %v3770 = vunpack.c.h.b16 %v2228
        %v3771 = vunpack.c.l.b16 %v2229
        %v3772 = vunpack.c.h.b16 %v2229
        %v3773 = vunpack.c.l.b16 %v2230
        %v3774 = vunpack.c.h.b16 %v2230
        %v3775 = vunpack.c.l.b16 %v2231
        %v3776 = vunpack.c.h.b16 %v2231
        %v3777 = vunpack.c.l.b16 %v2232
        %v3778 = vunpack.c.h.b16 %v2232
        %v3779 = vunpack.c.l.b16 %v2233
        %v3780 = vunpack.c.h.b16 %v2233
        %v3781 = vunpack.c.l.b16 %v2234
        %v3782 = vunpack.c.h.b16 %v2234
        %v3783 = vunpack.c.l.b16 %v2235
        %v3784 = vunpack.c.h.b16 %v2235
        %v3785 = vunpack.c.l.b16 %v2236
        %v3786 = vunpack.c.h.b16 %v2236
        %v3787 = vunpack.c.l.b16 %v2237
        %v3788 = vunpack.c.h.b16 %v2237
        %v3789 = vunpack.c.l.b16 %v2238
        %v3790 = vunpack.c.h.b16 %v2238
        %v3791 = vunpack.c.l.b16 %v2239
        %v3792 = vunpack.c.h.b16 %v2239
        %v3793 = vunpack.c.l.b16 %v2240
        %v3794 = vunpack.c.h.b16 %v2240
        %v3795 = vunpack.c.l.b16 %v2241
        %v3796 = vunpack.c.h.b16 %v2241
        %v3797 = vunpack.c.l.b16 %v2242
        %v3798 = vunpack.c.h.b16 %v2242
        %v3799 = vunpack.c.l.b16 %v2243
        %v3800 = vunpack.c.h.b16 %v2243
        %v3801 = vunpack.c.l.b16 %v2244
        %v3802 = vunpack.c.h.b16 %v2244
        %v3803 = vunpack.c.l.b16 %v2245
        %v3804 = vunpack.c.h.b16 %v2245
        %v3805 = vunpack.c.l.b16 %v2246
        %v3806 = vunpack.c.h.b16 %v2246
        %v3807 = vunpack.c.l.b16 %v2247
        %v3808 = vunpack.c.h.b16 %v2247
        %v3809 = vunpack.c.l.b16 %v2248
        %v3810 = vunpack.c.h.b16 %v2248
        %v3811 = vunpack.c.l.b16 %v2249
        %v3812 = vunpack.c.h.b16 %v2249
        %v3813 = vunpack.c.l.b16 %v2250
        %v3814 = vunpack.c.h.b16 %v2250
        %v3815 = vunpack.c.l.b16 %v2251
        %v3816 = vunpack.c.h.b16 %v2251
        %v3817 = vunpack.c.l.b16 %v2252
        %v3818 = vunpack.c.h.b16 %v2252
        %v3819 = vunpack.c.l.b16 %v2253
        %v3820 = vunpack.c.h.b16 %v2253
        %v3821 = vunpack.c.l.b16 %v2254
        %v3822 = vunpack.c.h.b16 %v2254
        %v3823 = vunpack.c.l.b16 %v2255
        %v3824 = vunpack.c.h.b16 %v2255
        %v3825 = vunpack.c.l.b16 %v2256
        %v3826 = vunpack.c.h.b16 %v2256
        %v3827 = vunpack.c.l.b16 %v2257
        %v3828 = vunpack.c.h.b16 %v2257
        %v3829 = vunpack.c.l.b16 %v2258
        %v3830 = vunpack.c.h.b16 %v2258
        %v3831 = vunpack.c.l.b16 %v2259
        %v3832 = vunpack.c.h.b16 %v2259
        %v3833 = vunpack.c.l.b16 %v2260
        %v3834 = vunpack.c.h.b16 %v2260
        %v3835 = vunpack.c.l.b16 %v2261
        %v3836 = vunpack.c.h.b16 %v2261
        %v3837 = vunpack.c.l.b16 %v2262
        %v3838 = vunpack.c.h.b16 %v2262
        %v3839 = vunpack.c.l.b16 %v2263
        %v3840 = vunpack.c.h.b16 %v2263
        %v3841 = vunpack.c.l.b16 %v2264
        %v3842 = vunpack.c.h.b16 %v2264
        %v3843 = vunpack.c.l.b16 %v2265
        %v3844 = vunpack.c.h.b16 %v2265
        %v3845 = vunpack.c.l.b16 %v2266
        %v3846 = vunpack.c.h.b16 %v2266
        %v3847 = vunpack.c.l.b16 %v2267
        %v3848 = vunpack.c.h.b16 %v2267
        %v3849 = vunpack.c.l.b16 %v2268
        %v3850 = vunpack.c.h.b16 %v2268
        %v3851 = vunpack.c.l.b16 %v2269
        %v3852 = vunpack.c.h.b16 %v2269
        %v3853 = vunpack.c.l.b16 %v2270
        %v3854 = vunpack.c.h.b16 %v2270
        %v3855 = vunpack.c.l.b16 %v2271
        %v3856 = vunpack.c.h.b16 %v2271
        %v3857 = vunpack.c.l.b16 %v2272
        %v3858 = vunpack.c.h.b16 %v2272
        %v3859 = vunpack.c.l.b16 %v2273
        %v3860 = vunpack.c.h.b16 %v2273
        %v3861 = vunpack.c.l.b16 %v2274
        %v3862 = vunpack.c.h.b16 %v2274
        %v3863 = vunpack.c.l.b16 %v2275
        %v3864 = vunpack.c.h.b16 %v2275
        %v3865 = vunpack.c.l.b16 %v2276
        %v3866 = vunpack.c.h.b16 %v2276
        %v3867 = vunpack.c.l.b16 %v2277
        %v3868 = vunpack.c.h.b16 %v2277
        %v3869 = vunpack.c.l.b16 %v2278
        %v3870 = vunpack.c.h.b16 %v2278
        %v3871 = vunpack.c.l.b16 %v2279
        %v3872 = vunpack.c.h.b16 %v2279
        %v3873 = vunpack.c.l.b16 %v2280
        %v3874 = vunpack.c.h.b16 %v2280
        %v3875 = vunpack.c.l.b16 %v2281
        %v3876 = vunpack.c.h.b16 %v2281
        %v3877 = vunpack.c.l.b16 %v2282
        %v3878 = vunpack.c.h.b16 %v2282
        %v3879 = vunpack.c.l.b16 %v2283
        %v3880 = vunpack.c.h.b16 %v2283
        %v3881 = vunpack.c.l.b16 %v2284
        %v3882 = vunpack.c.h.b16 %v2284
        %v3883 = vunpack.c.l.b16 %v2285
        %v3884 = vunpack.c.h.b16 %v2285
        %v3885 = vunpack.c.l.b16 %v2286
        %v3886 = vunpack.c.h.b16 %v2286
        %v3887 = vunpack.c.l.b16 %v2287
        %v3888 = vunpack.c.h.b16 %v2287
        %v3889 = vunpack.c.l.b16 %v2288
        %v3890 = vunpack.c.h.b16 %v2288
        %v3891 = vunpack.c.l.b16 %v2289
        %v3892 = vunpack.c.h.b16 %v2289
        %v3893 = vunpack.c.l.b16 %v2290
        %v3894 = vunpack.c.h.b16 %v2290
        %v3895 = vunpack.c.l.b16 %v2291
        %v3896 = vunpack.c.h.b16 %v2291
        %v3897 = vunpack.c.l.b16 %v2292
        %v3898 = vunpack.c.h.b16 %v2292
        %v3899 = vunpack.c.l.b16 %v2293
        %v3900 = vunpack.c.h.b16 %v2293
        %v3901 = vunpack.c.l.b16 %v2294
        %v3902 = vunpack.c.h.b16 %v2294
        %v3903 = vunpack.c.l.b16 %v2295
        %v3904 = vunpack.c.h.b16 %v2295
        %v3905 = vunpack.c.l.b16 %v2296
        %v3906 = vunpack.c.h.b16 %v2296
        %v3907 = vunpack.c.l.b16 %v2297
        %v3908 = vunpack.c.h.b16 %v2297
        %v3909 = vunpack.c.l.b16 %v2298
        %v3910 = vunpack.c.h.b16 %v2298
        %v3911 = vunpack.c.l.b16 %v2299
        %v3912 = vunpack.c.h.b16 %v2299
        %v3913 = vunpack.c.l.b16 %v2300
        %v3914 = vunpack.c.h.b16 %v2300
        %v3915 = vunpack.c.l.b16 %v2301
        %v3916 = vunpack.c.h.b16 %v2301
        %v3917 = vunpack.c.l.b16 %v2302
        %v3918 = vunpack.c.h.b16 %v2302
        %v3919 = vunpack.c.l.b16 %v2303
        %v3920 = vunpack.c.h.b16 %v2303
        %v3921 = vunpack.c.l.b16 %v2304
        %v3922 = vunpack.c.h.b16 %v2304
        %v3923 = vunpack.c.l.b16 %v2305
        %v3924 = vunpack.c.h.b16 %v2305
        %v3925 = vunpack.c.l.b16 %v2306
        %v3926 = vunpack.c.h.b16 %v2306
        %v3927 = vunpack.c.l.b16 %v2307
        %v3928 = vunpack.c.h.b16 %v2307
        %v3929 = vunpack.c.l.b16 %v2308
        %v3930 = vunpack.c.h.b16 %v2308
        %v3931 = vunpack.c.l.b16 %v2309
        %v3932 = vunpack.c.h.b16 %v2309
        %v3933 = vunpack.c.l.b16 %v2310
        %v3934 = vunpack.c.h.b16 %v2310
        %v3935 = vunpack.c.l.b16 %v2311
        %v3936 = vunpack.c.h.b16 %v2311
        %v3937 = vunpack.c.l.b16 %v2312
        %v3938 = vunpack.c.h.b16 %v2312
        %v3939 = vunpack.c.l.b16 %v2313
        %v3940 = vunpack.c.h.b16 %v2313
        %v3941 = vunpack.c.l.b16 %v2314
        %v3942 = vunpack.c.h.b16 %v2314
        %v3943 = vunpack.c.l.b16 %v2315
        %v3944 = vunpack.c.h.b16 %v2315
        %v3945 = vunpack.c.l.b16 %v2316
        %v3946 = vunpack.c.h.b16 %v2316
        %v3947 = vunpack.c.l.b16 %v2317
        %v3948 = vunpack.c.h.b16 %v2317
        %v3949 = vunpack.c.l.b16 %v2318
        %v3950 = vunpack.c.h.b16 %v2318
        %v3951 = vunpack.c.l.b16 %v2319
        %v3952 = vunpack.c.h.b16 %v2319
        %v3953 = vunpack.c.l.b16 %v2320
        %v3954 = vunpack.c.h.b16 %v2320
        %v3955 = vunpack.c.l.b16 %v2321
        %v3956 = vunpack.c.h.b16 %v2321
        %v3957 = vunpack.c.l.b16 %v2322
        %v3958 = vunpack.c.h.b16 %v2322
        %v3959 = vunpack.c.l.b16 %v2323
        %v3960 = vunpack.c.h.b16 %v2323
        %v3961 = vunpack.c.l.b16 %v2324
        %v3962 = vunpack.c.h.b16 %v2324
        %v3963 = vunpack.c.l.b16 %v2325
        %v3964 = vunpack.c.h.b16 %v2325
        %v3965 = vunpack.c.l.b16 %v2326
        %v3966 = vunpack.c.h.b16 %v2326
        %v3967 = vunpack.c.l.b16 %v2327
        %v3968 = vunpack.c.h.b16 %v2327
        %v3969 = vunpack.c.l.b16 %v2328
        %v3970 = vunpack.c.h.b16 %v2328
        %v3971 = vunpack.c.l.b16 %v2329
        %v3972 = vunpack.c.h.b16 %v2329
        %v3973 = vunpack.c.l.b16 %v2330
        %v3974 = vunpack.c.h.b16 %v2330
        %v3975 = vunpack.c.l.b16 %v2331
        %v3976 = vunpack.c.h.b16 %v2331
        %v3977 = vunpack.c.l.b16 %v2332
        %v3978 = vunpack.c.h.b16 %v2332
        %v3979 = vunpack.c.l.b16 %v2333
        %v3980 = vunpack.c.h.b16 %v2333
        %v3981 = vunpack.c.l.b16 %v2334
        %v3982 = vunpack.c.h.b16 %v2334
        %v3983 = vunpack.c.l.b16 %v2335
        %v3984 = vunpack.c.h.b16 %v2335
        %v3985 = vunpack.c.l.b16 %v2336
        %v3986 = vunpack.c.h.b16 %v2336
        %v3987 = vunpack.c.l.b16 %v2337
        %v3988 = vunpack.c.h.b16 %v2337
        %v3989 = vunpack.c.l.b16 %v2338
        %v3990 = vunpack.c.h.b16 %v2338
        %v3991 = vunpack.c.l.b16 %v2339
        %v3992 = vunpack.c.h.b16 %v2339
        %v3993 = vunpack.c.l.b16 %v2340
        %v3994 = vunpack.c.h.b16 %v2340
        %v3995 = vunpack.c.l.b16 %v2341
        %v3996 = vunpack.c.h.b16 %v2341
        %v3997 = vunpack.c.l.b16 %v2342
        %v3998 = vunpack.c.h.b16 %v2342
        %v3999 = vunpack.c.l.b16 %v2343
        %v4000 = vunpack.c.h.b16 %v2343
        %v4001 = vunpack.c.l.b16 %v2344
        %v4002 = vunpack.c.h.b16 %v2344
        %v4003 = vunpack.c.l.b16 %v2345
        %v4004 = vunpack.c.h.b16 %v2345
        %v4005 = vunpack.c.l.b16 %v2346
        %v4006 = vunpack.c.h.b16 %v2346
        %v4007 = vunpack.c.l.b16 %v2347
        %v4008 = vunpack.c.h.b16 %v2347
        %v4009 = vunpack.c.l.b16 %v2348
        %v4010 = vunpack.c.h.b16 %v2348
        %v4011 = vunpack.c.l.b16 %v2349
        %v4012 = vunpack.c.h.b16 %v2349
        %v4013 = vunpack.c.l.b16 %v2350
        %v4014 = vunpack.c.h.b16 %v2350
        %v4015 = vunpack.c.l.b16 %v2351
        %v4016 = vunpack.c.h.b16 %v2351
        %v4017 = vunpack.c.l.b16 %v2352
        %v4018 = vunpack.c.h.b16 %v2352
        %v4019 = vunpack.c.l.b16 %v2353
        %v4020 = vunpack.c.h.b16 %v2353
        %v4021 = vunpack.c.l.b16 %v2354
        %v4022 = vunpack.c.h.b16 %v2354
        %v4023 = vunpack.c.l.b16 %v2355
        %v4024 = vunpack.c.h.b16 %v2355
        %v4025 = vunpack.c.l.b16 %v2356
        %v4026 = vunpack.c.h.b16 %v2356
        %v4027 = vunpack.c.l.b16 %v2357
        %v4028 = vunpack.c.h.b16 %v2357
        %v4029 = vunpack.c.l.b16 %v2358
        %v4030 = vunpack.c.h.b16 %v2358
        %v4031 = vunpack.c.l.b16 %v2359
        %v4032 = vunpack.c.h.b16 %v2359
        %v4033 = vunpack.c.l.b16 %v2360
        %v4034 = vunpack.c.h.b16 %v2360
        %v4035 = vunpack.c.l.b16 %v2361
        %v4036 = vunpack.c.h.b16 %v2361
        %v4037 = vunpack.c.l.b16 %v2362
        %v4038 = vunpack.c.h.b16 %v2362
        %v4039 = vunpack.c.l.b16 %v2363
        %v4040 = vunpack.c.h.b16 %v2363
        %v4041 = vunpack.c.l.b16 %v2364
        %v4042 = vunpack.c.h.b16 %v2364
        %v4043 = vunpack.c.l.b16 %v2365
        %v4044 = vunpack.c.h.b16 %v2365
        %v4045 = vunpack.c.l.b16 %v2366
        %v4046 = vunpack.c.h.b16 %v2366
        %v4047 = vunpack.c.l.b16 %v2367
        %v4048 = vunpack.c.h.b16 %v2367
        %v4049 = vunpack.c.l.b16 %v2368
        %v4050 = vunpack.c.h.b16 %v2368
        %v4051 = vunpack.c.l.b16 %v2369
        %v4052 = vunpack.c.h.b16 %v2369
        %v4053 = vunpack.c.l.b16 %v2370
        %v4054 = vunpack.c.h.b16 %v2370
        %v4055 = vunpack.c.l.b16 %v2371
        %v4056 = vunpack.c.h.b16 %v2371
        %v4057 = vunpack.c.l.b16 %v2372
        %v4058 = vunpack.c.h.b16 %v2372
        %v4059 = vunpack.c.l.b16 %v2373
        %v4060 = vunpack.c.h.b16 %v2373
        %v4061 = vunpack.c.l.b16 %v2374
        %v4062 = vunpack.c.h.b16 %v2374
        %v4063 = vunpack.c.l.b16 %v2375
        %v4064 = vunpack.c.h.b16 %v2375
        %v4065 = vunpack.c.l.b16 %v2376
        %v4066 = vunpack.c.h.b16 %v2376
        %v4067 = vunpack.c.l.b16 %v2377
        %v4068 = vunpack.c.h.b16 %v2377
        %v4069 = vunpack.c.l.b16 %v2378
        %v4070 = vunpack.c.h.b16 %v2378
        %v4071 = vunpack.c.l.b16 %v2379
        %v4072 = vunpack.c.h.b16 %v2379
        %v4073 = vunpack.c.l.b16 %v2380
        %v4074 = vunpack.c.h.b16 %v2380
        %v4075 = vunpack.c.l.b16 %v2381
        %v4076 = vunpack.c.h.b16 %v2381
        %v4077 = vunpack.c.l.b16 %v2382
        %v4078 = vunpack.c.h.b16 %v2382
        %v4079 = vunpack.c.l.b16 %v2383
        %v4080 = vunpack.c.h.b16 %v2383
        %v4081 = vunpack.c.l.b16 %v2384
        %v4082 = vunpack.c.h.b16 %v2384
        %v4083 = vunpack.c.l.b16 %v2385
        %v4084 = vunpack.c.h.b16 %v2385
        %v4085 = vunpack.c.l.b16 %v2386
        %v4086 = vunpack.c.h.b16 %v2386
        %v4087 = vunpack.c.l.b16 %v2387
        %v4088 = vunpack.c.h.b16 %v2387
        %v4089 = vunpack.c.l.b16 %v2388
        %v4090 = vunpack.c.h.b16 %v2388
        %v4091 = vunpack.c.l.b16 %v2389
        %v4092 = vunpack.c.h.b16 %v2389
        %v4093 = vunpack.c.l.b16 %v2390
        %v4094 = vunpack.c.h.b16 %v2390
        %v4095 = vunpack.c.l.b16 %v2391
        %v4096 = vunpack.c.h.b16 %v2391
        %v4097 = vunpack.c.l.b16 %v2392
        %v4098 = vunpack.c.h.b16 %v2392
        %v4099 = vunpack.c.l.b16 %v2393
        %v4100 = vunpack.c.h.b16 %v2393
        %v4101 = vunpack.c.l.b16 %v2394
        %v4102 = vunpack.c.h.b16 %v2394
        %v4103 = vunpack.c.l.b16 %v2395
        %v4104 = vunpack.c.h.b16 %v2395
        %v4105 = vunpack.c.l.b16 %v2396
        %v4106 = vunpack.c.h.b16 %v2396
        %v4107 = vunpack.c.l.b16 %v2397
        %v4108 = vunpack.c.h.b16 %v2397
        %v4109 = vunpack.c.l.b16 %v2398
        %v4110 = vunpack.c.h.b16 %v2398
        %v4111 = vunpack.c.l.b16 %v2399
        %v4112 = vunpack.c.h.b16 %v2399
        %v4113 = vunpack.c.l.b16 %v2400
        %v4114 = vunpack.c.h.b16 %v2400
        %v4115 = vunpack.c.l.b16 %v2401
        %v4116 = vunpack.c.h.b16 %v2401
        %v4117 = vunpack.c.l.b16 %v2402
        %v4118 = vunpack.c.h.b16 %v2402
        %v4119 = vunpack.c.l.b16 %v2403
        %v4120 = vunpack.c.h.b16 %v2403
        %v4121 = vunpack.c.l.b16 %v2404
        %v4122 = vunpack.c.h.b16 %v2404
        %v4123 = vunpack.c.l.b16 %v2405
        %v4124 = vunpack.c.h.b16 %v2405
        %v4125 = vunpack.c.l.b16 %v2406
        %v4126 = vunpack.c.h.b16 %v2406
        %v4127 = vunpack.c.l.b16 %v2407
        %v4128 = vunpack.c.h.b16 %v2407
        %v4129 = vunpack.c.l.b16 %v2408
        %v4130 = vunpack.c.h.b16 %v2408
        %v4131 = vunpack.c.l.b16 %v2409
        %v4132 = vunpack.c.h.b16 %v2409
        %v4133 = vunpack.c.l.b16 %v2410
        %v4134 = vunpack.c.h.b16 %v2410
        %v4135 = vunpack.c.l.b16 %v2411
        %v4136 = vunpack.c.h.b16 %v2411
        %v4137 = vunpack.c.l.b16 %v2412
        %v4138 = vunpack.c.h.b16 %v2412
        %v4139 = vunpack.c.l.b16 %v2413
        %v4140 = vunpack.c.h.b16 %v2413
        %v4141 = vunpack.c.l.b16 %v2414
        %v4142 = vunpack.c.h.b16 %v2414
        %v4143 = vunpack.c.l.b16 %v2415
        %v4144 = vunpack.c.h.b16 %v2415
        %v4145 = vunpack.c.l.b16 %v2416
        %v4146 = vunpack.c.h.b16 %v2416
        %v4147 = vunpack.c.l.b16 %v2417
        %v4148 = vunpack.c.h.b16 %v2417
        %v4149 = vunpack.c.l.b16 %v2418
        %v4150 = vunpack.c.h.b16 %v2418
        %v4151 = vunpack.c.l.b16 %v2419
        %v4152 = vunpack.c.h.b16 %v2419
        %v4153 = vunpack.c.l.b16 %v2420
        %v4154 = vunpack.c.h.b16 %v2420
        %v4155 = vunpack.c.l.b16 %v2421
        %v4156 = vunpack.c.h.b16 %v2421
        %v4157 = vunpack.c.l.b16 %v2422
        %v4158 = vunpack.c.h.b16 %v2422
        %v4159 = vunpack.c.l.b16 %v2423
        %v4160 = vunpack.c.h.b16 %v2423
        %v4161 = vunpack.c.l.b16 %v2424
        %v4162 = vunpack.c.h.b16 %v2424
        %v4163 = vunpack.c.l.b16 %v2425
        %v4164 = vunpack.c.h.b16 %v2425
        %v4165 = vunpack.c.l.b16 %v2426
        %v4166 = vunpack.c.h.b16 %v2426
        %v4167 = vunpack.c.l.b16 %v2427
        %v4168 = vunpack.c.h.b16 %v2427
        %v4169 = vunpack.c.l.b16 %v2428
        %v4170 = vunpack.c.h.b16 %v2428
        %v4171 = vunpack.c.l.b16 %v2429
        %v4172 = vunpack.c.h.b16 %v2429
        %v4173 = vunpack.c.l.b16 %v2430
        %v4174 = vunpack.c.h.b16 %v2430
        %v4175 = vunpack.c.l.b16 %v2431
        %v4176 = vunpack.c.h.b16 %v2431
        %v4177 = vunpack.c.l.b16 %v2432
        %v4178 = vunpack.c.h.b16 %v2432
        %v4179 = vunpack.c.l.b16 %v2433
        %v4180 = vunpack.c.h.b16 %v2433
        %v4181 = vunpack.c.l.b16 %v2434
        %v4182 = vunpack.c.h.b16 %v2434
        %v4183 = vunpack.c.l.b16 %v2435
        %v4184 = vunpack.c.h.b16 %v2435
        %v4185 = vunpack.c.l.b16 %v2436
        %v4186 = vunpack.c.h.b16 %v2436
        %v4187 = vpack.c.b16 %v3039, %v3035
        %v4188 = vpack.c.b16 %v3040, %v3036
        %v4189 = vpack.c.b16 %v3041, %v3037
        %v4190 = vpack.c.b16 %v3042, %v3038
        %v4191 = vpack.c.b16 %v3047, %v3043
        %v4192 = vpack.c.b16 %v3048, %v3044
        %v4193 = vpack.c.b16 %v3049, %v3045
        %v4194 = vpack.c.b16 %v3050, %v3046
        %v4195 = vpack.c.b16 %v3055, %v3051
        %v4196 = vpack.c.b16 %v3056, %v3052
        %v4197 = vpack.c.b16 %v3057, %v3053
        %v4198 = vpack.c.b16 %v3058, %v3054
        %v4199 = vpack.c.b16 %v3063, %v3059
        %v4200 = vpack.c.b16 %v3064, %v3060
        %v4201 = vpack.c.b16 %v3065, %v3061
        %v4202 = vpack.c.b16 %v3066, %v3062
        %v4203 = vpack.c.b16 %v3071, %v3067
        %v4204 = vpack.c.b16 %v3072, %v3068
        %v4205 = vpack.c.b16 %v3073, %v3069
        %v4206 = vpack.c.b16 %v3074, %v3070
        %v4207 = vpack.c.b16 %v3079, %v3075
        %v4208 = vpack.c.b16 %v3080, %v3076
        %v4209 = vpack.c.b16 %v3081, %v3077
        %v4210 = vpack.c.b16 %v3082, %v3078
        %v4211 = vpack.c.b16 %v3087, %v3083
        %v4212 = vpack.c.b16 %v3088, %v3084
        %v4213 = vpack.c.b16 %v3089, %v3085
        %v4214 = vpack.c.b16 %v3090, %v3086
        %v4215 = vpack.c.b16 %v3095, %v3091
        %v4216 = vpack.c.b16 %v3096, %v3092
        %v4217 = vpack.c.b16 %v3097, %v3093
        %v4218 = vpack.c.b16 %v3098, %v3094
        %v4219 = vpack.c.b16 %v3103, %v3099
        %v4220 = vpack.c.b16 %v3104, %v3100
        %v4221 = vpack.c.b16 %v3105, %v3101
        %v4222 = vpack.c.b16 %v3106, %v3102
        %v4223 = vpack.c.b16 %v3111, %v3107
        %v4224 = vpack.c.b16 %v3112, %v3108
        %v4225 = vpack.c.b16 %v3113, %v3109
        %v4226 = vpack.c.b16 %v3114, %v3110
        %v4227 = vpack.c.b16 %v3119, %v3115
        %v4228 = vpack.c.b16 %v3120, %v3116
        %v4229 = vpack.c.b16 %v3121, %v3117
        %v4230 = vpack.c.b16 %v3122, %v3118
        %v4231 = vpack.c.b16 %v3127, %v3123
        %v4232 = vpack.c.b16 %v3128, %v3124
        %v4233 = vpack.c.b16 %v3129, %v3125
        %v4234 = vpack.c.b16 %v3130, %v3126
        %v4235 = vpack.c.b16 %v3135, %v3131
        %v4236 = vpack.c.b16 %v3136, %v3132
        %v4237 = vpack.c.b16 %v3137, %v3133
        %v4238 = vpack.c.b16 %v3138, %v3134
        %v4239 = vpack.c.b16 %v3143, %v3139
        %v4240 = vpack.c.b16 %v3144, %v3140
        %v4241 = vpack.c.b16 %v3145, %v3141
        %v4242 = vpack.c.b16 %v3146, %v3142
        %v4243 = vpack.c.b16 %v3151, %v3147
        %v4244 = vpack.c.b16 %v3152, %v3148
        %v4245 = vpack.c.b16 %v3153, %v3149
        %v4246 = vpack.c.b16 %v3154, %v3150
        %v4247 = vpack.c.b16 %v3159, %v3155
        %v4248 = vpack.c.b16 %v3160, %v3156
        %v4249 = vpack.c.b16 %v3161, %v3157
        %v4250 = vpack.c.b16 %v3162, %v3158
        %v4251 = vpack.c.b16 %v3167, %v3163
        %v4252 = vpack.c.b16 %v3168, %v3164
        %v4253 = vpack.c.b16 %v3169, %v3165
        %v4254 = vpack.c.b16 %v3170, %v3166
        %v4255 = vpack.c.b16 %v3175, %v3171
        %v4256 = vpack.c.b16 %v3176, %v3172
        %v4257 = vpack.c.b16 %v3177, %v3173
        %v4258 = vpack.c.b16 %v3178, %v3174
        %v4259 = vpack.c.b16 %v3183, %v3179
        %v4260 = vpack.c.b16 %v3184, %v3180
        %v4261 = vpack.c.b16 %v3185, %v3181
        %v4262 = vpack.c.b16 %v3186, %v3182
        %v4263 = vpack.c.b16 %v3191, %v3187
        %v4264 = vpack.c.b16 %v3192, %v3188
        %v4265 = vpack.c.b16 %v3193, %v3189
        %v4266 = vpack.c.b16 %v3194, %v3190
        %v4267 = vpack.c.b16 %v3199, %v3195
        %v4268 = vpack.c.b16 %v3200, %v3196
        %v4269 = vpack.c.b16 %v3201, %v3197
        %v4270 = vpack.c.b16 %v3202, %v3198
        %v4271 = vpack.c.b16 %v3207, %v3203
        %v4272 = vpack.c.b16 %v3208, %v3204
        %v4273 = vpack.c.b16 %v3209, %v3205
        %v4274 = vpack.c.b16 %v3210, %v3206
        %v4275 = vpack.c.b16 %v3215, %v3211
        %v4276 = vpack.c.b16 %v3216, %v3212
        %v4277 = vpack.c.b16 %v3217, %v3213
        %v4278 = vpack.c.b16 %v3218, %v3214
        %v4279 = vpack.c.b16 %v3223, %v3219
        %v4280 = vpack.c.b16 %v3224, %v3220
        %v4281 = vpack.c.b16 %v3225, %v3221
        %v4282 = vpack.c.b16 %v3226, %v3222
        %v4283 = vpack.c.b16 %v3231, %v3227
        %v4284 = vpack.c.b16 %v3232, %v3228
        %v4285 = vpack.c.b16 %v3233, %v3229
        %v4286 = vpack.c.b16 %v3234, %v3230
        %v4287 = vpack.c.b16 %v3239, %v3235
        %v4288 = vpack.c.b16 %v3240, %v3236
        %v4289 = vpack.c.b16 %v3241, %v3237
        %v4290 = vpack.c.b16 %v3242, %v3238
        %v4291 = vpack.c.b16 %v3247, %v3243
        %v4292 = vpack.c.b16 %v3248, %v3244
        %v4293 = vpack.c.b16 %v3249, %v3245
        %v4294 = vpack.c.b16 %v3250, %v3246
        %v4295 = vpack.c.b16 %v3255, %v3251
        %v4296 = vpack.c.b16 %v3256, %v3252
        %v4297 = vpack.c.b16 %v3257, %v3253
        %v4298 = vpack.c.b16 %v3258, %v3254
        %v4299 = vpack.c.b16 %v3263, %v3259
        %v4300 = vpack.c.b16 %v3264, %v3260
        %v4301 = vpack.c.b16 %v3265, %v3261
        %v4302 = vpack.c.b16 %v3266, %v3262
        %v4303 = vpack.c.b16 %v3271, %v3267
        %v4304 = vpack.c.b16 %v3272, %v3268
        %v4305 = vpack.c.b16 %v3273, %v3269
        %v4306 = vpack.c.b16 %v3274, %v3270
        %v4307 = vpack.c.b16 %v3279, %v3275
        %v4308 = vpack.c.b16 %v3280, %v3276
        %v4309 = vpack.c.b16 %v3281, %v3277
        %v4310 = vpack.c.b16 %v3282, %v3278
        %v4311 = vpack.c.b16 %v3287, %v3283
        %v4312 = vpack.c.b16 %v3288, %v3284
        %v4313 = vpack.c.b16 %v3289, %v3285
        %v4314 = vpack.c.b16 %v3290, %v3286
        %v4315 = vpack.c.b16 %v3295, %v3291
        %v4316 = vpack.c.b16 %v3296, %v3292
        %v4317 = vpack.c.b16 %v3297, %v3293
        %v4318 = vpack.c.b16 %v3298, %v3294
        %v4319 = vpack.c.b16 %v3303, %v3299
        %v4320 = vpack.c.b16 %v3304, %v3300
        %v4321 = vpack.c.b16 %v3305, %v3301
        %v4322 = vpack.c.b16 %v3306, %v3302
        %v4323 = vpack.c.b16 %v3311, %v3307
        %v4324 = vpack.c.b16 %v3312, %v3308
        %v4325 = vpack.c.b16 %v3313, %v3309
        %v4326 = vpack.c.b16 %v3314, %v3310
        %v4327 = vpack.c.b16 %v3319, %v3315
        %v4328 = vpack.c.b16 %v3320, %v3316
        %v4329 = vpack.c.b16 %v3321, %v3317
        %v4330 = vpack.c.b16 %v3322, %v3318
        %v4331 = vpack.c.b16 %v3327, %v3323
        %v4332 = vpack.c.b16 %v3328, %v3324
        %v4333 = vpack.c.b16 %v3329, %v3325
        %v4334 = vpack.c.b16 %v3330, %v3326
        %v4335 = vpack.c.b16 %v3335, %v3331
        %v4336 = vpack.c.b16 %v3336, %v3332
        %v4337 = vpack.c.b16 %v3337, %v3333
        %v4338 = vpack.c.b16 %v3338, %v3334
        %v4339 = vpack.c.b16 %v3343, %v3339
        %v4340 = vpack.c.b16 %v3344, %v3340
        %v4341 = vpack.c.b16 %v3345, %v3341
        %v4342 = vpack.c.b16 %v3346, %v3342
        %v4343 = vpack.c.b16 %v3351, %v3347
        %v4344 = vpack.c.b16 %v3352, %v3348
        %v4345 = vpack.c.b16 %v3353, %v3349
        %v4346 = vpack.c.b16 %v3354, %v3350
        %v4347 = vpack.c.b16 %v3359, %v3355
        %v4348 = vpack.c.b16 %v3360, %v3356
        %v4349 = vpack.c.b16 %v3361, %v3357
        %v4350 = vpack.c.b16 %v3362, %v3358
        %v4351 = vpack.c.b16 %v3367, %v3363
        %v4352 = vpack.c.b16 %v3368, %v3364
        %v4353 = vpack.c.b16 %v3369, %v3365
        %v4354 = vpack.c.b16 %v3370, %v3366
        %v4355 = vpack.c.b16 %v3375, %v3371
        %v4356 = vpack.c.b16 %v3376, %v3372
        %v4357 = vpack.c.b16 %v3377, %v3373
        %v4358 = vpack.c.b16 %v3378, %v3374
        %v4359 = vpack.c.b16 %v3383, %v3379
        %v4360 = vpack.c.b16 %v3384, %v3380
        %v4361 = vpack.c.b16 %v3385, %v3381
        %v4362 = vpack.c.b16 %v3386, %v3382
        %v4363 = vpack.c.b16 %v3391, %v3387
        %v4364 = vpack.c.b16 %v3392, %v3388
        %v4365 = vpack.c.b16 %v3393, %v3389
        %v4366 = vpack.c.b16 %v3394, %v3390
        %v4367 = vpack.c.b16 %v3399, %v3395
        %v4368 = vpack.c.b16 %v3400, %v3396
        %v4369 = vpack.c.b16 %v3401, %v3397
        %v4370 = vpack.c.b16 %v3402, %v3398
        %v4371 = vpack.c.b16 %v3407, %v3403
        %v4372 = vpack.c.b16 %v3408, %v3404
        %v4373 = vpack.c.b16 %v3409, %v3405
        %v4374 = vpack.c.b16 %v3410, %v3406
        %v4375 = vpack.c.b16 %v3415, %v3411
        %v4376 = vpack.c.b16 %v3416, %v3412
        %v4377 = vpack.c.b16 %v3417, %v3413
        %v4378 = vpack.c.b16 %v3418, %v3414
        %v4379 = vpack.c.b16 %v3423, %v3419
        %v4380 = vpack.c.b16 %v3424, %v3420
        %v4381 = vpack.c.b16 %v3425, %v3421
        %v4382 = vpack.c.b16 %v3426, %v3422
        %v4383 = vpack.c.b16 %v3431, %v3427
        %v4384 = vpack.c.b16 %v3432, %v3428
        %v4385 = vpack.c.b16 %v3433, %v3429
        %v4386 = vpack.c.b16 %v3434, %v3430
        %v4387 = vpack.c.b16 %v3439, %v3435
        %v4388 = vpack.c.b16 %v3440, %v3436
        %v4389 = vpack.c.b16 %v3441, %v3437
        %v4390 = vpack.c.b16 %v3442, %v3438
        %v4391 = vpack.c.b16 %v3447, %v3443
        %v4392 = vpack.c.b16 %v3448, %v3444
        %v4393 = vpack.c.b16 %v3449, %v3445
        %v4394 = vpack.c.b16 %v3450, %v3446
        %v4395 = vpack.c.b16 %v3455, %v3451
        %v4396 = vpack.c.b16 %v3456, %v3452
        %v4397 = vpack.c.b16 %v3457, %v3453
        %v4398 = vpack.c.b16 %v3458, %v3454
        %v4399 = vpack.c.b16 %v3463, %v3459
        %v4400 = vpack.c.b16 %v3464, %v3460
        %v4401 = vpack.c.b16 %v3465, %v3461
        %v4402 = vpack.c.b16 %v3466, %v3462
        %v4403 = vpack.c.b16 %v3471, %v3467
        %v4404 = vpack.c.b16 %v3472, %v3468
        %v4405 = vpack.c.b16 %v3473, %v3469
        %v4406 = vpack.c.b16 %v3474, %v3470
        %v4407 = vpack.c.b16 %v3479, %v3475
        %v4408 = vpack.c.b16 %v3480, %v3476
        %v4409 = vpack.c.b16 %v3481, %v3477
        %v4410 = vpack.c.b16 %v3482, %v3478
        %v4411 = vpack.c.b16 %v3487, %v3483
        %v4412 = vpack.c.b16 %v3488, %v3484
        %v4413 = vpack.c.b16 %v3489, %v3485
        %v4414 = vpack.c.b16 %v3490, %v3486
        %v4415 = vpack.c.b16 %v3495, %v3491
        %v4416 = vpack.c.b16 %v3496, %v3492
        %v4417 = vpack.c.b16 %v3497, %v3493
        %v4418 = vpack.c.b16 %v3498, %v3494
        %v4419 = vpack.c.b16 %v3503, %v3499
        %v4420 = vpack.c.b16 %v3504, %v3500
        %v4421 = vpack.c.b16 %v3505, %v3501
        %v4422 = vpack.c.b16 %v3506, %v3502
        %v4423 = vpack.c.b16 %v3511, %v3507
        %v4424 = vpack.c.b16 %v3512, %v3508
        %v4425 = vpack.c.b16 %v3513, %v3509
        %v4426 = vpack.c.b16 %v3514, %v3510
        %v4427 = vpack.c.b16 %v3519, %v3515
        %v4428 = vpack.c.b16 %v3520, %v3516
        %v4429 = vpack.c.b16 %v3521, %v3517
        %v4430 = vpack.c.b16 %v3522, %v3518
        %v4431 = vpack.c.b16 %v3527, %v3523
        %v4432 = vpack.c.b16 %v3528, %v3524
        %v4433 = vpack.c.b16 %v3529, %v3525
        %v4434 = vpack.c.b16 %v3530, %v3526
        %v4435 = vpack.c.b16 %v3535, %v3531
        %v4436 = vpack.c.b16 %v3536, %v3532
        %v4437 = vpack.c.b16 %v3537, %v3533
        %v4438 = vpack.c.b16 %v3538, %v3534
        %v4439 = vpack.c.b16 %v3543, %v3539
        %v4440 = vpack.c.b16 %v3544, %v3540
        %v4441 = vpack.c.b16 %v3545, %v3541
        %v4442 = vpack.c.b16 %v3546, %v3542
        %v4443 = vpack.c.b16 %v3551, %v3547
        %v4444 = vpack.c.b16 %v3552, %v3548
        %v4445 = vpack.c.b16 %v3553, %v3549
        %v4446 = vpack.c.b16 %v3554, %v3550
        %v4447 = vpack.c.b16 %v3559, %v3555
        %v4448 = vpack.c.b16 %v3560, %v3556
        %v4449 = vpack.c.b16 %v3561, %v3557
        %v4450 = vpack.c.b16 %v3562, %v3558
        %v4451 = vpack.c.b16 %v3567, %v3563
        %v4452 = vpack.c.b16 %v3568, %v3564
        %v4453 = vpack.c.b16 %v3569, %v3565
        %v4454 = vpack.c.b16 %v3570, %v3566
        %v4455 = vpack.c.b16 %v3575, %v3571
        %v4456 = vpack.c.b16 %v3576, %v3572
        %v4457 = vpack.c.b16 %v3577, %v3573
        %v4458 = vpack.c.b16 %v3578, %v3574
        %v4459 = vpack.c.b16 %v3583, %v3579
        %v4460 = vpack.c.b16 %v3584, %v3580
        %v4461 = vpack.c.b16 %v3585, %v3581
        %v4462 = vpack.c.b16 %v3586, %v3582
        %v4463 = vpack.c.b16 %v3591, %v3587
        %v4464 = vpack.c.b16 %v3592, %v3588
        %v4465 = vpack.c.b16 %v3593, %v3589
        %v4466 = vpack.c.b16 %v3594, %v3590
        %v4467 = vpack.c.b16 %v3599, %v3595
        %v4468 = vpack.c.b16 %v3600, %v3596
        %v4469 = vpack.c.b16 %v3601, %v3597
        %v4470 = vpack.c.b16 %v3602, %v3598
        %v4471 = vpack.c.b16 %v3607, %v3603
        %v4472 = vpack.c.b16 %v3608, %v3604
        %v4473 = vpack.c.b16 %v3609, %v3605
        %v4474 = vpack.c.b16 %v3610, %v3606
        %v4475 = vpack.c.b16 %v3615, %v3611
        %v4476 = vpack.c.b16 %v3616, %v3612
        %v4477 = vpack.c.b16 %v3617, %v3613
        %v4478 = vpack.c.b16 %v3618, %v3614
        %v4479 = vpack.c.b16 %v3623, %v3619
        %v4480 = vpack.c.b16 %v3624, %v3620
        %v4481 = vpack.c.b16 %v3625, %v3621
        %v4482 = vpack.c.b16 %v3626, %v3622
        %v4483 = vpack.c.b16 %v3631, %v3627
        %v4484 = vpack.c.b16 %v3632, %v3628
        %v4485 = vpack.c.b16 %v3633, %v3629
        %v4486 = vpack.c.b16 %v3634, %v3630
        %v4487 = vpack.c.b16 %v3639, %v3635
        %v4488 = vpack.c.b16 %v3640, %v3636
        %v4489 = vpack.c.b16 %v3641, %v3637
        %v4490 = vpack.c.b16 %v3642, %v3638
        %v4491 = vpack.c.b16 %v3647, %v3643
        %v4492 = vpack.c.b16 %v3648, %v3644
        %v4493 = vpack.c.b16 %v3649, %v3645
        %v4494 = vpack.c.b16 %v3650, %v3646
        %v4495 = vpack.c.b16 %v3655, %v3651
        %v4496 = vpack.c.b16 %v3656, %v3652
        %v4497 = vpack.c.b16 %v3657, %v3653
        %v4498 = vpack.c.b16 %v3658, %v3654
        %v4499 = vpack.c.b16 %v3663, %v3659
        %v4500 = vpack.c.b16 %v3664, %v3660
        %v4501 = vpack.c.b16 %v3665, %v3661
        %v4502 = vpack.c.b16 %v3666, %v3662
        %v4503 = vpack.c.b16 %v3671, %v3667
        %v4504 = vpack.c.b16 %v3672, %v3668
        %v4505 = vpack.c.b16 %v3673, %v3669
        %v4506 = vpack.c.b16 %v3674, %v3670
        %v4507 = vpack.c.b16 %v3679, %v3675
        %v4508 = vpack.c.b16 %v3680, %v3676
        %v4509 = vpack.c.b16 %v3681, %v3677
        %v4510 = vpack.c.b16 %v3682, %v3678
        %v4511 = vpack.c.b16 %v3687, %v3683
        %v4512 = vpack.c.b16 %v3688, %v3684
        %v4513 = vpack.c.b16 %v3689, %v3685
        %v4514 = vpack.c.b16 %v3690, %v3686
        %v4515 = vpack.c.b16 %v3695, %v3691
        %v4516 = vpack.c.b16 %v3696, %v3692
        %v4517 = vpack.c.b16 %v3697, %v3693
        %v4518 = vpack.c.b16 %v3698, %v3694
        %v4519 = vpack.c.b16 %v3703, %v3699
        %v4520 = vpack.c.b16 %v3704, %v3700
        %v4521 = vpack.c.b16 %v3705, %v3701
        %v4522 = vpack.c.b16 %v3706, %v3702
        %v4523 = vpack.c.b16 %v3711, %v3707
        %v4524 = vpack.c.b16 %v3712, %v3708
        %v4525 = vpack.c.b16 %v3713, %v3709
        %v4526 = vpack.c.b16 %v3714, %v3710
        %v4527 = vpack.c.b16 %v3719, %v3715
        %v4528 = vpack.c.b16 %v3720, %v3716
        %v4529 = vpack.c.b16 %v3721, %v3717
        %v4530 = vpack.c.b16 %v3722, %v3718
        %v4531 = vpack.c.b16 %v3727, %v3723
        %v4532 = vpack.c.b16 %v3728, %v3724
        %v4533 = vpack.c.b16 %v3729, %v3725
        %v4534 = vpack.c.b16 %v3730, %v3726
        %v4535 = vpack.c.b16 %v3735, %v3731
        %v4536 = vpack.c.b16 %v3736, %v3732
        %v4537 = vpack.c.b16 %v3737, %v3733
        %v4538 = vpack.c.b16 %v3738, %v3734
        %v4539 = vpack.c.b16 %v3743, %v3739
        %v4540 = vpack.c.b16 %v3744, %v3740
        %v4541 = vpack.c.b16 %v3745, %v3741
        %v4542 = vpack.c.b16 %v3746, %v3742
        %v4543 = vpack.c.b16 %v3751, %v3747
        %v4544 = vpack.c.b16 %v3752, %v3748
        %v4545 = vpack.c.b16 %v3753, %v3749
        %v4546 = vpack.c.b16 %v3754, %v3750
        %v4547 = vpack.c.b16 %v3759, %v3755
        %v4548 = vpack.c.b16 %v3760, %v3756
        %v4549 = vpack.c.b16 %v3761, %v3757
        %v4550 = vpack.c.b16 %v3762, %v3758
        %v4551 = vpack.c.b16 %v3767, %v3763
        %v4552 = vpack.c.b16 %v3768, %v3764
        %v4553 = vpack.c.b16 %v3769, %v3765
        %v4554 = vpack.c.b16 %v3770, %v3766
        %v4555 = vpack.c.b16 %v3775, %v3771
        %v4556 = vpack.c.b16 %v3776, %v3772
        %v4557 = vpack.c.b16 %v3777, %v3773
        %v4558 = vpack.c.b16 %v3778, %v3774
        %v4559 = vpack.c.b16 %v3783, %v3779
        %v4560 = vpack.c.b16 %v3784, %v3780
        %v4561 = vpack.c.b16 %v3785, %v3781
        %v4562 = vpack.c.b16 %v3786, %v3782
        %v4563 = vpack.c.b16 %v3791, %v3787
        %v4564 = vpack.c.b16 %v3792, %v3788
        %v4565 = vpack.c.b16 %v3793, %v3789
        %v4566 = vpack.c.b16 %v3794, %v3790
        %v4567 = vpack.c.b16 %v3799, %v3795
        %v4568 = vpack.c.b16 %v3800, %v3796
        %v4569 = vpack.c.b16 %v3801, %v3797
        %v4570 = vpack.c.b16 %v3802, %v3798
        %v4571 = vpack.c.b16 %v3807, %v3803
        %v4572 = vpack.c.b16 %v3808, %v3804
        %v4573 = vpack.c.b16 %v3809, %v3805
        %v4574 = vpack.c.b16 %v3810, %v3806
        %v4575 = vpack.c.b16 %v3815, %v3811
        %v4576 = vpack.c.b16 %v3816, %v3812
        %v4577 = vpack.c.b16 %v3817, %v3813
        %v4578 = vpack.c.b16 %v3818, %v3814
        %v4579 = vpack.c.b16 %v3823, %v3819
        %v4580 = vpack.c.b16 %v3824, %v3820
        %v4581 = vpack.c.b16 %v3825, %v3821
        %v4582 = vpack.c.b16 %v3826, %v3822
        %v4583 = vpack.c.b16 %v3831, %v3827
        %v4584 = vpack.c.b16 %v3832, %v3828
        %v4585 = vpack.c.b16 %v3833, %v3829
        %v4586 = vpack.c.b16 %v3834, %v3830
        %v4587 = vpack.c.b16 %v3839, %v3835
        %v4588 = vpack.c.b16 %v3840, %v3836
        %v4589 = vpack.c.b16 %v3841, %v3837
        %v4590 = vpack.c.b16 %v3842, %v3838
        %v4591 = vpack.c.b16 %v3847, %v3843
        %v4592 = vpack.c.b16 %v3848, %v3844
        %v4593 = vpack.c.b16 %v3849, %v3845
        %v4594 = vpack.c.b16 %v3850, %v3846
        %v4595 = vpack.c.b16 %v3855, %v3851
        %v4596 = vpack.c.b16 %v3856, %v3852
        %v4597 = vpack.c.b16 %v3857, %v3853
        %v4598 = vpack.c.b16 %v3858, %v3854
        %v4599 = vpack.c.b16 %v3863, %v3859
        %v4600 = vpack.c.b16 %v3864, %v3860
        %v4601 = vpack.c.b16 %v3865, %v3861
        %v4602 = vpack.c.b16 %v3866, %v3862
        %v4603 = vpack.c.b16 %v3871, %v3867
        %v4604 = vpack.c.b16 %v3872, %v3868
        %v4605 = vpack.c.b16 %v3873, %v3869
        %v4606 = vpack.c.b16 %v3874, %v3870
        %v4607 = vpack.c.b16 %v3879, %v3875
        %v4608 = vpack.c.b16 %v3880, %v3876
        %v4609 = vpack.c.b16 %v3881, %v3877
        %v4610 = vpack.c.b16 %v3882, %v3878
        %v4611 = vpack.c.b16 %v3887, %v3883
        %v4612 = vpack.c.b16 %v3888, %v3884
        %v4613 = vpack.c.b16 %v3889, %v3885
        %v4614 = vpack.c.b16 %v3890, %v3886
        %v4615 = vpack.c.b16 %v3895, %v3891
        %v4616 = vpack.c.b16 %v3896, %v3892
        %v4617 = vpack.c.b16 %v3897, %v3893
        %v4618 = vpack.c.b16 %v3898, %v3894
        %v4619 = vpack.c.b16 %v3903, %v3899
        %v4620 = vpack.c.b16 %v3904, %v3900
        %v4621 = vpack.c.b16 %v3905, %v3901
        %v4622 = vpack.c.b16 %v3906, %v3902
        %v4623 = vpack.c.b16 %v3911, %v3907
        %v4624 = vpack.c.b16 %v3912, %v3908
        %v4625 = vpack.c.b16 %v3913, %v3909
        %v4626 = vpack.c.b16 %v3914, %v3910
        %v4627 = vpack.c.b16 %v3919, %v3915
        %v4628 = vpack.c.b16 %v3920, %v3916
        %v4629 = vpack.c.b16 %v3921, %v3917
        %v4630 = vpack.c.b16 %v3922, %v3918
        %v4631 = vpack.c.b16 %v3927, %v3923
        %v4632 = vpack.c.b16 %v3928, %v3924
        %v4633 = vpack.c.b16 %v3929, %v3925
        %v4634 = vpack.c.b16 %v3930, %v3926
        %v4635 = vpack.c.b16 %v3935, %v3931
        %v4636 = vpack.c.b16 %v3936, %v3932
        %v4637 = vpack.c.b16 %v3937, %v3933
        %v4638 = vpack.c.b16 %v3938, %v3934
        %v4639 = vpack.c.b16 %v3943, %v3939
        %v4640 = vpack.c.b16 %v3944, %v3940
        %v4641 = vpack.c.b16 %v3945, %v3941
        %v4642 = vpack.c.b16 %v3946, %v3942
        %v4643 = vpack.c.b16 %v3951, %v3947
        %v4644 = vpack.c.b16 %v3952, %v3948
        %v4645 = vpack.c.b16 %v3953, %v3949
        %v4646 = vpack.c.b16 %v3954, %v3950
        %v4647 = vpack.c.b16 %v3959, %v3955
        %v4648 = vpack.c.b16 %v3960, %v3956
        %v4649 = vpack.c.b16 %v3961, %v3957
        %v4650 = vpack.c.b16 %v3962, %v3958
        %v4651 = vpack.c.b16 %v3967, %v3963
        %v4652 = vpack.c.b16 %v3968, %v3964
        %v4653 = vpack.c.b16 %v3969, %v3965
        %v4654 = vpack.c.b16 %v3970, %v3966
        %v4655 = vpack.c.b16 %v3975, %v3971
        %v4656 = vpack.c.b16 %v3976, %v3972
        %v4657 = vpack.c.b16 %v3977, %v3973
        %v4658 = vpack.c.b16 %v3978, %v3974
        %v4659 = vpack.c.b16 %v3983, %v3979
        %v4660 = vpack.c.b16 %v3984, %v3980
        %v4661 = vpack.c.b16 %v3985, %v3981
        %v4662 = vpack.c.b16 %v3986, %v3982
        %v4663 = vpack.c.b16 %v3991, %v3987
        %v4664 = vpack.c.b16 %v3992, %v3988
        %v4665 = vpack.c.b16 %v3993, %v3989
        %v4666 = vpack.c.b16 %v3994, %v3990
        %v4667 = vpack.c.b16 %v3999, %v3995
        %v4668 = vpack.c.b16 %v4000, %v3996
        %v4669 = vpack.c.b16 %v4001, %v3997
        %v4670 = vpack.c.b16 %v4002, %v3998
        %v4671 = vpack.c.b16 %v4007, %v4003
        %v4672 = vpack.c.b16 %v4008, %v4004
        %v4673 = vpack.c.b16 %v4009, %v4005
        %v4674 = vpack.c.b16 %v4010, %v4006
        %v4675 = vpack.c.b16 %v4015, %v4011
        %v4676 = vpack.c.b16 %v4016, %v4012
        %v4677 = vpack.c.b16 %v4017, %v4013
        %v4678 = vpack.c.b16 %v4018, %v4014
        %v4679 = vpack.c.b16 %v4023, %v4019
        %v4680 = vpack.c.b16 %v4024, %v4020
        %v4681 = vpack.c.b16 %v4025, %v4021
        %v4682 = vpack.c.b16 %v4026, %v4022
        %v4683 = vpack.c.b16 %v4031, %v4027
        %v4684 = vpack.c.b16 %v4032, %v4028
        %v4685 = vpack.c.b16 %v4033, %v4029
        %v4686 = vpack.c.b16 %v4034, %v4030
        %v4687 = vpack.c.b16 %v4039, %v4035
        %v4688 = vpack.c.b16 %v4040, %v4036
        %v4689 = vpack.c.b16 %v4041, %v4037
        %v4690 = vpack.c.b16 %v4042, %v4038
        %v4691 = vpack.c.b16 %v4047, %v4043
        %v4692 = vpack.c.b16 %v4048, %v4044
        %v4693 = vpack.c.b16 %v4049, %v4045
        %v4694 = vpack.c.b16 %v4050, %v4046
        %v4695 = vpack.c.b16 %v4055, %v4051
        %v4696 = vpack.c.b16 %v4056, %v4052
        %v4697 = vpack.c.b16 %v4057, %v4053
        %v4698 = vpack.c.b16 %v4058, %v4054
        %v4699 = vpack.c.b16 %v4063, %v4059
        %v4700 = vpack.c.b16 %v4064, %v4060
        %v4701 = vpack.c.b16 %v4065, %v4061
        %v4702 = vpack.c.b16 %v4066, %v4062
        %v4703 = vpack.c.b16 %v4071, %v4067
        %v4704 = vpack.c.b16 %v4072, %v4068
        %v4705 = vpack.c.b16 %v4073, %v4069
        %v4706 = vpack.c.b16 %v4074, %v4070
        %v4707 = vpack.c.b16 %v4079, %v4075
        %v4708 = vpack.c.b16 %v4080, %v4076
        %v4709 = vpack.c.b16 %v4081, %v4077
        %v4710 = vpack.c.b16 %v4082, %v4078
        %v4711 = vpack.c.b16 %v4087, %v4083
        %v4712 = vpack.c.b16 %v4088, %v4084
        %v4713 = vpack.c.b16 %v4089, %v4085
        %v4714 = vpack.c.b16 %v4090, %v4086
        %v4715 = vpack.c.b16 %v4095, %v4091
        %v4716 = vpack.c.b16 %v4096, %v4092
        %v4717 = vpack.c.b16 %v4097, %v4093
        %v4718 = vpack.c.b16 %v4098, %v4094
        %v4719 = vpack.c.b16 %v4103, %v4099
        %v4720 = vpack.c.b16 %v4104, %v4100
        %v4721 = vpack.c.b16 %v4105, %v4101
        %v4722 = vpack.c.b16 %v4106, %v4102
        %v4723 = vpack.c.b16 %v4111, %v4107
        %v4724 = vpack.c.b16 %v4112, %v4108
        %v4725 = vpack.c.b16 %v4113, %v4109
        %v4726 = vpack.c.b16 %v4114, %v4110
        %v4727 = vpack.c.b16 %v4119, %v4115
        %v4728 = vpack.c.b16 %v4120, %v4116
        %v4729 = vpack.c.b16 %v4121, %v4117
        %v4730 = vpack.c.b16 %v4122, %v4118
        %v4731 = vpack.c.b16 %v4127, %v4123
        %v4732 = vpack.c.b16 %v4128, %v4124
        %v4733 = vpack.c.b16 %v4129, %v4125
        %v4734 = vpack.c.b16 %v4130, %v4126
        %v4735 = vpack.c.b16 %v4135, %v4131
        %v4736 = vpack.c.b16 %v4136, %v4132
        %v4737 = vpack.c.b16 %v4137, %v4133
        %v4738 = vpack.c.b16 %v4138, %v4134
        %v4739 = vpack.c.b16 %v4143, %v4139
        %v4740 = vpack.c.b16 %v4144, %v4140
        %v4741 = vpack.c.b16 %v4145, %v4141
        %v4742 = vpack.c.b16 %v4146, %v4142
        %v4743 = vpack.c.b16 %v4151, %v4147
        %v4744 = vpack.c.b16 %v4152, %v4148
        %v4745 = vpack.c.b16 %v4153, %v4149
        %v4746 = vpack.c.b16 %v4154, %v4150
        %v4747 = vpack.c.b16 %v4159, %v4155
        %v4748 = vpack.c.b16 %v4160, %v4156
        %v4749 = vpack.c.b16 %v4161, %v4157
        %v4750 = vpack.c.b16 %v4162, %v4158
        %v4751 = vpack.c.b16 %v4167, %v4163
        %v4752 = vpack.c.b16 %v4168, %v4164
        %v4753 = vpack.c.b16 %v4169, %v4165
        %v4754 = vpack.c.b16 %v4170, %v4166
        %v4755 = vpack.c.b16 %v4175, %v4171
        %v4756 = vpack.c.b16 %v4176, %v4172
        %v4757 = vpack.c.b16 %v4177, %v4173
        %v4758 = vpack.c.b16 %v4178, %v4174
        %v4759 = vpack.c.b16 %v4183, %v4179
        %v4760 = vpack.c.b16 %v4184, %v4180
        %v4761 = vpack.c.b16 %v4185, %v4181
        %v4762 = vpack.c.b16 %v4186, %v4182
        %5339 = vmatprep.subr.bf16.mxu0 %v4188
        %5340 = vmatpush1.bf16.msra.mxu0 %v4187
        %5341 = vmatprep.subr.bf16.mxu0 %v4192
        %5342 = vmatpush1.bf16.msra.mxu0 %v4191
        %5343 = vmatprep.subr.bf16.mxu0 %v4196
        %5344 = vmatpush1.bf16.msra.mxu0 %v4195
        %5345 = vmatprep.subr.bf16.mxu0 %v4200
        %5346 = vmatpush1.bf16.msra.mxu0 %v4199
        %5347 = vmatprep.subr.bf16.mxu0 %v4204
        %5348 = vmatpush1.bf16.msra.mxu0 %v4203
        %5349 = vmatprep.subr.bf16.mxu0 %v4208
        %5350 = vmatpush1.bf16.msra.mxu0 %v4207
        %5351 = vmatprep.subr.bf16.mxu0 %v4212
        %5352 = vmatpush1.bf16.msra.mxu0 %v4211
        %5353 = vmatprep.subr.bf16.mxu0 %v4216
        %5354 = vmatpush1.bf16.msra.mxu0 %v4215
        %5355 = vmatprep.subr.bf16.mxu0 %v4220
        %5356 = vmatpush1.bf16.msra.mxu0 %v4219
        %5357 = vmatprep.subr.bf16.mxu0 %v4224
        %5358 = vmatpush1.bf16.msra.mxu0 %v4223
        %5359 = vmatprep.subr.bf16.mxu0 %v4228
        %5360 = vmatpush1.bf16.msra.mxu0 %v4227
        %5361 = vmatprep.subr.bf16.mxu0 %v4232
        %5362 = vmatpush1.bf16.msra.mxu0 %v4231
        %5363 = vmatprep.subr.bf16.mxu0 %v4236
        %5364 = vmatpush1.bf16.msra.mxu0 %v4235
        %5365 = vmatprep.subr.bf16.mxu0 %v4240
        %5366 = vmatpush1.bf16.msra.mxu0 %v4239
        %5367 = vmatprep.subr.bf16.mxu0 %v4244
        %5368 = vmatpush1.bf16.msra.mxu0 %v4243
        %5369 = vmatprep.subr.bf16.mxu0 %v4248
        %5370 = vmatpush1.bf16.msra.mxu0 %v4247
        %5371 = vmatprep.mubr.bf16.mxu0 %v1104
        %5372 = vmatmul.mubr.bf16.gmra.mrb[0].mxu0 %v1103
        %v5373 = vpop.f32.mrb[0].mxu0
        %v5374 = vadd.f32 %v2442, %v5373
        %v5375 = vpop.f32.mrb[0].mxu0
        %v5376 = vadd.f32 %v2446, %v5375
        %v5377 = vpop.f32.mrb[0].mxu0
        %v5378 = vadd.f32 %v2442, %v5377
        %v5379 = vpop.f32.mrb[0].mxu0
        %v5380 = vadd.f32 %v2446, %v5379
        %5381 = vmatprep.mubr.bf16.mxu0 %v1108
        %5382 = vmatmul.mubr.bf16.gmra.mrb[0].mxu0 %v1107
        %v5383 = vpop.f32.mrb[0].mxu0
        %v5384 = vadd.f32 %v2442, %v5383
        %v5385 = vpop.f32.mrb[0].mxu0
        %v5386 = vadd.f32 %v2446, %v5385
        %v5387 = vpop.f32.mrb[0].mxu0
        %v5388 = vadd.f32 %v2442, %v5387
        %v5389 = vpop.f32.mrb[0].mxu0
        %v5390 = vadd.f32 %v2446, %v5389
        %5391 = vmatprep.mubr.bf16.mxu0 %v1112
        %5392 = vmatmul.mubr.bf16.gmra.mrb[0].mxu0 %v1111
        %v5393 = vpop.f32.mrb[0].mxu0
        %v5394 = vadd.f32 %v2442, %v5393
        %v5395 = vpop.f32.mrb[0].mxu0
        %v5396 = vadd.f32 %v2446, %v5395
        %v5397 = vpop.f32.mrb[0].mxu0
        %v5398 = vadd.f32 %v2442, %v5397
        %v5399 = vpop.f32.mrb[0].mxu0
        %v5400 = vadd.f32 %v2446, %v5399
        %5401 = vmatprep.mubr.bf16.mxu0 %v1116
        %5402 = vmatmul.mubr.bf16.gmra.mrb[0].mxu0 %v1115
        %v5403 = vpop.f32.mrb[0].mxu0
        %v5404 = vadd.f32 %v2442, %v5403
        %v5405 = vpop.f32.mrb[0].mxu0
        %v5406 = vadd.f32 %v2446, %v5405
        %v5407 = vpop.f32.mrb[0].mxu0
        %v5408 = vadd.f32 %v2442, %v5407
        %v5409 = vpop.f32.mrb[0].mxu0
        %v5410 = vadd.f32 %v2446, %v5409
        %5411 = vmatprep.mubr.bf16.mxu0 %v1120
        %5412 = vmatmul.mubr.bf16.gmra.mrb[0].mxu0 %v1119
        %v5413 = vpop.f32.mrb[0].mxu0
        %v5414 = vadd.f32 %v2442, %v5413
        %v5415 = vpop.f32.mrb[0].mxu0
        %v5416 = vadd.f32 %v2446, %v5415
        %v5417 = vpop.f32.mrb[0].mxu0
        %v5418 = vadd.f32 %v2442, %v5417
        %v5419 = vpop.f32.mrb[0].mxu0
        %v5420 = vadd.f32 %v2446, %v5419
        %5421 = vmatprep.mubr.bf16.mxu0 %v1124
        %5422 = vmatmul.mubr.bf16.gmra.mrb[0].mxu0 %v1123
        %v5423 = vpop.f32.mrb[0].mxu0
        %v5424 = vadd.f32 %v2442, %v5423
        %v5425 = vpop.f32.mrb[0].mxu0
        %v5426 = vadd.f32 %v2446, %v5425
        %v5427 = vpop.f32.mrb[0].mxu0
        %v5428 = vadd.f32 %v2442, %v5427
        %v5429 = vpop.f32.mrb[0].mxu0
        %v5430 = vadd.f32 %v2446, %v5429
        %5431 = vmatprep.mubr.bf16.mxu0 %v1128
        %5432 = vmatmul.mubr.bf16.gmra.mrb[0].mxu0 %v1127
        %v5433 = vpop.f32.mrb[0].mxu0
        %v5434 = vadd.f32 %v2442, %v5433
        %v5435 = vpop.f32.mrb[0].mxu0
        %v5436 = vadd.f32 %v2446, %v5435
        %v5437 = vpop.f32.mrb[0].mxu0
        %v5438 = vadd.f32 %v2442, %v5437
        %v5439 = vpop.f32.mrb[0].mxu0
        %v5440 = vadd.f32 %v2446, %v5439
        %5441 = vmatprep.mubr.bf16.mxu0 %v1132
        %5442 = vmatmul.mubr.bf16.gmra.mrb[0].mxu0 %v1131
        %v5443 = vpop.f32.mrb[0].mxu0
        %v5444 = vadd.f32 %v2442, %v5443
        %v5445 = vpop.f32.mrb[0].mxu0
        %v5446 = vadd.f32 %v2446, %v5445
        %v5447 = vpop.f32.mrb[0].mxu0
        %v5448 = vadd.f32 %v2442, %v5447
        %v5449 = vpop.f32.mrb[0].mxu0
        %v5450 = vadd.f32 %v2446, %v5449
        %5451 = vmatprep.mubr.bf16.mxu0 %v1136
        %5452 = vmatmul.mubr.bf16.gmra.mrb[0].mxu0 %v1135
        %v5453 = vpop.f32.mrb[0].mxu0
        %v5454 = vadd.f32 %v2442, %v5453
        %v5455 = vpop.f32.mrb[0].mxu0
        %v5456 = vadd.f32 %v2446, %v5455
        %v5457 = vpop.f32.mrb[0].mxu0
        %v5458 = vadd.f32 %v2442, %v5457
        %v5459 = vpop.f32.mrb[0].mxu0
        %v5460 = vadd.f32 %v2446, %v5459
        %5461 = vmatprep.mubr.bf16.mxu0 %v1140
        %5462 = vmatmul.mubr.bf16.gmra.mrb[0].mxu0 %v1139
        %v5463 = vpop.f32.mrb[0].mxu0
        %v5464 = vadd.f32 %v2442, %v5463
        %v5465 = vpop.f32.mrb[0].mxu0
        %v5466 = vadd.f32 %v2446, %v5465
        %v5467 = vpop.f32.mrb[0].mxu0
        %v5468 = vadd.f32 %v2442, %v5467
        %v5469 = vpop.f32.mrb[0].mxu0
        %v5470 = vadd.f32 %v2446, %v5469
        %5471 = vmatprep.mubr.bf16.mxu0 %v1144
        %5472 = vmatmul.mubr.bf16.gmra.mrb[0].mxu0 %v1143
        %v5473 = vpop.f32.mrb[0].mxu0
        %v5474 = vadd.f32 %v2442, %v5473
        %v5475 = vpop.f32.mrb[0].mxu0
        %v5476 = vadd.f32 %v2446, %v5475
        %v5477 = vpop.f32.mrb[0].mxu0
        %v5478 = vadd.f32 %v2442, %v5477
        %v5479 = vpop.f32.mrb[0].mxu0
        %v5480 = vadd.f32 %v2446, %v5479
        %5481 = vmatprep.mubr.bf16.mxu0 %v1148
        %5482 = vmatmul.mubr.bf16.gmra.mrb[0].mxu0 %v1147
        %v5483 = vpop.f32.mrb[0].mxu0
        %v5484 = vadd.f32 %v2442, %v5483
        %v5485 = vpop.f32.mrb[0].mxu0
        %v5486 = vadd.f32 %v2446, %v5485
        %v5487 = vpop.f32.mrb[0].mxu0
        %v5488 = vadd.f32 %v2442, %v5487
        %v5489 = vpop.f32.mrb[0].mxu0
        %v5490 = vadd.f32 %v2446, %v5489
        %5491 = vmatprep.mubr.bf16.mxu0 %v1152
        %5492 = vmatmul.mubr.bf16.gmra.mrb[0].mxu0 %v1151
        %v5493 = vpop.f32.mrb[0].mxu0
        %v5494 = vadd.f32 %v2442, %v5493
        %v5495 = vpop.f32.mrb[0].mxu0
        %v5496 = vadd.f32 %v2446, %v5495
        %v5497 = vpop.f32.mrb[0].mxu0
        %v5498 = vadd.f32 %v2442, %v5497
        %v5499 = vpop.f32.mrb[0].mxu0
        %v5500 = vadd.f32 %v2446, %v5499
        %5501 = vmatprep.mubr.bf16.mxu0 %v1156
        %5502 = vmatmul.mubr.bf16.gmra.mrb[0].mxu0 %v1155
        %v5503 = vpop.f32.mrb[0].mxu0
        %v5504 = vadd.f32 %v2442, %v5503
        %v5505 = vpop.f32.mrb[0].mxu0
        %v5506 = vadd.f32 %v2446, %v5505
        %v5507 = vpop.f32.mrb[0].mxu0
        %v5508 = vadd.f32 %v2442, %v5507
        %v5509 = vpop.f32.mrb[0].mxu0
        %v5510 = vadd.f32 %v2446, %v5509
        %5511 = vmatprep.mubr.bf16.mxu0 %v1160
        %5512 = vmatmul.mubr.bf16.gmra.mrb[0].mxu0 %v1159
        %v5513 = vpop.f32.mrb[0].mxu0
        %v5514 = vadd.f32 %v2442, %v5513
        %v5515 = vpop.f32.mrb[0].mxu0
        %v5516 = vadd.f32 %v2446, %v5515
        %v5517 = vpop.f32.mrb[0].mxu0
        %v5518 = vadd.f32 %v2442, %v5517
        %v5519 = vpop.f32.mrb[0].mxu0
        %v5520 = vadd.f32 %v2446, %v5519
        %5521 = vmatprep.mubr.bf16.mxu0 %v1164
        %5522 = vmatmul.mubr.bf16.gmra.mrb[0].mxu0 %v1163
        %v5523 = vpop.f32.mrb[0].mxu0
        %v5524 = vadd.f32 %v2442, %v5523
        %v5525 = vpop.f32.mrb[0].mxu0
        %v5526 = vadd.f32 %v2446, %v5525
        %v5527 = vpop.f32.mrb[0].mxu0
        %v5528 = vadd.f32 %v2442, %v5527
        %v5529 = vpop.f32.mrb[0].mxu0
        %v5530 = vadd.f32 %v2446, %v5529
        %5531 = vdwg.mxu0
        %5532 = vmatprep.subr.bf16.mxu0 %v4252
        %5533 = vmatpush1.bf16.msra.mxu0 %v4251
        %5534 = vmatprep.subr.bf16.mxu0 %v4256
        %5535 = vmatpush1.bf16.msra.mxu0 %v4255
        %5536 = vmatprep.subr.bf16.mxu0 %v4260
        %5537 = vmatpush1.bf16.msra.mxu0 %v4259
        %5538 = vmatprep.subr.bf16.mxu0 %v4264
        %5539 = vmatpush1.bf16.msra.mxu0 %v4263
        %5540 = vmatprep.subr.bf16.mxu0 %v4268
        %5541 = vmatpush1.bf16.msra.mxu0 %v4267
        %5542 = vmatprep.subr.bf16.mxu0 %v4272
        %5543 = vmatpush1.bf16.msra.mxu0 %v4271
        %5544 = vmatprep.subr.bf16.mxu0 %v4276
        %5545 = vmatpush1.bf16.msra.mxu0 %v4275
        %5546 = vmatprep.subr.bf16.mxu0 %v4280
        %5547 = vmatpush1.bf16.msra.mxu0 %v4279
        %5548 = vmatprep.subr.bf16.mxu0 %v4284
        %5549 = vmatpush1.bf16.msra.mxu0 %v4283
        %5550 = vmatprep.subr.bf16.mxu0 %v4288
        %5551 = vmatpush1.bf16.msra.mxu0 %v4287
        %5552 = vmatprep.subr.bf16.mxu0 %v4292
        %5553 = vmatpush1.bf16.msra.mxu0 %v4291
        %5554 = vmatprep.subr.bf16.mxu0 %v4296
        %5555 = vmatpush1.bf16.msra.mxu0 %v4295
        %5556 = vmatprep.subr.bf16.mxu0 %v4300
        %5557 = vmatpush1.bf16.msra.mxu0 %v4299
        %5558 = vmatprep.subr.bf16.mxu0 %v4304
        %5559 = vmatpush1.bf16.msra.mxu0 %v4303
        %5560 = vmatprep.subr.bf16.mxu0 %v4308
        %5561 = vmatpush1.bf16.msra.mxu0 %v4307
        %5562 = vmatprep.subr.bf16.mxu0 %v4312
        %5563 = vmatpush1.bf16.msra.mxu0 %v4311
        %5564 = vmatprep.mubr.bf16.mxu0 %v1199
        %5565 = vmatmul.mubr.bf16.gmra.mrb[0].mxu0 %v1187
        %v5566 = vpop.f32.mrb[0].mxu0
        %v5567 = vadd.f32 %v5374, %v5566
        %v5568 = vpop.f32.mrb[0].mxu0
        %v5569 = vadd.f32 %v5376, %v5568
        %v5570 = vpop.f32.mrb[0].mxu0
        %v5571 = vadd.f32 %v5378, %v5570
        %v5572 = vpop.f32.mrb[0].mxu0
        %v5573 = vadd.f32 %v5380, %v5572
        %5574 = vmatprep.mubr.bf16.mxu0 %v1223
        %5575 = vmatmul.mubr.bf16.gmra.mrb[0].mxu0 %v1211
        %v5576 = vpop.f32.mrb[0].mxu0
        %v5577 = vadd.f32 %v5384, %v5576
        %v5578 = vpop.f32.mrb[0].mxu0
        %v5579 = vadd.f32 %v5386, %v5578
        %v5580 = vpop.f32.mrb[0].mxu0
        %v5581 = vadd.f32 %v5388, %v5580
        %v5582 = vpop.f32.mrb[0].mxu0
        %v5583 = vadd.f32 %v5390, %v5582
        %5584 = vmatprep.mubr.bf16.mxu0 %v1247
        %5585 = vmatmul.mubr.bf16.gmra.mrb[0].mxu0 %v1235
        %v5586 = vpop.f32.mrb[0].mxu0
        %v5587 = vadd.f32 %v5394, %v5586
        %v5588 = vpop.f32.mrb[0].mxu0
        %v5589 = vadd.f32 %v5396, %v5588
        %v5590 = vpop.f32.mrb[0].mxu0
        %v5591 = vadd.f32 %v5398, %v5590
        %v5592 = vpop.f32.mrb[0].mxu0
        %v5593 = vadd.f32 %v5400, %v5592
        %5594 = vmatprep.mubr.bf16.mxu0 %v1271
        %5595 = vmatmul.mubr.bf16.gmra.mrb[0].mxu0 %v1259
        %v5596 = vpop.f32.mrb[0].mxu0
        %v5597 = vadd.f32 %v5404, %v5596
        %v5598 = vpop.f32.mrb[0].mxu0
        %v5599 = vadd.f32 %v5406, %v5598
        %v5600 = vpop.f32.mrb[0].mxu0
        %v5601 = vadd.f32 %v5408, %v5600
        %v5602 = vpop.f32.mrb[0].mxu0
        %v5603 = vadd.f32 %v5410, %v5602
        %5604 = vmatprep.mubr.bf16.mxu0 %v1295
        %5605 = vmatmul.mubr.bf16.gmra.mrb[0].mxu0 %v1283
        %v5606 = vpop.f32.mrb[0].mxu0
        %v5607 = vadd.f32 %v5414, %v5606
        %v5608 = vpop.f32.mrb[0].mxu0
        %v5609 = vadd.f32 %v5416, %v5608
        %v5610 = vpop.f32.mrb[0].mxu0
        %v5611 = vadd.f32 %v5418, %v5610
        %v5612 = vpop.f32.mrb[0].mxu0
        %v5613 = vadd.f32 %v5420, %v5612
        %5614 = vmatprep.mubr.bf16.mxu0 %v1319
        %5615 = vmatmul.mubr.bf16.gmra.mrb[0].mxu0 %v1307
        %v5616 = vpop.f32.mrb[0].mxu0
        %v5617 = vadd.f32 %v5424, %v5616
        %v5618 = vpop.f32.mrb[0].mxu0
        %v5619 = vadd.f32 %v5426, %v5618
        %v5620 = vpop.f32.mrb[0].mxu0
        %v5621 = vadd.f32 %v5428, %v5620
        %v5622 = vpop.f32.mrb[0].mxu0
        %v5623 = vadd.f32 %v5430, %v5622
        %5624 = vmatprep.mubr.bf16.mxu0 %v1343
        %5625 = vmatmul.mubr.bf16.gmra.mrb[0].mxu0 %v1331
        %v5626 = vpop.f32.mrb[0].mxu0
        %v5627 = vadd.f32 %v5434, %v5626
        %v5628 = vpop.f32.mrb[0].mxu0
        %v5629 = vadd.f32 %v5436, %v5628
        %v5630 = vpop.f32.mrb[0].mxu0
        %v5631 = vadd.f32 %v5438, %v5630
        %v5632 = vpop.f32.mrb[0].mxu0
        %v5633 = vadd.f32 %v5440, %v5632
        %5634 = vmatprep.mubr.bf16.mxu0 %v1367
        %5635 = vmatmul.mubr.bf16.gmra.mrb[0].mxu0 %v1355
        %v5636 = vpop.f32.mrb[0].mxu0
        %v5637 = vadd.f32 %v5444, %v5636
        %v5638 = vpop.f32.mrb[0].mxu0
        %v5639 = vadd.f32 %v5446, %v5638
        %v5640 = vpop.f32.mrb[0].mxu0
        %v5641 = vadd.f32 %v5448, %v5640
        %v5642 = vpop.f32.mrb[0].mxu0
        %v5643 = vadd.f32 %v5450, %v5642
        %5644 = vmatprep.mubr.bf16.mxu0 %v1391
        %5645 = vmatmul.mubr.bf16.gmra.mrb[0].mxu0 %v1379
        %v5646 = vpop.f32.mrb[0].mxu0
        %v5647 = vadd.f32 %v5454, %v5646
        %v5648 = vpop.f32.mrb[0].mxu0
        %v5649 = vadd.f32 %v5456, %v5648
        %v5650 = vpop.f32.mrb[0].mxu0
        %v5651 = vadd.f32 %v5458, %v5650
        %v5652 = vpop.f32.mrb[0].mxu0
        %v5653 = vadd.f32 %v5460, %v5652
        %5654 = vmatprep.mubr.bf16.mxu0 %v1415
        %5655 = vmatmul.mubr.bf16.gmra.mrb[0].mxu0 %v1403
        %v5656 = vpop.f32.mrb[0].mxu0
        %v5657 = vadd.f32 %v5464, %v5656
        %v5658 = vpop.f32.mrb[0].mxu0
        %v5659 = vadd.f32 %v5466, %v5658
        %v5660 = vpop.f32.mrb[0].mxu0
        %v5661 = vadd.f32 %v5468, %v5660
        %v5662 = vpop.f32.mrb[0].mxu0
        %v5663 = vadd.f32 %v5470, %v5662
        %5664 = vmatprep.mubr.bf16.mxu0 %v1439
        %5665 = vmatmul.mubr.bf16.gmra.mrb[0].mxu0 %v1427
        %v5666 = vpop.f32.mrb[0].mxu0
        %v5667 = vadd.f32 %v5474, %v5666
        %v5668 = vpop.f32.mrb[0].mxu0
        %v5669 = vadd.f32 %v5476, %v5668
        %v5670 = vpop.f32.mrb[0].mxu0
        %v5671 = vadd.f32 %v5478, %v5670
        %v5672 = vpop.f32.mrb[0].mxu0
        %v5673 = vadd.f32 %v5480, %v5672
        %5674 = vmatprep.mubr.bf16.mxu0 %v1463
        %5675 = vmatmul.mubr.bf16.gmra.mrb[0].mxu0 %v1451
        %v5676 = vpop.f32.mrb[0].mxu0
        %v5677 = vadd.f32 %v5484, %v5676
        %v5678 = vpop.f32.mrb[0].mxu0
        %v5679 = vadd.f32 %v5486, %v5678
        %v5680 = vpop.f32.mrb[0].mxu0
        %v5681 = vadd.f32 %v5488, %v5680
        %v5682 = vpop.f32.mrb[0].mxu0
        %v5683 = vadd.f32 %v5490, %v5682
        %5684 = vmatprep.mubr.bf16.mxu0 %v1487
        %5685 = vmatmul.mubr.bf16.gmra.mrb[0].mxu0 %v1475
        %v5686 = vpop.f32.mrb[0].mxu0
        %v5687 = vadd.f32 %v5494, %v5686
        %v5688 = vpop.f32.mrb[0].mxu0
        %v5689 = vadd.f32 %v5496, %v5688
        %v5690 = vpop.f32.mrb[0].mxu0
        %v5691 = vadd.f32 %v5498, %v5690
        %v5692 = vpop.f32.mrb[0].mxu0
        %v5693 = vadd.f32 %v5500, %v5692
        %5694 = vmatprep.mubr.bf16.mxu0 %v1511
        %5695 = vmatmul.mubr.bf16.gmra.mrb[0].mxu0 %v1499
        %v5696 = vpop.f32.mrb[0].mxu0
        %v5697 = vadd.f32 %v5504, %v5696
        %v5698 = vpop.f32.mrb[0].mxu0
        %v5699 = vadd.f32 %v5506, %v5698
        %v5700 = vpop.f32.mrb[0].mxu0
        %v5701 = vadd.f32 %v5508, %v5700
        %v5702 = vpop.f32.mrb[0].mxu0
        %v5703 = vadd.f32 %v5510, %v5702
        %5704 = vmatprep.mubr.bf16.mxu0 %v1535
        %5705 = vmatmul.mubr.bf16.gmra.mrb[0].mxu0 %v1523
        %v5706 = vpop.f32.mrb[0].mxu0
        %v5707 = vadd.f32 %v5514, %v5706
        %v5708 = vpop.f32.mrb[0].mxu0
        %v5709 = vadd.f32 %v5516, %v5708
        %v5710 = vpop.f32.mrb[0].mxu0
        %v5711 = vadd.f32 %v5518, %v5710
        %v5712 = vpop.f32.mrb[0].mxu0
        %v5713 = vadd.f32 %v5520, %v5712
        %5714 = vmatprep.mubr.bf16.mxu0 %v1559
        %5715 = vmatmul.mubr.bf16.gmra.mrb[0].mxu0 %v1547
        %v5716 = vpop.f32.mrb[0].mxu0
        %v5717 = vadd.f32 %v5524, %v5716
        %v5718 = vpop.f32.mrb[0].mxu0
        %v5719 = vadd.f32 %v5526, %v5718
        %v5720 = vpop.f32.mrb[0].mxu0
        %v5721 = vadd.f32 %v5528, %v5720
        %v5722 = vpop.f32.mrb[0].mxu0
        %v5723 = vadd.f32 %v5530, %v5722
        %5724 = vdwg.mxu0
        %5725 = vmatprep.subr.bf16.mxu0 %v4316
        %5726 = vmatpush1.bf16.msra.mxu0 %v4315
        %5727 = vmatprep.subr.bf16.mxu0 %v4320
        %5728 = vmatpush1.bf16.msra.mxu0 %v4319
        %5729 = vmatprep.subr.bf16.mxu0 %v4324
        %5730 = vmatpush1.bf16.msra.mxu0 %v4323
        %5731 = vmatprep.subr.bf16.mxu0 %v4328
        %5732 = vmatpush1.bf16.msra.mxu0 %v4327
        %5733 = vmatprep.subr.bf16.mxu0 %v4332
        %5734 = vmatpush1.bf16.msra.mxu0 %v4331
        %5735 = vmatprep.subr.bf16.mxu0 %v4336
        %5736 = vmatpush1.bf16.msra.mxu0 %v4335
        %5737 = vmatprep.subr.bf16.mxu0 %v4340
        %5738 = vmatpush1.bf16.msra.mxu0 %v4339
        %5739 = vmatprep.subr.bf16.mxu0 %v4344
        %5740 = vmatpush1.bf16.msra.mxu0 %v4343
        %5741 = vmatprep.subr.bf16.mxu0 %v4348
        %5742 = vmatpush1.bf16.msra.mxu0 %v4347
        %5743 = vmatprep.subr.bf16.mxu0 %v4352
        %5744 = vmatpush1.bf16.msra.mxu0 %v4351
        %5745 = vmatprep.subr.bf16.mxu0 %v4356
        %5746 = vmatpush1.bf16.msra.mxu0 %v4355
        %5747 = vmatprep.subr.bf16.mxu0 %v4360
        %5748 = vmatpush1.bf16.msra.mxu0 %v4359
        %5749 = vmatprep.subr.bf16.mxu0 %v4364
        %5750 = vmatpush1.bf16.msra.mxu0 %v4363
        %5751 = vmatprep.subr.bf16.mxu0 %v4368
        %5752 = vmatpush1.bf16.msra.mxu0 %v4367
        %5753 = vmatprep.subr.bf16.mxu0 %v4372
        %5754 = vmatpush1.bf16.msra.mxu0 %v4371
        %5755 = vmatprep.subr.bf16.mxu0 %v4376
        %5756 = vmatpush1.bf16.msra.mxu0 %v4375
        %5757 = vmatprep.mubr.bf16.mxu0 %v1662
        %5758 = vmatmul.mubr.bf16.gmra.mrb[0].mxu0 %v1659
        %v5759 = vpop.f32.mrb[0].mxu0
        %v5760 = vadd.f32 %v5567, %v5759
        %v5761 = vpop.f32.mrb[0].mxu0
        %v5762 = vadd.f32 %v5569, %v5761
        %v5763 = vpop.f32.mrb[0].mxu0
        %v5764 = vadd.f32 %v5571, %v5763
        %v5765 = vpop.f32.mrb[0].mxu0
        %v5766 = vadd.f32 %v5573, %v5765
        %5767 = vmatprep.mubr.bf16.mxu0 %v1668
        %5768 = vmatmul.mubr.bf16.gmra.mrb[0].mxu0 %v1665
        %v5769 = vpop.f32.mrb[0].mxu0
        %v5770 = vadd.f32 %v5577, %v5769
        %v5771 = vpop.f32.mrb[0].mxu0
        %v5772 = vadd.f32 %v5579, %v5771
        %v5773 = vpop.f32.mrb[0].mxu0
        %v5774 = vadd.f32 %v5581, %v5773
        %v5775 = vpop.f32.mrb[0].mxu0
        %v5776 = vadd.f32 %v5583, %v5775
        %5777 = vmatprep.mubr.bf16.mxu0 %v1674
        %5778 = vmatmul.mubr.bf16.gmra.mrb[0].mxu0 %v1671
        %v5779 = vpop.f32.mrb[0].mxu0
        %v5780 = vadd.f32 %v5587, %v5779
        %v5781 = vpop.f32.mrb[0].mxu0
        %v5782 = vadd.f32 %v5589, %v5781
        %v5783 = vpop.f32.mrb[0].mxu0
        %v5784 = vadd.f32 %v5591, %v5783
        %v5785 = vpop.f32.mrb[0].mxu0
        %v5786 = vadd.f32 %v5593, %v5785
        %5787 = vmatprep.mubr.bf16.mxu0 %v1680
        %5788 = vmatmul.mubr.bf16.gmra.mrb[0].mxu0 %v1677
        %v5789 = vpop.f32.mrb[0].mxu0
        %v5790 = vadd.f32 %v5597, %v5789
        %v5791 = vpop.f32.mrb[0].mxu0
        %v5792 = vadd.f32 %v5599, %v5791
        %v5793 = vpop.f32.mrb[0].mxu0
        %v5794 = vadd.f32 %v5601, %v5793
        %v5795 = vpop.f32.mrb[0].mxu0
        %v5796 = vadd.f32 %v5603, %v5795
        %5797 = vmatprep.mubr.bf16.mxu0 %v1686
        %5798 = vmatmul.mubr.bf16.gmra.mrb[0].mxu0 %v1683
        %v5799 = vpop.f32.mrb[0].mxu0
        %v5800 = vadd.f32 %v5607, %v5799
        %v5801 = vpop.f32.mrb[0].mxu0
        %v5802 = vadd.f32 %v5609, %v5801
        %v5803 = vpop.f32.mrb[0].mxu0
        %v5804 = vadd.f32 %v5611, %v5803
        %v5805 = vpop.f32.mrb[0].mxu0
        %v5806 = vadd.f32 %v5613, %v5805
        %5807 = vmatprep.mubr.bf16.mxu0 %v1692
        %5808 = vmatmul.mubr.bf16.gmra.mrb[0].mxu0 %v1689
        %v5809 = vpop.f32.mrb[0].mxu0
        %v5810 = vadd.f32 %v5617, %v5809
        %v5811 = vpop.f32.mrb[0].mxu0
        %v5812 = vadd.f32 %v5619, %v5811
        %v5813 = vpop.f32.mrb[0].mxu0
        %v5814 = vadd.f32 %v5621, %v5813
        %v5815 = vpop.f32.mrb[0].mxu0
        %v5816 = vadd.f32 %v5623, %v5815
        %5817 = vmatprep.mubr.bf16.mxu0 %v1698
        %5818 = vmatmul.mubr.bf16.gmra.mrb[0].mxu0 %v1695
        %v5819 = vpop.f32.mrb[0].mxu0
        %v5820 = vadd.f32 %v5627, %v5819
        %v5821 = vpop.f32.mrb[0].mxu0
        %v5822 = vadd.f32 %v5629, %v5821
        %v5823 = vpop.f32.mrb[0].mxu0
        %v5824 = vadd.f32 %v5631, %v5823
        %v5825 = vpop.f32.mrb[0].mxu0
        %v5826 = vadd.f32 %v5633, %v5825
        %5827 = vmatprep.mubr.bf16.mxu0 %v1704
        %5828 = vmatmul.mubr.bf16.gmra.mrb[0].mxu0 %v1701
        %v5829 = vpop.f32.mrb[0].mxu0
        %v5830 = vadd.f32 %v5637, %v5829
        %v5831 = vpop.f32.mrb[0].mxu0
        %v5832 = vadd.f32 %v5639, %v5831
        %v5833 = vpop.f32.mrb[0].mxu0
        %v5834 = vadd.f32 %v5641, %v5833
        %v5835 = vpop.f32.mrb[0].mxu0
        %v5836 = vadd.f32 %v5643, %v5835
        %5837 = vmatprep.mubr.bf16.mxu0 %v1710
        %5838 = vmatmul.mubr.bf16.gmra.mrb[0].mxu0 %v1707
        %v5839 = vpop.f32.mrb[0].mxu0
        %v5840 = vadd.f32 %v5647, %v5839
        %v5841 = vpop.f32.mrb[0].mxu0
        %v5842 = vadd.f32 %v5649, %v5841
        %v5843 = vpop.f32.mrb[0].mxu0
        %v5844 = vadd.f32 %v5651, %v5843
        %v5845 = vpop.f32.mrb[0].mxu0
        %v5846 = vadd.f32 %v5653, %v5845
        %5847 = vmatprep.mubr.bf16.mxu0 %v1716
        %5848 = vmatmul.mubr.bf16.gmra.mrb[0].mxu0 %v1713
        %v5849 = vpop.f32.mrb[0].mxu0
        %v5850 = vadd.f32 %v5657, %v5849
        %v5851 = vpop.f32.mrb[0].mxu0
        %v5852 = vadd.f32 %v5659, %v5851
        %v5853 = vpop.f32.mrb[0].mxu0
        %v5854 = vadd.f32 %v5661, %v5853
        %v5855 = vpop.f32.mrb[0].mxu0
        %v5856 = vadd.f32 %v5663, %v5855
        %5857 = vmatprep.mubr.bf16.mxu0 %v1722
        %5858 = vmatmul.mubr.bf16.gmra.mrb[0].mxu0 %v1719
        %v5859 = vpop.f32.mrb[0].mxu0
        %v5860 = vadd.f32 %v5667, %v5859
        %v5861 = vpop.f32.mrb[0].mxu0
        %v5862 = vadd.f32 %v5669, %v5861
        %v5863 = vpop.f32.mrb[0].mxu0
        %v5864 = vadd.f32 %v5671, %v5863
        %v5865 = vpop.f32.mrb[0].mxu0
        %v5866 = vadd.f32 %v5673, %v5865
        %5867 = vmatprep.mubr.bf16.mxu0 %v1728
        %5868 = vmatmul.mubr.bf16.gmra.mrb[0].mxu0 %v1725
        %v5869 = vpop.f32.mrb[0].mxu0
        %v5870 = vadd.f32 %v5677, %v5869
        %v5871 = vpop.f32.mrb[0].mxu0
        %v5872 = vadd.f32 %v5679, %v5871
        %v5873 = vpop.f32.mrb[0].mxu0
        %v5874 = vadd.f32 %v5681, %v5873
        %v5875 = vpop.f32.mrb[0].mxu0
        %v5876 = vadd.f32 %v5683, %v5875
        %5877 = vmatprep.mubr.bf16.mxu0 %v1734
        %5878 = vmatmul.mubr.bf16.gmra.mrb[0].mxu0 %v1731
        %v5879 = vpop.f32.mrb[0].mxu0
        %v5880 = vadd.f32 %v5687, %v5879
        %v5881 = vpop.f32.mrb[0].mxu0
        %v5882 = vadd.f32 %v5689, %v5881
        %v5883 = vpop.f32.mrb[0].mxu0
        %v5884 = vadd.f32 %v5691, %v5883
        %v5885 = vpop.f32.mrb[0].mxu0
        %v5886 = vadd.f32 %v5693, %v5885
        %5887 = vmatprep.mubr.bf16.mxu0 %v1740
        %5888 = vmatmul.mubr.bf16.gmra.mrb[0].mxu0 %v1737
        %v5889 = vpop.f32.mrb[0].mxu0
        %v5890 = vadd.f32 %v5697, %v5889
        %v5891 = vpop.f32.mrb[0].mxu0
        %v5892 = vadd.f32 %v5699, %v5891
        %v5893 = vpop.f32.mrb[0].mxu0
        %v5894 = vadd.f32 %v5701, %v5893
        %v5895 = vpop.f32.mrb[0].mxu0
        %v5896 = vadd.f32 %v5703, %v5895
        %5897 = vmatprep.mubr.bf16.mxu0 %v1746
        %5898 = vmatmul.mubr.bf16.gmra.mrb[0].mxu0 %v1743
        %v5899 = vpop.f32.mrb[0].mxu0
        %v5900 = vadd.f32 %v5707, %v5899
        %v5901 = vpop.f32.mrb[0].mxu0
        %v5902 = vadd.f32 %v5709, %v5901
        %v5903 = vpop.f32.mrb[0].mxu0
        %v5904 = vadd.f32 %v5711, %v5903
        %v5905 = vpop.f32.mrb[0].mxu0
        %v5906 = vadd.f32 %v5713, %v5905
        %5907 = vmatprep.mubr.bf16.mxu0 %v1752
        %5908 = vmatmul.mubr.bf16.gmra.mrb[0].mxu0 %v1749
        %v5909 = vpop.f32.mrb[0].mxu0
        %v5910 = vadd.f32 %v5717, %v5909
        %v5911 = vpop.f32.mrb[0].mxu0
        %v5912 = vadd.f32 %v5719, %v5911
        %v5913 = vpop.f32.mrb[0].mxu0
        %v5914 = vadd.f32 %v5721, %v5913
        %v5915 = vpop.f32.mrb[0].mxu0
        %v5916 = vadd.f32 %v5723, %v5915
        %5917 = vdwg.mxu0
        %5918 = vmatprep.subr.bf16.mxu0 %v4380
        %5919 = vmatpush1.bf16.msra.mxu0 %v4379
        %5920 = vmatprep.subr.bf16.mxu0 %v4384
        %5921 = vmatpush1.bf16.msra.mxu0 %v4383
        %5922 = vmatprep.subr.bf16.mxu0 %v4388
        %5923 = vmatpush1.bf16.msra.mxu0 %v4387
        %5924 = vmatprep.subr.bf16.mxu0 %v4392
        %5925 = vmatpush1.bf16.msra.mxu0 %v4391
        %5926 = vmatprep.subr.bf16.mxu0 %v4396
        %5927 = vmatpush1.bf16.msra.mxu0 %v4395
        %5928 = vmatprep.subr.bf16.mxu0 %v4400
        %5929 = vmatpush1.bf16.msra.mxu0 %v4399
        %5930 = vmatprep.subr.bf16.mxu0 %v4404
        %5931 = vmatpush1.bf16.msra.mxu0 %v4403
        %5932 = vmatprep.subr.bf16.mxu0 %v4408
        %5933 = vmatpush1.bf16.msra.mxu0 %v4407
        %5934 = vmatprep.subr.bf16.mxu0 %v4412
        %5935 = vmatpush1.bf16.msra.mxu0 %v4411
        %5936 = vmatprep.subr.bf16.mxu0 %v4416
        %5937 = vmatpush1.bf16.msra.mxu0 %v4415
        %5938 = vmatprep.subr.bf16.mxu0 %v4420
        %5939 = vmatpush1.bf16.msra.mxu0 %v4419
        %5940 = vmatprep.subr.bf16.mxu0 %v4424
        %5941 = vmatpush1.bf16.msra.mxu0 %v4423
        %5942 = vmatprep.subr.bf16.mxu0 %v4428
        %5943 = vmatpush1.bf16.msra.mxu0 %v4427
        %5944 = vmatprep.subr.bf16.mxu0 %v4432
        %5945 = vmatpush1.bf16.msra.mxu0 %v4431
        %5946 = vmatprep.subr.bf16.mxu0 %v4436
        %5947 = vmatpush1.bf16.msra.mxu0 %v4435
        %5948 = vmatprep.subr.bf16.mxu0 %v4440
        %5949 = vmatpush1.bf16.msra.mxu0 %v4439
        %5950 = vmatprep.mubr.bf16.mxu0 %v1108
        %5951 = vmatmul.mubr.bf16.gmra.mrb[0].mxu0 %v1107
        %v5952 = vpop.f32.mrb[0].mxu0
        %v5953 = vadd.f32 %v5760, %v5952
        %v5954 = vpop.f32.mrb[0].mxu0
        %v5955 = vadd.f32 %v5762, %v5954
        %v5956 = vpop.f32.mrb[0].mxu0
        %v5957 = vadd.f32 %v5764, %v5956
        %v5958 = vpop.f32.mrb[0].mxu0
        %v5959 = vadd.f32 %v5766, %v5958
        %5960 = vmatprep.mubr.bf16.mxu0 %v1112
        %5961 = vmatmul.mubr.bf16.gmra.mrb[0].mxu0 %v1111
        %v5962 = vpop.f32.mrb[0].mxu0
        %v5963 = vadd.f32 %v5770, %v5962
        %v5964 = vpop.f32.mrb[0].mxu0
        %v5965 = vadd.f32 %v5772, %v5964
        %v5966 = vpop.f32.mrb[0].mxu0
        %v5967 = vadd.f32 %v5774, %v5966
        %v5968 = vpop.f32.mrb[0].mxu0
        %v5969 = vadd.f32 %v5776, %v5968
        %5970 = vmatprep.mubr.bf16.mxu0 %v1116
        %5971 = vmatmul.mubr.bf16.gmra.mrb[0].mxu0 %v1115
        %v5972 = vpop.f32.mrb[0].mxu0
        %v5973 = vadd.f32 %v5780, %v5972
        %v5974 = vpop.f32.mrb[0].mxu0
        %v5975 = vadd.f32 %v5782, %v5974
        %v5976 = vpop.f32.mrb[0].mxu0
        %v5977 = vadd.f32 %v5784, %v5976
        %v5978 = vpop.f32.mrb[0].mxu0
        %v5979 = vadd.f32 %v5786, %v5978
        %5980 = vmatprep.mubr.bf16.mxu0 %v1120
        %5981 = vmatmul.mubr.bf16.gmra.mrb[0].mxu0 %v1119
        %v5982 = vpop.f32.mrb[0].mxu0
        %v5983 = vadd.f32 %v5790, %v5982
        %v5984 = vpop.f32.mrb[0].mxu0
        %v5985 = vadd.f32 %v5792, %v5984
        %v5986 = vpop.f32.mrb[0].mxu0
        %v5987 = vadd.f32 %v5794, %v5986
        %v5988 = vpop.f32.mrb[0].mxu0
        %v5989 = vadd.f32 %v5796, %v5988
        %5990 = vmatprep.mubr.bf16.mxu0 %v1124
        %5991 = vmatmul.mubr.bf16.gmra.mrb[0].mxu0 %v1123
        %v5992 = vpop.f32.mrb[0].mxu0
        %v5993 = vadd.f32 %v5800, %v5992
        %v5994 = vpop.f32.mrb[0].mxu0
        %v5995 = vadd.f32 %v5802, %v5994
        %v5996 = vpop.f32.mrb[0].mxu0
        %v5997 = vadd.f32 %v5804, %v5996
        %v5998 = vpop.f32.mrb[0].mxu0
        %v5999 = vadd.f32 %v5806, %v5998
        %6000 = vmatprep.mubr.bf16.mxu0 %v1128
        %6001 = vmatmul.mubr.bf16.gmra.mrb[0].mxu0 %v1127
        %v6002 = vpop.f32.mrb[0].mxu0
        %v6003 = vadd.f32 %v5810, %v6002
        %v6004 = vpop.f32.mrb[0].mxu0
        %v6005 = vadd.f32 %v5812, %v6004
        %v6006 = vpop.f32.mrb[0].mxu0
        %v6007 = vadd.f32 %v5814, %v6006
        %v6008 = vpop.f32.mrb[0].mxu0
        %v6009 = vadd.f32 %v5816, %v6008
        %6010 = vmatprep.mubr.bf16.mxu0 %v1132
        %6011 = vmatmul.mubr.bf16.gmra.mrb[0].mxu0 %v1131
        %v6012 = vpop.f32.mrb[0].mxu0
        %v6013 = vadd.f32 %v5820, %v6012
        %v6014 = vpop.f32.mrb[0].mxu0
        %v6015 = vadd.f32 %v5822, %v6014
        %v6016 = vpop.f32.mrb[0].mxu0
        %v6017 = vadd.f32 %v5824, %v6016
        %v6018 = vpop.f32.mrb[0].mxu0
        %v6019 = vadd.f32 %v5826, %v6018
        %6020 = vmatprep.mubr.bf16.mxu0 %v1136
        %6021 = vmatmul.mubr.bf16.gmra.mrb[0].mxu0 %v1135
        %v6022 = vpop.f32.mrb[0].mxu0
        %v6023 = vadd.f32 %v5830, %v6022
        %v6024 = vpop.f32.mrb[0].mxu0
        %v6025 = vadd.f32 %v5832, %v6024
        %v6026 = vpop.f32.mrb[0].mxu0
        %v6027 = vadd.f32 %v5834, %v6026
        %v6028 = vpop.f32.mrb[0].mxu0
        %v6029 = vadd.f32 %v5836, %v6028
        %6030 = vmatprep.mubr.bf16.mxu0 %v1140
        %6031 = vmatmul.mubr.bf16.gmra.mrb[0].mxu0 %v1139
        %v6032 = vpop.f32.mrb[0].mxu0
        %v6033 = vadd.f32 %v5840, %v6032
        %v6034 = vpop.f32.mrb[0].mxu0
        %v6035 = vadd.f32 %v5842, %v6034
        %v6036 = vpop.f32.mrb[0].mxu0
        %v6037 = vadd.f32 %v5844, %v6036
        %v6038 = vpop.f32.mrb[0].mxu0
        %v6039 = vadd.f32 %v5846, %v6038
        %6040 = vmatprep.mubr.bf16.mxu0 %v1144
        %6041 = vmatmul.mubr.bf16.gmra.mrb[0].mxu0 %v1143
        %v6042 = vpop.f32.mrb[0].mxu0
        %v6043 = vadd.f32 %v5850, %v6042
        %v6044 = vpop.f32.mrb[0].mxu0
        %v6045 = vadd.f32 %v5852, %v6044
        %v6046 = vpop.f32.mrb[0].mxu0
        %v6047 = vadd.f32 %v5854, %v6046
        %v6048 = vpop.f32.mrb[0].mxu0
        %v6049 = vadd.f32 %v5856, %v6048
        %6050 = vmatprep.mubr.bf16.mxu0 %v1148
        %6051 = vmatmul.mubr.bf16.gmra.mrb[0].mxu0 %v1147
        %v6052 = vpop.f32.mrb[0].mxu0
        %v6053 = vadd.f32 %v5860, %v6052
        %v6054 = vpop.f32.mrb[0].mxu0
        %v6055 = vadd.f32 %v5862, %v6054
        %v6056 = vpop.f32.mrb[0].mxu0
        %v6057 = vadd.f32 %v5864, %v6056
        %v6058 = vpop.f32.mrb[0].mxu0
        %v6059 = vadd.f32 %v5866, %v6058
        %6060 = vmatprep.mubr.bf16.mxu0 %v1152
        %6061 = vmatmul.mubr.bf16.gmra.mrb[0].mxu0 %v1151
        %v6062 = vpop.f32.mrb[0].mxu0
        %v6063 = vadd.f32 %v5870, %v6062
        %v6064 = vpop.f32.mrb[0].mxu0
        %v6065 = vadd.f32 %v5872, %v6064
        %v6066 = vpop.f32.mrb[0].mxu0
        %v6067 = vadd.f32 %v5874, %v6066
        %v6068 = vpop.f32.mrb[0].mxu0
        %v6069 = vadd.f32 %v5876, %v6068
        %6070 = vmatprep.mubr.bf16.mxu0 %v1156
        %6071 = vmatmul.mubr.bf16.gmra.mrb[0].mxu0 %v1155
        %v6072 = vpop.f32.mrb[0].mxu0
        %v6073 = vadd.f32 %v5880, %v6072
        %v6074 = vpop.f32.mrb[0].mxu0
        %v6075 = vadd.f32 %v5882, %v6074
        %v6076 = vpop.f32.mrb[0].mxu0
        %v6077 = vadd.f32 %v5884, %v6076
        %v6078 = vpop.f32.mrb[0].mxu0
        %v6079 = vadd.f32 %v5886, %v6078
        %6080 = vmatprep.mubr.bf16.mxu0 %v1160
        %6081 = vmatmul.mubr.bf16.gmra.mrb[0].mxu0 %v1159
        %v6082 = vpop.f32.mrb[0].mxu0
        %v6083 = vadd.f32 %v5890, %v6082
        %v6084 = vpop.f32.mrb[0].mxu0
        %v6085 = vadd.f32 %v5892, %v6084
        %v6086 = vpop.f32.mrb[0].mxu0
        %v6087 = vadd.f32 %v5894, %v6086
        %v6088 = vpop.f32.mrb[0].mxu0
        %v6089 = vadd.f32 %v5896, %v6088
        %6090 = vmatprep.mubr.bf16.mxu0 %v1164
        %6091 = vmatmul.mubr.bf16.gmra.mrb[0].mxu0 %v1163
        %v6092 = vpop.f32.mrb[0].mxu0
        %v6093 = vadd.f32 %v5900, %v6092
        %v6094 = vpop.f32.mrb[0].mxu0
        %v6095 = vadd.f32 %v5902, %v6094
        %v6096 = vpop.f32.mrb[0].mxu0
        %v6097 = vadd.f32 %v5904, %v6096
        %v6098 = vpop.f32.mrb[0].mxu0
        %v6099 = vadd.f32 %v5906, %v6098
        %6100 = vmatprep.mubr.bf16.mxu0 %v1168
        %6101 = vmatmul.mubr.bf16.gmra.mrb[0].mxu0 %v1167
        %v6102 = vpop.f32.mrb[0].mxu0
        %v6103 = vadd.f32 %v5910, %v6102
        %v6104 = vpop.f32.mrb[0].mxu0
        %v6105 = vadd.f32 %v5912, %v6104
        %v6106 = vpop.f32.mrb[0].mxu0
        %v6107 = vadd.f32 %v5914, %v6106
        %v6108 = vpop.f32.mrb[0].mxu0
        %v6109 = vadd.f32 %v5916, %v6108
        %6110 = vdwg.mxu0
        %6111 = vmatprep.subr.bf16.mxu0 %v4444
        %6112 = vmatpush1.bf16.msra.mxu0 %v4443
        %6113 = vmatprep.subr.bf16.mxu0 %v4448
        %6114 = vmatpush1.bf16.msra.mxu0 %v4447
        %6115 = vmatprep.subr.bf16.mxu0 %v4452
        %6116 = vmatpush1.bf16.msra.mxu0 %v4451
        %6117 = vmatprep.subr.bf16.mxu0 %v4456
        %6118 = vmatpush1.bf16.msra.mxu0 %v4455
        %6119 = vmatprep.subr.bf16.mxu0 %v4460
        %6120 = vmatpush1.bf16.msra.mxu0 %v4459
        %6121 = vmatprep.subr.bf16.mxu0 %v4464
        %6122 = vmatpush1.bf16.msra.mxu0 %v4463
        %6123 = vmatprep.subr.bf16.mxu0 %v4468
        %6124 = vmatpush1.bf16.msra.mxu0 %v4467
        %6125 = vmatprep.subr.bf16.mxu0 %v4472
        %6126 = vmatpush1.bf16.msra.mxu0 %v4471
        %6127 = vmatprep.subr.bf16.mxu0 %v4476
        %6128 = vmatpush1.bf16.msra.mxu0 %v4475
        %6129 = vmatprep.subr.bf16.mxu0 %v4480
        %6130 = vmatpush1.bf16.msra.mxu0 %v4479
        %6131 = vmatprep.subr.bf16.mxu0 %v4484
        %6132 = vmatpush1.bf16.msra.mxu0 %v4483
        %6133 = vmatprep.subr.bf16.mxu0 %v4488
        %6134 = vmatpush1.bf16.msra.mxu0 %v4487
        %6135 = vmatprep.subr.bf16.mxu0 %v4492
        %6136 = vmatpush1.bf16.msra.mxu0 %v4491
        %6137 = vmatprep.subr.bf16.mxu0 %v4496
        %6138 = vmatpush1.bf16.msra.mxu0 %v4495
        %6139 = vmatprep.subr.bf16.mxu0 %v4500
        %6140 = vmatpush1.bf16.msra.mxu0 %v4499
        %6141 = vmatprep.subr.bf16.mxu0 %v4504
        %6142 = vmatpush1.bf16.msra.mxu0 %v4503
        %6143 = vmatprep.mubr.bf16.mxu0 %v1223
        %6144 = vmatmul.mubr.bf16.gmra.mrb[0].mxu0 %v1211
        %v6145 = vpop.f32.mrb[0].mxu0
        %v6146 = vadd.f32 %v5953, %v6145
        %v6147 = vpop.f32.mrb[0].mxu0
        %v6148 = vadd.f32 %v5955, %v6147
        %v6149 = vpop.f32.mrb[0].mxu0
        %v6150 = vadd.f32 %v5957, %v6149
        %v6151 = vpop.f32.mrb[0].mxu0
        %v6152 = vadd.f32 %v5959, %v6151
        %6153 = vmatprep.mubr.bf16.mxu0 %v1247
        %6154 = vmatmul.mubr.bf16.gmra.mrb[0].mxu0 %v1235
        %v6155 = vpop.f32.mrb[0].mxu0
        %v6156 = vadd.f32 %v5963, %v6155
        %v6157 = vpop.f32.mrb[0].mxu0
        %v6158 = vadd.f32 %v5965, %v6157
        %v6159 = vpop.f32.mrb[0].mxu0
        %v6160 = vadd.f32 %v5967, %v6159
        %v6161 = vpop.f32.mrb[0].mxu0
        %v6162 = vadd.f32 %v5969, %v6161
        %6163 = vmatprep.mubr.bf16.mxu0 %v1271
        %6164 = vmatmul.mubr.bf16.gmra.mrb[0].mxu0 %v1259
        %v6165 = vpop.f32.mrb[0].mxu0
        %v6166 = vadd.f32 %v5973, %v6165
        %v6167 = vpop.f32.mrb[0].mxu0
        %v6168 = vadd.f32 %v5975, %v6167
        %v6169 = vpop.f32.mrb[0].mxu0
        %v6170 = vadd.f32 %v5977, %v6169
        %v6171 = vpop.f32.mrb[0].mxu0
        %v6172 = vadd.f32 %v5979, %v6171
        %6173 = vmatprep.mubr.bf16.mxu0 %v1295
        %6174 = vmatmul.mubr.bf16.gmra.mrb[0].mxu0 %v1283
        %v6175 = vpop.f32.mrb[0].mxu0
        %v6176 = vadd.f32 %v5983, %v6175
        %v6177 = vpop.f32.mrb[0].mxu0
        %v6178 = vadd.f32 %v5985, %v6177
        %v6179 = vpop.f32.mrb[0].mxu0
        %v6180 = vadd.f32 %v5987, %v6179
        %v6181 = vpop.f32.mrb[0].mxu0
        %v6182 = vadd.f32 %v5989, %v6181
        %6183 = vmatprep.mubr.bf16.mxu0 %v1319
        %6184 = vmatmul.mubr.bf16.gmra.mrb[0].mxu0 %v1307
        %v6185 = vpop.f32.mrb[0].mxu0
        %v6186 = vadd.f32 %v5993, %v6185
        %v6187 = vpop.f32.mrb[0].mxu0
        %v6188 = vadd.f32 %v5995, %v6187
        %v6189 = vpop.f32.mrb[0].mxu0
        %v6190 = vadd.f32 %v5997, %v6189
        %v6191 = vpop.f32.mrb[0].mxu0
        %v6192 = vadd.f32 %v5999, %v6191
        %6193 = vmatprep.mubr.bf16.mxu0 %v1343
        %6194 = vmatmul.mubr.bf16.gmra.mrb[0].mxu0 %v1331
        %v6195 = vpop.f32.mrb[0].mxu0
        %v6196 = vadd.f32 %v6003, %v6195
        %v6197 = vpop.f32.mrb[0].mxu0
        %v6198 = vadd.f32 %v6005, %v6197
        %v6199 = vpop.f32.mrb[0].mxu0
        %v6200 = vadd.f32 %v6007, %v6199
        %v6201 = vpop.f32.mrb[0].mxu0
        %v6202 = vadd.f32 %v6009, %v6201
        %6203 = vmatprep.mubr.bf16.mxu0 %v1367
        %6204 = vmatmul.mubr.bf16.gmra.mrb[0].mxu0 %v1355
        %v6205 = vpop.f32.mrb[0].mxu0
        %v6206 = vadd.f32 %v6013, %v6205
        %v6207 = vpop.f32.mrb[0].mxu0
        %v6208 = vadd.f32 %v6015, %v6207
        %v6209 = vpop.f32.mrb[0].mxu0
        %v6210 = vadd.f32 %v6017, %v6209
        %v6211 = vpop.f32.mrb[0].mxu0
        %v6212 = vadd.f32 %v6019, %v6211
        %6213 = vmatprep.mubr.bf16.mxu0 %v1391
        %6214 = vmatmul.mubr.bf16.gmra.mrb[0].mxu0 %v1379
        %v6215 = vpop.f32.mrb[0].mxu0
        %v6216 = vadd.f32 %v6023, %v6215
        %v6217 = vpop.f32.mrb[0].mxu0
        %v6218 = vadd.f32 %v6025, %v6217
        %v6219 = vpop.f32.mrb[0].mxu0
        %v6220 = vadd.f32 %v6027, %v6219
        %v6221 = vpop.f32.mrb[0].mxu0
        %v6222 = vadd.f32 %v6029, %v6221
        %6223 = vmatprep.mubr.bf16.mxu0 %v1415
        %6224 = vmatmul.mubr.bf16.gmra.mrb[0].mxu0 %v1403
        %v6225 = vpop.f32.mrb[0].mxu0
        %v6226 = vadd.f32 %v6033, %v6225
        %v6227 = vpop.f32.mrb[0].mxu0
        %v6228 = vadd.f32 %v6035, %v6227
        %v6229 = vpop.f32.mrb[0].mxu0
        %v6230 = vadd.f32 %v6037, %v6229
        %v6231 = vpop.f32.mrb[0].mxu0
        %v6232 = vadd.f32 %v6039, %v6231
        %6233 = vmatprep.mubr.bf16.mxu0 %v1439
        %6234 = vmatmul.mubr.bf16.gmra.mrb[0].mxu0 %v1427
        %v6235 = vpop.f32.mrb[0].mxu0
        %v6236 = vadd.f32 %v6043, %v6235
        %v6237 = vpop.f32.mrb[0].mxu0
        %v6238 = vadd.f32 %v6045, %v6237
        %v6239 = vpop.f32.mrb[0].mxu0
        %v6240 = vadd.f32 %v6047, %v6239
        %v6241 = vpop.f32.mrb[0].mxu0
        %v6242 = vadd.f32 %v6049, %v6241
        %6243 = vmatprep.mubr.bf16.mxu0 %v1463
        %6244 = vmatmul.mubr.bf16.gmra.mrb[0].mxu0 %v1451
        %v6245 = vpop.f32.mrb[0].mxu0
        %v6246 = vadd.f32 %v6053, %v6245
        %v6247 = vpop.f32.mrb[0].mxu0
        %v6248 = vadd.f32 %v6055, %v6247
        %v6249 = vpop.f32.mrb[0].mxu0
        %v6250 = vadd.f32 %v6057, %v6249
        %v6251 = vpop.f32.mrb[0].mxu0
        %v6252 = vadd.f32 %v6059, %v6251
        %6253 = vmatprep.mubr.bf16.mxu0 %v1487
        %6254 = vmatmul.mubr.bf16.gmra.mrb[0].mxu0 %v1475
        %v6255 = vpop.f32.mrb[0].mxu0
        %v6256 = vadd.f32 %v6063, %v6255
        %v6257 = vpop.f32.mrb[0].mxu0
        %v6258 = vadd.f32 %v6065, %v6257
        %v6259 = vpop.f32.mrb[0].mxu0
        %v6260 = vadd.f32 %v6067, %v6259
        %v6261 = vpop.f32.mrb[0].mxu0
        %v6262 = vadd.f32 %v6069, %v6261
        %6263 = vmatprep.mubr.bf16.mxu0 %v1511
        %6264 = vmatmul.mubr.bf16.gmra.mrb[0].mxu0 %v1499
        %v6265 = vpop.f32.mrb[0].mxu0
        %v6266 = vadd.f32 %v6073, %v6265
        %v6267 = vpop.f32.mrb[0].mxu0
        %v6268 = vadd.f32 %v6075, %v6267
        %v6269 = vpop.f32.mrb[0].mxu0
        %v6270 = vadd.f32 %v6077, %v6269
        %v6271 = vpop.f32.mrb[0].mxu0
        %v6272 = vadd.f32 %v6079, %v6271
        %6273 = vmatprep.mubr.bf16.mxu0 %v1535
        %6274 = vmatmul.mubr.bf16.gmra.mrb[0].mxu0 %v1523
        %v6275 = vpop.f32.mrb[0].mxu0
        %v6276 = vadd.f32 %v6083, %v6275
        %v6277 = vpop.f32.mrb[0].mxu0
        %v6278 = vadd.f32 %v6085, %v6277
        %v6279 = vpop.f32.mrb[0].mxu0
        %v6280 = vadd.f32 %v6087, %v6279
        %v6281 = vpop.f32.mrb[0].mxu0
        %v6282 = vadd.f32 %v6089, %v6281
        %6283 = vmatprep.mubr.bf16.mxu0 %v1559
        %6284 = vmatmul.mubr.bf16.gmra.mrb[0].mxu0 %v1547
        %v6285 = vpop.f32.mrb[0].mxu0
        %v6286 = vadd.f32 %v6093, %v6285
        %v6287 = vpop.f32.mrb[0].mxu0
        %v6288 = vadd.f32 %v6095, %v6287
        %v6289 = vpop.f32.mrb[0].mxu0
        %v6290 = vadd.f32 %v6097, %v6289
        %v6291 = vpop.f32.mrb[0].mxu0
        %v6292 = vadd.f32 %v6099, %v6291
        %6293 = vmatprep.mubr.bf16.mxu0 %v1808
        %6294 = vmatmul.mubr.bf16.gmra.mrb[0].mxu0 %v1796
        %v6295 = vpop.f32.mrb[0].mxu0
        %v6296 = vadd.f32 %v6103, %v6295
        %v6297 = vpop.f32.mrb[0].mxu0
        %v6298 = vadd.f32 %v6105, %v6297
        %v6299 = vpop.f32.mrb[0].mxu0
        %v6300 = vadd.f32 %v6107, %v6299
        %v6301 = vpop.f32.mrb[0].mxu0
        %v6302 = vadd.f32 %v6109, %v6301
        %6303 = vdwg.mxu0
        %6304 = vmatprep.subr.bf16.mxu0 %v4508
        %6305 = vmatpush1.bf16.msra.mxu0 %v4507
        %6306 = vmatprep.subr.bf16.mxu0 %v4512
        %6307 = vmatpush1.bf16.msra.mxu0 %v4511
        %6308 = vmatprep.subr.bf16.mxu0 %v4516
        %6309 = vmatpush1.bf16.msra.mxu0 %v4515
        %6310 = vmatprep.subr.bf16.mxu0 %v4520
        %6311 = vmatpush1.bf16.msra.mxu0 %v4519
        %6312 = vmatprep.subr.bf16.mxu0 %v4524
        %6313 = vmatpush1.bf16.msra.mxu0 %v4523
        %6314 = vmatprep.subr.bf16.mxu0 %v4528
        %6315 = vmatpush1.bf16.msra.mxu0 %v4527
        %6316 = vmatprep.subr.bf16.mxu0 %v4532
        %6317 = vmatpush1.bf16.msra.mxu0 %v4531
        %6318 = vmatprep.subr.bf16.mxu0 %v4536
        %6319 = vmatpush1.bf16.msra.mxu0 %v4535
        %6320 = vmatprep.subr.bf16.mxu0 %v4540
        %6321 = vmatpush1.bf16.msra.mxu0 %v4539
        %6322 = vmatprep.subr.bf16.mxu0 %v4544
        %6323 = vmatpush1.bf16.msra.mxu0 %v4543
        %6324 = vmatprep.subr.bf16.mxu0 %v4548
        %6325 = vmatpush1.bf16.msra.mxu0 %v4547
        %6326 = vmatprep.subr.bf16.mxu0 %v4552
        %6327 = vmatpush1.bf16.msra.mxu0 %v4551
        %6328 = vmatprep.subr.bf16.mxu0 %v4556
        %6329 = vmatpush1.bf16.msra.mxu0 %v4555
        %6330 = vmatprep.subr.bf16.mxu0 %v4560
        %6331 = vmatpush1.bf16.msra.mxu0 %v4559
        %6332 = vmatprep.subr.bf16.mxu0 %v4564
        %6333 = vmatpush1.bf16.msra.mxu0 %v4563
        %6334 = vmatprep.subr.bf16.mxu0 %v4568
        %6335 = vmatpush1.bf16.msra.mxu0 %v4567
        %6336 = vmatprep.mubr.bf16.mxu0 %v1668
        %6337 = vmatmul.mubr.bf16.gmra.mrb[0].mxu0 %v1665
        %v6338 = vpop.f32.mrb[0].mxu0
        %v6339 = vadd.f32 %v6146, %v6338
        %v6340 = vpop.f32.mrb[0].mxu0
        %v6341 = vadd.f32 %v6148, %v6340
        %v6342 = vpop.f32.mrb[0].mxu0
        %v6343 = vadd.f32 %v6150, %v6342
        %v6344 = vpop.f32.mrb[0].mxu0
        %v6345 = vadd.f32 %v6152, %v6344
        %6346 = vmatprep.mubr.bf16.mxu0 %v1674
        %6347 = vmatmul.mubr.bf16.gmra.mrb[0].mxu0 %v1671
        %v6348 = vpop.f32.mrb[0].mxu0
        %v6349 = vadd.f32 %v6156, %v6348
        %v6350 = vpop.f32.mrb[0].mxu0
        %v6351 = vadd.f32 %v6158, %v6350
        %v6352 = vpop.f32.mrb[0].mxu0
        %v6353 = vadd.f32 %v6160, %v6352
        %v6354 = vpop.f32.mrb[0].mxu0
        %v6355 = vadd.f32 %v6162, %v6354
        %6356 = vmatprep.mubr.bf16.mxu0 %v1680
        %6357 = vmatmul.mubr.bf16.gmra.mrb[0].mxu0 %v1677
        %v6358 = vpop.f32.mrb[0].mxu0
        %v6359 = vadd.f32 %v6166, %v6358
        %v6360 = vpop.f32.mrb[0].mxu0
        %v6361 = vadd.f32 %v6168, %v6360
        %v6362 = vpop.f32.mrb[0].mxu0
        %v6363 = vadd.f32 %v6170, %v6362
        %v6364 = vpop.f32.mrb[0].mxu0
        %v6365 = vadd.f32 %v6172, %v6364
        %6366 = vmatprep.mubr.bf16.mxu0 %v1686
        %6367 = vmatmul.mubr.bf16.gmra.mrb[0].mxu0 %v1683
        %v6368 = vpop.f32.mrb[0].mxu0
        %v6369 = vadd.f32 %v6176, %v6368
        %v6370 = vpop.f32.mrb[0].mxu0
        %v6371 = vadd.f32 %v6178, %v6370
        %v6372 = vpop.f32.mrb[0].mxu0
        %v6373 = vadd.f32 %v6180, %v6372
        %v6374 = vpop.f32.mrb[0].mxu0
        %v6375 = vadd.f32 %v6182, %v6374
        %6376 = vmatprep.mubr.bf16.mxu0 %v1692
        %6377 = vmatmul.mubr.bf16.gmra.mrb[0].mxu0 %v1689
        %v6378 = vpop.f32.mrb[0].mxu0
        %v6379 = vadd.f32 %v6186, %v6378
        %v6380 = vpop.f32.mrb[0].mxu0
        %v6381 = vadd.f32 %v6188, %v6380
        %v6382 = vpop.f32.mrb[0].mxu0
        %v6383 = vadd.f32 %v6190, %v6382
        %v6384 = vpop.f32.mrb[0].mxu0
        %v6385 = vadd.f32 %v6192, %v6384
        %6386 = vmatprep.mubr.bf16.mxu0 %v1698
        %6387 = vmatmul.mubr.bf16.gmra.mrb[0].mxu0 %v1695
        %v6388 = vpop.f32.mrb[0].mxu0
        %v6389 = vadd.f32 %v6196, %v6388
        %v6390 = vpop.f32.mrb[0].mxu0
        %v6391 = vadd.f32 %v6198, %v6390
        %v6392 = vpop.f32.mrb[0].mxu0
        %v6393 = vadd.f32 %v6200, %v6392
        %v6394 = vpop.f32.mrb[0].mxu0
        %v6395 = vadd.f32 %v6202, %v6394
        %6396 = vmatprep.mubr.bf16.mxu0 %v1704
        %6397 = vmatmul.mubr.bf16.gmra.mrb[0].mxu0 %v1701
        %v6398 = vpop.f32.mrb[0].mxu0
        %v6399 = vadd.f32 %v6206, %v6398
        %v6400 = vpop.f32.mrb[0].mxu0
        %v6401 = vadd.f32 %v6208, %v6400
        %v6402 = vpop.f32.mrb[0].mxu0
        %v6403 = vadd.f32 %v6210, %v6402
        %v6404 = vpop.f32.mrb[0].mxu0
        %v6405 = vadd.f32 %v6212, %v6404
        %6406 = vmatprep.mubr.bf16.mxu0 %v1710
        %6407 = vmatmul.mubr.bf16.gmra.mrb[0].mxu0 %v1707
        %v6408 = vpop.f32.mrb[0].mxu0
        %v6409 = vadd.f32 %v6216, %v6408
        %v6410 = vpop.f32.mrb[0].mxu0
        %v6411 = vadd.f32 %v6218, %v6410
        %v6412 = vpop.f32.mrb[0].mxu0
        %v6413 = vadd.f32 %v6220, %v6412
        %v6414 = vpop.f32.mrb[0].mxu0
        %v6415 = vadd.f32 %v6222, %v6414
        %6416 = vmatprep.mubr.bf16.mxu0 %v1716
        %6417 = vmatmul.mubr.bf16.gmra.mrb[0].mxu0 %v1713
        %v6418 = vpop.f32.mrb[0].mxu0
        %v6419 = vadd.f32 %v6226, %v6418
        %v6420 = vpop.f32.mrb[0].mxu0
        %v6421 = vadd.f32 %v6228, %v6420
        %v6422 = vpop.f32.mrb[0].mxu0
        %v6423 = vadd.f32 %v6230, %v6422
        %v6424 = vpop.f32.mrb[0].mxu0
        %v6425 = vadd.f32 %v6232, %v6424
        %6426 = vmatprep.mubr.bf16.mxu0 %v1722
        %6427 = vmatmul.mubr.bf16.gmra.mrb[0].mxu0 %v1719
        %v6428 = vpop.f32.mrb[0].mxu0
        %v6429 = vadd.f32 %v6236, %v6428
        %v6430 = vpop.f32.mrb[0].mxu0
        %v6431 = vadd.f32 %v6238, %v6430
        %v6432 = vpop.f32.mrb[0].mxu0
        %v6433 = vadd.f32 %v6240, %v6432
        %v6434 = vpop.f32.mrb[0].mxu0
        %v6435 = vadd.f32 %v6242, %v6434
        %6436 = vmatprep.mubr.bf16.mxu0 %v1728
        %6437 = vmatmul.mubr.bf16.gmra.mrb[0].mxu0 %v1725
        %v6438 = vpop.f32.mrb[0].mxu0
        %v6439 = vadd.f32 %v6246, %v6438
        %v6440 = vpop.f32.mrb[0].mxu0
        %v6441 = vadd.f32 %v6248, %v6440
        %v6442 = vpop.f32.mrb[0].mxu0
        %v6443 = vadd.f32 %v6250, %v6442
        %v6444 = vpop.f32.mrb[0].mxu0
        %v6445 = vadd.f32 %v6252, %v6444
        %6446 = vmatprep.mubr.bf16.mxu0 %v1734
        %6447 = vmatmul.mubr.bf16.gmra.mrb[0].mxu0 %v1731
        %v6448 = vpop.f32.mrb[0].mxu0
        %v6449 = vadd.f32 %v6256, %v6448
        %v6450 = vpop.f32.mrb[0].mxu0
        %v6451 = vadd.f32 %v6258, %v6450
        %v6452 = vpop.f32.mrb[0].mxu0
        %v6453 = vadd.f32 %v6260, %v6452
        %v6454 = vpop.f32.mrb[0].mxu0
        %v6455 = vadd.f32 %v6262, %v6454
        %6456 = vmatprep.mubr.bf16.mxu0 %v1740
        %6457 = vmatmul.mubr.bf16.gmra.mrb[0].mxu0 %v1737
        %v6458 = vpop.f32.mrb[0].mxu0
        %v6459 = vadd.f32 %v6266, %v6458
        %v6460 = vpop.f32.mrb[0].mxu0
        %v6461 = vadd.f32 %v6268, %v6460
        %v6462 = vpop.f32.mrb[0].mxu0
        %v6463 = vadd.f32 %v6270, %v6462
        %v6464 = vpop.f32.mrb[0].mxu0
        %v6465 = vadd.f32 %v6272, %v6464
        %6466 = vmatprep.mubr.bf16.mxu0 %v1746
        %6467 = vmatmul.mubr.bf16.gmra.mrb[0].mxu0 %v1743
        %v6468 = vpop.f32.mrb[0].mxu0
        %v6469 = vadd.f32 %v6276, %v6468
        %v6470 = vpop.f32.mrb[0].mxu0
        %v6471 = vadd.f32 %v6278, %v6470
        %v6472 = vpop.f32.mrb[0].mxu0
        %v6473 = vadd.f32 %v6280, %v6472
        %v6474 = vpop.f32.mrb[0].mxu0
        %v6475 = vadd.f32 %v6282, %v6474
        %6476 = vmatprep.mubr.bf16.mxu0 %v1752
        %6477 = vmatmul.mubr.bf16.gmra.mrb[0].mxu0 %v1749
        %v6478 = vpop.f32.mrb[0].mxu0
        %v6479 = vadd.f32 %v6286, %v6478
        %v6480 = vpop.f32.mrb[0].mxu0
        %v6481 = vadd.f32 %v6288, %v6480
        %v6482 = vpop.f32.mrb[0].mxu0
        %v6483 = vadd.f32 %v6290, %v6482
        %v6484 = vpop.f32.mrb[0].mxu0
        %v6485 = vadd.f32 %v6292, %v6484
        %6486 = vmatprep.mubr.bf16.mxu0 %v1820
        %6487 = vmatmul.mubr.bf16.gmra.mrb[0].mxu0 %v1817
        %v6488 = vpop.f32.mrb[0].mxu0
        %v6489 = vadd.f32 %v6296, %v6488
        %v6490 = vpop.f32.mrb[0].mxu0
        %v6491 = vadd.f32 %v6298, %v6490
        %v6492 = vpop.f32.mrb[0].mxu0
        %v6493 = vadd.f32 %v6300, %v6492
        %v6494 = vpop.f32.mrb[0].mxu0
        %v6495 = vadd.f32 %v6302, %v6494
        %6496 = vdwg.mxu0
        %6497 = vmatprep.subr.bf16.mxu0 %v4572
        %6498 = vmatpush1.bf16.msra.mxu0 %v4571
        %6499 = vmatprep.subr.bf16.mxu0 %v4576
        %6500 = vmatpush1.bf16.msra.mxu0 %v4575
        %6501 = vmatprep.subr.bf16.mxu0 %v4580
        %6502 = vmatpush1.bf16.msra.mxu0 %v4579
        %6503 = vmatprep.subr.bf16.mxu0 %v4584
        %6504 = vmatpush1.bf16.msra.mxu0 %v4583
        %6505 = vmatprep.subr.bf16.mxu0 %v4588
        %6506 = vmatpush1.bf16.msra.mxu0 %v4587
        %6507 = vmatprep.subr.bf16.mxu0 %v4592
        %6508 = vmatpush1.bf16.msra.mxu0 %v4591
        %6509 = vmatprep.subr.bf16.mxu0 %v4596
        %6510 = vmatpush1.bf16.msra.mxu0 %v4595
        %6511 = vmatprep.subr.bf16.mxu0 %v4600
        %6512 = vmatpush1.bf16.msra.mxu0 %v4599
        %6513 = vmatprep.subr.bf16.mxu0 %v4604
        %6514 = vmatpush1.bf16.msra.mxu0 %v4603
        %6515 = vmatprep.subr.bf16.mxu0 %v4608
        %6516 = vmatpush1.bf16.msra.mxu0 %v4607
        %6517 = vmatprep.subr.bf16.mxu0 %v4612
        %6518 = vmatpush1.bf16.msra.mxu0 %v4611
        %6519 = vmatprep.subr.bf16.mxu0 %v4616
        %6520 = vmatpush1.bf16.msra.mxu0 %v4615
        %6521 = vmatprep.subr.bf16.mxu0 %v4620
        %6522 = vmatpush1.bf16.msra.mxu0 %v4619
        %6523 = vmatprep.subr.bf16.mxu0 %v4624
        %6524 = vmatpush1.bf16.msra.mxu0 %v4623
        %6525 = vmatprep.subr.bf16.mxu0 %v4628
        %6526 = vmatpush1.bf16.msra.mxu0 %v4627
        %6527 = vmatprep.subr.bf16.mxu0 %v4632
        %6528 = vmatpush1.bf16.msra.mxu0 %v4631
        %6529 = vmatprep.mubr.bf16.mxu0 %v1112
        %6530 = vmatmul.mubr.bf16.gmra.mrb[0].mxu0 %v1111
        %v6531 = vpop.f32.mrb[0].mxu0
        %v6532 = vadd.f32 %v6339, %v6531
        %v6533 = vpop.f32.mrb[0].mxu0
        %v6534 = vadd.f32 %v6341, %v6533
        %v6535 = vpop.f32.mrb[0].mxu0
        %v6536 = vadd.f32 %v6343, %v6535
        %v6537 = vpop.f32.mrb[0].mxu0
        %v6538 = vadd.f32 %v6345, %v6537
        %6539 = vmatprep.mubr.bf16.mxu0 %v1116
        %6540 = vmatmul.mubr.bf16.gmra.mrb[0].mxu0 %v1115
        %v6541 = vpop.f32.mrb[0].mxu0
        %v6542 = vadd.f32 %v6349, %v6541
        %v6543 = vpop.f32.mrb[0].mxu0
        %v6544 = vadd.f32 %v6351, %v6543
        %v6545 = vpop.f32.mrb[0].mxu0
        %v6546 = vadd.f32 %v6353, %v6545
        %v6547 = vpop.f32.mrb[0].mxu0
        %v6548 = vadd.f32 %v6355, %v6547
        %6549 = vmatprep.mubr.bf16.mxu0 %v1120
        %6550 = vmatmul.mubr.bf16.gmra.mrb[0].mxu0 %v1119
        %v6551 = vpop.f32.mrb[0].mxu0
        %v6552 = vadd.f32 %v6359, %v6551
        %v6553 = vpop.f32.mrb[0].mxu0
        %v6554 = vadd.f32 %v6361, %v6553
        %v6555 = vpop.f32.mrb[0].mxu0
        %v6556 = vadd.f32 %v6363, %v6555
        %v6557 = vpop.f32.mrb[0].mxu0
        %v6558 = vadd.f32 %v6365, %v6557
        %6559 = vmatprep.mubr.bf16.mxu0 %v1124
        %6560 = vmatmul.mubr.bf16.gmra.mrb[0].mxu0 %v1123
        %v6561 = vpop.f32.mrb[0].mxu0
        %v6562 = vadd.f32 %v6369, %v6561
        %v6563 = vpop.f32.mrb[0].mxu0
        %v6564 = vadd.f32 %v6371, %v6563
        %v6565 = vpop.f32.mrb[0].mxu0
        %v6566 = vadd.f32 %v6373, %v6565
        %v6567 = vpop.f32.mrb[0].mxu0
        %v6568 = vadd.f32 %v6375, %v6567
        %6569 = vmatprep.mubr.bf16.mxu0 %v1128
        %6570 = vmatmul.mubr.bf16.gmra.mrb[0].mxu0 %v1127
        %v6571 = vpop.f32.mrb[0].mxu0
        %v6572 = vadd.f32 %v6379, %v6571
        %v6573 = vpop.f32.mrb[0].mxu0
        %v6574 = vadd.f32 %v6381, %v6573
        %v6575 = vpop.f32.mrb[0].mxu0
        %v6576 = vadd.f32 %v6383, %v6575
        %v6577 = vpop.f32.mrb[0].mxu0
        %v6578 = vadd.f32 %v6385, %v6577
        %6579 = vmatprep.mubr.bf16.mxu0 %v1132
        %6580 = vmatmul.mubr.bf16.gmra.mrb[0].mxu0 %v1131
        %v6581 = vpop.f32.mrb[0].mxu0
        %v6582 = vadd.f32 %v6389, %v6581
        %v6583 = vpop.f32.mrb[0].mxu0
        %v6584 = vadd.f32 %v6391, %v6583
        %v6585 = vpop.f32.mrb[0].mxu0
        %v6586 = vadd.f32 %v6393, %v6585
        %v6587 = vpop.f32.mrb[0].mxu0
        %v6588 = vadd.f32 %v6395, %v6587
        %6589 = vmatprep.mubr.bf16.mxu0 %v1136
        %6590 = vmatmul.mubr.bf16.gmra.mrb[0].mxu0 %v1135
        %v6591 = vpop.f32.mrb[0].mxu0
        %v6592 = vadd.f32 %v6399, %v6591
        %v6593 = vpop.f32.mrb[0].mxu0
        %v6594 = vadd.f32 %v6401, %v6593
        %v6595 = vpop.f32.mrb[0].mxu0
        %v6596 = vadd.f32 %v6403, %v6595
        %v6597 = vpop.f32.mrb[0].mxu0
        %v6598 = vadd.f32 %v6405, %v6597
        %6599 = vmatprep.mubr.bf16.mxu0 %v1140
        %6600 = vmatmul.mubr.bf16.gmra.mrb[0].mxu0 %v1139
        %v6601 = vpop.f32.mrb[0].mxu0
        %v6602 = vadd.f32 %v6409, %v6601
        %v6603 = vpop.f32.mrb[0].mxu0
        %v6604 = vadd.f32 %v6411, %v6603
        %v6605 = vpop.f32.mrb[0].mxu0
        %v6606 = vadd.f32 %v6413, %v6605
        %v6607 = vpop.f32.mrb[0].mxu0
        %v6608 = vadd.f32 %v6415, %v6607
        %6609 = vmatprep.mubr.bf16.mxu0 %v1144
        %6610 = vmatmul.mubr.bf16.gmra.mrb[0].mxu0 %v1143
        %v6611 = vpop.f32.mrb[0].mxu0
        %v6612 = vadd.f32 %v6419, %v6611
        %v6613 = vpop.f32.mrb[0].mxu0
        %v6614 = vadd.f32 %v6421, %v6613
        %v6615 = vpop.f32.mrb[0].mxu0
        %v6616 = vadd.f32 %v6423, %v6615
        %v6617 = vpop.f32.mrb[0].mxu0
        %v6618 = vadd.f32 %v6425, %v6617
        %6619 = vmatprep.mubr.bf16.mxu0 %v1148
        %6620 = vmatmul.mubr.bf16.gmra.mrb[0].mxu0 %v1147
        %v6621 = vpop.f32.mrb[0].mxu0
        %v6622 = vadd.f32 %v6429, %v6621
        %v6623 = vpop.f32.mrb[0].mxu0
        %v6624 = vadd.f32 %v6431, %v6623
        %v6625 = vpop.f32.mrb[0].mxu0
        %v6626 = vadd.f32 %v6433, %v6625
        %v6627 = vpop.f32.mrb[0].mxu0
        %v6628 = vadd.f32 %v6435, %v6627
        %6629 = vmatprep.mubr.bf16.mxu0 %v1152
        %6630 = vmatmul.mubr.bf16.gmra.mrb[0].mxu0 %v1151
        %v6631 = vpop.f32.mrb[0].mxu0
        %v6632 = vadd.f32 %v6439, %v6631
        %v6633 = vpop.f32.mrb[0].mxu0
        %v6634 = vadd.f32 %v6441, %v6633
        %v6635 = vpop.f32.mrb[0].mxu0
        %v6636 = vadd.f32 %v6443, %v6635
        %v6637 = vpop.f32.mrb[0].mxu0
        %v6638 = vadd.f32 %v6445, %v6637
        %6639 = vmatprep.mubr.bf16.mxu0 %v1156
        %6640 = vmatmul.mubr.bf16.gmra.mrb[0].mxu0 %v1155
        %v6641 = vpop.f32.mrb[0].mxu0
        %v6642 = vadd.f32 %v6449, %v6641
        %v6643 = vpop.f32.mrb[0].mxu0
        %v6644 = vadd.f32 %v6451, %v6643
        %v6645 = vpop.f32.mrb[0].mxu0
        %v6646 = vadd.f32 %v6453, %v6645
        %v6647 = vpop.f32.mrb[0].mxu0
        %v6648 = vadd.f32 %v6455, %v6647
        %6649 = vmatprep.mubr.bf16.mxu0 %v1160
        %6650 = vmatmul.mubr.bf16.gmra.mrb[0].mxu0 %v1159
        %v6651 = vpop.f32.mrb[0].mxu0
        %v6652 = vadd.f32 %v6459, %v6651
        %v6653 = vpop.f32.mrb[0].mxu0
        %v6654 = vadd.f32 %v6461, %v6653
        %v6655 = vpop.f32.mrb[0].mxu0
        %v6656 = vadd.f32 %v6463, %v6655
        %v6657 = vpop.f32.mrb[0].mxu0
        %v6658 = vadd.f32 %v6465, %v6657
        %6659 = vmatprep.mubr.bf16.mxu0 %v1164
        %6660 = vmatmul.mubr.bf16.gmra.mrb[0].mxu0 %v1163
        %v6661 = vpop.f32.mrb[0].mxu0
        %v6662 = vadd.f32 %v6469, %v6661
        %v6663 = vpop.f32.mrb[0].mxu0
        %v6664 = vadd.f32 %v6471, %v6663
        %v6665 = vpop.f32.mrb[0].mxu0
        %v6666 = vadd.f32 %v6473, %v6665
        %v6667 = vpop.f32.mrb[0].mxu0
        %v6668 = vadd.f32 %v6475, %v6667
        %6669 = vmatprep.mubr.bf16.mxu0 %v1168
        %6670 = vmatmul.mubr.bf16.gmra.mrb[0].mxu0 %v1167
        %v6671 = vpop.f32.mrb[0].mxu0
        %v6672 = vadd.f32 %v6479, %v6671
        %v6673 = vpop.f32.mrb[0].mxu0
        %v6674 = vadd.f32 %v6481, %v6673
        %v6675 = vpop.f32.mrb[0].mxu0
        %v6676 = vadd.f32 %v6483, %v6675
        %v6677 = vpop.f32.mrb[0].mxu0
        %v6678 = vadd.f32 %v6485, %v6677
        %6679 = vmatprep.mubr.bf16.mxu0 %v1172
        %6680 = vmatmul.mubr.bf16.gmra.mrb[0].mxu0 %v1171
        %v6681 = vpop.f32.mrb[0].mxu0
        %v6682 = vadd.f32 %v6489, %v6681
        %v6683 = vpop.f32.mrb[0].mxu0
        %v6684 = vadd.f32 %v6491, %v6683
        %v6685 = vpop.f32.mrb[0].mxu0
        %v6686 = vadd.f32 %v6493, %v6685
        %v6687 = vpop.f32.mrb[0].mxu0
        %v6688 = vadd.f32 %v6495, %v6687
        %6689 = vdwg.mxu0
        %6690 = vmatprep.subr.bf16.mxu0 %v4636
        %6691 = vmatpush1.bf16.msra.mxu0 %v4635
        %6692 = vmatprep.subr.bf16.mxu0 %v4640
        %6693 = vmatpush1.bf16.msra.mxu0 %v4639
        %6694 = vmatprep.subr.bf16.mxu0 %v4644
        %6695 = vmatpush1.bf16.msra.mxu0 %v4643
        %6696 = vmatprep.subr.bf16.mxu0 %v4648
        %6697 = vmatpush1.bf16.msra.mxu0 %v4647
        %6698 = vmatprep.subr.bf16.mxu0 %v4652
        %6699 = vmatpush1.bf16.msra.mxu0 %v4651
        %6700 = vmatprep.subr.bf16.mxu0 %v4656
        %6701 = vmatpush1.bf16.msra.mxu0 %v4655
        %6702 = vmatprep.subr.bf16.mxu0 %v4660
        %6703 = vmatpush1.bf16.msra.mxu0 %v4659
        %6704 = vmatprep.subr.bf16.mxu0 %v4664
        %6705 = vmatpush1.bf16.msra.mxu0 %v4663
        %6706 = vmatprep.subr.bf16.mxu0 %v4668
        %6707 = vmatpush1.bf16.msra.mxu0 %v4667
        %6708 = vmatprep.subr.bf16.mxu0 %v4672
        %6709 = vmatpush1.bf16.msra.mxu0 %v4671
        %6710 = vmatprep.subr.bf16.mxu0 %v4676
        %6711 = vmatpush1.bf16.msra.mxu0 %v4675
        %6712 = vmatprep.subr.bf16.mxu0 %v4680
        %6713 = vmatpush1.bf16.msra.mxu0 %v4679
        %6714 = vmatprep.subr.bf16.mxu0 %v4684
        %6715 = vmatpush1.bf16.msra.mxu0 %v4683
        %6716 = vmatprep.subr.bf16.mxu0 %v4688
        %6717 = vmatpush1.bf16.msra.mxu0 %v4687
        %6718 = vmatprep.subr.bf16.mxu0 %v4692
        %6719 = vmatpush1.bf16.msra.mxu0 %v4691
        %6720 = vmatprep.subr.bf16.mxu0 %v4696
        %6721 = vmatpush1.bf16.msra.mxu0 %v4695
        %6722 = vmatprep.mubr.bf16.mxu0 %v1247
        %6723 = vmatmul.mubr.bf16.gmra.mrb[0].mxu0 %v1235
        %v6724 = vpop.f32.mrb[0].mxu0
        %v6725 = vadd.f32 %v6532, %v6724
        %v6726 = vpop.f32.mrb[0].mxu0
        %v6727 = vadd.f32 %v6534, %v6726
        %v6728 = vpop.f32.mrb[0].mxu0
        %v6729 = vadd.f32 %v6536, %v6728
        %v6730 = vpop.f32.mrb[0].mxu0
        %v6731 = vadd.f32 %v6538, %v6730
        %6732 = vmatprep.mubr.bf16.mxu0 %v1271
        %6733 = vmatmul.mubr.bf16.gmra.mrb[0].mxu0 %v1259
        %v6734 = vpop.f32.mrb[0].mxu0
        %v6735 = vadd.f32 %v6542, %v6734
        %v6736 = vpop.f32.mrb[0].mxu0
        %v6737 = vadd.f32 %v6544, %v6736
        %v6738 = vpop.f32.mrb[0].mxu0
        %v6739 = vadd.f32 %v6546, %v6738
        %v6740 = vpop.f32.mrb[0].mxu0
        %v6741 = vadd.f32 %v6548, %v6740
        %6742 = vmatprep.mubr.bf16.mxu0 %v1295
        %6743 = vmatmul.mubr.bf16.gmra.mrb[0].mxu0 %v1283
        %v6744 = vpop.f32.mrb[0].mxu0
        %v6745 = vadd.f32 %v6552, %v6744
        %v6746 = vpop.f32.mrb[0].mxu0
        %v6747 = vadd.f32 %v6554, %v6746
        %v6748 = vpop.f32.mrb[0].mxu0
        %v6749 = vadd.f32 %v6556, %v6748
        %v6750 = vpop.f32.mrb[0].mxu0
        %v6751 = vadd.f32 %v6558, %v6750
        %6752 = vmatprep.mubr.bf16.mxu0 %v1319
        %6753 = vmatmul.mubr.bf16.gmra.mrb[0].mxu0 %v1307
        %v6754 = vpop.f32.mrb[0].mxu0
        %v6755 = vadd.f32 %v6562, %v6754
        %v6756 = vpop.f32.mrb[0].mxu0
        %v6757 = vadd.f32 %v6564, %v6756
        %v6758 = vpop.f32.mrb[0].mxu0
        %v6759 = vadd.f32 %v6566, %v6758
        %v6760 = vpop.f32.mrb[0].mxu0
        %v6761 = vadd.f32 %v6568, %v6760
        %6762 = vmatprep.mubr.bf16.mxu0 %v1343
        %6763 = vmatmul.mubr.bf16.gmra.mrb[0].mxu0 %v1331
        %v6764 = vpop.f32.mrb[0].mxu0
        %v6765 = vadd.f32 %v6572, %v6764
        %v6766 = vpop.f32.mrb[0].mxu0
        %v6767 = vadd.f32 %v6574, %v6766
        %v6768 = vpop.f32.mrb[0].mxu0
        %v6769 = vadd.f32 %v6576, %v6768
        %v6770 = vpop.f32.mrb[0].mxu0
        %v6771 = vadd.f32 %v6578, %v6770
        %6772 = vmatprep.mubr.bf16.mxu0 %v1367
        %6773 = vmatmul.mubr.bf16.gmra.mrb[0].mxu0 %v1355
        %v6774 = vpop.f32.mrb[0].mxu0
        %v6775 = vadd.f32 %v6582, %v6774
        %v6776 = vpop.f32.mrb[0].mxu0
        %v6777 = vadd.f32 %v6584, %v6776
        %v6778 = vpop.f32.mrb[0].mxu0
        %v6779 = vadd.f32 %v6586, %v6778
        %v6780 = vpop.f32.mrb[0].mxu0
        %v6781 = vadd.f32 %v6588, %v6780
        %6782 = vmatprep.mubr.bf16.mxu0 %v1391
        %6783 = vmatmul.mubr.bf16.gmra.mrb[0].mxu0 %v1379
        %v6784 = vpop.f32.mrb[0].mxu0
        %v6785 = vadd.f32 %v6592, %v6784
        %v6786 = vpop.f32.mrb[0].mxu0
        %v6787 = vadd.f32 %v6594, %v6786
        %v6788 = vpop.f32.mrb[0].mxu0
        %v6789 = vadd.f32 %v6596, %v6788
        %v6790 = vpop.f32.mrb[0].mxu0
        %v6791 = vadd.f32 %v6598, %v6790
        %6792 = vmatprep.mubr.bf16.mxu0 %v1415
        %6793 = vmatmul.mubr.bf16.gmra.mrb[0].mxu0 %v1403
        %v6794 = vpop.f32.mrb[0].mxu0
        %v6795 = vadd.f32 %v6602, %v6794
        %v6796 = vpop.f32.mrb[0].mxu0
        %v6797 = vadd.f32 %v6604, %v6796
        %v6798 = vpop.f32.mrb[0].mxu0
        %v6799 = vadd.f32 %v6606, %v6798
        %v6800 = vpop.f32.mrb[0].mxu0
        %v6801 = vadd.f32 %v6608, %v6800
        %6802 = vmatprep.mubr.bf16.mxu0 %v1439
        %6803 = vmatmul.mubr.bf16.gmra.mrb[0].mxu0 %v1427
        %v6804 = vpop.f32.mrb[0].mxu0
        %v6805 = vadd.f32 %v6612, %v6804
        %v6806 = vpop.f32.mrb[0].mxu0
        %v6807 = vadd.f32 %v6614, %v6806
        %v6808 = vpop.f32.mrb[0].mxu0
        %v6809 = vadd.f32 %v6616, %v6808
        %v6810 = vpop.f32.mrb[0].mxu0
        %v6811 = vadd.f32 %v6618, %v6810
        %6812 = vmatprep.mubr.bf16.mxu0 %v1463
        %6813 = vmatmul.mubr.bf16.gmra.mrb[0].mxu0 %v1451
        %v6814 = vpop.f32.mrb[0].mxu0
        %v6815 = vadd.f32 %v6622, %v6814
        %v6816 = vpop.f32.mrb[0].mxu0
        %v6817 = vadd.f32 %v6624, %v6816
        %v6818 = vpop.f32.mrb[0].mxu0
        %v6819 = vadd.f32 %v6626, %v6818
        %v6820 = vpop.f32.mrb[0].mxu0
        %v6821 = vadd.f32 %v6628, %v6820
        %6822 = vmatprep.mubr.bf16.mxu0 %v1487
        %6823 = vmatmul.mubr.bf16.gmra.mrb[0].mxu0 %v1475
        %v6824 = vpop.f32.mrb[0].mxu0
        %v6825 = vadd.f32 %v6632, %v6824
        %v6826 = vpop.f32.mrb[0].mxu0
        %v6827 = vadd.f32 %v6634, %v6826
        %v6828 = vpop.f32.mrb[0].mxu0
        %v6829 = vadd.f32 %v6636, %v6828
        %v6830 = vpop.f32.mrb[0].mxu0
        %v6831 = vadd.f32 %v6638, %v6830
        %6832 = vmatprep.mubr.bf16.mxu0 %v1511
        %6833 = vmatmul.mubr.bf16.gmra.mrb[0].mxu0 %v1499
        %v6834 = vpop.f32.mrb[0].mxu0
        %v6835 = vadd.f32 %v6642, %v6834
        %v6836 = vpop.f32.mrb[0].mxu0
        %v6837 = vadd.f32 %v6644, %v6836
        %v6838 = vpop.f32.mrb[0].mxu0
        %v6839 = vadd.f32 %v6646, %v6838
        %v6840 = vpop.f32.mrb[0].mxu0
        %v6841 = vadd.f32 %v6648, %v6840
        %6842 = vmatprep.mubr.bf16.mxu0 %v1535
        %6843 = vmatmul.mubr.bf16.gmra.mrb[0].mxu0 %v1523
        %v6844 = vpop.f32.mrb[0].mxu0
        %v6845 = vadd.f32 %v6652, %v6844
        %v6846 = vpop.f32.mrb[0].mxu0
        %v6847 = vadd.f32 %v6654, %v6846
        %v6848 = vpop.f32.mrb[0].mxu0
        %v6849 = vadd.f32 %v6656, %v6848
        %v6850 = vpop.f32.mrb[0].mxu0
        %v6851 = vadd.f32 %v6658, %v6850
        %6852 = vmatprep.mubr.bf16.mxu0 %v1559
        %6853 = vmatmul.mubr.bf16.gmra.mrb[0].mxu0 %v1547
        %v6854 = vpop.f32.mrb[0].mxu0
        %v6855 = vadd.f32 %v6662, %v6854
        %v6856 = vpop.f32.mrb[0].mxu0
        %v6857 = vadd.f32 %v6664, %v6856
        %v6858 = vpop.f32.mrb[0].mxu0
        %v6859 = vadd.f32 %v6666, %v6858
        %v6860 = vpop.f32.mrb[0].mxu0
        %v6861 = vadd.f32 %v6668, %v6860
        %6862 = vmatprep.mubr.bf16.mxu0 %v1808
        %6863 = vmatmul.mubr.bf16.gmra.mrb[0].mxu0 %v1796
        %v6864 = vpop.f32.mrb[0].mxu0
        %v6865 = vadd.f32 %v6672, %v6864
        %v6866 = vpop.f32.mrb[0].mxu0
        %v6867 = vadd.f32 %v6674, %v6866
        %v6868 = vpop.f32.mrb[0].mxu0
        %v6869 = vadd.f32 %v6676, %v6868
        %v6870 = vpop.f32.mrb[0].mxu0
        %v6871 = vadd.f32 %v6678, %v6870
        %6872 = vmatprep.mubr.bf16.mxu0 %v1846
        %6873 = vmatmul.mubr.bf16.gmra.mrb[0].mxu0 %v1834
        %v6874 = vpop.f32.mrb[0].mxu0
        %v6875 = vadd.f32 %v6682, %v6874
        %v6876 = vpop.f32.mrb[0].mxu0
        %v6877 = vadd.f32 %v6684, %v6876
        %v6878 = vpop.f32.mrb[0].mxu0
        %v6879 = vadd.f32 %v6686, %v6878
        %v6880 = vpop.f32.mrb[0].mxu0
        %v6881 = vadd.f32 %v6688, %v6880
        %6882 = vdwg.mxu0
        %6883 = vmatprep.subr.bf16.mxu0 %v4700
        %6884 = vmatpush1.bf16.msra.mxu0 %v4699
        %6885 = vmatprep.subr.bf16.mxu0 %v4704
        %6886 = vmatpush1.bf16.msra.mxu0 %v4703
        %6887 = vmatprep.subr.bf16.mxu0 %v4708
        %6888 = vmatpush1.bf16.msra.mxu0 %v4707
        %6889 = vmatprep.subr.bf16.mxu0 %v4712
        %6890 = vmatpush1.bf16.msra.mxu0 %v4711
        %6891 = vmatprep.subr.bf16.mxu0 %v4716
        %6892 = vmatpush1.bf16.msra.mxu0 %v4715
        %6893 = vmatprep.subr.bf16.mxu0 %v4720
        %6894 = vmatpush1.bf16.msra.mxu0 %v4719
        %6895 = vmatprep.subr.bf16.mxu0 %v4724
        %6896 = vmatpush1.bf16.msra.mxu0 %v4723
        %6897 = vmatprep.subr.bf16.mxu0 %v4728
        %6898 = vmatpush1.bf16.msra.mxu0 %v4727
        %6899 = vmatprep.subr.bf16.mxu0 %v4732
        %6900 = vmatpush1.bf16.msra.mxu0 %v4731
        %6901 = vmatprep.subr.bf16.mxu0 %v4736
        %6902 = vmatpush1.bf16.msra.mxu0 %v4735
        %6903 = vmatprep.subr.bf16.mxu0 %v4740
        %6904 = vmatpush1.bf16.msra.mxu0 %v4739
        %6905 = vmatprep.subr.bf16.mxu0 %v4744
        %6906 = vmatpush1.bf16.msra.mxu0 %v4743
        %6907 = vmatprep.subr.bf16.mxu0 %v4748
        %6908 = vmatpush1.bf16.msra.mxu0 %v4747
        %6909 = vmatprep.subr.bf16.mxu0 %v4752
        %6910 = vmatpush1.bf16.msra.mxu0 %v4751
        %6911 = vmatprep.subr.bf16.mxu0 %v4756
        %6912 = vmatpush1.bf16.msra.mxu0 %v4755
        %6913 = vmatprep.subr.bf16.mxu0 %v4760
        %6914 = vmatpush1.bf16.msra.mxu0 %v4759
        %6915 = vmatprep.mubr.bf16.mxu0 %v1674
        %6916 = vmatmul.mubr.bf16.gmra.mrb[0].mxu0 %v1671
        %v6917 = vpop.f32.mrb[0].mxu0
        %v6918 = vadd.f32 %v6725, %v6917
        %v6919 = vpop.f32.mrb[0].mxu0
        %v6920 = vadd.f32 %v6727, %v6919
        %v6921 = vpop.f32.mrb[0].mxu0
        %v6922 = vadd.f32 %v6729, %v6921
        %v6923 = vpop.f32.mrb[0].mxu0
        %v6924 = vadd.f32 %v6731, %v6923
        %6925 = vmatprep.mubr.bf16.mxu0 %v1680
        %6926 = vmatmul.mubr.bf16.gmra.mrb[0].mxu0 %v1677
        %v6927 = vpop.f32.mrb[0].mxu0
        %v6928 = vadd.f32 %v6735, %v6927
        %v6929 = vpop.f32.mrb[0].mxu0
        %v6930 = vadd.f32 %v6737, %v6929
        %v6931 = vpop.f32.mrb[0].mxu0
        %v6932 = vadd.f32 %v6739, %v6931
        %v6933 = vpop.f32.mrb[0].mxu0
        %v6934 = vadd.f32 %v6741, %v6933
        %6935 = vmatprep.mubr.bf16.mxu0 %v1686
        %6936 = vmatmul.mubr.bf16.gmra.mrb[0].mxu0 %v1683
        %v6937 = vpop.f32.mrb[0].mxu0
        %v6938 = vadd.f32 %v6745, %v6937
        %v6939 = vpop.f32.mrb[0].mxu0
        %v6940 = vadd.f32 %v6747, %v6939
        %v6941 = vpop.f32.mrb[0].mxu0
        %v6942 = vadd.f32 %v6749, %v6941
        %v6943 = vpop.f32.mrb[0].mxu0
        %v6944 = vadd.f32 %v6751, %v6943
        %6945 = vmatprep.mubr.bf16.mxu0 %v1692
        %6946 = vmatmul.mubr.bf16.gmra.mrb[0].mxu0 %v1689
        %v6947 = vpop.f32.mrb[0].mxu0
        %v6948 = vadd.f32 %v6755, %v6947
        %v6949 = vpop.f32.mrb[0].mxu0
        %v6950 = vadd.f32 %v6757, %v6949
        %v6951 = vpop.f32.mrb[0].mxu0
        %v6952 = vadd.f32 %v6759, %v6951
        %v6953 = vpop.f32.mrb[0].mxu0
        %v6954 = vadd.f32 %v6761, %v6953
        %6955 = vmatprep.mubr.bf16.mxu0 %v1698
        %6956 = vmatmul.mubr.bf16.gmra.mrb[0].mxu0 %v1695
        %v6957 = vpop.f32.mrb[0].mxu0
        %v6958 = vadd.f32 %v6765, %v6957
        %v6959 = vpop.f32.mrb[0].mxu0
        %v6960 = vadd.f32 %v6767, %v6959
        %v6961 = vpop.f32.mrb[0].mxu0
        %v6962 = vadd.f32 %v6769, %v6961
        %v6963 = vpop.f32.mrb[0].mxu0
        %v6964 = vadd.f32 %v6771, %v6963
        %6965 = vmatprep.mubr.bf16.mxu0 %v1704
        %6966 = vmatmul.mubr.bf16.gmra.mrb[0].mxu0 %v1701
        %v6967 = vpop.f32.mrb[0].mxu0
        %v6968 = vadd.f32 %v6775, %v6967
        %v6969 = vpop.f32.mrb[0].mxu0
        %v6970 = vadd.f32 %v6777, %v6969
        %v6971 = vpop.f32.mrb[0].mxu0
        %v6972 = vadd.f32 %v6779, %v6971
        %v6973 = vpop.f32.mrb[0].mxu0
        %v6974 = vadd.f32 %v6781, %v6973
        %6975 = vmatprep.mubr.bf16.mxu0 %v1710
        %6976 = vmatmul.mubr.bf16.gmra.mrb[0].mxu0 %v1707
        %v6977 = vpop.f32.mrb[0].mxu0
        %v6978 = vadd.f32 %v6785, %v6977
        %v6979 = vpop.f32.mrb[0].mxu0
        %v6980 = vadd.f32 %v6787, %v6979
        %v6981 = vpop.f32.mrb[0].mxu0
        %v6982 = vadd.f32 %v6789, %v6981
        %v6983 = vpop.f32.mrb[0].mxu0
        %v6984 = vadd.f32 %v6791, %v6983
        %6985 = vmatprep.mubr.bf16.mxu0 %v1716
        %6986 = vmatmul.mubr.bf16.gmra.mrb[0].mxu0 %v1713
        %v6987 = vpop.f32.mrb[0].mxu0
        %v6988 = vadd.f32 %v6795, %v6987
        %v6989 = vpop.f32.mrb[0].mxu0
        %v6990 = vadd.f32 %v6797, %v6989
        %v6991 = vpop.f32.mrb[0].mxu0
        %v6992 = vadd.f32 %v6799, %v6991
        %v6993 = vpop.f32.mrb[0].mxu0
        %v6994 = vadd.f32 %v6801, %v6993
        %6995 = vmatprep.mubr.bf16.mxu0 %v1722
        %6996 = vmatmul.mubr.bf16.gmra.mrb[0].mxu0 %v1719
        %v6997 = vpop.f32.mrb[0].mxu0
        %v6998 = vadd.f32 %v6805, %v6997
        %v6999 = vpop.f32.mrb[0].mxu0
        %v7000 = vadd.f32 %v6807, %v6999
        %v7001 = vpop.f32.mrb[0].mxu0
        %v7002 = vadd.f32 %v6809, %v7001
        %v7003 = vpop.f32.mrb[0].mxu0
        %v7004 = vadd.f32 %v6811, %v7003
        %7005 = vmatprep.mubr.bf16.mxu0 %v1728
        %7006 = vmatmul.mubr.bf16.gmra.mrb[0].mxu0 %v1725
        %v7007 = vpop.f32.mrb[0].mxu0
        %v7008 = vadd.f32 %v6815, %v7007
        %v7009 = vpop.f32.mrb[0].mxu0
        %v7010 = vadd.f32 %v6817, %v7009
        %v7011 = vpop.f32.mrb[0].mxu0
        %v7012 = vadd.f32 %v6819, %v7011
        %v7013 = vpop.f32.mrb[0].mxu0
        %v7014 = vadd.f32 %v6821, %v7013
        %7015 = vmatprep.mubr.bf16.mxu0 %v1734
        %7016 = vmatmul.mubr.bf16.gmra.mrb[0].mxu0 %v1731
        %v7017 = vpop.f32.mrb[0].mxu0
        %v7018 = vadd.f32 %v6825, %v7017
        %v7019 = vpop.f32.mrb[0].mxu0
        %v7020 = vadd.f32 %v6827, %v7019
        %v7021 = vpop.f32.mrb[0].mxu0
        %v7022 = vadd.f32 %v6829, %v7021
        %v7023 = vpop.f32.mrb[0].mxu0
        %v7024 = vadd.f32 %v6831, %v7023
        %7025 = vmatprep.mubr.bf16.mxu0 %v1740
        %7026 = vmatmul.mubr.bf16.gmra.mrb[0].mxu0 %v1737
        %v7027 = vpop.f32.mrb[0].mxu0
        %v7028 = vadd.f32 %v6835, %v7027
        %v7029 = vpop.f32.mrb[0].mxu0
        %v7030 = vadd.f32 %v6837, %v7029
        %v7031 = vpop.f32.mrb[0].mxu0
        %v7032 = vadd.f32 %v6839, %v7031
        %v7033 = vpop.f32.mrb[0].mxu0
        %v7034 = vadd.f32 %v6841, %v7033
        %7035 = vmatprep.mubr.bf16.mxu0 %v1746
        %7036 = vmatmul.mubr.bf16.gmra.mrb[0].mxu0 %v1743
        %v7037 = vpop.f32.mrb[0].mxu0
        %v7038 = vadd.f32 %v6845, %v7037
        %v7039 = vpop.f32.mrb[0].mxu0
        %v7040 = vadd.f32 %v6847, %v7039
        %v7041 = vpop.f32.mrb[0].mxu0
        %v7042 = vadd.f32 %v6849, %v7041
        %v7043 = vpop.f32.mrb[0].mxu0
        %v7044 = vadd.f32 %v6851, %v7043
        %7045 = vmatprep.mubr.bf16.mxu0 %v1752
        %7046 = vmatmul.mubr.bf16.gmra.mrb[0].mxu0 %v1749
        %v7047 = vpop.f32.mrb[0].mxu0
        %v7048 = vadd.f32 %v6855, %v7047
        %v7049 = vpop.f32.mrb[0].mxu0
        %v7050 = vadd.f32 %v6857, %v7049
        %v7051 = vpop.f32.mrb[0].mxu0
        %v7052 = vadd.f32 %v6859, %v7051
        %v7053 = vpop.f32.mrb[0].mxu0
        %v7054 = vadd.f32 %v6861, %v7053
        %7055 = vmatprep.mubr.bf16.mxu0 %v1820
        %7056 = vmatmul.mubr.bf16.gmra.mrb[0].mxu0 %v1817
        %v7057 = vpop.f32.mrb[0].mxu0
        %v7058 = vadd.f32 %v6865, %v7057
        %v7059 = vpop.f32.mrb[0].mxu0
        %v7060 = vadd.f32 %v6867, %v7059
        %v7061 = vpop.f32.mrb[0].mxu0
        %v7062 = vadd.f32 %v6869, %v7061
        %v7063 = vpop.f32.mrb[0].mxu0
        %v7064 = vadd.f32 %v6871, %v7063
        %7065 = vmatprep.mubr.bf16.mxu0 %v1858
        %7066 = vmatmul.mubr.bf16.gmra.mrb[0].mxu0 %v1855
        %v7067 = vpop.f32.mrb[0].mxu0
        %v7068 = vadd.f32 %v6875, %v7067
        %v7069 = vpop.f32.mrb[0].mxu0
        %v7070 = vadd.f32 %v6877, %v7069
        %v7071 = vpop.f32.mrb[0].mxu0
        %v7072 = vadd.f32 %v6879, %v7071
        %v7073 = vpop.f32.mrb[0].mxu0
        %v7074 = vadd.f32 %v6881, %v7073
        %7075 = vdwg.mxu0
        %7076 = vmatprep.subr.bf16.mxu0 %v4190
        %7077 = vmatpush1.bf16.msra.mxu0 %v4189
        %7078 = vmatprep.subr.bf16.mxu0 %v4194
        %7079 = vmatpush1.bf16.msra.mxu0 %v4193
        %7080 = vmatprep.subr.bf16.mxu0 %v4198
        %7081 = vmatpush1.bf16.msra.mxu0 %v4197
        %7082 = vmatprep.subr.bf16.mxu0 %v4202
        %7083 = vmatpush1.bf16.msra.mxu0 %v4201
        %7084 = vmatprep.subr.bf16.mxu0 %v4206
        %7085 = vmatpush1.bf16.msra.mxu0 %v4205
        %7086 = vmatprep.subr.bf16.mxu0 %v4210
        %7087 = vmatpush1.bf16.msra.mxu0 %v4209
        %7088 = vmatprep.subr.bf16.mxu0 %v4214
        %7089 = vmatpush1.bf16.msra.mxu0 %v4213
        %7090 = vmatprep.subr.bf16.mxu0 %v4218
        %7091 = vmatpush1.bf16.msra.mxu0 %v4217
        %7092 = vmatprep.subr.bf16.mxu0 %v4222
        %7093 = vmatpush1.bf16.msra.mxu0 %v4221
        %7094 = vmatprep.subr.bf16.mxu0 %v4226
        %7095 = vmatpush1.bf16.msra.mxu0 %v4225
        %7096 = vmatprep.subr.bf16.mxu0 %v4230
        %7097 = vmatpush1.bf16.msra.mxu0 %v4229
        %7098 = vmatprep.subr.bf16.mxu0 %v4234
        %7099 = vmatpush1.bf16.msra.mxu0 %v4233
        %7100 = vmatprep.subr.bf16.mxu0 %v4238
        %7101 = vmatpush1.bf16.msra.mxu0 %v4237
        %7102 = vmatprep.subr.bf16.mxu0 %v4242
        %7103 = vmatpush1.bf16.msra.mxu0 %v4241
        %7104 = vmatprep.subr.bf16.mxu0 %v4246
        %7105 = vmatpush1.bf16.msra.mxu0 %v4245
        %7106 = vmatprep.subr.bf16.mxu0 %v4250
        %7107 = vmatpush1.bf16.msra.mxu0 %v4249
        %7108 = vmatprep.mubr.bf16.mxu0 %v1104
        %7109 = vmatmul.mubr.bf16.gmra.mrb[0].mxu0 %v1103
        %v7110 = vpop.f32.mrb[0].mxu0
        %v7111 = vadd.f32 %v2450, %v7110
        %v7112 = vpop.f32.mrb[0].mxu0
        %v7113 = vadd.f32 %v2454, %v7112
        %v7114 = vpop.f32.mrb[0].mxu0
        %v7115 = vadd.f32 %v2450, %v7114
        %v7116 = vpop.f32.mrb[0].mxu0
        %v7117 = vadd.f32 %v2454, %v7116
        %7118 = vmatprep.mubr.bf16.mxu0 %v1108
        %7119 = vmatmul.mubr.bf16.gmra.mrb[0].mxu0 %v1107
        %v7120 = vpop.f32.mrb[0].mxu0
        %v7121 = vadd.f32 %v2450, %v7120
        %v7122 = vpop.f32.mrb[0].mxu0
        %v7123 = vadd.f32 %v2454, %v7122
        %v7124 = vpop.f32.mrb[0].mxu0
        %v7125 = vadd.f32 %v2450, %v7124
        %v7126 = vpop.f32.mrb[0].mxu0
        %v7127 = vadd.f32 %v2454, %v7126
        %7128 = vmatprep.mubr.bf16.mxu0 %v1112
        %7129 = vmatmul.mubr.bf16.gmra.mrb[0].mxu0 %v1111
        %v7130 = vpop.f32.mrb[0].mxu0
        %v7131 = vadd.f32 %v2450, %v7130
        %v7132 = vpop.f32.mrb[0].mxu0
        %v7133 = vadd.f32 %v2454, %v7132
        %v7134 = vpop.f32.mrb[0].mxu0
        %v7135 = vadd.f32 %v2450, %v7134
        %v7136 = vpop.f32.mrb[0].mxu0
        %v7137 = vadd.f32 %v2454, %v7136
        %7138 = vmatprep.mubr.bf16.mxu0 %v1116
        %7139 = vmatmul.mubr.bf16.gmra.mrb[0].mxu0 %v1115
        %v7140 = vpop.f32.mrb[0].mxu0
        %v7141 = vadd.f32 %v2450, %v7140
        %v7142 = vpop.f32.mrb[0].mxu0
        %v7143 = vadd.f32 %v2454, %v7142
        %v7144 = vpop.f32.mrb[0].mxu0
        %v7145 = vadd.f32 %v2450, %v7144
        %v7146 = vpop.f32.mrb[0].mxu0
        %v7147 = vadd.f32 %v2454, %v7146
        %7148 = vmatprep.mubr.bf16.mxu0 %v1120
        %7149 = vmatmul.mubr.bf16.gmra.mrb[0].mxu0 %v1119
        %v7150 = vpop.f32.mrb[0].mxu0
        %v7151 = vadd.f32 %v2450, %v7150
        %v7152 = vpop.f32.mrb[0].mxu0
        %v7153 = vadd.f32 %v2454, %v7152
        %v7154 = vpop.f32.mrb[0].mxu0
        %v7155 = vadd.f32 %v2450, %v7154
        %v7156 = vpop.f32.mrb[0].mxu0
        %v7157 = vadd.f32 %v2454, %v7156
        %7158 = vmatprep.mubr.bf16.mxu0 %v1124
        %7159 = vmatmul.mubr.bf16.gmra.mrb[0].mxu0 %v1123
        %v7160 = vpop.f32.mrb[0].mxu0
        %v7161 = vadd.f32 %v2450, %v7160
        %v7162 = vpop.f32.mrb[0].mxu0
        %v7163 = vadd.f32 %v2454, %v7162
        %v7164 = vpop.f32.mrb[0].mxu0
        %v7165 = vadd.f32 %v2450, %v7164
        %v7166 = vpop.f32.mrb[0].mxu0
        %v7167 = vadd.f32 %v2454, %v7166
        %7168 = vmatprep.mubr.bf16.mxu0 %v1128
        %7169 = vmatmul.mubr.bf16.gmra.mrb[0].mxu0 %v1127
        %v7170 = vpop.f32.mrb[0].mxu0
        %v7171 = vadd.f32 %v2450, %v7170
        %v7172 = vpop.f32.mrb[0].mxu0
        %v7173 = vadd.f32 %v2454, %v7172
        %v7174 = vpop.f32.mrb[0].mxu0
        %v7175 = vadd.f32 %v2450, %v7174
        %v7176 = vpop.f32.mrb[0].mxu0
        %v7177 = vadd.f32 %v2454, %v7176
        %7178 = vmatprep.mubr.bf16.mxu0 %v1132
        %7179 = vmatmul.mubr.bf16.gmra.mrb[0].mxu0 %v1131
        %v7180 = vpop.f32.mrb[0].mxu0
        %v7181 = vadd.f32 %v2450, %v7180
        %v7182 = vpop.f32.mrb[0].mxu0
        %v7183 = vadd.f32 %v2454, %v7182
        %v7184 = vpop.f32.mrb[0].mxu0
        %v7185 = vadd.f32 %v2450, %v7184
        %v7186 = vpop.f32.mrb[0].mxu0
        %v7187 = vadd.f32 %v2454, %v7186
        %7188 = vmatprep.mubr.bf16.mxu0 %v1136
        %7189 = vmatmul.mubr.bf16.gmra.mrb[0].mxu0 %v1135
        %v7190 = vpop.f32.mrb[0].mxu0
        %v7191 = vadd.f32 %v2450, %v7190
        %v7192 = vpop.f32.mrb[0].mxu0
        %v7193 = vadd.f32 %v2454, %v7192
        %v7194 = vpop.f32.mrb[0].mxu0
        %v7195 = vadd.f32 %v2450, %v7194
        %v7196 = vpop.f32.mrb[0].mxu0
        %v7197 = vadd.f32 %v2454, %v7196
        %7198 = vmatprep.mubr.bf16.mxu0 %v1140
        %7199 = vmatmul.mubr.bf16.gmra.mrb[0].mxu0 %v1139
        %v7200 = vpop.f32.mrb[0].mxu0
        %v7201 = vadd.f32 %v2450, %v7200
        %v7202 = vpop.f32.mrb[0].mxu0
        %v7203 = vadd.f32 %v2454, %v7202
        %v7204 = vpop.f32.mrb[0].mxu0
        %v7205 = vadd.f32 %v2450, %v7204
        %v7206 = vpop.f32.mrb[0].mxu0
        %v7207 = vadd.f32 %v2454, %v7206
        %7208 = vmatprep.mubr.bf16.mxu0 %v1144
        %7209 = vmatmul.mubr.bf16.gmra.mrb[0].mxu0 %v1143
        %v7210 = vpop.f32.mrb[0].mxu0
        %v7211 = vadd.f32 %v2450, %v7210
        %v7212 = vpop.f32.mrb[0].mxu0
        %v7213 = vadd.f32 %v2454, %v7212
        %v7214 = vpop.f32.mrb[0].mxu0
        %v7215 = vadd.f32 %v2450, %v7214
        %v7216 = vpop.f32.mrb[0].mxu0
        %v7217 = vadd.f32 %v2454, %v7216
        %7218 = vmatprep.mubr.bf16.mxu0 %v1148
        %7219 = vmatmul.mubr.bf16.gmra.mrb[0].mxu0 %v1147
        %v7220 = vpop.f32.mrb[0].mxu0
        %v7221 = vadd.f32 %v2450, %v7220
        %v7222 = vpop.f32.mrb[0].mxu0
        %v7223 = vadd.f32 %v2454, %v7222
        %v7224 = vpop.f32.mrb[0].mxu0
        %v7225 = vadd.f32 %v2450, %v7224
        %v7226 = vpop.f32.mrb[0].mxu0
        %v7227 = vadd.f32 %v2454, %v7226
        %7228 = vmatprep.mubr.bf16.mxu0 %v1152
        %7229 = vmatmul.mubr.bf16.gmra.mrb[0].mxu0 %v1151
        %v7230 = vpop.f32.mrb[0].mxu0
        %v7231 = vadd.f32 %v2450, %v7230
        %v7232 = vpop.f32.mrb[0].mxu0
        %v7233 = vadd.f32 %v2454, %v7232
        %v7234 = vpop.f32.mrb[0].mxu0
        %v7235 = vadd.f32 %v2450, %v7234
        %v7236 = vpop.f32.mrb[0].mxu0
        %v7237 = vadd.f32 %v2454, %v7236
        %7238 = vmatprep.mubr.bf16.mxu0 %v1156
        %7239 = vmatmul.mubr.bf16.gmra.mrb[0].mxu0 %v1155
        %v7240 = vpop.f32.mrb[0].mxu0
        %v7241 = vadd.f32 %v2450, %v7240
        %v7242 = vpop.f32.mrb[0].mxu0
        %v7243 = vadd.f32 %v2454, %v7242
        %v7244 = vpop.f32.mrb[0].mxu0
        %v7245 = vadd.f32 %v2450, %v7244
        %v7246 = vpop.f32.mrb[0].mxu0
        %v7247 = vadd.f32 %v2454, %v7246
        %7248 = vmatprep.mubr.bf16.mxu0 %v1160
        %7249 = vmatmul.mubr.bf16.gmra.mrb[0].mxu0 %v1159
        %v7250 = vpop.f32.mrb[0].mxu0
        %v7251 = vadd.f32 %v2450, %v7250
        %v7252 = vpop.f32.mrb[0].mxu0
        %v7253 = vadd.f32 %v2454, %v7252
        %v7254 = vpop.f32.mrb[0].mxu0
        %v7255 = vadd.f32 %v2450, %v7254
        %v7256 = vpop.f32.mrb[0].mxu0
        %v7257 = vadd.f32 %v2454, %v7256
        %7258 = vmatprep.mubr.bf16.mxu0 %v1164
        %7259 = vmatmul.mubr.bf16.gmra.mrb[0].mxu0 %v1163
        %v7260 = vpop.f32.mrb[0].mxu0
        %v7261 = vadd.f32 %v2450, %v7260
        %v7262 = vpop.f32.mrb[0].mxu0
        %v7263 = vadd.f32 %v2454, %v7262
        %v7264 = vpop.f32.mrb[0].mxu0
        %v7265 = vadd.f32 %v2450, %v7264
        %v7266 = vpop.f32.mrb[0].mxu0
        %v7267 = vadd.f32 %v2454, %v7266
        %7268 = vdwg.mxu0
        %7269 = vmatprep.subr.bf16.mxu0 %v4254
        %7270 = vmatpush1.bf16.msra.mxu0 %v4253
        %7271 = vmatprep.subr.bf16.mxu0 %v4258
        %7272 = vmatpush1.bf16.msra.mxu0 %v4257
        %7273 = vmatprep.subr.bf16.mxu0 %v4262
        %7274 = vmatpush1.bf16.msra.mxu0 %v4261
        %7275 = vmatprep.subr.bf16.mxu0 %v4266
        %7276 = vmatpush1.bf16.msra.mxu0 %v4265
        %7277 = vmatprep.subr.bf16.mxu0 %v4270
        %7278 = vmatpush1.bf16.msra.mxu0 %v4269
        %7279 = vmatprep.subr.bf16.mxu0 %v4274
        %7280 = vmatpush1.bf16.msra.mxu0 %v4273
        %7281 = vmatprep.subr.bf16.mxu0 %v4278
        %7282 = vmatpush1.bf16.msra.mxu0 %v4277
        %7283 = vmatprep.subr.bf16.mxu0 %v4282
        %7284 = vmatpush1.bf16.msra.mxu0 %v4281
        %7285 = vmatprep.subr.bf16.mxu0 %v4286
        %7286 = vmatpush1.bf16.msra.mxu0 %v4285
        %7287 = vmatprep.subr.bf16.mxu0 %v4290
        %7288 = vmatpush1.bf16.msra.mxu0 %v4289
        %7289 = vmatprep.subr.bf16.mxu0 %v4294
        %7290 = vmatpush1.bf16.msra.mxu0 %v4293
        %7291 = vmatprep.subr.bf16.mxu0 %v4298
        %7292 = vmatpush1.bf16.msra.mxu0 %v4297
        %7293 = vmatprep.subr.bf16.mxu0 %v4302
        %7294 = vmatpush1.bf16.msra.mxu0 %v4301
        %7295 = vmatprep.subr.bf16.mxu0 %v4306
        %7296 = vmatpush1.bf16.msra.mxu0 %v4305
        %7297 = vmatprep.subr.bf16.mxu0 %v4310
        %7298 = vmatpush1.bf16.msra.mxu0 %v4309
        %7299 = vmatprep.subr.bf16.mxu0 %v4314
        %7300 = vmatpush1.bf16.msra.mxu0 %v4313
        %7301 = vmatprep.mubr.bf16.mxu0 %v1199
        %7302 = vmatmul.mubr.bf16.gmra.mrb[0].mxu0 %v1187
        %v7303 = vpop.f32.mrb[0].mxu0
        %v7304 = vadd.f32 %v7111, %v7303
        %v7305 = vpop.f32.mrb[0].mxu0
        %v7306 = vadd.f32 %v7113, %v7305
        %v7307 = vpop.f32.mrb[0].mxu0
        %v7308 = vadd.f32 %v7115, %v7307
        %v7309 = vpop.f32.mrb[0].mxu0
        %v7310 = vadd.f32 %v7117, %v7309
        %7311 = vmatprep.mubr.bf16.mxu0 %v1223
        %7312 = vmatmul.mubr.bf16.gmra.mrb[0].mxu0 %v1211
        %v7313 = vpop.f32.mrb[0].mxu0
        %v7314 = vadd.f32 %v7121, %v7313
        %v7315 = vpop.f32.mrb[0].mxu0
        %v7316 = vadd.f32 %v7123, %v7315
        %v7317 = vpop.f32.mrb[0].mxu0
        %v7318 = vadd.f32 %v7125, %v7317
        %v7319 = vpop.f32.mrb[0].mxu0
        %v7320 = vadd.f32 %v7127, %v7319
        %7321 = vmatprep.mubr.bf16.mxu0 %v1247
        %7322 = vmatmul.mubr.bf16.gmra.mrb[0].mxu0 %v1235
        %v7323 = vpop.f32.mrb[0].mxu0
        %v7324 = vadd.f32 %v7131, %v7323
        %v7325 = vpop.f32.mrb[0].mxu0
        %v7326 = vadd.f32 %v7133, %v7325
        %v7327 = vpop.f32.mrb[0].mxu0
        %v7328 = vadd.f32 %v7135, %v7327
        %v7329 = vpop.f32.mrb[0].mxu0
        %v7330 = vadd.f32 %v7137, %v7329
        %7331 = vmatprep.mubr.bf16.mxu0 %v1271
        %7332 = vmatmul.mubr.bf16.gmra.mrb[0].mxu0 %v1259
        %v7333 = vpop.f32.mrb[0].mxu0
        %v7334 = vadd.f32 %v7141, %v7333
        %v7335 = vpop.f32.mrb[0].mxu0
        %v7336 = vadd.f32 %v7143, %v7335
        %v7337 = vpop.f32.mrb[0].mxu0
        %v7338 = vadd.f32 %v7145, %v7337
        %v7339 = vpop.f32.mrb[0].mxu0
        %v7340 = vadd.f32 %v7147, %v7339
        %7341 = vmatprep.mubr.bf16.mxu0 %v1295
        %7342 = vmatmul.mubr.bf16.gmra.mrb[0].mxu0 %v1283
        %v7343 = vpop.f32.mrb[0].mxu0
        %v7344 = vadd.f32 %v7151, %v7343
        %v7345 = vpop.f32.mrb[0].mxu0
        %v7346 = vadd.f32 %v7153, %v7345
        %v7347 = vpop.f32.mrb[0].mxu0
        %v7348 = vadd.f32 %v7155, %v7347
        %v7349 = vpop.f32.mrb[0].mxu0
        %v7350 = vadd.f32 %v7157, %v7349
        %7351 = vmatprep.mubr.bf16.mxu0 %v1319
        %7352 = vmatmul.mubr.bf16.gmra.mrb[0].mxu0 %v1307
        %v7353 = vpop.f32.mrb[0].mxu0
        %v7354 = vadd.f32 %v7161, %v7353
        %v7355 = vpop.f32.mrb[0].mxu0
        %v7356 = vadd.f32 %v7163, %v7355
        %v7357 = vpop.f32.mrb[0].mxu0
        %v7358 = vadd.f32 %v7165, %v7357
        %v7359 = vpop.f32.mrb[0].mxu0
        %v7360 = vadd.f32 %v7167, %v7359
        %7361 = vmatprep.mubr.bf16.mxu0 %v1343
        %7362 = vmatmul.mubr.bf16.gmra.mrb[0].mxu0 %v1331
        %v7363 = vpop.f32.mrb[0].mxu0
        %v7364 = vadd.f32 %v7171, %v7363
        %v7365 = vpop.f32.mrb[0].mxu0
        %v7366 = vadd.f32 %v7173, %v7365
        %v7367 = vpop.f32.mrb[0].mxu0
        %v7368 = vadd.f32 %v7175, %v7367
        %v7369 = vpop.f32.mrb[0].mxu0
        %v7370 = vadd.f32 %v7177, %v7369
        %7371 = vmatprep.mubr.bf16.mxu0 %v1367
        %7372 = vmatmul.mubr.bf16.gmra.mrb[0].mxu0 %v1355
        %v7373 = vpop.f32.mrb[0].mxu0
        %v7374 = vadd.f32 %v7181, %v7373
        %v7375 = vpop.f32.mrb[0].mxu0
        %v7376 = vadd.f32 %v7183, %v7375
        %v7377 = vpop.f32.mrb[0].mxu0
        %v7378 = vadd.f32 %v7185, %v7377
        %v7379 = vpop.f32.mrb[0].mxu0
        %v7380 = vadd.f32 %v7187, %v7379
        %7381 = vmatprep.mubr.bf16.mxu0 %v1391
        %7382 = vmatmul.mubr.bf16.gmra.mrb[0].mxu0 %v1379
        %v7383 = vpop.f32.mrb[0].mxu0
        %v7384 = vadd.f32 %v7191, %v7383
        %v7385 = vpop.f32.mrb[0].mxu0
        %v7386 = vadd.f32 %v7193, %v7385
        %v7387 = vpop.f32.mrb[0].mxu0
        %v7388 = vadd.f32 %v7195, %v7387
        %v7389 = vpop.f32.mrb[0].mxu0
        %v7390 = vadd.f32 %v7197, %v7389
        %7391 = vmatprep.mubr.bf16.mxu0 %v1415
        %7392 = vmatmul.mubr.bf16.gmra.mrb[0].mxu0 %v1403
        %v7393 = vpop.f32.mrb[0].mxu0
        %v7394 = vadd.f32 %v7201, %v7393
        %v7395 = vpop.f32.mrb[0].mxu0
        %v7396 = vadd.f32 %v7203, %v7395
        %v7397 = vpop.f32.mrb[0].mxu0
        %v7398 = vadd.f32 %v7205, %v7397
        %v7399 = vpop.f32.mrb[0].mxu0
        %v7400 = vadd.f32 %v7207, %v7399
        %7401 = vmatprep.mubr.bf16.mxu0 %v1439
        %7402 = vmatmul.mubr.bf16.gmra.mrb[0].mxu0 %v1427
        %v7403 = vpop.f32.mrb[0].mxu0
        %v7404 = vadd.f32 %v7211, %v7403
        %v7405 = vpop.f32.mrb[0].mxu0
        %v7406 = vadd.f32 %v7213, %v7405
        %v7407 = vpop.f32.mrb[0].mxu0
        %v7408 = vadd.f32 %v7215, %v7407
        %v7409 = vpop.f32.mrb[0].mxu0
        %v7410 = vadd.f32 %v7217, %v7409
        %7411 = vmatprep.mubr.bf16.mxu0 %v1463
        %7412 = vmatmul.mubr.bf16.gmra.mrb[0].mxu0 %v1451
        %v7413 = vpop.f32.mrb[0].mxu0
        %v7414 = vadd.f32 %v7221, %v7413
        %v7415 = vpop.f32.mrb[0].mxu0
        %v7416 = vadd.f32 %v7223, %v7415
        %v7417 = vpop.f32.mrb[0].mxu0
        %v7418 = vadd.f32 %v7225, %v7417
        %v7419 = vpop.f32.mrb[0].mxu0
        %v7420 = vadd.f32 %v7227, %v7419
        %7421 = vmatprep.mubr.bf16.mxu0 %v1487
        %7422 = vmatmul.mubr.bf16.gmra.mrb[0].mxu0 %v1475
        %v7423 = vpop.f32.mrb[0].mxu0
        %v7424 = vadd.f32 %v7231, %v7423
        %v7425 = vpop.f32.mrb[0].mxu0
        %v7426 = vadd.f32 %v7233, %v7425
        %v7427 = vpop.f32.mrb[0].mxu0
        %v7428 = vadd.f32 %v7235, %v7427
        %v7429 = vpop.f32.mrb[0].mxu0
        %v7430 = vadd.f32 %v7237, %v7429
        %7431 = vmatprep.mubr.bf16.mxu0 %v1511
        %7432 = vmatmul.mubr.bf16.gmra.mrb[0].mxu0 %v1499
        %v7433 = vpop.f32.mrb[0].mxu0
        %v7434 = vadd.f32 %v7241, %v7433
        %v7435 = vpop.f32.mrb[0].mxu0
        %v7436 = vadd.f32 %v7243, %v7435
        %v7437 = vpop.f32.mrb[0].mxu0
        %v7438 = vadd.f32 %v7245, %v7437
        %v7439 = vpop.f32.mrb[0].mxu0
        %v7440 = vadd.f32 %v7247, %v7439
        %7441 = vmatprep.mubr.bf16.mxu0 %v1535
        %7442 = vmatmul.mubr.bf16.gmra.mrb[0].mxu0 %v1523
        %v7443 = vpop.f32.mrb[0].mxu0
        %v7444 = vadd.f32 %v7251, %v7443
        %v7445 = vpop.f32.mrb[0].mxu0
        %v7446 = vadd.f32 %v7253, %v7445
        %v7447 = vpop.f32.mrb[0].mxu0
        %v7448 = vadd.f32 %v7255, %v7447
        %v7449 = vpop.f32.mrb[0].mxu0
        %v7450 = vadd.f32 %v7257, %v7449
        %7451 = vmatprep.mubr.bf16.mxu0 %v1559
        %7452 = vmatmul.mubr.bf16.gmra.mrb[0].mxu0 %v1547
        %v7453 = vpop.f32.mrb[0].mxu0
        %v7454 = vadd.f32 %v7261, %v7453
        %v7455 = vpop.f32.mrb[0].mxu0
        %v7456 = vadd.f32 %v7263, %v7455
        %v7457 = vpop.f32.mrb[0].mxu0
        %v7458 = vadd.f32 %v7265, %v7457
        %v7459 = vpop.f32.mrb[0].mxu0
        %v7460 = vadd.f32 %v7267, %v7459
        %7461 = vdwg.mxu0
        %7462 = vmatprep.subr.bf16.mxu0 %v4318
        %7463 = vmatpush1.bf16.msra.mxu0 %v4317
        %7464 = vmatprep.subr.bf16.mxu0 %v4322
        %7465 = vmatpush1.bf16.msra.mxu0 %v4321
        %7466 = vmatprep.subr.bf16.mxu0 %v4326
        %7467 = vmatpush1.bf16.msra.mxu0 %v4325
        %7468 = vmatprep.subr.bf16.mxu0 %v4330
        %7469 = vmatpush1.bf16.msra.mxu0 %v4329
        %7470 = vmatprep.subr.bf16.mxu0 %v4334
        %7471 = vmatpush1.bf16.msra.mxu0 %v4333
        %7472 = vmatprep.subr.bf16.mxu0 %v4338
        %7473 = vmatpush1.bf16.msra.mxu0 %v4337
        %7474 = vmatprep.subr.bf16.mxu0 %v4342
        %7475 = vmatpush1.bf16.msra.mxu0 %v4341
        %7476 = vmatprep.subr.bf16.mxu0 %v4346
        %7477 = vmatpush1.bf16.msra.mxu0 %v4345
        %7478 = vmatprep.subr.bf16.mxu0 %v4350
        %7479 = vmatpush1.bf16.msra.mxu0 %v4349
        %7480 = vmatprep.subr.bf16.mxu0 %v4354
        %7481 = vmatpush1.bf16.msra.mxu0 %v4353
        %7482 = vmatprep.subr.bf16.mxu0 %v4358
        %7483 = vmatpush1.bf16.msra.mxu0 %v4357
        %7484 = vmatprep.subr.bf16.mxu0 %v4362
        %7485 = vmatpush1.bf16.msra.mxu0 %v4361
        %7486 = vmatprep.subr.bf16.mxu0 %v4366
        %7487 = vmatpush1.bf16.msra.mxu0 %v4365
        %7488 = vmatprep.subr.bf16.mxu0 %v4370
        %7489 = vmatpush1.bf16.msra.mxu0 %v4369
        %7490 = vmatprep.subr.bf16.mxu0 %v4374
        %7491 = vmatpush1.bf16.msra.mxu0 %v4373
        %7492 = vmatprep.subr.bf16.mxu0 %v4378
        %7493 = vmatpush1.bf16.msra.mxu0 %v4377
        %7494 = vmatprep.mubr.bf16.mxu0 %v1662
        %7495 = vmatmul.mubr.bf16.gmra.mrb[0].mxu0 %v1659
        %v7496 = vpop.f32.mrb[0].mxu0
        %v7497 = vadd.f32 %v7304, %v7496
        %v7498 = vpop.f32.mrb[0].mxu0
        %v7499 = vadd.f32 %v7306, %v7498
        %v7500 = vpop.f32.mrb[0].mxu0
        %v7501 = vadd.f32 %v7308, %v7500
        %v7502 = vpop.f32.mrb[0].mxu0
        %v7503 = vadd.f32 %v7310, %v7502
        %7504 = vmatprep.mubr.bf16.mxu0 %v1668
        %7505 = vmatmul.mubr.bf16.gmra.mrb[0].mxu0 %v1665
        %v7506 = vpop.f32.mrb[0].mxu0
        %v7507 = vadd.f32 %v7314, %v7506
        %v7508 = vpop.f32.mrb[0].mxu0
        %v7509 = vadd.f32 %v7316, %v7508
        %v7510 = vpop.f32.mrb[0].mxu0
        %v7511 = vadd.f32 %v7318, %v7510
        %v7512 = vpop.f32.mrb[0].mxu0
        %v7513 = vadd.f32 %v7320, %v7512
        %7514 = vmatprep.mubr.bf16.mxu0 %v1674
        %7515 = vmatmul.mubr.bf16.gmra.mrb[0].mxu0 %v1671
        %v7516 = vpop.f32.mrb[0].mxu0
        %v7517 = vadd.f32 %v7324, %v7516
        %v7518 = vpop.f32.mrb[0].mxu0
        %v7519 = vadd.f32 %v7326, %v7518
        %v7520 = vpop.f32.mrb[0].mxu0
        %v7521 = vadd.f32 %v7328, %v7520
        %v7522 = vpop.f32.mrb[0].mxu0
        %v7523 = vadd.f32 %v7330, %v7522
        %7524 = vmatprep.mubr.bf16.mxu0 %v1680
        %7525 = vmatmul.mubr.bf16.gmra.mrb[0].mxu0 %v1677
        %v7526 = vpop.f32.mrb[0].mxu0
        %v7527 = vadd.f32 %v7334, %v7526
        %v7528 = vpop.f32.mrb[0].mxu0
        %v7529 = vadd.f32 %v7336, %v7528
        %v7530 = vpop.f32.mrb[0].mxu0
        %v7531 = vadd.f32 %v7338, %v7530
        %v7532 = vpop.f32.mrb[0].mxu0
        %v7533 = vadd.f32 %v7340, %v7532
        %7534 = vmatprep.mubr.bf16.mxu0 %v1686
        %7535 = vmatmul.mubr.bf16.gmra.mrb[0].mxu0 %v1683
        %v7536 = vpop.f32.mrb[0].mxu0
        %v7537 = vadd.f32 %v7344, %v7536
        %v7538 = vpop.f32.mrb[0].mxu0
        %v7539 = vadd.f32 %v7346, %v7538
        %v7540 = vpop.f32.mrb[0].mxu0
        %v7541 = vadd.f32 %v7348, %v7540
        %v7542 = vpop.f32.mrb[0].mxu0
        %v7543 = vadd.f32 %v7350, %v7542
        %7544 = vmatprep.mubr.bf16.mxu0 %v1692
        %7545 = vmatmul.mubr.bf16.gmra.mrb[0].mxu0 %v1689
        %v7546 = vpop.f32.mrb[0].mxu0
        %v7547 = vadd.f32 %v7354, %v7546
        %v7548 = vpop.f32.mrb[0].mxu0
        %v7549 = vadd.f32 %v7356, %v7548
        %v7550 = vpop.f32.mrb[0].mxu0
        %v7551 = vadd.f32 %v7358, %v7550
        %v7552 = vpop.f32.mrb[0].mxu0
        %v7553 = vadd.f32 %v7360, %v7552
        %7554 = vmatprep.mubr.bf16.mxu0 %v1698
        %7555 = vmatmul.mubr.bf16.gmra.mrb[0].mxu0 %v1695
        %v7556 = vpop.f32.mrb[0].mxu0
        %v7557 = vadd.f32 %v7364, %v7556
        %v7558 = vpop.f32.mrb[0].mxu0
        %v7559 = vadd.f32 %v7366, %v7558
        %v7560 = vpop.f32.mrb[0].mxu0
        %v7561 = vadd.f32 %v7368, %v7560
        %v7562 = vpop.f32.mrb[0].mxu0
        %v7563 = vadd.f32 %v7370, %v7562
        %7564 = vmatprep.mubr.bf16.mxu0 %v1704
        %7565 = vmatmul.mubr.bf16.gmra.mrb[0].mxu0 %v1701
        %v7566 = vpop.f32.mrb[0].mxu0
        %v7567 = vadd.f32 %v7374, %v7566
        %v7568 = vpop.f32.mrb[0].mxu0
        %v7569 = vadd.f32 %v7376, %v7568
        %v7570 = vpop.f32.mrb[0].mxu0
        %v7571 = vadd.f32 %v7378, %v7570
        %v7572 = vpop.f32.mrb[0].mxu0
        %v7573 = vadd.f32 %v7380, %v7572
        %7574 = vmatprep.mubr.bf16.mxu0 %v1710
        %7575 = vmatmul.mubr.bf16.gmra.mrb[0].mxu0 %v1707
        %v7576 = vpop.f32.mrb[0].mxu0
        %v7577 = vadd.f32 %v7384, %v7576
        %v7578 = vpop.f32.mrb[0].mxu0
        %v7579 = vadd.f32 %v7386, %v7578
        %v7580 = vpop.f32.mrb[0].mxu0
        %v7581 = vadd.f32 %v7388, %v7580
        %v7582 = vpop.f32.mrb[0].mxu0
        %v7583 = vadd.f32 %v7390, %v7582
        %7584 = vmatprep.mubr.bf16.mxu0 %v1716
        %7585 = vmatmul.mubr.bf16.gmra.mrb[0].mxu0 %v1713
        %v7586 = vpop.f32.mrb[0].mxu0
        %v7587 = vadd.f32 %v7394, %v7586
        %v7588 = vpop.f32.mrb[0].mxu0
        %v7589 = vadd.f32 %v7396, %v7588
        %v7590 = vpop.f32.mrb[0].mxu0
        %v7591 = vadd.f32 %v7398, %v7590
        %v7592 = vpop.f32.mrb[0].mxu0
        %v7593 = vadd.f32 %v7400, %v7592
        %7594 = vmatprep.mubr.bf16.mxu0 %v1722
        %7595 = vmatmul.mubr.bf16.gmra.mrb[0].mxu0 %v1719
        %v7596 = vpop.f32.mrb[0].mxu0
        %v7597 = vadd.f32 %v7404, %v7596
        %v7598 = vpop.f32.mrb[0].mxu0
        %v7599 = vadd.f32 %v7406, %v7598
        %v7600 = vpop.f32.mrb[0].mxu0
        %v7601 = vadd.f32 %v7408, %v7600
        %v7602 = vpop.f32.mrb[0].mxu0
        %v7603 = vadd.f32 %v7410, %v7602
        %7604 = vmatprep.mubr.bf16.mxu0 %v1728
        %7605 = vmatmul.mubr.bf16.gmra.mrb[0].mxu0 %v1725
        %v7606 = vpop.f32.mrb[0].mxu0
        %v7607 = vadd.f32 %v7414, %v7606
        %v7608 = vpop.f32.mrb[0].mxu0
        %v7609 = vadd.f32 %v7416, %v7608
        %v7610 = vpop.f32.mrb[0].mxu0
        %v7611 = vadd.f32 %v7418, %v7610
        %v7612 = vpop.f32.mrb[0].mxu0
        %v7613 = vadd.f32 %v7420, %v7612
        %7614 = vmatprep.mubr.bf16.mxu0 %v1734
        %7615 = vmatmul.mubr.bf16.gmra.mrb[0].mxu0 %v1731
        %v7616 = vpop.f32.mrb[0].mxu0
        %v7617 = vadd.f32 %v7424, %v7616
        %v7618 = vpop.f32.mrb[0].mxu0
        %v7619 = vadd.f32 %v7426, %v7618
        %v7620 = vpop.f32.mrb[0].mxu0
        %v7621 = vadd.f32 %v7428, %v7620
        %v7622 = vpop.f32.mrb[0].mxu0
        %v7623 = vadd.f32 %v7430, %v7622
        %7624 = vmatprep.mubr.bf16.mxu0 %v1740
        %7625 = vmatmul.mubr.bf16.gmra.mrb[0].mxu0 %v1737
        %v7626 = vpop.f32.mrb[0].mxu0
        %v7627 = vadd.f32 %v7434, %v7626
        %v7628 = vpop.f32.mrb[0].mxu0
        %v7629 = vadd.f32 %v7436, %v7628
        %v7630 = vpop.f32.mrb[0].mxu0
        %v7631 = vadd.f32 %v7438, %v7630
        %v7632 = vpop.f32.mrb[0].mxu0
        %v7633 = vadd.f32 %v7440, %v7632
        %7634 = vmatprep.mubr.bf16.mxu0 %v1746
        %7635 = vmatmul.mubr.bf16.gmra.mrb[0].mxu0 %v1743
        %v7636 = vpop.f32.mrb[0].mxu0
        %v7637 = vadd.f32 %v7444, %v7636
        %v7638 = vpop.f32.mrb[0].mxu0
        %v7639 = vadd.f32 %v7446, %v7638
        %v7640 = vpop.f32.mrb[0].mxu0
        %v7641 = vadd.f32 %v7448, %v7640
        %v7642 = vpop.f32.mrb[0].mxu0
        %v7643 = vadd.f32 %v7450, %v7642
        %7644 = vmatprep.mubr.bf16.mxu0 %v1752
        %7645 = vmatmul.mubr.bf16.gmra.mrb[0].mxu0 %v1749
        %v7646 = vpop.f32.mrb[0].mxu0
        %v7647 = vadd.f32 %v7454, %v7646
        %v7648 = vpop.f32.mrb[0].mxu0
        %v7649 = vadd.f32 %v7456, %v7648
        %v7650 = vpop.f32.mrb[0].mxu0
        %v7651 = vadd.f32 %v7458, %v7650
        %v7652 = vpop.f32.mrb[0].mxu0
        %v7653 = vadd.f32 %v7460, %v7652
        %7654 = vdwg.mxu0
        %7655 = vmatprep.subr.bf16.mxu0 %v4382
        %7656 = vmatpush1.bf16.msra.mxu0 %v4381
        %7657 = vmatprep.subr.bf16.mxu0 %v4386
        %7658 = vmatpush1.bf16.msra.mxu0 %v4385
        %7659 = vmatprep.subr.bf16.mxu0 %v4390
        %7660 = vmatpush1.bf16.msra.mxu0 %v4389
        %7661 = vmatprep.subr.bf16.mxu0 %v4394
        %7662 = vmatpush1.bf16.msra.mxu0 %v4393
        %7663 = vmatprep.subr.bf16.mxu0 %v4398
        %7664 = vmatpush1.bf16.msra.mxu0 %v4397
        %7665 = vmatprep.subr.bf16.mxu0 %v4402
        %7666 = vmatpush1.bf16.msra.mxu0 %v4401
        %7667 = vmatprep.subr.bf16.mxu0 %v4406
        %7668 = vmatpush1.bf16.msra.mxu0 %v4405
        %7669 = vmatprep.subr.bf16.mxu0 %v4410
        %7670 = vmatpush1.bf16.msra.mxu0 %v4409
        %7671 = vmatprep.subr.bf16.mxu0 %v4414
        %7672 = vmatpush1.bf16.msra.mxu0 %v4413
        %7673 = vmatprep.subr.bf16.mxu0 %v4418
        %7674 = vmatpush1.bf16.msra.mxu0 %v4417
        %7675 = vmatprep.subr.bf16.mxu0 %v4422
        %7676 = vmatpush1.bf16.msra.mxu0 %v4421
        %7677 = vmatprep.subr.bf16.mxu0 %v4426
        %7678 = vmatpush1.bf16.msra.mxu0 %v4425
        %7679 = vmatprep.subr.bf16.mxu0 %v4430
        %7680 = vmatpush1.bf16.msra.mxu0 %v4429
        %7681 = vmatprep.subr.bf16.mxu0 %v4434
        %7682 = vmatpush1.bf16.msra.mxu0 %v4433
        %7683 = vmatprep.subr.bf16.mxu0 %v4438
        %7684 = vmatpush1.bf16.msra.mxu0 %v4437
        %7685 = vmatprep.subr.bf16.mxu0 %v4442
        %7686 = vmatpush1.bf16.msra.mxu0 %v4441
        %7687 = vmatprep.mubr.bf16.mxu0 %v1108
        %7688 = vmatmul.mubr.bf16.gmra.mrb[0].mxu0 %v1107
        %v7689 = vpop.f32.mrb[0].mxu0
        %v7690 = vadd.f32 %v7497, %v7689
        %v7691 = vpop.f32.mrb[0].mxu0
        %v7692 = vadd.f32 %v7499, %v7691
        %v7693 = vpop.f32.mrb[0].mxu0
        %v7694 = vadd.f32 %v7501, %v7693
        %v7695 = vpop.f32.mrb[0].mxu0
        %v7696 = vadd.f32 %v7503, %v7695
        %7697 = vmatprep.mubr.bf16.mxu0 %v1112
        %7698 = vmatmul.mubr.bf16.gmra.mrb[0].mxu0 %v1111
        %v7699 = vpop.f32.mrb[0].mxu0
        %v7700 = vadd.f32 %v7507, %v7699
        %v7701 = vpop.f32.mrb[0].mxu0
        %v7702 = vadd.f32 %v7509, %v7701
        %v7703 = vpop.f32.mrb[0].mxu0
        %v7704 = vadd.f32 %v7511, %v7703
        %v7705 = vpop.f32.mrb[0].mxu0
        %v7706 = vadd.f32 %v7513, %v7705
        %7707 = vmatprep.mubr.bf16.mxu0 %v1116
        %7708 = vmatmul.mubr.bf16.gmra.mrb[0].mxu0 %v1115
        %v7709 = vpop.f32.mrb[0].mxu0
        %v7710 = vadd.f32 %v7517, %v7709
        %v7711 = vpop.f32.mrb[0].mxu0
        %v7712 = vadd.f32 %v7519, %v7711
        %v7713 = vpop.f32.mrb[0].mxu0
        %v7714 = vadd.f32 %v7521, %v7713
        %v7715 = vpop.f32.mrb[0].mxu0
        %v7716 = vadd.f32 %v7523, %v7715
        %7717 = vmatprep.mubr.bf16.mxu0 %v1120
        %7718 = vmatmul.mubr.bf16.gmra.mrb[0].mxu0 %v1119
        %v7719 = vpop.f32.mrb[0].mxu0
        %v7720 = vadd.f32 %v7527, %v7719
        %v7721 = vpop.f32.mrb[0].mxu0
        %v7722 = vadd.f32 %v7529, %v7721
        %v7723 = vpop.f32.mrb[0].mxu0
        %v7724 = vadd.f32 %v7531, %v7723
        %v7725 = vpop.f32.mrb[0].mxu0
        %v7726 = vadd.f32 %v7533, %v7725
        %7727 = vmatprep.mubr.bf16.mxu0 %v1124
        %7728 = vmatmul.mubr.bf16.gmra.mrb[0].mxu0 %v1123
        %v7729 = vpop.f32.mrb[0].mxu0
        %v7730 = vadd.f32 %v7537, %v7729
        %v7731 = vpop.f32.mrb[0].mxu0
        %v7732 = vadd.f32 %v7539, %v7731
        %v7733 = vpop.f32.mrb[0].mxu0
        %v7734 = vadd.f32 %v7541, %v7733
        %v7735 = vpop.f32.mrb[0].mxu0
        %v7736 = vadd.f32 %v7543, %v7735
        %7737 = vmatprep.mubr.bf16.mxu0 %v1128
        %7738 = vmatmul.mubr.bf16.gmra.mrb[0].mxu0 %v1127
        %v7739 = vpop.f32.mrb[0].mxu0
        %v7740 = vadd.f32 %v7547, %v7739
        %v7741 = vpop.f32.mrb[0].mxu0
        %v7742 = vadd.f32 %v7549, %v7741
        %v7743 = vpop.f32.mrb[0].mxu0
        %v7744 = vadd.f32 %v7551, %v7743
        %v7745 = vpop.f32.mrb[0].mxu0
        %v7746 = vadd.f32 %v7553, %v7745
        %7747 = vmatprep.mubr.bf16.mxu0 %v1132
        %7748 = vmatmul.mubr.bf16.gmra.mrb[0].mxu0 %v1131
        %v7749 = vpop.f32.mrb[0].mxu0
        %v7750 = vadd.f32 %v7557, %v7749
        %v7751 = vpop.f32.mrb[0].mxu0
        %v7752 = vadd.f32 %v7559, %v7751
        %v7753 = vpop.f32.mrb[0].mxu0
        %v7754 = vadd.f32 %v7561, %v7753
        %v7755 = vpop.f32.mrb[0].mxu0
        %v7756 = vadd.f32 %v7563, %v7755
        %7757 = vmatprep.mubr.bf16.mxu0 %v1136
        %7758 = vmatmul.mubr.bf16.gmra.mrb[0].mxu0 %v1135
        %v7759 = vpop.f32.mrb[0].mxu0
        %v7760 = vadd.f32 %v7567, %v7759
        %v7761 = vpop.f32.mrb[0].mxu0
        %v7762 = vadd.f32 %v7569, %v7761
        %v7763 = vpop.f32.mrb[0].mxu0
        %v7764 = vadd.f32 %v7571, %v7763
        %v7765 = vpop.f32.mrb[0].mxu0
        %v7766 = vadd.f32 %v7573, %v7765
        %7767 = vmatprep.mubr.bf16.mxu0 %v1140
        %7768 = vmatmul.mubr.bf16.gmra.mrb[0].mxu0 %v1139
        %v7769 = vpop.f32.mrb[0].mxu0
        %v7770 = vadd.f32 %v7577, %v7769
        %v7771 = vpop.f32.mrb[0].mxu0
        %v7772 = vadd.f32 %v7579, %v7771
        %v7773 = vpop.f32.mrb[0].mxu0
        %v7774 = vadd.f32 %v7581, %v7773
        %v7775 = vpop.f32.mrb[0].mxu0
        %v7776 = vadd.f32 %v7583, %v7775
        %7777 = vmatprep.mubr.bf16.mxu0 %v1144
        %7778 = vmatmul.mubr.bf16.gmra.mrb[0].mxu0 %v1143
        %v7779 = vpop.f32.mrb[0].mxu0
        %v7780 = vadd.f32 %v7587, %v7779
        %v7781 = vpop.f32.mrb[0].mxu0
        %v7782 = vadd.f32 %v7589, %v7781
        %v7783 = vpop.f32.mrb[0].mxu0
        %v7784 = vadd.f32 %v7591, %v7783
        %v7785 = vpop.f32.mrb[0].mxu0
        %v7786 = vadd.f32 %v7593, %v7785
        %7787 = vmatprep.mubr.bf16.mxu0 %v1148
        %7788 = vmatmul.mubr.bf16.gmra.mrb[0].mxu0 %v1147
        %v7789 = vpop.f32.mrb[0].mxu0
        %v7790 = vadd.f32 %v7597, %v7789
        %v7791 = vpop.f32.mrb[0].mxu0
        %v7792 = vadd.f32 %v7599, %v7791
        %v7793 = vpop.f32.mrb[0].mxu0
        %v7794 = vadd.f32 %v7601, %v7793
        %v7795 = vpop.f32.mrb[0].mxu0
        %v7796 = vadd.f32 %v7603, %v7795
        %7797 = vmatprep.mubr.bf16.mxu0 %v1152
        %7798 = vmatmul.mubr.bf16.gmra.mrb[0].mxu0 %v1151
        %v7799 = vpop.f32.mrb[0].mxu0
        %v7800 = vadd.f32 %v7607, %v7799
        %v7801 = vpop.f32.mrb[0].mxu0
        %v7802 = vadd.f32 %v7609, %v7801
        %v7803 = vpop.f32.mrb[0].mxu0
        %v7804 = vadd.f32 %v7611, %v7803
        %v7805 = vpop.f32.mrb[0].mxu0
        %v7806 = vadd.f32 %v7613, %v7805
        %7807 = vmatprep.mubr.bf16.mxu0 %v1156
        %7808 = vmatmul.mubr.bf16.gmra.mrb[0].mxu0 %v1155
        %v7809 = vpop.f32.mrb[0].mxu0
        %v7810 = vadd.f32 %v7617, %v7809
        %v7811 = vpop.f32.mrb[0].mxu0
        %v7812 = vadd.f32 %v7619, %v7811
        %v7813 = vpop.f32.mrb[0].mxu0
        %v7814 = vadd.f32 %v7621, %v7813
        %v7815 = vpop.f32.mrb[0].mxu0
        %v7816 = vadd.f32 %v7623, %v7815
        %7817 = vmatprep.mubr.bf16.mxu0 %v1160
        %7818 = vmatmul.mubr.bf16.gmra.mrb[0].mxu0 %v1159
        %v7819 = vpop.f32.mrb[0].mxu0
        %v7820 = vadd.f32 %v7627, %v7819
        %v7821 = vpop.f32.mrb[0].mxu0
        %v7822 = vadd.f32 %v7629, %v7821
        %v7823 = vpop.f32.mrb[0].mxu0
        %v7824 = vadd.f32 %v7631, %v7823
        %v7825 = vpop.f32.mrb[0].mxu0
        %v7826 = vadd.f32 %v7633, %v7825
        %7827 = vmatprep.mubr.bf16.mxu0 %v1164
        %7828 = vmatmul.mubr.bf16.gmra.mrb[0].mxu0 %v1163
        %v7829 = vpop.f32.mrb[0].mxu0
        %v7830 = vadd.f32 %v7637, %v7829
        %v7831 = vpop.f32.mrb[0].mxu0
        %v7832 = vadd.f32 %v7639, %v7831
        %v7833 = vpop.f32.mrb[0].mxu0
        %v7834 = vadd.f32 %v7641, %v7833
        %v7835 = vpop.f32.mrb[0].mxu0
        %v7836 = vadd.f32 %v7643, %v7835
        %7837 = vmatprep.mubr.bf16.mxu0 %v1168
        %7838 = vmatmul.mubr.bf16.gmra.mrb[0].mxu0 %v1167
        %v7839 = vpop.f32.mrb[0].mxu0
        %v7840 = vadd.f32 %v7647, %v7839
        %v7841 = vpop.f32.mrb[0].mxu0
        %v7842 = vadd.f32 %v7649, %v7841
        %v7843 = vpop.f32.mrb[0].mxu0
        %v7844 = vadd.f32 %v7651, %v7843
        %v7845 = vpop.f32.mrb[0].mxu0
        %v7846 = vadd.f32 %v7653, %v7845
        %7847 = vdwg.mxu0
        %7848 = vmatprep.subr.bf16.mxu0 %v4446
        %7849 = vmatpush1.bf16.msra.mxu0 %v4445
        %7850 = vmatprep.subr.bf16.mxu0 %v4450
        %7851 = vmatpush1.bf16.msra.mxu0 %v4449
        %7852 = vmatprep.subr.bf16.mxu0 %v4454
        %7853 = vmatpush1.bf16.msra.mxu0 %v4453
        %7854 = vmatprep.subr.bf16.mxu0 %v4458
        %7855 = vmatpush1.bf16.msra.mxu0 %v4457
        %7856 = vmatprep.subr.bf16.mxu0 %v4462
        %7857 = vmatpush1.bf16.msra.mxu0 %v4461
        %7858 = vmatprep.subr.bf16.mxu0 %v4466
        %7859 = vmatpush1.bf16.msra.mxu0 %v4465
        %7860 = vmatprep.subr.bf16.mxu0 %v4470
        %7861 = vmatpush1.bf16.msra.mxu0 %v4469
        %7862 = vmatprep.subr.bf16.mxu0 %v4474
        %7863 = vmatpush1.bf16.msra.mxu0 %v4473
        %7864 = vmatprep.subr.bf16.mxu0 %v4478
        %7865 = vmatpush1.bf16.msra.mxu0 %v4477
        %7866 = vmatprep.subr.bf16.mxu0 %v4482
        %7867 = vmatpush1.bf16.msra.mxu0 %v4481
        %7868 = vmatprep.subr.bf16.mxu0 %v4486
        %7869 = vmatpush1.bf16.msra.mxu0 %v4485
        %7870 = vmatprep.subr.bf16.mxu0 %v4490
        %7871 = vmatpush1.bf16.msra.mxu0 %v4489
        %7872 = vmatprep.subr.bf16.mxu0 %v4494
        %7873 = vmatpush1.bf16.msra.mxu0 %v4493
        %7874 = vmatprep.subr.bf16.mxu0 %v4498
        %7875 = vmatpush1.bf16.msra.mxu0 %v4497
        %7876 = vmatprep.subr.bf16.mxu0 %v4502
        %7877 = vmatpush1.bf16.msra.mxu0 %v4501
        %7878 = vmatprep.subr.bf16.mxu0 %v4506
        %7879 = vmatpush1.bf16.msra.mxu0 %v4505
        %7880 = vmatprep.mubr.bf16.mxu0 %v1223
        %7881 = vmatmul.mubr.bf16.gmra.mrb[0].mxu0 %v1211
        %v7882 = vpop.f32.mrb[0].mxu0
        %v7883 = vadd.f32 %v7690, %v7882
        %v7884 = vpop.f32.mrb[0].mxu0
        %v7885 = vadd.f32 %v7692, %v7884
        %v7886 = vpop.f32.mrb[0].mxu0
        %v7887 = vadd.f32 %v7694, %v7886
        %v7888 = vpop.f32.mrb[0].mxu0
        %v7889 = vadd.f32 %v7696, %v7888
        %7890 = vmatprep.mubr.bf16.mxu0 %v1247
        %7891 = vmatmul.mubr.bf16.gmra.mrb[0].mxu0 %v1235
        %v7892 = vpop.f32.mrb[0].mxu0
        %v7893 = vadd.f32 %v7700, %v7892
        %v7894 = vpop.f32.mrb[0].mxu0
        %v7895 = vadd.f32 %v7702, %v7894
        %v7896 = vpop.f32.mrb[0].mxu0
        %v7897 = vadd.f32 %v7704, %v7896
        %v7898 = vpop.f32.mrb[0].mxu0
        %v7899 = vadd.f32 %v7706, %v7898
        %7900 = vmatprep.mubr.bf16.mxu0 %v1271
        %7901 = vmatmul.mubr.bf16.gmra.mrb[0].mxu0 %v1259
        %v7902 = vpop.f32.mrb[0].mxu0
        %v7903 = vadd.f32 %v7710, %v7902
        %v7904 = vpop.f32.mrb[0].mxu0
        %v7905 = vadd.f32 %v7712, %v7904
        %v7906 = vpop.f32.mrb[0].mxu0
        %v7907 = vadd.f32 %v7714, %v7906
        %v7908 = vpop.f32.mrb[0].mxu0
        %v7909 = vadd.f32 %v7716, %v7908
        %7910 = vmatprep.mubr.bf16.mxu0 %v1295
        %7911 = vmatmul.mubr.bf16.gmra.mrb[0].mxu0 %v1283
        %v7912 = vpop.f32.mrb[0].mxu0
        %v7913 = vadd.f32 %v7720, %v7912
        %v7914 = vpop.f32.mrb[0].mxu0
        %v7915 = vadd.f32 %v7722, %v7914
        %v7916 = vpop.f32.mrb[0].mxu0
        %v7917 = vadd.f32 %v7724, %v7916
        %v7918 = vpop.f32.mrb[0].mxu0
        %v7919 = vadd.f32 %v7726, %v7918
        %7920 = vmatprep.mubr.bf16.mxu0 %v1319
        %7921 = vmatmul.mubr.bf16.gmra.mrb[0].mxu0 %v1307
        %v7922 = vpop.f32.mrb[0].mxu0
        %v7923 = vadd.f32 %v7730, %v7922
        %v7924 = vpop.f32.mrb[0].mxu0
        %v7925 = vadd.f32 %v7732, %v7924
        %v7926 = vpop.f32.mrb[0].mxu0
        %v7927 = vadd.f32 %v7734, %v7926
        %v7928 = vpop.f32.mrb[0].mxu0
        %v7929 = vadd.f32 %v7736, %v7928
        %7930 = vmatprep.mubr.bf16.mxu0 %v1343
        %7931 = vmatmul.mubr.bf16.gmra.mrb[0].mxu0 %v1331
        %v7932 = vpop.f32.mrb[0].mxu0
        %v7933 = vadd.f32 %v7740, %v7932
        %v7934 = vpop.f32.mrb[0].mxu0
        %v7935 = vadd.f32 %v7742, %v7934
        %v7936 = vpop.f32.mrb[0].mxu0
        %v7937 = vadd.f32 %v7744, %v7936
        %v7938 = vpop.f32.mrb[0].mxu0
        %v7939 = vadd.f32 %v7746, %v7938
        %7940 = vmatprep.mubr.bf16.mxu0 %v1367
        %7941 = vmatmul.mubr.bf16.gmra.mrb[0].mxu0 %v1355
        %v7942 = vpop.f32.mrb[0].mxu0
        %v7943 = vadd.f32 %v7750, %v7942
        %v7944 = vpop.f32.mrb[0].mxu0
        %v7945 = vadd.f32 %v7752, %v7944
        %v7946 = vpop.f32.mrb[0].mxu0
        %v7947 = vadd.f32 %v7754, %v7946
        %v7948 = vpop.f32.mrb[0].mxu0
        %v7949 = vadd.f32 %v7756, %v7948
        %7950 = vmatprep.mubr.bf16.mxu0 %v1391
        %7951 = vmatmul.mubr.bf16.gmra.mrb[0].mxu0 %v1379
        %v7952 = vpop.f32.mrb[0].mxu0
        %v7953 = vadd.f32 %v7760, %v7952
        %v7954 = vpop.f32.mrb[0].mxu0
        %v7955 = vadd.f32 %v7762, %v7954
        %v7956 = vpop.f32.mrb[0].mxu0
        %v7957 = vadd.f32 %v7764, %v7956
        %v7958 = vpop.f32.mrb[0].mxu0
        %v7959 = vadd.f32 %v7766, %v7958
        %7960 = vmatprep.mubr.bf16.mxu0 %v1415
        %7961 = vmatmul.mubr.bf16.gmra.mrb[0].mxu0 %v1403
        %v7962 = vpop.f32.mrb[0].mxu0
        %v7963 = vadd.f32 %v7770, %v7962
        %v7964 = vpop.f32.mrb[0].mxu0
        %v7965 = vadd.f32 %v7772, %v7964
        %v7966 = vpop.f32.mrb[0].mxu0
        %v7967 = vadd.f32 %v7774, %v7966
        %v7968 = vpop.f32.mrb[0].mxu0
        %v7969 = vadd.f32 %v7776, %v7968
        %7970 = vmatprep.mubr.bf16.mxu0 %v1439
        %7971 = vmatmul.mubr.bf16.gmra.mrb[0].mxu0 %v1427
        %v7972 = vpop.f32.mrb[0].mxu0
        %v7973 = vadd.f32 %v7780, %v7972
        %v7974 = vpop.f32.mrb[0].mxu0
        %v7975 = vadd.f32 %v7782, %v7974
        %v7976 = vpop.f32.mrb[0].mxu0
        %v7977 = vadd.f32 %v7784, %v7976
        %v7978 = vpop.f32.mrb[0].mxu0
        %v7979 = vadd.f32 %v7786, %v7978
        %7980 = vmatprep.mubr.bf16.mxu0 %v1463
        %7981 = vmatmul.mubr.bf16.gmra.mrb[0].mxu0 %v1451
        %v7982 = vpop.f32.mrb[0].mxu0
        %v7983 = vadd.f32 %v7790, %v7982
        %v7984 = vpop.f32.mrb[0].mxu0
        %v7985 = vadd.f32 %v7792, %v7984
        %v7986 = vpop.f32.mrb[0].mxu0
        %v7987 = vadd.f32 %v7794, %v7986
        %v7988 = vpop.f32.mrb[0].mxu0
        %v7989 = vadd.f32 %v7796, %v7988
        %7990 = vmatprep.mubr.bf16.mxu0 %v1487
        %7991 = vmatmul.mubr.bf16.gmra.mrb[0].mxu0 %v1475
        %v7992 = vpop.f32.mrb[0].mxu0
        %v7993 = vadd.f32 %v7800, %v7992
        %v7994 = vpop.f32.mrb[0].mxu0
        %v7995 = vadd.f32 %v7802, %v7994
        %v7996 = vpop.f32.mrb[0].mxu0
        %v7997 = vadd.f32 %v7804, %v7996
        %v7998 = vpop.f32.mrb[0].mxu0
        %v7999 = vadd.f32 %v7806, %v7998
        %8000 = vmatprep.mubr.bf16.mxu0 %v1511
        %8001 = vmatmul.mubr.bf16.gmra.mrb[0].mxu0 %v1499
        %v8002 = vpop.f32.mrb[0].mxu0
        %v8003 = vadd.f32 %v7810, %v8002
        %v8004 = vpop.f32.mrb[0].mxu0
        %v8005 = vadd.f32 %v7812, %v8004
        %v8006 = vpop.f32.mrb[0].mxu0
        %v8007 = vadd.f32 %v7814, %v8006
        %v8008 = vpop.f32.mrb[0].mxu0
        %v8009 = vadd.f32 %v7816, %v8008
        %8010 = vmatprep.mubr.bf16.mxu0 %v1535
        %8011 = vmatmul.mubr.bf16.gmra.mrb[0].mxu0 %v1523
        %v8012 = vpop.f32.mrb[0].mxu0
        %v8013 = vadd.f32 %v7820, %v8012
        %v8014 = vpop.f32.mrb[0].mxu0
        %v8015 = vadd.f32 %v7822, %v8014
        %v8016 = vpop.f32.mrb[0].mxu0
        %v8017 = vadd.f32 %v7824, %v8016
        %v8018 = vpop.f32.mrb[0].mxu0
        %v8019 = vadd.f32 %v7826, %v8018
        %8020 = vmatprep.mubr.bf16.mxu0 %v1559
        %8021 = vmatmul.mubr.bf16.gmra.mrb[0].mxu0 %v1547
        %v8022 = vpop.f32.mrb[0].mxu0
        %v8023 = vadd.f32 %v7830, %v8022
        %v8024 = vpop.f32.mrb[0].mxu0
        %v8025 = vadd.f32 %v7832, %v8024
        %v8026 = vpop.f32.mrb[0].mxu0
        %v8027 = vadd.f32 %v7834, %v8026
        %v8028 = vpop.f32.mrb[0].mxu0
        %v8029 = vadd.f32 %v7836, %v8028
        %8030 = vmatprep.mubr.bf16.mxu0 %v1808
        %8031 = vmatmul.mubr.bf16.gmra.mrb[0].mxu0 %v1796
        %v8032 = vpop.f32.mrb[0].mxu0
        %v8033 = vadd.f32 %v7840, %v8032
        %v8034 = vpop.f32.mrb[0].mxu0
        %v8035 = vadd.f32 %v7842, %v8034
        %v8036 = vpop.f32.mrb[0].mxu0
        %v8037 = vadd.f32 %v7844, %v8036
        %v8038 = vpop.f32.mrb[0].mxu0
        %v8039 = vadd.f32 %v7846, %v8038
        %8040 = vdwg.mxu0
        %8041 = vmatprep.subr.bf16.mxu0 %v4510
        %8042 = vmatpush1.bf16.msra.mxu0 %v4509
        %8043 = vmatprep.subr.bf16.mxu0 %v4514
        %8044 = vmatpush1.bf16.msra.mxu0 %v4513
        %8045 = vmatprep.subr.bf16.mxu0 %v4518
        %8046 = vmatpush1.bf16.msra.mxu0 %v4517
        %8047 = vmatprep.subr.bf16.mxu0 %v4522
        %8048 = vmatpush1.bf16.msra.mxu0 %v4521
        %8049 = vmatprep.subr.bf16.mxu0 %v4526
        %8050 = vmatpush1.bf16.msra.mxu0 %v4525
        %8051 = vmatprep.subr.bf16.mxu0 %v4530
        %8052 = vmatpush1.bf16.msra.mxu0 %v4529
        %8053 = vmatprep.subr.bf16.mxu0 %v4534
        %8054 = vmatpush1.bf16.msra.mxu0 %v4533
        %8055 = vmatprep.subr.bf16.mxu0 %v4538
        %8056 = vmatpush1.bf16.msra.mxu0 %v4537
        %8057 = vmatprep.subr.bf16.mxu0 %v4542
        %8058 = vmatpush1.bf16.msra.mxu0 %v4541
        %8059 = vmatprep.subr.bf16.mxu0 %v4546
        %8060 = vmatpush1.bf16.msra.mxu0 %v4545
        %8061 = vmatprep.subr.bf16.mxu0 %v4550
        %8062 = vmatpush1.bf16.msra.mxu0 %v4549
        %8063 = vmatprep.subr.bf16.mxu0 %v4554
        %8064 = vmatpush1.bf16.msra.mxu0 %v4553
        %8065 = vmatprep.subr.bf16.mxu0 %v4558
        %8066 = vmatpush1.bf16.msra.mxu0 %v4557
        %8067 = vmatprep.subr.bf16.mxu0 %v4562
        %8068 = vmatpush1.bf16.msra.mxu0 %v4561
        %8069 = vmatprep.subr.bf16.mxu0 %v4566
        %8070 = vmatpush1.bf16.msra.mxu0 %v4565
        %8071 = vmatprep.subr.bf16.mxu0 %v4570
        %8072 = vmatpush1.bf16.msra.mxu0 %v4569
        %8073 = vmatprep.mubr.bf16.mxu0 %v1668
        %8074 = vmatmul.mubr.bf16.gmra.mrb[0].mxu0 %v1665
        %v8075 = vpop.f32.mrb[0].mxu0
        %v8076 = vadd.f32 %v7883, %v8075
        %v8077 = vpop.f32.mrb[0].mxu0
        %v8078 = vadd.f32 %v7885, %v8077
        %v8079 = vpop.f32.mrb[0].mxu0
        %v8080 = vadd.f32 %v7887, %v8079
        %v8081 = vpop.f32.mrb[0].mxu0
        %v8082 = vadd.f32 %v7889, %v8081
        %8083 = vmatprep.mubr.bf16.mxu0 %v1674
        %8084 = vmatmul.mubr.bf16.gmra.mrb[0].mxu0 %v1671
        %v8085 = vpop.f32.mrb[0].mxu0
        %v8086 = vadd.f32 %v7893, %v8085
        %v8087 = vpop.f32.mrb[0].mxu0
        %v8088 = vadd.f32 %v7895, %v8087
        %v8089 = vpop.f32.mrb[0].mxu0
        %v8090 = vadd.f32 %v7897, %v8089
        %v8091 = vpop.f32.mrb[0].mxu0
        %v8092 = vadd.f32 %v7899, %v8091
        %8093 = vmatprep.mubr.bf16.mxu0 %v1680
        %8094 = vmatmul.mubr.bf16.gmra.mrb[0].mxu0 %v1677
        %v8095 = vpop.f32.mrb[0].mxu0
        %v8096 = vadd.f32 %v7903, %v8095
        %v8097 = vpop.f32.mrb[0].mxu0
        %v8098 = vadd.f32 %v7905, %v8097
        %v8099 = vpop.f32.mrb[0].mxu0
        %v8100 = vadd.f32 %v7907, %v8099
        %v8101 = vpop.f32.mrb[0].mxu0
        %v8102 = vadd.f32 %v7909, %v8101
        %8103 = vmatprep.mubr.bf16.mxu0 %v1686
        %8104 = vmatmul.mubr.bf16.gmra.mrb[0].mxu0 %v1683
        %v8105 = vpop.f32.mrb[0].mxu0
        %v8106 = vadd.f32 %v7913, %v8105
        %v8107 = vpop.f32.mrb[0].mxu0
        %v8108 = vadd.f32 %v7915, %v8107
        %v8109 = vpop.f32.mrb[0].mxu0
        %v8110 = vadd.f32 %v7917, %v8109
        %v8111 = vpop.f32.mrb[0].mxu0
        %v8112 = vadd.f32 %v7919, %v8111
        %8113 = vmatprep.mubr.bf16.mxu0 %v1692
        %8114 = vmatmul.mubr.bf16.gmra.mrb[0].mxu0 %v1689
        %v8115 = vpop.f32.mrb[0].mxu0
        %v8116 = vadd.f32 %v7923, %v8115
        %v8117 = vpop.f32.mrb[0].mxu0
        %v8118 = vadd.f32 %v7925, %v8117
        %v8119 = vpop.f32.mrb[0].mxu0
        %v8120 = vadd.f32 %v7927, %v8119
        %v8121 = vpop.f32.mrb[0].mxu0
        %v8122 = vadd.f32 %v7929, %v8121
        %8123 = vmatprep.mubr.bf16.mxu0 %v1698
        %8124 = vmatmul.mubr.bf16.gmra.mrb[0].mxu0 %v1695
        %v8125 = vpop.f32.mrb[0].mxu0
        %v8126 = vadd.f32 %v7933, %v8125
        %v8127 = vpop.f32.mrb[0].mxu0
        %v8128 = vadd.f32 %v7935, %v8127
        %v8129 = vpop.f32.mrb[0].mxu0
        %v8130 = vadd.f32 %v7937, %v8129
        %v8131 = vpop.f32.mrb[0].mxu0
        %v8132 = vadd.f32 %v7939, %v8131
        %8133 = vmatprep.mubr.bf16.mxu0 %v1704
        %8134 = vmatmul.mubr.bf16.gmra.mrb[0].mxu0 %v1701
        %v8135 = vpop.f32.mrb[0].mxu0
        %v8136 = vadd.f32 %v7943, %v8135
        %v8137 = vpop.f32.mrb[0].mxu0
        %v8138 = vadd.f32 %v7945, %v8137
        %v8139 = vpop.f32.mrb[0].mxu0
        %v8140 = vadd.f32 %v7947, %v8139
        %v8141 = vpop.f32.mrb[0].mxu0
        %v8142 = vadd.f32 %v7949, %v8141
        %8143 = vmatprep.mubr.bf16.mxu0 %v1710
        %8144 = vmatmul.mubr.bf16.gmra.mrb[0].mxu0 %v1707
        %v8145 = vpop.f32.mrb[0].mxu0
        %v8146 = vadd.f32 %v7953, %v8145
        %v8147 = vpop.f32.mrb[0].mxu0
        %v8148 = vadd.f32 %v7955, %v8147
        %v8149 = vpop.f32.mrb[0].mxu0
        %v8150 = vadd.f32 %v7957, %v8149
        %v8151 = vpop.f32.mrb[0].mxu0
        %v8152 = vadd.f32 %v7959, %v8151
        %8153 = vmatprep.mubr.bf16.mxu0 %v1716
        %8154 = vmatmul.mubr.bf16.gmra.mrb[0].mxu0 %v1713
        %v8155 = vpop.f32.mrb[0].mxu0
        %v8156 = vadd.f32 %v7963, %v8155
        %v8157 = vpop.f32.mrb[0].mxu0
        %v8158 = vadd.f32 %v7965, %v8157
        %v8159 = vpop.f32.mrb[0].mxu0
        %v8160 = vadd.f32 %v7967, %v8159
        %v8161 = vpop.f32.mrb[0].mxu0
        %v8162 = vadd.f32 %v7969, %v8161
        %8163 = vmatprep.mubr.bf16.mxu0 %v1722
        %8164 = vmatmul.mubr.bf16.gmra.mrb[0].mxu0 %v1719
        %v8165 = vpop.f32.mrb[0].mxu0
        %v8166 = vadd.f32 %v7973, %v8165
        %v8167 = vpop.f32.mrb[0].mxu0
        %v8168 = vadd.f32 %v7975, %v8167
        %v8169 = vpop.f32.mrb[0].mxu0
        %v8170 = vadd.f32 %v7977, %v8169
        %v8171 = vpop.f32.mrb[0].mxu0
        %v8172 = vadd.f32 %v7979, %v8171
        %8173 = vmatprep.mubr.bf16.mxu0 %v1728
        %8174 = vmatmul.mubr.bf16.gmra.mrb[0].mxu0 %v1725
        %v8175 = vpop.f32.mrb[0].mxu0
        %v8176 = vadd.f32 %v7983, %v8175
        %v8177 = vpop.f32.mrb[0].mxu0
        %v8178 = vadd.f32 %v7985, %v8177
        %v8179 = vpop.f32.mrb[0].mxu0
        %v8180 = vadd.f32 %v7987, %v8179
        %v8181 = vpop.f32.mrb[0].mxu0
        %v8182 = vadd.f32 %v7989, %v8181
        %8183 = vmatprep.mubr.bf16.mxu0 %v1734
        %8184 = vmatmul.mubr.bf16.gmra.mrb[0].mxu0 %v1731
        %v8185 = vpop.f32.mrb[0].mxu0
        %v8186 = vadd.f32 %v7993, %v8185
        %v8187 = vpop.f32.mrb[0].mxu0
        %v8188 = vadd.f32 %v7995, %v8187
        %v8189 = vpop.f32.mrb[0].mxu0
        %v8190 = vadd.f32 %v7997, %v8189
        %v8191 = vpop.f32.mrb[0].mxu0
        %v8192 = vadd.f32 %v7999, %v8191
        %8193 = vmatprep.mubr.bf16.mxu0 %v1740
        %8194 = vmatmul.mubr.bf16.gmra.mrb[0].mxu0 %v1737
        %v8195 = vpop.f32.mrb[0].mxu0
        %v8196 = vadd.f32 %v8003, %v8195
        %v8197 = vpop.f32.mrb[0].mxu0
        %v8198 = vadd.f32 %v8005, %v8197
        %v8199 = vpop.f32.mrb[0].mxu0
        %v8200 = vadd.f32 %v8007, %v8199
        %v8201 = vpop.f32.mrb[0].mxu0
        %v8202 = vadd.f32 %v8009, %v8201
        %8203 = vmatprep.mubr.bf16.mxu0 %v1746
        %8204 = vmatmul.mubr.bf16.gmra.mrb[0].mxu0 %v1743
        %v8205 = vpop.f32.mrb[0].mxu0
        %v8206 = vadd.f32 %v8013, %v8205
        %v8207 = vpop.f32.mrb[0].mxu0
        %v8208 = vadd.f32 %v8015, %v8207
        %v8209 = vpop.f32.mrb[0].mxu0
        %v8210 = vadd.f32 %v8017, %v8209
        %v8211 = vpop.f32.mrb[0].mxu0
        %v8212 = vadd.f32 %v8019, %v8211
        %8213 = vmatprep.mubr.bf16.mxu0 %v1752
        %8214 = vmatmul.mubr.bf16.gmra.mrb[0].mxu0 %v1749
        %v8215 = vpop.f32.mrb[0].mxu0
        %v8216 = vadd.f32 %v8023, %v8215
        %v8217 = vpop.f32.mrb[0].mxu0
        %v8218 = vadd.f32 %v8025, %v8217
        %v8219 = vpop.f32.mrb[0].mxu0
        %v8220 = vadd.f32 %v8027, %v8219
        %v8221 = vpop.f32.mrb[0].mxu0
        %v8222 = vadd.f32 %v8029, %v8221
        %8223 = vmatprep.mubr.bf16.mxu0 %v1820
        %8224 = vmatmul.mubr.bf16.gmra.mrb[0].mxu0 %v1817
        %v8225 = vpop.f32.mrb[0].mxu0
        %v8226 = vadd.f32 %v8033, %v8225
        %v8227 = vpop.f32.mrb[0].mxu0
        %v8228 = vadd.f32 %v8035, %v8227
        %v8229 = vpop.f32.mrb[0].mxu0
        %v8230 = vadd.f32 %v8037, %v8229
        %v8231 = vpop.f32.mrb[0].mxu0
        %v8232 = vadd.f32 %v8039, %v8231
        %8233 = vdwg.mxu0
        %8234 = vmatprep.subr.bf16.mxu0 %v4574
        %8235 = vmatpush1.bf16.msra.mxu0 %v4573
        %8236 = vmatprep.subr.bf16.mxu0 %v4578
        %8237 = vmatpush1.bf16.msra.mxu0 %v4577
        %8238 = vmatprep.subr.bf16.mxu0 %v4582
        %8239 = vmatpush1.bf16.msra.mxu0 %v4581
        %8240 = vmatprep.subr.bf16.mxu0 %v4586
        %8241 = vmatpush1.bf16.msra.mxu0 %v4585
        %8242 = vmatprep.subr.bf16.mxu0 %v4590
        %8243 = vmatpush1.bf16.msra.mxu0 %v4589
        %8244 = vmatprep.subr.bf16.mxu0 %v4594
        %8245 = vmatpush1.bf16.msra.mxu0 %v4593
        %8246 = vmatprep.subr.bf16.mxu0 %v4598
        %8247 = vmatpush1.bf16.msra.mxu0 %v4597
        %8248 = vmatprep.subr.bf16.mxu0 %v4602
        %8249 = vmatpush1.bf16.msra.mxu0 %v4601
        %8250 = vmatprep.subr.bf16.mxu0 %v4606
        %8251 = vmatpush1.bf16.msra.mxu0 %v4605
        %8252 = vmatprep.subr.bf16.mxu0 %v4610
        %8253 = vmatpush1.bf16.msra.mxu0 %v4609
        %8254 = vmatprep.subr.bf16.mxu0 %v4614
        %8255 = vmatpush1.bf16.msra.mxu0 %v4613
        %8256 = vmatprep.subr.bf16.mxu0 %v4618
        %8257 = vmatpush1.bf16.msra.mxu0 %v4617
        %8258 = vmatprep.subr.bf16.mxu0 %v4622
        %8259 = vmatpush1.bf16.msra.mxu0 %v4621
        %8260 = vmatprep.subr.bf16.mxu0 %v4626
        %8261 = vmatpush1.bf16.msra.mxu0 %v4625
        %8262 = vmatprep.subr.bf16.mxu0 %v4630
        %8263 = vmatpush1.bf16.msra.mxu0 %v4629
        %8264 = vmatprep.subr.bf16.mxu0 %v4634
        %8265 = vmatpush1.bf16.msra.mxu0 %v4633
        %8266 = vmatprep.mubr.bf16.mxu0 %v1112
        %8267 = vmatmul.mubr.bf16.gmra.mrb[0].mxu0 %v1111
        %v8268 = vpop.f32.mrb[0].mxu0
        %v8269 = vadd.f32 %v8076, %v8268
        %v8270 = vpop.f32.mrb[0].mxu0
        %v8271 = vadd.f32 %v8078, %v8270
        %v8272 = vpop.f32.mrb[0].mxu0
        %v8273 = vadd.f32 %v8080, %v8272
        %v8274 = vpop.f32.mrb[0].mxu0
        %v8275 = vadd.f32 %v8082, %v8274
        %8276 = vmatprep.mubr.bf16.mxu0 %v1116
        %8277 = vmatmul.mubr.bf16.gmra.mrb[0].mxu0 %v1115
        %v8278 = vpop.f32.mrb[0].mxu0
        %v8279 = vadd.f32 %v8086, %v8278
        %v8280 = vpop.f32.mrb[0].mxu0
        %v8281 = vadd.f32 %v8088, %v8280
        %v8282 = vpop.f32.mrb[0].mxu0
        %v8283 = vadd.f32 %v8090, %v8282
        %v8284 = vpop.f32.mrb[0].mxu0
        %v8285 = vadd.f32 %v8092, %v8284
        %8286 = vmatprep.mubr.bf16.mxu0 %v1120
        %8287 = vmatmul.mubr.bf16.gmra.mrb[0].mxu0 %v1119
        %v8288 = vpop.f32.mrb[0].mxu0
        %v8289 = vadd.f32 %v8096, %v8288
        %v8290 = vpop.f32.mrb[0].mxu0
        %v8291 = vadd.f32 %v8098, %v8290
        %v8292 = vpop.f32.mrb[0].mxu0
        %v8293 = vadd.f32 %v8100, %v8292
        %v8294 = vpop.f32.mrb[0].mxu0
        %v8295 = vadd.f32 %v8102, %v8294
        %8296 = vmatprep.mubr.bf16.mxu0 %v1124
        %8297 = vmatmul.mubr.bf16.gmra.mrb[0].mxu0 %v1123
        %v8298 = vpop.f32.mrb[0].mxu0
        %v8299 = vadd.f32 %v8106, %v8298
        %v8300 = vpop.f32.mrb[0].mxu0
        %v8301 = vadd.f32 %v8108, %v8300
        %v8302 = vpop.f32.mrb[0].mxu0
        %v8303 = vadd.f32 %v8110, %v8302
        %v8304 = vpop.f32.mrb[0].mxu0
        %v8305 = vadd.f32 %v8112, %v8304
        %8306 = vmatprep.mubr.bf16.mxu0 %v1128
        %8307 = vmatmul.mubr.bf16.gmra.mrb[0].mxu0 %v1127
        %v8308 = vpop.f32.mrb[0].mxu0
        %v8309 = vadd.f32 %v8116, %v8308
        %v8310 = vpop.f32.mrb[0].mxu0
        %v8311 = vadd.f32 %v8118, %v8310
        %v8312 = vpop.f32.mrb[0].mxu0
        %v8313 = vadd.f32 %v8120, %v8312
        %v8314 = vpop.f32.mrb[0].mxu0
        %v8315 = vadd.f32 %v8122, %v8314
        %8316 = vmatprep.mubr.bf16.mxu0 %v1132
        %8317 = vmatmul.mubr.bf16.gmra.mrb[0].mxu0 %v1131
        %v8318 = vpop.f32.mrb[0].mxu0
        %v8319 = vadd.f32 %v8126, %v8318
        %v8320 = vpop.f32.mrb[0].mxu0
        %v8321 = vadd.f32 %v8128, %v8320
        %v8322 = vpop.f32.mrb[0].mxu0
        %v8323 = vadd.f32 %v8130, %v8322
        %v8324 = vpop.f32.mrb[0].mxu0
        %v8325 = vadd.f32 %v8132, %v8324
        %8326 = vmatprep.mubr.bf16.mxu0 %v1136
        %8327 = vmatmul.mubr.bf16.gmra.mrb[0].mxu0 %v1135
        %v8328 = vpop.f32.mrb[0].mxu0
        %v8329 = vadd.f32 %v8136, %v8328
        %v8330 = vpop.f32.mrb[0].mxu0
        %v8331 = vadd.f32 %v8138, %v8330
        %v8332 = vpop.f32.mrb[0].mxu0
        %v8333 = vadd.f32 %v8140, %v8332
        %v8334 = vpop.f32.mrb[0].mxu0
        %v8335 = vadd.f32 %v8142, %v8334
        %8336 = vmatprep.mubr.bf16.mxu0 %v1140
        %8337 = vmatmul.mubr.bf16.gmra.mrb[0].mxu0 %v1139
        %v8338 = vpop.f32.mrb[0].mxu0
        %v8339 = vadd.f32 %v8146, %v8338
        %v8340 = vpop.f32.mrb[0].mxu0
        %v8341 = vadd.f32 %v8148, %v8340
        %v8342 = vpop.f32.mrb[0].mxu0
        %v8343 = vadd.f32 %v8150, %v8342
        %v8344 = vpop.f32.mrb[0].mxu0
        %v8345 = vadd.f32 %v8152, %v8344
        %8346 = vmatprep.mubr.bf16.mxu0 %v1144
        %8347 = vmatmul.mubr.bf16.gmra.mrb[0].mxu0 %v1143
        %v8348 = vpop.f32.mrb[0].mxu0
        %v8349 = vadd.f32 %v8156, %v8348
        %v8350 = vpop.f32.mrb[0].mxu0
        %v8351 = vadd.f32 %v8158, %v8350
        %v8352 = vpop.f32.mrb[0].mxu0
        %v8353 = vadd.f32 %v8160, %v8352
        %v8354 = vpop.f32.mrb[0].mxu0
        %v8355 = vadd.f32 %v8162, %v8354
        %8356 = vmatprep.mubr.bf16.mxu0 %v1148
        %8357 = vmatmul.mubr.bf16.gmra.mrb[0].mxu0 %v1147
        %v8358 = vpop.f32.mrb[0].mxu0
        %v8359 = vadd.f32 %v8166, %v8358
        %v8360 = vpop.f32.mrb[0].mxu0
        %v8361 = vadd.f32 %v8168, %v8360
        %v8362 = vpop.f32.mrb[0].mxu0
        %v8363 = vadd.f32 %v8170, %v8362
        %v8364 = vpop.f32.mrb[0].mxu0
        %v8365 = vadd.f32 %v8172, %v8364
        %8366 = vmatprep.mubr.bf16.mxu0 %v1152
        %8367 = vmatmul.mubr.bf16.gmra.mrb[0].mxu0 %v1151
        %v8368 = vpop.f32.mrb[0].mxu0
        %v8369 = vadd.f32 %v8176, %v8368
        %v8370 = vpop.f32.mrb[0].mxu0
        %v8371 = vadd.f32 %v8178, %v8370
        %v8372 = vpop.f32.mrb[0].mxu0
        %v8373 = vadd.f32 %v8180, %v8372
        %v8374 = vpop.f32.mrb[0].mxu0
        %v8375 = vadd.f32 %v8182, %v8374
        %8376 = vmatprep.mubr.bf16.mxu0 %v1156
        %8377 = vmatmul.mubr.bf16.gmra.mrb[0].mxu0 %v1155
        %v8378 = vpop.f32.mrb[0].mxu0
        %v8379 = vadd.f32 %v8186, %v8378
        %v8380 = vpop.f32.mrb[0].mxu0
        %v8381 = vadd.f32 %v8188, %v8380
        %v8382 = vpop.f32.mrb[0].mxu0
        %v8383 = vadd.f32 %v8190, %v8382
        %v8384 = vpop.f32.mrb[0].mxu0
        %v8385 = vadd.f32 %v8192, %v8384
        %8386 = vmatprep.mubr.bf16.mxu0 %v1160
        %8387 = vmatmul.mubr.bf16.gmra.mrb[0].mxu0 %v1159
        %v8388 = vpop.f32.mrb[0].mxu0
        %v8389 = vadd.f32 %v8196, %v8388
        %v8390 = vpop.f32.mrb[0].mxu0
        %v8391 = vadd.f32 %v8198, %v8390
        %v8392 = vpop.f32.mrb[0].mxu0
        %v8393 = vadd.f32 %v8200, %v8392
        %v8394 = vpop.f32.mrb[0].mxu0
        %v8395 = vadd.f32 %v8202, %v8394
        %8396 = vmatprep.mubr.bf16.mxu0 %v1164
        %8397 = vmatmul.mubr.bf16.gmra.mrb[0].mxu0 %v1163
        %v8398 = vpop.f32.mrb[0].mxu0
        %v8399 = vadd.f32 %v8206, %v8398
        %v8400 = vpop.f32.mrb[0].mxu0
        %v8401 = vadd.f32 %v8208, %v8400
        %v8402 = vpop.f32.mrb[0].mxu0
        %v8403 = vadd.f32 %v8210, %v8402
        %v8404 = vpop.f32.mrb[0].mxu0
        %v8405 = vadd.f32 %v8212, %v8404
        %8406 = vmatprep.mubr.bf16.mxu0 %v1168
        %8407 = vmatmul.mubr.bf16.gmra.mrb[0].mxu0 %v1167
        %v8408 = vpop.f32.mrb[0].mxu0
        %v8409 = vadd.f32 %v8216, %v8408
        %v8410 = vpop.f32.mrb[0].mxu0
        %v8411 = vadd.f32 %v8218, %v8410
        %v8412 = vpop.f32.mrb[0].mxu0
        %v8413 = vadd.f32 %v8220, %v8412
        %v8414 = vpop.f32.mrb[0].mxu0
        %v8415 = vadd.f32 %v8222, %v8414
        %8416 = vmatprep.mubr.bf16.mxu0 %v1172
        %8417 = vmatmul.mubr.bf16.gmra.mrb[0].mxu0 %v1171
        %v8418 = vpop.f32.mrb[0].mxu0
        %v8419 = vadd.f32 %v8226, %v8418
        %v8420 = vpop.f32.mrb[0].mxu0
        %v8421 = vadd.f32 %v8228, %v8420
        %v8422 = vpop.f32.mrb[0].mxu0
        %v8423 = vadd.f32 %v8230, %v8422
        %v8424 = vpop.f32.mrb[0].mxu0
        %v8425 = vadd.f32 %v8232, %v8424
        %8426 = vdwg.mxu0
        %8427 = vmatprep.subr.bf16.mxu0 %v4638
        %8428 = vmatpush1.bf16.msra.mxu0 %v4637
        %8429 = vmatprep.subr.bf16.mxu0 %v4642
        %8430 = vmatpush1.bf16.msra.mxu0 %v4641
        %8431 = vmatprep.subr.bf16.mxu0 %v4646
        %8432 = vmatpush1.bf16.msra.mxu0 %v4645
        %8433 = vmatprep.subr.bf16.mxu0 %v4650
        %8434 = vmatpush1.bf16.msra.mxu0 %v4649
        %8435 = vmatprep.subr.bf16.mxu0 %v4654
        %8436 = vmatpush1.bf16.msra.mxu0 %v4653
        %8437 = vmatprep.subr.bf16.mxu0 %v4658
        %8438 = vmatpush1.bf16.msra.mxu0 %v4657
        %8439 = vmatprep.subr.bf16.mxu0 %v4662
        %8440 = vmatpush1.bf16.msra.mxu0 %v4661
        %8441 = vmatprep.subr.bf16.mxu0 %v4666
        %8442 = vmatpush1.bf16.msra.mxu0 %v4665
        %8443 = vmatprep.subr.bf16.mxu0 %v4670
        %8444 = vmatpush1.bf16.msra.mxu0 %v4669
        %8445 = vmatprep.subr.bf16.mxu0 %v4674
        %8446 = vmatpush1.bf16.msra.mxu0 %v4673
        %8447 = vmatprep.subr.bf16.mxu0 %v4678
        %8448 = vmatpush1.bf16.msra.mxu0 %v4677
        %8449 = vmatprep.subr.bf16.mxu0 %v4682
        %8450 = vmatpush1.bf16.msra.mxu0 %v4681
        %8451 = vmatprep.subr.bf16.mxu0 %v4686
        %8452 = vmatpush1.bf16.msra.mxu0 %v4685
        %8453 = vmatprep.subr.bf16.mxu0 %v4690
        %8454 = vmatpush1.bf16.msra.mxu0 %v4689
        %8455 = vmatprep.subr.bf16.mxu0 %v4694
        %8456 = vmatpush1.bf16.msra.mxu0 %v4693
        %8457 = vmatprep.subr.bf16.mxu0 %v4698
        %8458 = vmatpush1.bf16.msra.mxu0 %v4697
        %8459 = vmatprep.mubr.bf16.mxu0 %v1247
        %8460 = vmatmul.mubr.bf16.gmra.mrb[0].mxu0 %v1235
        %v8461 = vpop.f32.mrb[0].mxu0
        %v8462 = vadd.f32 %v8269, %v8461
        %v8463 = vpop.f32.mrb[0].mxu0
        %v8464 = vadd.f32 %v8271, %v8463
        %v8465 = vpop.f32.mrb[0].mxu0
        %v8466 = vadd.f32 %v8273, %v8465
        %v8467 = vpop.f32.mrb[0].mxu0
        %v8468 = vadd.f32 %v8275, %v8467
        %8469 = vmatprep.mubr.bf16.mxu0 %v1271
        %8470 = vmatmul.mubr.bf16.gmra.mrb[0].mxu0 %v1259
        %v8471 = vpop.f32.mrb[0].mxu0
        %v8472 = vadd.f32 %v8279, %v8471
        %v8473 = vpop.f32.mrb[0].mxu0
        %v8474 = vadd.f32 %v8281, %v8473
        %v8475 = vpop.f32.mrb[0].mxu0
        %v8476 = vadd.f32 %v8283, %v8475
        %v8477 = vpop.f32.mrb[0].mxu0
        %v8478 = vadd.f32 %v8285, %v8477
        %8479 = vmatprep.mubr.bf16.mxu0 %v1295
        %8480 = vmatmul.mubr.bf16.gmra.mrb[0].mxu0 %v1283
        %v8481 = vpop.f32.mrb[0].mxu0
        %v8482 = vadd.f32 %v8289, %v8481
        %v8483 = vpop.f32.mrb[0].mxu0
        %v8484 = vadd.f32 %v8291, %v8483
        %v8485 = vpop.f32.mrb[0].mxu0
        %v8486 = vadd.f32 %v8293, %v8485
        %v8487 = vpop.f32.mrb[0].mxu0
        %v8488 = vadd.f32 %v8295, %v8487
        %8489 = vmatprep.mubr.bf16.mxu0 %v1319
        %8490 = vmatmul.mubr.bf16.gmra.mrb[0].mxu0 %v1307
        %v8491 = vpop.f32.mrb[0].mxu0
        %v8492 = vadd.f32 %v8299, %v8491
        %v8493 = vpop.f32.mrb[0].mxu0
        %v8494 = vadd.f32 %v8301, %v8493
        %v8495 = vpop.f32.mrb[0].mxu0
        %v8496 = vadd.f32 %v8303, %v8495
        %v8497 = vpop.f32.mrb[0].mxu0
        %v8498 = vadd.f32 %v8305, %v8497
        %8499 = vmatprep.mubr.bf16.mxu0 %v1343
        %8500 = vmatmul.mubr.bf16.gmra.mrb[0].mxu0 %v1331
        %v8501 = vpop.f32.mrb[0].mxu0
        %v8502 = vadd.f32 %v8309, %v8501
        %v8503 = vpop.f32.mrb[0].mxu0
        %v8504 = vadd.f32 %v8311, %v8503
        %v8505 = vpop.f32.mrb[0].mxu0
        %v8506 = vadd.f32 %v8313, %v8505
        %v8507 = vpop.f32.mrb[0].mxu0
        %v8508 = vadd.f32 %v8315, %v8507
        %8509 = vmatprep.mubr.bf16.mxu0 %v1367
        %8510 = vmatmul.mubr.bf16.gmra.mrb[0].mxu0 %v1355
        %v8511 = vpop.f32.mrb[0].mxu0
        %v8512 = vadd.f32 %v8319, %v8511
        %v8513 = vpop.f32.mrb[0].mxu0
        %v8514 = vadd.f32 %v8321, %v8513
        %v8515 = vpop.f32.mrb[0].mxu0
        %v8516 = vadd.f32 %v8323, %v8515
        %v8517 = vpop.f32.mrb[0].mxu0
        %v8518 = vadd.f32 %v8325, %v8517
        %8519 = vmatprep.mubr.bf16.mxu0 %v1391
        %8520 = vmatmul.mubr.bf16.gmra.mrb[0].mxu0 %v1379
        %v8521 = vpop.f32.mrb[0].mxu0
        %v8522 = vadd.f32 %v8329, %v8521
        %v8523 = vpop.f32.mrb[0].mxu0
        %v8524 = vadd.f32 %v8331, %v8523
        %v8525 = vpop.f32.mrb[0].mxu0
        %v8526 = vadd.f32 %v8333, %v8525
        %v8527 = vpop.f32.mrb[0].mxu0
        %v8528 = vadd.f32 %v8335, %v8527
        %8529 = vmatprep.mubr.bf16.mxu0 %v1415
        %8530 = vmatmul.mubr.bf16.gmra.mrb[0].mxu0 %v1403
        %v8531 = vpop.f32.mrb[0].mxu0
        %v8532 = vadd.f32 %v8339, %v8531
        %v8533 = vpop.f32.mrb[0].mxu0
        %v8534 = vadd.f32 %v8341, %v8533
        %v8535 = vpop.f32.mrb[0].mxu0
        %v8536 = vadd.f32 %v8343, %v8535
        %v8537 = vpop.f32.mrb[0].mxu0
        %v8538 = vadd.f32 %v8345, %v8537
        %8539 = vmatprep.mubr.bf16.mxu0 %v1439
        %8540 = vmatmul.mubr.bf16.gmra.mrb[0].mxu0 %v1427
        %v8541 = vpop.f32.mrb[0].mxu0
        %v8542 = vadd.f32 %v8349, %v8541
        %v8543 = vpop.f32.mrb[0].mxu0
        %v8544 = vadd.f32 %v8351, %v8543
        %v8545 = vpop.f32.mrb[0].mxu0
        %v8546 = vadd.f32 %v8353, %v8545
        %v8547 = vpop.f32.mrb[0].mxu0
        %v8548 = vadd.f32 %v8355, %v8547
        %8549 = vmatprep.mubr.bf16.mxu0 %v1463
        %8550 = vmatmul.mubr.bf16.gmra.mrb[0].mxu0 %v1451
        %v8551 = vpop.f32.mrb[0].mxu0
        %v8552 = vadd.f32 %v8359, %v8551
        %v8553 = vpop.f32.mrb[0].mxu0
        %v8554 = vadd.f32 %v8361, %v8553
        %v8555 = vpop.f32.mrb[0].mxu0
        %v8556 = vadd.f32 %v8363, %v8555
        %v8557 = vpop.f32.mrb[0].mxu0
        %v8558 = vadd.f32 %v8365, %v8557
        %8559 = vmatprep.mubr.bf16.mxu0 %v1487
        %8560 = vmatmul.mubr.bf16.gmra.mrb[0].mxu0 %v1475
        %v8561 = vpop.f32.mrb[0].mxu0
        %v8562 = vadd.f32 %v8369, %v8561
        %v8563 = vpop.f32.mrb[0].mxu0
        %v8564 = vadd.f32 %v8371, %v8563
        %v8565 = vpop.f32.mrb[0].mxu0
        %v8566 = vadd.f32 %v8373, %v8565
        %v8567 = vpop.f32.mrb[0].mxu0
        %v8568 = vadd.f32 %v8375, %v8567
        %8569 = vmatprep.mubr.bf16.mxu0 %v1511
        %8570 = vmatmul.mubr.bf16.gmra.mrb[0].mxu0 %v1499
        %v8571 = vpop.f32.mrb[0].mxu0
        %v8572 = vadd.f32 %v8379, %v8571
        %v8573 = vpop.f32.mrb[0].mxu0
        %v8574 = vadd.f32 %v8381, %v8573
        %v8575 = vpop.f32.mrb[0].mxu0
        %v8576 = vadd.f32 %v8383, %v8575
        %v8577 = vpop.f32.mrb[0].mxu0
        %v8578 = vadd.f32 %v8385, %v8577
        %8579 = vmatprep.mubr.bf16.mxu0 %v1535
        %8580 = vmatmul.mubr.bf16.gmra.mrb[0].mxu0 %v1523
        %v8581 = vpop.f32.mrb[0].mxu0
        %v8582 = vadd.f32 %v8389, %v8581
        %v8583 = vpop.f32.mrb[0].mxu0
        %v8584 = vadd.f32 %v8391, %v8583
        %v8585 = vpop.f32.mrb[0].mxu0
        %v8586 = vadd.f32 %v8393, %v8585
        %v8587 = vpop.f32.mrb[0].mxu0
        %v8588 = vadd.f32 %v8395, %v8587
        %8589 = vmatprep.mubr.bf16.mxu0 %v1559
        %8590 = vmatmul.mubr.bf16.gmra.mrb[0].mxu0 %v1547
        %v8591 = vpop.f32.mrb[0].mxu0
        %v8592 = vadd.f32 %v8399, %v8591
        %v8593 = vpop.f32.mrb[0].mxu0
        %v8594 = vadd.f32 %v8401, %v8593
        %v8595 = vpop.f32.mrb[0].mxu0
        %v8596 = vadd.f32 %v8403, %v8595
        %v8597 = vpop.f32.mrb[0].mxu0
        %v8598 = vadd.f32 %v8405, %v8597
        %8599 = vmatprep.mubr.bf16.mxu0 %v1808
        %8600 = vmatmul.mubr.bf16.gmra.mrb[0].mxu0 %v1796
        %v8601 = vpop.f32.mrb[0].mxu0
        %v8602 = vadd.f32 %v8409, %v8601
        %v8603 = vpop.f32.mrb[0].mxu0
        %v8604 = vadd.f32 %v8411, %v8603
        %v8605 = vpop.f32.mrb[0].mxu0
        %v8606 = vadd.f32 %v8413, %v8605
        %v8607 = vpop.f32.mrb[0].mxu0
        %v8608 = vadd.f32 %v8415, %v8607
        %8609 = vmatprep.mubr.bf16.mxu0 %v1846
        %8610 = vmatmul.mubr.bf16.gmra.mrb[0].mxu0 %v1834
        %v8611 = vpop.f32.mrb[0].mxu0
        %v8612 = vadd.f32 %v8419, %v8611
        %v8613 = vpop.f32.mrb[0].mxu0
        %v8614 = vadd.f32 %v8421, %v8613
        %v8615 = vpop.f32.mrb[0].mxu0
        %v8616 = vadd.f32 %v8423, %v8615
        %v8617 = vpop.f32.mrb[0].mxu0
        %v8618 = vadd.f32 %v8425, %v8617
        %8619 = vdwg.mxu0
        %8620 = vmatprep.subr.bf16.mxu0 %v4702
        %8621 = vmatpush1.bf16.msra.mxu0 %v4701
        %8622 = vmatprep.subr.bf16.mxu0 %v4706
        %8623 = vmatpush1.bf16.msra.mxu0 %v4705
        %8624 = vmatprep.subr.bf16.mxu0 %v4710
        %8625 = vmatpush1.bf16.msra.mxu0 %v4709
        %8626 = vmatprep.subr.bf16.mxu0 %v4714
        %8627 = vmatpush1.bf16.msra.mxu0 %v4713
        %8628 = vmatprep.subr.bf16.mxu0 %v4718
        %8629 = vmatpush1.bf16.msra.mxu0 %v4717
        %8630 = vmatprep.subr.bf16.mxu0 %v4722
        %8631 = vmatpush1.bf16.msra.mxu0 %v4721
        %8632 = vmatprep.subr.bf16.mxu0 %v4726
        %8633 = vmatpush1.bf16.msra.mxu0 %v4725
        %8634 = vmatprep.subr.bf16.mxu0 %v4730
        %8635 = vmatpush1.bf16.msra.mxu0 %v4729
        %8636 = vmatprep.subr.bf16.mxu0 %v4734
        %8637 = vmatpush1.bf16.msra.mxu0 %v4733
        %8638 = vmatprep.subr.bf16.mxu0 %v4738
        %8639 = vmatpush1.bf16.msra.mxu0 %v4737
        %8640 = vmatprep.subr.bf16.mxu0 %v4742
        %8641 = vmatpush1.bf16.msra.mxu0 %v4741
        %8642 = vmatprep.subr.bf16.mxu0 %v4746
        %8643 = vmatpush1.bf16.msra.mxu0 %v4745
        %8644 = vmatprep.subr.bf16.mxu0 %v4750
        %8645 = vmatpush1.bf16.msra.mxu0 %v4749
        %8646 = vmatprep.subr.bf16.mxu0 %v4754
        %8647 = vmatpush1.bf16.msra.mxu0 %v4753
        %8648 = vmatprep.subr.bf16.mxu0 %v4758
        %8649 = vmatpush1.bf16.msra.mxu0 %v4757
        %8650 = vmatprep.subr.bf16.mxu0 %v4762
        %8651 = vmatpush1.bf16.msra.mxu0 %v4761
        %8652 = vmatprep.mubr.bf16.mxu0 %v1674
        %8653 = vmatmul.mubr.bf16.gmra.mrb[0].mxu0 %v1671
        %v8654 = vpop.f32.mrb[0].mxu0
        %v8655 = vadd.f32 %v8462, %v8654
        %v8656 = vpop.f32.mrb[0].mxu0
        %v8657 = vadd.f32 %v8464, %v8656
        %v8658 = vpop.f32.mrb[0].mxu0
        %v8659 = vadd.f32 %v8466, %v8658
        %v8660 = vpop.f32.mrb[0].mxu0
        %v8661 = vadd.f32 %v8468, %v8660
        %8662 = vmatprep.mubr.bf16.mxu0 %v1680
        %8663 = vmatmul.mubr.bf16.gmra.mrb[0].mxu0 %v1677
        %v8664 = vpop.f32.mrb[0].mxu0
        %v8665 = vadd.f32 %v8472, %v8664
        %v8666 = vpop.f32.mrb[0].mxu0
        %v8667 = vadd.f32 %v8474, %v8666
        %v8668 = vpop.f32.mrb[0].mxu0
        %v8669 = vadd.f32 %v8476, %v8668
        %v8670 = vpop.f32.mrb[0].mxu0
        %v8671 = vadd.f32 %v8478, %v8670
        %8672 = vmatprep.mubr.bf16.mxu0 %v1686
        %8673 = vmatmul.mubr.bf16.gmra.mrb[0].mxu0 %v1683
        %v8674 = vpop.f32.mrb[0].mxu0
        %v8675 = vadd.f32 %v8482, %v8674
        %v8676 = vpop.f32.mrb[0].mxu0
        %v8677 = vadd.f32 %v8484, %v8676
        %v8678 = vpop.f32.mrb[0].mxu0
        %v8679 = vadd.f32 %v8486, %v8678
        %v8680 = vpop.f32.mrb[0].mxu0
        %v8681 = vadd.f32 %v8488, %v8680
        %8682 = vmatprep.mubr.bf16.mxu0 %v1692
        %8683 = vmatmul.mubr.bf16.gmra.mrb[0].mxu0 %v1689
        %v8684 = vpop.f32.mrb[0].mxu0
        %v8685 = vadd.f32 %v8492, %v8684
        %v8686 = vpop.f32.mrb[0].mxu0
        %v8687 = vadd.f32 %v8494, %v8686
        %v8688 = vpop.f32.mrb[0].mxu0
        %v8689 = vadd.f32 %v8496, %v8688
        %v8690 = vpop.f32.mrb[0].mxu0
        %v8691 = vadd.f32 %v8498, %v8690
        %8692 = vmatprep.mubr.bf16.mxu0 %v1698
        %8693 = vmatmul.mubr.bf16.gmra.mrb[0].mxu0 %v1695
        %v8694 = vpop.f32.mrb[0].mxu0
        %v8695 = vadd.f32 %v8502, %v8694
        %v8696 = vpop.f32.mrb[0].mxu0
        %v8697 = vadd.f32 %v8504, %v8696
        %v8698 = vpop.f32.mrb[0].mxu0
        %v8699 = vadd.f32 %v8506, %v8698
        %v8700 = vpop.f32.mrb[0].mxu0
        %v8701 = vadd.f32 %v8508, %v8700
        %8702 = vmatprep.mubr.bf16.mxu0 %v1704
        %8703 = vmatmul.mubr.bf16.gmra.mrb[0].mxu0 %v1701
        %v8704 = vpop.f32.mrb[0].mxu0
        %v8705 = vadd.f32 %v8512, %v8704
        %v8706 = vpop.f32.mrb[0].mxu0
        %v8707 = vadd.f32 %v8514, %v8706
        %v8708 = vpop.f32.mrb[0].mxu0
        %v8709 = vadd.f32 %v8516, %v8708
        %v8710 = vpop.f32.mrb[0].mxu0
        %v8711 = vadd.f32 %v8518, %v8710
        %8712 = vmatprep.mubr.bf16.mxu0 %v1710
        %8713 = vmatmul.mubr.bf16.gmra.mrb[0].mxu0 %v1707
        %v8714 = vpop.f32.mrb[0].mxu0
        %v8715 = vadd.f32 %v8522, %v8714
        %v8716 = vpop.f32.mrb[0].mxu0
        %v8717 = vadd.f32 %v8524, %v8716
        %v8718 = vpop.f32.mrb[0].mxu0
        %v8719 = vadd.f32 %v8526, %v8718
        %v8720 = vpop.f32.mrb[0].mxu0
        %v8721 = vadd.f32 %v8528, %v8720
        %8722 = vmatprep.mubr.bf16.mxu0 %v1716
        %8723 = vmatmul.mubr.bf16.gmra.mrb[0].mxu0 %v1713
        %v8724 = vpop.f32.mrb[0].mxu0
        %v8725 = vadd.f32 %v8532, %v8724
        %v8726 = vpop.f32.mrb[0].mxu0
        %v8727 = vadd.f32 %v8534, %v8726
        %v8728 = vpop.f32.mrb[0].mxu0
        %v8729 = vadd.f32 %v8536, %v8728
        %v8730 = vpop.f32.mrb[0].mxu0
        %v8731 = vadd.f32 %v8538, %v8730
        %8732 = vmatprep.mubr.bf16.mxu0 %v1722
        %8733 = vmatmul.mubr.bf16.gmra.mrb[0].mxu0 %v1719
        %v8734 = vpop.f32.mrb[0].mxu0
        %v8735 = vadd.f32 %v8542, %v8734
        %v8736 = vpop.f32.mrb[0].mxu0
        %v8737 = vadd.f32 %v8544, %v8736
        %v8738 = vpop.f32.mrb[0].mxu0
        %v8739 = vadd.f32 %v8546, %v8738
        %v8740 = vpop.f32.mrb[0].mxu0
        %v8741 = vadd.f32 %v8548, %v8740
        %8742 = vmatprep.mubr.bf16.mxu0 %v1728
        %8743 = vmatmul.mubr.bf16.gmra.mrb[0].mxu0 %v1725
        %v8744 = vpop.f32.mrb[0].mxu0
        %v8745 = vadd.f32 %v8552, %v8744
        %v8746 = vpop.f32.mrb[0].mxu0
        %v8747 = vadd.f32 %v8554, %v8746
        %v8748 = vpop.f32.mrb[0].mxu0
        %v8749 = vadd.f32 %v8556, %v8748
        %v8750 = vpop.f32.mrb[0].mxu0
        %v8751 = vadd.f32 %v8558, %v8750
        %8752 = vmatprep.mubr.bf16.mxu0 %v1734
        %8753 = vmatmul.mubr.bf16.gmra.mrb[0].mxu0 %v1731
        %v8754 = vpop.f32.mrb[0].mxu0
        %v8755 = vadd.f32 %v8562, %v8754
        %v8756 = vpop.f32.mrb[0].mxu0
        %v8757 = vadd.f32 %v8564, %v8756
        %v8758 = vpop.f32.mrb[0].mxu0
        %v8759 = vadd.f32 %v8566, %v8758
        %v8760 = vpop.f32.mrb[0].mxu0
        %v8761 = vadd.f32 %v8568, %v8760
        %8762 = vmatprep.mubr.bf16.mxu0 %v1740
        %8763 = vmatmul.mubr.bf16.gmra.mrb[0].mxu0 %v1737
        %v8764 = vpop.f32.mrb[0].mxu0
        %v8765 = vadd.f32 %v8572, %v8764
        %v8766 = vpop.f32.mrb[0].mxu0
        %v8767 = vadd.f32 %v8574, %v8766
        %v8768 = vpop.f32.mrb[0].mxu0
        %v8769 = vadd.f32 %v8576, %v8768
        %v8770 = vpop.f32.mrb[0].mxu0
        %v8771 = vadd.f32 %v8578, %v8770
        %8772 = vmatprep.mubr.bf16.mxu0 %v1746
        %8773 = vmatmul.mubr.bf16.gmra.mrb[0].mxu0 %v1743
        %v8774 = vpop.f32.mrb[0].mxu0
        %v8775 = vadd.f32 %v8582, %v8774
        %v8776 = vpop.f32.mrb[0].mxu0
        %v8777 = vadd.f32 %v8584, %v8776
        %v8778 = vpop.f32.mrb[0].mxu0
        %v8779 = vadd.f32 %v8586, %v8778
        %v8780 = vpop.f32.mrb[0].mxu0
        %v8781 = vadd.f32 %v8588, %v8780
        %8782 = vmatprep.mubr.bf16.mxu0 %v1752
        %8783 = vmatmul.mubr.bf16.gmra.mrb[0].mxu0 %v1749
        %v8784 = vpop.f32.mrb[0].mxu0
        %v8785 = vadd.f32 %v8592, %v8784
        %v8786 = vpop.f32.mrb[0].mxu0
        %v8787 = vadd.f32 %v8594, %v8786
        %v8788 = vpop.f32.mrb[0].mxu0
        %v8789 = vadd.f32 %v8596, %v8788
        %v8790 = vpop.f32.mrb[0].mxu0
        %v8791 = vadd.f32 %v8598, %v8790
        %8792 = vmatprep.mubr.bf16.mxu0 %v1820
        %8793 = vmatmul.mubr.bf16.gmra.mrb[0].mxu0 %v1817
        %v8794 = vpop.f32.mrb[0].mxu0
        %v8795 = vadd.f32 %v8602, %v8794
        %v8796 = vpop.f32.mrb[0].mxu0
        %v8797 = vadd.f32 %v8604, %v8796
        %v8798 = vpop.f32.mrb[0].mxu0
        %v8799 = vadd.f32 %v8606, %v8798
        %v8800 = vpop.f32.mrb[0].mxu0
        %v8801 = vadd.f32 %v8608, %v8800
        %8802 = vmatprep.mubr.bf16.mxu0 %v1858
        %8803 = vmatmul.mubr.bf16.gmra.mrb[0].mxu0 %v1855
        %v8804 = vpop.f32.mrb[0].mxu0
        %v8805 = vadd.f32 %v8612, %v8804
        %v8806 = vpop.f32.mrb[0].mxu0
        %v8807 = vadd.f32 %v8614, %v8806
        %v8808 = vpop.f32.mrb[0].mxu0
        %v8809 = vadd.f32 %v8616, %v8808
        %v8810 = vpop.f32.mrb[0].mxu0
        %v8811 = vadd.f32 %v8618, %v8810
        %8812 = vdwg.mxu0
        %v8813 = vunpack.c.l.bf16 %v1211
        %v8814 = vunpack.c.l.bf16 %v1223
        %v8815 = vunpack.c.h.bf16 %v1211
        %v8816 = vunpack.c.h.bf16 %v1223
        %v8817 = vunpack.c.l.bf16 %v1235
        %v8818 = vunpack.c.l.bf16 %v1247
        %v8819 = vunpack.c.h.bf16 %v1235
        %v8820 = vunpack.c.h.bf16 %v1247
        %v8821 = vunpack.c.l.bf16 %v1259
        %v8822 = vunpack.c.l.bf16 %v1271
        %v8823 = vunpack.c.h.bf16 %v1259
        %v8824 = vunpack.c.h.bf16 %v1271
        %v8825 = vunpack.c.l.bf16 %v1283
        %v8826 = vunpack.c.l.bf16 %v1295
        %v8827 = vunpack.c.h.bf16 %v1283
        %v8828 = vunpack.c.h.bf16 %v1295
        %v8829 = vunpack.c.l.bf16 %v1307
        %v8830 = vunpack.c.l.bf16 %v1319
        %v8831 = vunpack.c.h.bf16 %v1307
        %v8832 = vunpack.c.h.bf16 %v1319
        %v8833 = vunpack.c.l.bf16 %v1331
        %v8834 = vunpack.c.l.bf16 %v1343
        %v8835 = vunpack.c.h.bf16 %v1331
        %v8836 = vunpack.c.h.bf16 %v1343
        %v8837 = vunpack.c.l.bf16 %v1355
        %v8838 = vunpack.c.l.bf16 %v1367
        %v8839 = vunpack.c.h.bf16 %v1355
        %v8840 = vunpack.c.h.bf16 %v1367
        %v8841 = vunpack.c.l.bf16 %v1379
        %v8842 = vunpack.c.l.bf16 %v1391
        %v8843 = vunpack.c.h.bf16 %v1379
        %v8844 = vunpack.c.h.bf16 %v1391
        %v8845 = vunpack.c.l.bf16 %v1403
        %v8846 = vunpack.c.l.bf16 %v1415
        %v8847 = vunpack.c.h.bf16 %v1403
        %v8848 = vunpack.c.h.bf16 %v1415
        %v8849 = vunpack.c.l.bf16 %v1427
        %v8850 = vunpack.c.l.bf16 %v1439
        %v8851 = vunpack.c.h.bf16 %v1427
        %v8852 = vunpack.c.h.bf16 %v1439
        %v8853 = vunpack.c.l.bf16 %v1451
        %v8854 = vunpack.c.l.bf16 %v1463
        %v8855 = vunpack.c.h.bf16 %v1451
        %v8856 = vunpack.c.h.bf16 %v1463
        %v8857 = vunpack.c.l.bf16 %v1475
        %v8858 = vunpack.c.l.bf16 %v1487
        %v8859 = vunpack.c.h.bf16 %v1475
        %v8860 = vunpack.c.h.bf16 %v1487
        %v8861 = vunpack.c.l.bf16 %v1499
        %v8862 = vunpack.c.l.bf16 %v1511
        %v8863 = vunpack.c.h.bf16 %v1499
        %v8864 = vunpack.c.h.bf16 %v1511
        %v8865 = vunpack.c.l.bf16 %v1523
        %v8866 = vunpack.c.l.bf16 %v1535
        %v8867 = vunpack.c.h.bf16 %v1523
        %v8868 = vunpack.c.h.bf16 %v1535
        %v8869 = vunpack.c.l.bf16 %v1547
        %v8870 = vunpack.c.l.bf16 %v1559
        %v8871 = vunpack.c.h.bf16 %v1547
        %v8872 = vunpack.c.h.bf16 %v1559
        %v8873 = vunpack.c.l.bf16 %v1796
        %v8874 = vunpack.c.l.bf16 %v1808
        %v8875 = vunpack.c.h.bf16 %v1796
        %v8876 = vunpack.c.h.bf16 %v1808
        %v8877 = vmul.f32 %v6918, %v8813
        %v8878 = vmul.f32 %v6920, %v8814
        %v8879 = vmul.f32 %v6922, %v8815
        %v8880 = vmul.f32 %v6924, %v8816
        %v8881 = vmul.f32 %v6928, %v8817
        %v8882 = vmul.f32 %v6930, %v8818
        %v8883 = vmul.f32 %v6932, %v8819
        %v8884 = vmul.f32 %v6934, %v8820
        %v8885 = vmul.f32 %v6938, %v8821
        %v8886 = vmul.f32 %v6940, %v8822
        %v8887 = vmul.f32 %v6942, %v8823
        %v8888 = vmul.f32 %v6944, %v8824
        %v8889 = vmul.f32 %v6948, %v8825
        %v8890 = vmul.f32 %v6950, %v8826
        %v8891 = vmul.f32 %v6952, %v8827
        %v8892 = vmul.f32 %v6954, %v8828
        %v8893 = vmul.f32 %v6958, %v8829
        %v8894 = vmul.f32 %v6960, %v8830
        %v8895 = vmul.f32 %v6962, %v8831
        %v8896 = vmul.f32 %v6964, %v8832
        %v8897 = vmul.f32 %v6968, %v8833
        %v8898 = vmul.f32 %v6970, %v8834
        %v8899 = vmul.f32 %v6972, %v8835
        %v8900 = vmul.f32 %v6974, %v8836
        %v8901 = vmul.f32 %v6978, %v8837
        %v8902 = vmul.f32 %v6980, %v8838
        %v8903 = vmul.f32 %v6982, %v8839
        %v8904 = vmul.f32 %v6984, %v8840
        %v8905 = vmul.f32 %v6988, %v8841
        %v8906 = vmul.f32 %v6990, %v8842
        %v8907 = vmul.f32 %v6992, %v8843
        %v8908 = vmul.f32 %v6994, %v8844
        %v8909 = vmul.f32 %v6998, %v8845
        %v8910 = vmul.f32 %v7000, %v8846
        %v8911 = vmul.f32 %v7002, %v8847
        %v8912 = vmul.f32 %v7004, %v8848
        %v8913 = vmul.f32 %v7008, %v8849
        %v8914 = vmul.f32 %v7010, %v8850
        %v8915 = vmul.f32 %v7012, %v8851
        %v8916 = vmul.f32 %v7014, %v8852
        %v8917 = vmul.f32 %v7018, %v8853
        %v8918 = vmul.f32 %v7020, %v8854
        %v8919 = vmul.f32 %v7022, %v8855
        %v8920 = vmul.f32 %v7024, %v8856
        %v8921 = vmul.f32 %v7028, %v8857
        %v8922 = vmul.f32 %v7030, %v8858
        %v8923 = vmul.f32 %v7032, %v8859
        %v8924 = vmul.f32 %v7034, %v8860
        %v8925 = vmul.f32 %v7038, %v8861
        %v8926 = vmul.f32 %v7040, %v8862
        %v8927 = vmul.f32 %v7042, %v8863
        %v8928 = vmul.f32 %v7044, %v8864
        %v8929 = vmul.f32 %v7048, %v8865
        %v8930 = vmul.f32 %v7050, %v8866
        %v8931 = vmul.f32 %v7052, %v8867
        %v8932 = vmul.f32 %v7054, %v8868
        %v8933 = vmul.f32 %v7058, %v8869
        %v8934 = vmul.f32 %v7060, %v8870
        %v8935 = vmul.f32 %v7062, %v8871
        %v8936 = vmul.f32 %v7064, %v8872
        %v8937 = vmul.f32 %v7068, %v8873
        %v8938 = vmul.f32 %v7070, %v8874
        %v8939 = vmul.f32 %v7072, %v8875
        %v8940 = vmul.f32 %v7074, %v8876
        %v8941 = vadd.f32 %v8877, %v8655
        %v8942 = vadd.f32 %v8878, %v8657
        %v8943 = vadd.f32 %v8879, %v8659
        %v8944 = vadd.f32 %v8880, %v8661
        %v8945 = vadd.f32 %v8881, %v8665
        %v8946 = vadd.f32 %v8882, %v8667
        %v8947 = vadd.f32 %v8883, %v8669
        %v8948 = vadd.f32 %v8884, %v8671
        %v8949 = vadd.f32 %v8885, %v8675
        %v8950 = vadd.f32 %v8886, %v8677
        %v8951 = vadd.f32 %v8887, %v8679
        %v8952 = vadd.f32 %v8888, %v8681
        %v8953 = vadd.f32 %v8889, %v8685
        %v8954 = vadd.f32 %v8890, %v8687
        %v8955 = vadd.f32 %v8891, %v8689
        %v8956 = vadd.f32 %v8892, %v8691
        %v8957 = vadd.f32 %v8893, %v8695
        %v8958 = vadd.f32 %v8894, %v8697
        %v8959 = vadd.f32 %v8895, %v8699
        %v8960 = vadd.f32 %v8896, %v8701
        %v8961 = vadd.f32 %v8897, %v8705
        %v8962 = vadd.f32 %v8898, %v8707
        %v8963 = vadd.f32 %v8899, %v8709
        %v8964 = vadd.f32 %v8900, %v8711
        %v8965 = vadd.f32 %v8901, %v8715
        %v8966 = vadd.f32 %v8902, %v8717
        %v8967 = vadd.f32 %v8903, %v8719
        %v8968 = vadd.f32 %v8904, %v8721
        %v8969 = vadd.f32 %v8905, %v8725
        %v8970 = vadd.f32 %v8906, %v8727
        %v8971 = vadd.f32 %v8907, %v8729
        %v8972 = vadd.f32 %v8908, %v8731
        %v8973 = vadd.f32 %v8909, %v8735
        %v8974 = vadd.f32 %v8910, %v8737
        %v8975 = vadd.f32 %v8911, %v8739
        %v8976 = vadd.f32 %v8912, %v8741
        %v8977 = vadd.f32 %v8913, %v8745
        %v8978 = vadd.f32 %v8914, %v8747
        %v8979 = vadd.f32 %v8915, %v8749
        %v8980 = vadd.f32 %v8916, %v8751
        %v8981 = vadd.f32 %v8917, %v8755
        %v8982 = vadd.f32 %v8918, %v8757
        %v8983 = vadd.f32 %v8919, %v8759
        %v8984 = vadd.f32 %v8920, %v8761
        %v8985 = vadd.f32 %v8921, %v8765
        %v8986 = vadd.f32 %v8922, %v8767
        %v8987 = vadd.f32 %v8923, %v8769
        %v8988 = vadd.f32 %v8924, %v8771
        %v8989 = vadd.f32 %v8925, %v8775
        %v8990 = vadd.f32 %v8926, %v8777
        %v8991 = vadd.f32 %v8927, %v8779
        %v8992 = vadd.f32 %v8928, %v8781
        %v8993 = vadd.f32 %v8929, %v8785
        %v8994 = vadd.f32 %v8930, %v8787
        %v8995 = vadd.f32 %v8931, %v8789
        %v8996 = vadd.f32 %v8932, %v8791
        %v8997 = vadd.f32 %v8933, %v8795
        %v8998 = vadd.f32 %v8934, %v8797
        %v8999 = vadd.f32 %v8935, %v8799
        %v9000 = vadd.f32 %v8936, %v8801
        %v9001 = vadd.f32 %v8937, %v8805
        %v9002 = vadd.f32 %v8938, %v8807
        %v9003 = vadd.f32 %v8939, %v8809
        %v9004 = vadd.f32 %v8940, %v8811
        %v9005 = vmax.f32 %v8941, 0.0
        %v9006 = vmax.f32 %v8942, 0.0
        %v9007 = vmax.f32 %v8943, 0.0
        %v9008 = vmax.f32 %v8944, 0.0
        %v9009 = vmax.f32 %v8945, 0.0
        %v9010 = vmax.f32 %v8946, 0.0
        %v9011 = vmax.f32 %v8947, 0.0
        %v9012 = vmax.f32 %v8948, 0.0
        %v9013 = vmax.f32 %v8949, 0.0
        %v9014 = vmax.f32 %v8950, 0.0
        %v9015 = vmax.f32 %v8951, 0.0
        %v9016 = vmax.f32 %v8952, 0.0
        %v9017 = vmax.f32 %v8953, 0.0
        %v9018 = vmax.f32 %v8954, 0.0
        %v9019 = vmax.f32 %v8955, 0.0
        %v9020 = vmax.f32 %v8956, 0.0
        %v9021 = vmax.f32 %v8957, 0.0
        %v9022 = vmax.f32 %v8958, 0.0
        %v9023 = vmax.f32 %v8959, 0.0
        %v9024 = vmax.f32 %v8960, 0.0
        %v9025 = vmax.f32 %v8961, 0.0
        %v9026 = vmax.f32 %v8962, 0.0
        %v9027 = vmax.f32 %v8963, 0.0
        %v9028 = vmax.f32 %v8964, 0.0
        %v9029 = vmax.f32 %v8965, 0.0
        %v9030 = vmax.f32 %v8966, 0.0
        %v9031 = vmax.f32 %v8967, 0.0
        %v9032 = vmax.f32 %v8968, 0.0
        %v9033 = vmax.f32 %v8969, 0.0
        %v9034 = vmax.f32 %v8970, 0.0
        %v9035 = vmax.f32 %v8971, 0.0
        %v9036 = vmax.f32 %v8972, 0.0
        %v9037 = vmax.f32 %v8973, 0.0
        %v9038 = vmax.f32 %v8974, 0.0
        %v9039 = vmax.f32 %v8975, 0.0
        %v9040 = vmax.f32 %v8976, 0.0
        %v9041 = vmax.f32 %v8977, 0.0
        %v9042 = vmax.f32 %v8978, 0.0
        %v9043 = vmax.f32 %v8979, 0.0
        %v9044 = vmax.f32 %v8980, 0.0
        %v9045 = vmax.f32 %v8981, 0.0
        %v9046 = vmax.f32 %v8982, 0.0
        %v9047 = vmax.f32 %v8983, 0.0
        %v9048 = vmax.f32 %v8984, 0.0
        %v9049 = vmax.f32 %v8985, 0.0
        %v9050 = vmax.f32 %v8986, 0.0
        %v9051 = vmax.f32 %v8987, 0.0
        %v9052 = vmax.f32 %v8988, 0.0
        %v9053 = vmax.f32 %v8989, 0.0
        %v9054 = vmax.f32 %v8990, 0.0
        %v9055 = vmax.f32 %v8991, 0.0
        %v9056 = vmax.f32 %v8992, 0.0
        %v9057 = vmax.f32 %v8993, 0.0
        %v9058 = vmax.f32 %v8994, 0.0
        %v9059 = vmax.f32 %v8995, 0.0
        %v9060 = vmax.f32 %v8996, 0.0
        %v9061 = vmax.f32 %v8997, 0.0
        %v9062 = vmax.f32 %v8998, 0.0
        %v9063 = vmax.f32 %v8999, 0.0
        %v9064 = vmax.f32 %v9000, 0.0
        %v9065 = vmax.f32 %v9001, 0.0
        %v9066 = vmax.f32 %v9002, 0.0
        %v9067 = vmax.f32 %v9003, 0.0
        %v9068 = vmax.f32 %v9004, 0.0
        %9069 = vst [vmem:[%s388] sm:$0xff] %v9005
        %9070 = vst [vmem:[%s388 + $0x8] sm:$0xff] %v9006
        %9071 = vst [vmem:[%s388 + $0x10] sm:$0xff] %v9007
        %9072 = vst [vmem:[%s388 + $0x18] sm:$0xff] %v9008
        %9073 = vst [vmem:[%s388 + $0x20] sm:$0xff] %v9009
        %9074 = vst [vmem:[%s388 + $0x28] sm:$0xff] %v9010
        %9075 = vst [vmem:[%s388 + $0x30] sm:$0xff] %v9011
        %9076 = vst [vmem:[%s388 + $0x38] sm:$0xff] %v9012
        %9077 = vst [vmem:[%s388 + $0x40] sm:$0xff] %v9013
        %9078 = vst [vmem:[%s388 + $0x48] sm:$0xff] %v9014
        %9079 = vst [vmem:[%s388 + $0x50] sm:$0xff] %v9015
        %9080 = vst [vmem:[%s388 + $0x58] sm:$0xff] %v9016
        %9081 = vst [vmem:[%s388 + $0x60] sm:$0xff] %v9017
        %9082 = vst [vmem:[%s388 + $0x68] sm:$0xff] %v9018
        %9083 = vst [vmem:[%s388 + $0x70] sm:$0xff] %v9019
        %9084 = vst [vmem:[%s388 + $0x78] sm:$0xff] %v9020
        %9085 = vst [vmem:[%s388 + $0x80] sm:$0xff] %v9021
        %9086 = vst [vmem:[%s388 + $0x88] sm:$0xff] %v9022
        %9087 = vst [vmem:[%s388 + $0x90] sm:$0xff] %v9023
        %9088 = vst [vmem:[%s388 + $0x98] sm:$0xff] %v9024
        %9089 = vst [vmem:[%s388 + $0xa0] sm:$0xff] %v9025
        %9090 = vst [vmem:[%s388 + $0xa8] sm:$0xff] %v9026
        %9091 = vst [vmem:[%s388 + $0xb0] sm:$0xff] %v9027
        %9092 = vst [vmem:[%s388 + $0xb8] sm:$0xff] %v9028
        %9093 = vst [vmem:[%s388 + $0xc0] sm:$0xff] %v9029
        %9094 = vst [vmem:[%s388 + $0xc8] sm:$0xff] %v9030
        %9095 = vst [vmem:[%s388 + $0xd0] sm:$0xff] %v9031
        %9096 = vst [vmem:[%s388 + $0xd8] sm:$0xff] %v9032
        %9097 = vst [vmem:[%s388 + $0xe0] sm:$0xff] %v9033
        %9098 = vst [vmem:[%s388 + $0xe8] sm:$0xff] %v9034
        %9099 = vst [vmem:[%s388 + $0xf0] sm:$0xff] %v9035
        %9100 = vst [vmem:[%s388 + $0xf8] sm:$0xff] %v9036
        %9101 = vst [vmem:[%s388 + $0x100] sm:$0xff] %v9037
        %9102 = vst [vmem:[%s388 + $0x108] sm:$0xff] %v9038
        %9103 = vst [vmem:[%s388 + $0x110] sm:$0xff] %v9039
        %9104 = vst [vmem:[%s388 + $0x118] sm:$0xff] %v9040
        %9105 = vst [vmem:[%s388 + $0x120] sm:$0xff] %v9041
        %9106 = vst [vmem:[%s388 + $0x128] sm:$0xff] %v9042
        %9107 = vst [vmem:[%s388 + $0x130] sm:$0xff] %v9043
        %9108 = vst [vmem:[%s388 + $0x138] sm:$0xff] %v9044
        %9109 = vst [vmem:[%s388 + $0x140] sm:$0xff] %v9045
        %9110 = vst [vmem:[%s388 + $0x148] sm:$0xff] %v9046
        %9111 = vst [vmem:[%s388 + $0x150] sm:$0xff] %v9047
        %9112 = vst [vmem:[%s388 + $0x158] sm:$0xff] %v9048
        %9113 = vst [vmem:[%s388 + $0x160] sm:$0xff] %v9049
        %9114 = vst [vmem:[%s388 + $0x168] sm:$0xff] %v9050
        %9115 = vst [vmem:[%s388 + $0x170] sm:$0xff] %v9051
        %9116 = vst [vmem:[%s388 + $0x178] sm:$0xff] %v9052
        %9117 = vst [vmem:[%s388 + $0x180] sm:$0xff] %v9053
        %9118 = vst [vmem:[%s388 + $0x188] sm:$0xff] %v9054
        %9119 = vst [vmem:[%s388 + $0x190] sm:$0xff] %v9055
        %9120 = vst [vmem:[%s388 + $0x198] sm:$0xff] %v9056
        %9121 = vst [vmem:[%s388 + $0x1a0] sm:$0xff] %v9057
        %9122 = vst [vmem:[%s388 + $0x1a8] sm:$0xff] %v9058
        %9123 = vst [vmem:[%s388 + $0x1b0] sm:$0xff] %v9059
        %9124 = vst [vmem:[%s388 + $0x1b8] sm:$0xff] %v9060
        %9125 = vst [vmem:[%s388 + $0x1c0] sm:$0xff] %v9061
        %9126 = vst [vmem:[%s388 + $0x1c8] sm:$0xff] %v9062
        %9127 = vst [vmem:[%s388 + $0x1d0] sm:$0xff] %v9063
        %9128 = vst [vmem:[%s388 + $0x1d8] sm:$0xff] %v9064
        %9129 = vst [vmem:[%s388 + $0x1e0] sm:$0xff] %v9065
        %9130 = vst [vmem:[%s388 + $0x1e8] sm:$0xff] %v9066
        %9131 = vst [vmem:[%s388 + $0x1f0] sm:$0xff] %v9067
        %9132 = vst [vmem:[%s388 + $0x1f8] sm:$0xff] %v9068
        %s9133 = sand.u32 %s227, 1
        %s9134 = scalar_lea.sflag [#allocation3], %s9133
        %s9135 = sand.u32 %s227, 1
        %s9136 = smul.addr %s9135, 512
        %s9137 = scalar_lea.vmem [#allocation2], %s9136
        // Predicated region
        $region49: #{sa_forward.3} parent=47 // pred_check
          %p9138 = pneg %p237
        $region50: #{sa_forward.3} parent=47 // pred_check_branch
          %9140 = sbr.rel (%p9138) target = $region52
        $region51: #{sa_forward.3} parent=47 // pred_region
          %s9141 = smul.u32 16, %s26
          %s9143 = ssub.s32 8192, 8192
          %9144 = vsyncadd %s9134, %s9143
          %s9145 = smul.addr %s9141, 4
          %s9146 = smul.addr %s25, 64
          %s9147 = sadd.s32 %s9145, %s9146
          %s9148 = smul.addr %s9147, 128
          %s9149 = scalar_lea.hbm %s7, %s9148
          %s9150 = sshll.u32 %s9137, 4
          %s9151 = int_to_ptr.vmem [resolvable:$true] %s9150
          %9156 = dma.vmem_to_hbm [thread:$0]  %s9151, 8192, %s9149, %s9134, 256, 256, 16
        $region52: #{sa_forward.3} parent=47 // pred_fallthru
          _
      $region48: #{sa_forward.3} parent=5 // pred_fallthru
        _
      %p9157 = scmp.le.s32.totalorder 2, %s16
      // Predicated region
      $region53: #{sa_forward.3} parent=5 // pred_check
        %p9158 = pneg %p9157
      $region54: #{sa_forward.3} parent=5 // pred_check_branch
        %9160 = sbr.rel (%p9158) target = $region56
      $region55: #{sa_forward.3} parent=5 // pred_region
        %s9161 = ssub.s32 %s16, 2
        // Predicated region
        $region57: #{sa_forward.3} parent=55 // pred_check
          %p9162 = pneg %p243
        $region58: #{sa_forward.3} parent=55 // pred_check_branch
          %9164 = sbr.rel (%p9162) target = $region60
        $region59: #{sa_forward.3} parent=55 // pred_region
          %s9165 = sand.u32 %s228, 1
          %s9166 = scalar_lea.sflag [#allocation3], %s9165
          %s9167 = sand.u32 %s228, 1
          %s9168 = smul.addr %s9167, 512
          %s9169 = scalar_lea.vmem [#allocation2], %s9168
          %9170 = dma.done %s9166, 8192
        $region60: #{sa_forward.3} parent=55 // pred_fallthru
          _
      $region56: #{sa_forward.3} parent=5 // pred_fallthru
        _
    $region6: #{sa_forward.3} parent=1 // loop_footer
      %s20 = sadd.s32 1, %s16
    $region7: #{sa_forward.3} parent=1 // loop_footer_branch
      %15 = sbr.rel target = $region3
    $region8: #{sa_forward.3} parent=1 // loop_exit
      _
    %9171 = vsyncpa [#allocation3], 1
    %s9172 = scalar_lea.sflag [#allocation3], 1
    %9173 = vsyncpa %s9172, 1

</llo_original>
